<compile_context>
chip_gen: v7x
topology: tpu7x:2x2x1
jax: 0.10.0
libtpu: 0.0.40
codegen_flags: <defaults>
</compile_context>

<pallas_src>
import functools
import math

import jax
import jax.numpy as jnp
from jax import lax
from jax.experimental import pallas as pl
from jax.experimental.pallas import tpu as pltpu

EPS = 1e-5  # nn.LayerNorm default eps


# ----------------------------------------------------------------------------
# in-kernel helpers
# ----------------------------------------------------------------------------
def _layernorm(x, g, b):
    mu = jnp.mean(x, axis=-1, keepdims=True)
    var = jnp.mean((x - mu) ** 2, axis=-1, keepdims=True)
    return (x - mu) * lax.rsqrt(var + EPS) * g + b


def _gelu_exact(x):
    # nn.GELU() default (exact, erf-based)
    return x * 0.5 * (1.0 + lax.erf(x * 0.7071067811865476))


# ----------------------------------------------------------------------------
# Fused Transformer stack kernel:
#   for layer in range(depth): x += MHSA(LN(x)); x += MLP(LN(x))
#   return LN_final(x)
# One grid step == S full sequences through all layers.  Weights VMEM-resident.
# ----------------------------------------------------------------------------
def transformer_stack_kernel(x_ref, ln1_g, ln1_b, wq, wk, wv, wo, bo,
                             ln2_g, ln2_b, w1, b1, w2, b2,
                             norm_g, norm_b, o_ref):
    depth, heads, _dim, dim_head = wq.shape
    S, N, D = x_ref.shape
    scale = dim_head ** -0.5
    f32 = jnp.float32

    def bcast(w):
        # Weights carry no sequence axis; give them one so every matmul is the
        # supported single-batch-dim batched form (no rank-4 / multi-free dots).
        return jnp.broadcast_to(w, (S,) + w.shape)

    def layer_body(layer, x):
        # ---- PreNorm + multi-head self-attention ----
        h = _layernorm(x, ln1_g[layer], ln1_b[layer])               # (S,N,D)
        wq_l, wk_l, wv_l, wo_l = wq[layer], wk[layer], wv[layer], wo[layer]
        attn = jnp.zeros((S, N, D), f32)
        for hh in range(heads):            # heads static & small; all slicing
            q = jnp.einsum('snd,sdk->snk', h, bcast(wq_l[hh]),      # is on
                           preferred_element_type=f32)              # leading
            k = jnp.einsum('snd,sdk->snk', h, bcast(wk_l[hh]),      # axes at
                           preferred_element_type=f32)              # lane 0
            v = jnp.einsum('snd,sdk->snk', h, bcast(wv_l[hh]),
                           preferred_element_type=f32)
            dots = jnp.einsum('sik,sjk->sij', q, k,
                              preferred_element_type=f32) * scale
            dots = dots - jnp.max(dots, axis=-1, keepdims=True)
            p = jnp.exp(dots)
            p = p / jnp.sum(p, axis=-1, keepdims=True)   # exact div (parity)
            av = jnp.einsum('sij,sjk->sik', p, v, preferred_element_type=f32)
            # fold this head straight through its slice of W_o (no concat)
            attn = attn + jnp.einsum('snk,skd->snd', av, bcast(wo_l[hh]),
                                     preferred_element_type=f32)
        x = x + attn + bo[layer]

        # ---- PreNorm + MLP (Linear -> GELU -> Linear) ----
        h2 = _layernorm(x, ln2_g[layer], ln2_b[layer])
        mid = jnp.einsum('snd,sdm->snm', h2, bcast(w1[layer]),
                         preferred_element_type=f32) + b1[layer]
        mid = _gelu_exact(mid)
        x = x + jnp.einsum('snm,smd->snd', mid, bcast(w2[layer]),
                           preferred_element_type=f32) + b2[layer]
        return x

    x = x_ref[...].astype(f32)
    if depth <= 4:
        for layer in range(depth):          # static unroll at small depth
            x = layer_body(layer, x)
    else:
        x = lax.fori_loop(0, depth, layer_body, x)   # bounded live ranges

    # trailing LayerNorm (Transformer.norm), fused into the same call
    o_ref[...] = _layernorm(x, norm_g[...], norm_b[...]).astype(o_ref.dtype)


def _seqs_per_step(B):
    # Batch sequences per grid step to amortize per-step overhead; keep 2 grid
    # steps when B allows so both v7x TensorCores get work.
    if B > 2 and B % 2 == 0:
        return B // 2
    return B


def transformer_stack(x, tf):
    B, N, D = x.shape
    S = _seqs_per_step(B)
    grid_b = B // S
    names = ("ln1_g", "ln1_b", "wq", "wk", "wv", "wo", "bo",
             "ln2_g", "ln2_b", "w1", "b1", "w2", "b2",
             "norm_g", "norm_b")
    weights = [tf[n] for n in names]
    w_specs = [pl.BlockSpec(w.shape, lambda b, nd=w.ndim: (0,) * nd)
               for w in weights]
    # Explicit VMEM budget: default double-buffered weights + activation blocks
    # (+slack); generous floor so it never under-allocates at these sizes.
    w_bytes = sum(int(w.size) * w.dtype.itemsize for w in weights)
    blk_bytes = S * N * D * x.dtype.itemsize
    vmem_limit = int(min(100 << 20,
                         max(32 << 20, 2 * w_bytes + 4 * blk_bytes + (4 << 20))))
    return pl.pallas_call(
        transformer_stack_kernel,
        out_shape=jax.ShapeDtypeStruct((B, N, D), x.dtype),
        grid=(grid_b,),
        in_specs=[pl.BlockSpec((S, N, D), lambda b: (b, 0, 0))] + w_specs,
        out_specs=pl.BlockSpec((S, N, D), lambda b: (b, 0, 0)),
        compiler_params=pltpu.CompilerParams(
            dimension_semantics=("parallel",),
            vmem_limit_bytes=vmem_limit),
    )(x, *weights)


# ----------------------------------------------------------------------------
# Glue (plain JAX inside the jit; XLA fuses these micro ops — per perf review)
# ----------------------------------------------------------------------------
def nearest_resize(x, out_sizes, axes):
    # matches torch F.interpolate mode='nearest' (floor index)
    for ax, out in zip(axes, out_sizes):
        n_in = x.shape[ax]
        idx = jnp.minimum((jnp.arange(out) * n_in) // out, n_in - 1)
        x = jnp.take(x, idx, axis=ax)
    return x


def conv3x3(x, w, b):
    out = lax.conv_general_dilated(
        x, w, window_strides=(1, 1), padding=((1, 1), (1, 1)),
        dimension_numbers=("NCHW", "OIHW", "NCHW"))
    return out + b.reshape(1, -1, 1, 1)


# ----------------------------------------------------------------------------
# Parameter init (deterministic, synthetic); per-layer weights pre-stacked on a
# leading `depth` axis, per-head projections on a `heads` axis.
# ----------------------------------------------------------------------------
class KeyGen:
    def __init__(self, key):
        self.key = key

    def __call__(self):
        self.key, sub = jax.random.split(self.key)
        return sub


def init_transformer(kg, dim, depth, heads, mlp_dim):
    dim_head = dim // heads

    def nrm(shape):
        return 0.02 * jax.random.normal(kg(), shape, jnp.float32)

    return dict(
        ln1_g=jnp.ones((depth, 1, dim), jnp.float32),
        ln1_b=jnp.zeros((depth, 1, dim), jnp.float32),
        wq=nrm((depth, heads, dim, dim_head)),
        wk=nrm((depth, heads, dim, dim_head)),
        wv=nrm((depth, heads, dim, dim_head)),
        wo=nrm((depth, heads, dim_head, dim)),
        bo=nrm((depth, 1, dim)),
        ln2_g=jnp.ones((depth, 1, dim), jnp.float32),
        ln2_b=jnp.zeros((depth, 1, dim), jnp.float32),
        w1=nrm((depth, dim, mlp_dim)),
        b1=nrm((depth, 1, mlp_dim)),
        w2=nrm((depth, mlp_dim, dim)),
        b2=nrm((depth, 1, dim)),
        norm_g=jnp.ones((1, dim), jnp.float32),
        norm_b=jnp.zeros((1, dim), jnp.float32),
    )


def init_params(seed, cfg):
    kg = KeyGen(jax.random.PRNGKey(seed))
    dim, p, C = cfg["dim"], cfg["patch_size"], cfg["in_channels"]
    n = (cfg["int_image_size"] // p) ** 2
    patch_dim = C * p * p
    mlp_dim = dim * cfg["scale_dim"]
    Tp = cfg["num_predictions"]
    return dict(
        patch_w=0.02 * jax.random.normal(kg(), (patch_dim, dim), jnp.float32),
        patch_b=0.02 * jax.random.normal(kg(), (1, dim), jnp.float32),
        pos_embedding=jax.random.normal(kg(), (1, cfg["num_frames"], n + 1, dim),
                                        jnp.float32),
        space_token=jax.random.normal(kg(), (1, 1, dim), jnp.float32),
        temporal_token=jax.random.normal(kg(), (1, 1, dim), jnp.float32),
        space_tf=init_transformer(kg, dim, cfg["depth"], cfg["heads"], mlp_dim),
        temporal_tf=init_transformer(kg, dim, cfg["depth"], cfg["heads"], mlp_dim),
        time_pred_w=0.02 * jax.random.normal(kg(), (dim, Tp * dim), jnp.float32),
        time_pred_b=0.02 * jax.random.normal(kg(), (1, Tp * dim), jnp.float32),
        conv_w=0.02 * jax.random.normal(kg(), (Tp, Tp, 3, 3), jnp.float32),
        conv_b=0.02 * jax.random.normal(kg(), (Tp,), jnp.float32),
    )


# ----------------------------------------------------------------------------
# ViViT forward (dropout = 0 -> identity; pool='cls')
# ----------------------------------------------------------------------------
def vivit_forward(x, params, cfg):
    C, Simg = cfg["in_channels"], cfg["int_image_size"]
    p, dim = cfg["patch_size"], cfg["dim"]
    Tp, img = cfg["num_predictions"], cfg["image_size"]

    b, t = x.shape[0], x.shape[1]

    # F.interpolate(x, size=(C, S, S), mode='nearest')
    x = nearest_resize(x, (C, Simg, Simg), (2, 3, 4))

    # Rearrange 'b t c (h p1) (w p2) -> b t (h w) (p1 p2 c)' + Linear(patch_dim, dim)
    h = Simg // p
    x = x.reshape(b, t, C, h, p, h, p)
    x = jnp.transpose(x, (0, 1, 3, 5, 4, 6, 2))            # b t h w p1 p2 c
    n = h * h
    patch_dim = p * p * C
    x = x.reshape(b, t, n, patch_dim)
    x = jnp.dot(x, params["patch_w"]) + params["patch_b"]  # (b, t, n, dim)

    # cls space token + pos embedding
    cls_sp = jnp.broadcast_to(params["space_token"], (b, t, 1, dim))
    x = jnp.concatenate([cls_sp, x], axis=2)
    x = x + params["pos_embedding"][:, :, :n + 1]

    # space transformer over (b*t, n+1, dim) — one fused pallas_call
    x = x.reshape(b * t, n + 1, dim)
    x = transformer_stack(x, params["space_tf"])

    # temporal transformer over (b, t+1, dim) — one fused pallas_call
    x = x[:, 0].reshape(b, t, dim)
    cls_tm = jnp.broadcast_to(params["temporal_token"], (b, 1, dim))
    x = jnp.concatenate([cls_tm, x], axis=1)
    x = transformer_stack(x, params["temporal_tf"])
    x = x[:, 0, :]                                          # (b, dim)

    # time prediction head
    x = jnp.dot(x, params["time_pred_w"]) + params["time_pred_b"]  # (b, Tp*dim)
    s = int(math.isqrt(dim))
    x = x.reshape(b, Tp, s, s)

    # nearest upsample to (image_size, image_size), 3x3 conv, unsqueeze(2)
    x = nearest_resize(x, (img, img), (2, 3))
    x = conv3x3(x, params["conv_w"], params["conv_b"])
    out = x[:, :, None, :, :]
    # TODO(synk): use_deltas=True branch not implemented (default False; the
    # original in-place delta loop indexes dim 2 out of range after unsqueeze).
    return out


if __name__ == "__main__":
    cfg = dict(image_size=12, int_image_size=16, patch_size=8,
               num_predictions=4, num_frames=2, dim=16, depth=2,
               heads=2, in_channels=3, scale_dim=4)
    params = init_params(0, cfg)
    x = jax.random.normal(jax.random.PRNGKey(0),
                          (2, cfg["num_frames"], 3, 12, 12), jnp.float32)

    fwd = jax.jit(lambda xx, pp: vivit_forward(xx, pp, cfg))
    out = jax.block_until_ready(fwd(x, params))
    assert out.shape == (2, cfg["num_predictions"], 1,
                         cfg["image_size"], cfg["image_size"]), out.shape
    assert bool(jnp.all(jnp.isfinite(out)))
    print("KERNEL_OK")
</pallas_src>

<mosaic_0001>
module attributes {stable_mosaic.version = 11 : i64} {
  func.func @transformer_stack_kernel(%arg0: i32, %arg1: memref<2x3x16xf32, #tpu.memory_space<vmem>>, %arg2: memref<2x1x16xf32, #tpu.memory_space<vmem>>, %arg3: memref<2x1x16xf32, #tpu.memory_space<vmem>>, %arg4: memref<2x2x16x8xf32, #tpu.memory_space<vmem>>, %arg5: memref<2x2x16x8xf32, #tpu.memory_space<vmem>>, %arg6: memref<2x2x16x8xf32, #tpu.memory_space<vmem>>, %arg7: memref<2x2x8x16xf32, #tpu.memory_space<vmem>>, %arg8: memref<2x1x16xf32, #tpu.memory_space<vmem>>, %arg9: memref<2x1x16xf32, #tpu.memory_space<vmem>>, %arg10: memref<2x1x16xf32, #tpu.memory_space<vmem>>, %arg11: memref<2x16x64xf32, #tpu.memory_space<vmem>>, %arg12: memref<2x1x64xf32, #tpu.memory_space<vmem>>, %arg13: memref<2x64x16xf32, #tpu.memory_space<vmem>>, %arg14: memref<2x1x16xf32, #tpu.memory_space<vmem>>, %arg15: memref<1x16xf32, #tpu.memory_space<vmem>>, %arg16: memref<1x16xf32, #tpu.memory_space<vmem>>, %arg17: memref<2x3x16xf32, #tpu.memory_space<vmem>>) attributes {dimension_semantics = [#tpu.dimension_semantics<parallel>], iteration_bounds = array<i64: 1>, scalar_prefetch = 0 : i64, scratch_operands = 0 : i64, tpu.core_type = #tpu.core_type<tc>, window_params = [{transform_indices = @transform_0, window_bounds = array<i64: 2, 3, 16>}, {pipeline_mode = #tpu.pipeline_mode<synchronous>, transform_indices = @transform_1, window_bounds = array<i64: 2, 1, 16>}, {pipeline_mode = #tpu.pipeline_mode<synchronous>, transform_indices = @transform_2, window_bounds = array<i64: 2, 1, 16>}, {pipeline_mode = #tpu.pipeline_mode<synchronous>, transform_indices = @transform_3, window_bounds = array<i64: 2, 2, 16, 8>}, {pipeline_mode = #tpu.pipeline_mode<synchronous>, transform_indices = @transform_4, window_bounds = array<i64: 2, 2, 16, 8>}, {pipeline_mode = #tpu.pipeline_mode<synchronous>, transform_indices = @transform_5, window_bounds = array<i64: 2, 2, 16, 8>}, {pipeline_mode = #tpu.pipeline_mode<synchronous>, transform_indices = @transform_6, window_bounds = array<i64: 2, 2, 8, 16>}, {pipeline_mode = #tpu.pipeline_mode<synchronous>, transform_indices = @transform_7, window_bounds = array<i64: 2, 1, 16>}, {pipeline_mode = #tpu.pipeline_mode<synchronous>, transform_indices = @transform_8, window_bounds = array<i64: 2, 1, 16>}, {pipeline_mode = #tpu.pipeline_mode<synchronous>, transform_indices = @transform_9, window_bounds = array<i64: 2, 1, 16>}, {pipeline_mode = #tpu.pipeline_mode<synchronous>, transform_indices = @transform_10, window_bounds = array<i64: 2, 16, 64>}, {pipeline_mode = #tpu.pipeline_mode<synchronous>, transform_indices = @transform_11, window_bounds = array<i64: 2, 1, 64>}, {pipeline_mode = #tpu.pipeline_mode<synchronous>, transform_indices = @transform_12, window_bounds = array<i64: 2, 64, 16>}, {pipeline_mode = #tpu.pipeline_mode<synchronous>, transform_indices = @transform_13, window_bounds = array<i64: 2, 1, 16>}, {pipeline_mode = #tpu.pipeline_mode<synchronous>, transform_indices = @transform_14, window_bounds = array<i64: 1, 16>}, {pipeline_mode = #tpu.pipeline_mode<synchronous>, transform_indices = @transform_15, window_bounds = array<i64: 1, 16>}, {transform_indices = @transform_16, window_bounds = array<i64: 2, 3, 16>}]} {
    %c0 = arith.constant 0 : index
    %c0_0 = arith.constant 0 : index
    %c0_1 = arith.constant 0 : index
    %0 = vector.load %arg1[%c0, %c0_0, %c0_1] : memref<2x3x16xf32, #tpu.memory_space<vmem>>, vector<2x3x16xf32>
    %c0_2 = arith.constant 0 : index
    %c0_3 = arith.constant 0 : index
    %c0_4 = arith.constant 0 : index
    %1 = vector.load %arg2[%c0_2, %c0_3, %c0_4] : memref<2x1x16xf32, #tpu.memory_space<vmem>>, vector<1x1x16xf32>
    %2 = vector.shape_cast %1 : vector<1x1x16xf32> to vector<1x16xf32>
    %c0_5 = arith.constant 0 : index
    %c0_6 = arith.constant 0 : index
    %c0_7 = arith.constant 0 : index
    %3 = vector.load %arg3[%c0_5, %c0_6, %c0_7] : memref<2x1x16xf32, #tpu.memory_space<vmem>>, vector<1x1x16xf32>
    %4 = vector.shape_cast %3 : vector<1x1x16xf32> to vector<1x16xf32>
    %cst = arith.constant dense<0.000000e+00> : vector<2x3xf32>
    %5 = vector.multi_reduction <add>, %0, %cst [2] : vector<2x3x16xf32> to vector<2x3xf32>
    %6 = vector.shape_cast %5 : vector<2x3xf32> to vector<2x3x1xf32>
    %cst_8 = arith.constant 1.600000e+01 : f32
    %7 = vector.broadcast %cst_8 : f32 to vector<2x3x1xf32>
    %8 = arith.divf %6, %7 : vector<2x3x1xf32>
    %9 = vector.broadcast %8 : vector<2x3x1xf32> to vector<2x3x16xf32>
    %10 = arith.subf %0, %9 : vector<2x3x16xf32>
    %11 = arith.mulf %10, %10 : vector<2x3x16xf32>
    %cst_9 = arith.constant dense<0.000000e+00> : vector<2x3xf32>
    %12 = vector.multi_reduction <add>, %11, %cst_9 [2] : vector<2x3x16xf32> to vector<2x3xf32>
    %13 = vector.shape_cast %12 : vector<2x3xf32> to vector<2x3x1xf32>
    %cst_10 = arith.constant 1.600000e+01 : f32
    %14 = vector.broadcast %cst_10 : f32 to vector<2x3x1xf32>
    %15 = arith.divf %13, %14 : vector<2x3x1xf32>
    %16 = vector.broadcast %8 : vector<2x3x1xf32> to vector<2x3x16xf32>
    %17 = arith.subf %0, %16 : vector<2x3x16xf32>
    %cst_11 = arith.constant 9.99999974E-6 : f32
    %18 = vector.broadcast %cst_11 : f32 to vector<2x3x1xf32>
    %19 = arith.addf %15, %18 : vector<2x3x1xf32>
    %20 = math.rsqrt %19 : vector<2x3x1xf32>
    %21 = vector.broadcast %20 : vector<2x3x1xf32> to vector<2x3x16xf32>
    %22 = arith.mulf %17, %21 : vector<2x3x16xf32>
    %23 = vector.shape_cast %2 : vector<1x16xf32> to vector<1x1x16xf32>
    %24 = vector.broadcast %23 : vector<1x1x16xf32> to vector<2x3x16xf32>
    %25 = arith.mulf %22, %24 : vector<2x3x16xf32>
    %26 = vector.shape_cast %4 : vector<1x16xf32> to vector<1x1x16xf32>
    %27 = vector.broadcast %26 : vector<1x1x16xf32> to vector<2x3x16xf32>
    %28 = arith.addf %25, %27 : vector<2x3x16xf32>
    %c0_12 = arith.constant 0 : index
    %c0_13 = arith.constant 0 : index
    %c0_14 = arith.constant 0 : index
    %c0_15 = arith.constant 0 : index
    %29 = vector.load %arg4[%c0_12, %c0_13, %c0_14, %c0_15] : memref<2x2x16x8xf32, #tpu.memory_space<vmem>>, vector<1x2x16x8xf32>
    %30 = vector.shape_cast %29 : vector<1x2x16x8xf32> to vector<2x16x8xf32>
    %c0_16 = arith.constant 0 : index
    %c0_17 = arith.constant 0 : index
    %c0_18 = arith.constant 0 : index
    %c0_19 = arith.constant 0 : index
    %31 = vector.load %arg5[%c0_16, %c0_17, %c0_18, %c0_19] : memref<2x2x16x8xf32, #tpu.memory_space<vmem>>, vector<1x2x16x8xf32>
    %32 = vector.shape_cast %31 : vector<1x2x16x8xf32> to vector<2x16x8xf32>
    %c0_20 = arith.constant 0 : index
    %c0_21 = arith.constant 0 : index
    %c0_22 = arith.constant 0 : index
    %c0_23 = arith.constant 0 : index
    %33 = vector.load %arg6[%c0_20, %c0_21, %c0_22, %c0_23] : memref<2x2x16x8xf32, #tpu.memory_space<vmem>>, vector<1x2x16x8xf32>
    %34 = vector.shape_cast %33 : vector<1x2x16x8xf32> to vector<2x16x8xf32>
    %c0_24 = arith.constant 0 : index
    %c0_25 = arith.constant 0 : index
    %c0_26 = arith.constant 0 : index
    %c0_27 = arith.constant 0 : index
    %35 = vector.load %arg7[%c0_24, %c0_25, %c0_26, %c0_27] : memref<2x2x8x16xf32, #tpu.memory_space<vmem>>, vector<1x2x8x16xf32>
    %36 = vector.shape_cast %35 : vector<1x2x8x16xf32> to vector<2x8x16xf32>
    %cst_28 = arith.constant 0.000000e+00 : f32
    %37 = vector.broadcast %cst_28 : f32 to vector<2x3x16xf32>
    %38 = vector.extract_strided_slice %30 {offsets = [0, 0, 0], sizes = [1, 16, 8], strides = [1, 1, 1]} : vector<2x16x8xf32> to vector<1x16x8xf32>
    %39 = vector.shape_cast %38 : vector<1x16x8xf32> to vector<16x8xf32>
    %40 = vector.shape_cast %39 : vector<16x8xf32> to vector<1x16x8xf32>
    %41 = vector.broadcast %40 : vector<1x16x8xf32> to vector<2x16x8xf32>
    "tpu.trace_start"() <{level = 10 : i32, message = "snd,sdk->snk"}> : () -> ()
    %cst_29 = arith.constant dense<0.000000e+00> : vector<2x3x8xf32>
    %42 = tpu.matmul %28, %41, %cst_29 {dimension_numbers = #tpu.dot_dimension_numbers<[2], [1], [1], [2], [0, 0, 0, 1, 1, 2], [0], [0]>} : vector<2x3x16xf32>, vector<2x16x8xf32>, vector<2x3x8xf32> -> vector<2x3x8xf32>
    "tpu.trace_stop"() : () -> ()
    %43 = vector.extract_strided_slice %32 {offsets = [0, 0, 0], sizes = [1, 16, 8], strides = [1, 1, 1]} : vector<2x16x8xf32> to vector<1x16x8xf32>
    %44 = vector.shape_cast %43 : vector<1x16x8xf32> to vector<16x8xf32>
    %45 = vector.shape_cast %44 : vector<16x8xf32> to vector<1x16x8xf32>
    %46 = vector.broadcast %45 : vector<1x16x8xf32> to vector<2x16x8xf32>
    "tpu.trace_start"() <{level = 10 : i32, message = "snd,sdk->snk"}> : () -> ()
    %cst_30 = arith.constant dense<0.000000e+00> : vector<2x3x8xf32>
    %47 = tpu.matmul %28, %46, %cst_30 {dimension_numbers = #tpu.dot_dimension_numbers<[2], [1], [1], [2], [0, 0, 0, 1, 1, 2], [0], [0]>} : vector<2x3x16xf32>, vector<2x16x8xf32>, vector<2x3x8xf32> -> vector<2x3x8xf32>
    "tpu.trace_stop"() : () -> ()
    %48 = vector.extract_strided_slice %34 {offsets = [0, 0, 0], sizes = [1, 16, 8], strides = [1, 1, 1]} : vector<2x16x8xf32> to vector<1x16x8xf32>
    %49 = vector.shape_cast %48 : vector<1x16x8xf32> to vector<16x8xf32>
    %50 = vector.shape_cast %49 : vector<16x8xf32> to vector<1x16x8xf32>
    %51 = vector.broadcast %50 : vector<1x16x8xf32> to vector<2x16x8xf32>
    "tpu.trace_start"() <{level = 10 : i32, message = "snd,sdk->snk"}> : () -> ()
    %cst_31 = arith.constant dense<0.000000e+00> : vector<2x3x8xf32>
    %52 = tpu.matmul %28, %51, %cst_31 {dimension_numbers = #tpu.dot_dimension_numbers<[2], [1], [1], [2], [0, 0, 0, 1, 1, 2], [0], [0]>} : vector<2x3x16xf32>, vector<2x16x8xf32>, vector<2x3x8xf32> -> vector<2x3x8xf32>
    "tpu.trace_stop"() : () -> ()
    "tpu.trace_start"() <{level = 10 : i32, message = "sik,sjk->sij"}> : () -> ()
    %cst_32 = arith.constant dense<0.000000e+00> : vector<2x3x3xf32>
    %53 = tpu.matmul %42, %47, %cst_32 {dimension_numbers = #tpu.dot_dimension_numbers<[2], [2], [1], [1], [0, 0, 0, 1, 1, 1], [0], [0]>} : vector<2x3x8xf32>, vector<2x3x8xf32>, vector<2x3x3xf32> -> vector<2x3x3xf32>
    "tpu.trace_stop"() : () -> ()
    %cst_33 = arith.constant 0.353553385 : f32
    %54 = vector.broadcast %cst_33 : f32 to vector<2x3x3xf32>
    %55 = arith.mulf %53, %54 : vector<2x3x3xf32>
    %cst_34 = arith.constant dense<0xFF800000> : vector<2x3xf32>
    %56 = vector.multi_reduction <maximumf>, %55, %cst_34 [2] : vector<2x3x3xf32> to vector<2x3xf32>
    %57 = vector.shape_cast %56 : vector<2x3xf32> to vector<2x3x1xf32>
    %58 = vector.broadcast %57 : vector<2x3x1xf32> to vector<2x3x3xf32>
    %59 = arith.subf %55, %58 : vector<2x3x3xf32>
    %60 = math.exp %59 : vector<2x3x3xf32>
    %cst_35 = arith.constant dense<0.000000e+00> : vector<2x3xf32>
    %61 = vector.multi_reduction <add>, %60, %cst_35 [2] : vector<2x3x3xf32> to vector<2x3xf32>
    %62 = vector.shape_cast %61 : vector<2x3xf32> to vector<2x3x1xf32>
    %63 = vector.broadcast %62 : vector<2x3x1xf32> to vector<2x3x3xf32>
    %64 = arith.divf %60, %63 : vector<2x3x3xf32>
    "tpu.trace_start"() <{level = 10 : i32, message = "sij,sjk->sik"}> : () -> ()
    %cst_36 = arith.constant dense<0.000000e+00> : vector<2x3x8xf32>
    %65 = tpu.matmul %64, %52, %cst_36 {dimension_numbers = #tpu.dot_dimension_numbers<[2], [1], [1], [2], [0, 0, 0, 1, 1, 2], [0], [0]>} : vector<2x3x3xf32>, vector<2x3x8xf32>, vector<2x3x8xf32> -> vector<2x3x8xf32>
    "tpu.trace_stop"() : () -> ()
    %66 = vector.extract_strided_slice %36 {offsets = [0, 0, 0], sizes = [1, 8, 16], strides = [1, 1, 1]} : vector<2x8x16xf32> to vector<1x8x16xf32>
    %67 = vector.shape_cast %66 : vector<1x8x16xf32> to vector<8x16xf32>
    %68 = vector.shape_cast %67 : vector<8x16xf32> to vector<1x8x16xf32>
    %69 = vector.broadcast %68 : vector<1x8x16xf32> to vector<2x8x16xf32>
    "tpu.trace_start"() <{level = 10 : i32, message = "snk,skd->snd"}> : () -> ()
    %cst_37 = arith.constant dense<0.000000e+00> : vector<2x3x16xf32>
    %70 = tpu.matmul %65, %69, %cst_37 {dimension_numbers = #tpu.dot_dimension_numbers<[2], [1], [1], [2], [0, 0, 0, 1, 1, 2], [0], [0]>} : vector<2x3x8xf32>, vector<2x8x16xf32>, vector<2x3x16xf32> -> vector<2x3x16xf32>
    "tpu.trace_stop"() : () -> ()
    %71 = arith.addf %37, %70 : vector<2x3x16xf32>
    %72 = vector.extract_strided_slice %30 {offsets = [1, 0, 0], sizes = [1, 16, 8], strides = [1, 1, 1]} : vector<2x16x8xf32> to vector<1x16x8xf32>
    %73 = vector.shape_cast %72 : vector<1x16x8xf32> to vector<16x8xf32>
    %74 = vector.shape_cast %73 : vector<16x8xf32> to vector<1x16x8xf32>
    %75 = vector.broadcast %74 : vector<1x16x8xf32> to vector<2x16x8xf32>
    "tpu.trace_start"() <{level = 10 : i32, message = "snd,sdk->snk"}> : () -> ()
    %cst_38 = arith.constant dense<0.000000e+00> : vector<2x3x8xf32>
    %76 = tpu.matmul %28, %75, %cst_38 {dimension_numbers = #tpu.dot_dimension_numbers<[2], [1], [1], [2], [0, 0, 0, 1, 1, 2], [0], [0]>} : vector<2x3x16xf32>, vector<2x16x8xf32>, vector<2x3x8xf32> -> vector<2x3x8xf32>
    "tpu.trace_stop"() : () -> ()
    %77 = vector.extract_strided_slice %32 {offsets = [1, 0, 0], sizes = [1, 16, 8], strides = [1, 1, 1]} : vector<2x16x8xf32> to vector<1x16x8xf32>
    %78 = vector.shape_cast %77 : vector<1x16x8xf32> to vector<16x8xf32>
    %79 = vector.shape_cast %78 : vector<16x8xf32> to vector<1x16x8xf32>
    %80 = vector.broadcast %79 : vector<1x16x8xf32> to vector<2x16x8xf32>
    "tpu.trace_start"() <{level = 10 : i32, message = "snd,sdk->snk"}> : () -> ()
    %cst_39 = arith.constant dense<0.000000e+00> : vector<2x3x8xf32>
    %81 = tpu.matmul %28, %80, %cst_39 {dimension_numbers = #tpu.dot_dimension_numbers<[2], [1], [1], [2], [0, 0, 0, 1, 1, 2], [0], [0]>} : vector<2x3x16xf32>, vector<2x16x8xf32>, vector<2x3x8xf32> -> vector<2x3x8xf32>
    "tpu.trace_stop"() : () -> ()
    %82 = vector.extract_strided_slice %34 {offsets = [1, 0, 0], sizes = [1, 16, 8], strides = [1, 1, 1]} : vector<2x16x8xf32> to vector<1x16x8xf32>
    %83 = vector.shape_cast %82 : vector<1x16x8xf32> to vector<16x8xf32>
    %84 = vector.shape_cast %83 : vector<16x8xf32> to vector<1x16x8xf32>
    %85 = vector.broadcast %84 : vector<1x16x8xf32> to vector<2x16x8xf32>
    "tpu.trace_start"() <{level = 10 : i32, message = "snd,sdk->snk"}> : () -> ()
    %cst_40 = arith.constant dense<0.000000e+00> : vector<2x3x8xf32>
    %86 = tpu.matmul %28, %85, %cst_40 {dimension_numbers = #tpu.dot_dimension_numbers<[2], [1], [1], [2], [0, 0, 0, 1, 1, 2], [0], [0]>} : vector<2x3x16xf32>, vector<2x16x8xf32>, vector<2x3x8xf32> -> vector<2x3x8xf32>
    "tpu.trace_stop"() : () -> ()
    "tpu.trace_start"() <{level = 10 : i32, message = "sik,sjk->sij"}> : () -> ()
    %cst_41 = arith.constant dense<0.000000e+00> : vector<2x3x3xf32>
    %87 = tpu.matmul %76, %81, %cst_41 {dimension_numbers = #tpu.dot_dimension_numbers<[2], [2], [1], [1], [0, 0, 0, 1, 1, 1], [0], [0]>} : vector<2x3x8xf32>, vector<2x3x8xf32>, vector<2x3x3xf32> -> vector<2x3x3xf32>
    "tpu.trace_stop"() : () -> ()
    %cst_42 = arith.constant 0.353553385 : f32
    %88 = vector.broadcast %cst_42 : f32 to vector<2x3x3xf32>
    %89 = arith.mulf %87, %88 : vector<2x3x3xf32>
    %cst_43 = arith.constant dense<0xFF800000> : vector<2x3xf32>
    %90 = vector.multi_reduction <maximumf>, %89, %cst_43 [2] : vector<2x3x3xf32> to vector<2x3xf32>
    %91 = vector.shape_cast %90 : vector<2x3xf32> to vector<2x3x1xf32>
    %92 = vector.broadcast %91 : vector<2x3x1xf32> to vector<2x3x3xf32>
    %93 = arith.subf %89, %92 : vector<2x3x3xf32>
    %94 = math.exp %93 : vector<2x3x3xf32>
    %cst_44 = arith.constant dense<0.000000e+00> : vector<2x3xf32>
    %95 = vector.multi_reduction <add>, %94, %cst_44 [2] : vector<2x3x3xf32> to vector<2x3xf32>
    %96 = vector.shape_cast %95 : vector<2x3xf32> to vector<2x3x1xf32>
    %97 = vector.broadcast %96 : vector<2x3x1xf32> to vector<2x3x3xf32>
    %98 = arith.divf %94, %97 : vector<2x3x3xf32>
    "tpu.trace_start"() <{level = 10 : i32, message = "sij,sjk->sik"}> : () -> ()
    %cst_45 = arith.constant dense<0.000000e+00> : vector<2x3x8xf32>
    %99 = tpu.matmul %98, %86, %cst_45 {dimension_numbers = #tpu.dot_dimension_numbers<[2], [1], [1], [2], [0, 0, 0, 1, 1, 2], [0], [0]>} : vector<2x3x3xf32>, vector<2x3x8xf32>, vector<2x3x8xf32> -> vector<2x3x8xf32>
    "tpu.trace_stop"() : () -> ()
    %100 = vector.extract_strided_slice %36 {offsets = [1, 0, 0], sizes = [1, 8, 16], strides = [1, 1, 1]} : vector<2x8x16xf32> to vector<1x8x16xf32>
    %101 = vector.shape_cast %100 : vector<1x8x16xf32> to vector<8x16xf32>
    %102 = vector.shape_cast %101 : vector<8x16xf32> to vector<1x8x16xf32>
    %103 = vector.broadcast %102 : vector<1x8x16xf32> to vector<2x8x16xf32>
    "tpu.trace_start"() <{level = 10 : i32, message = "snk,skd->snd"}> : () -> ()
    %cst_46 = arith.constant dense<0.000000e+00> : vector<2x3x16xf32>
    %104 = tpu.matmul %99, %103, %cst_46 {dimension_numbers = #tpu.dot_dimension_numbers<[2], [1], [1], [2], [0, 0, 0, 1, 1, 2], [0], [0]>} : vector<2x3x8xf32>, vector<2x8x16xf32>, vector<2x3x16xf32> -> vector<2x3x16xf32>
    "tpu.trace_stop"() : () -> ()
    %105 = arith.addf %71, %104 : vector<2x3x16xf32>
    %106 = arith.addf %0, %105 : vector<2x3x16xf32>
    %c0_47 = arith.constant 0 : index
    %c0_48 = arith.constant 0 : index
    %c0_49 = arith.constant 0 : index
    %107 = vector.load %arg8[%c0_47, %c0_48, %c0_49] : memref<2x1x16xf32, #tpu.memory_space<vmem>>, vector<1x1x16xf32>
    %108 = vector.shape_cast %107 : vector<1x1x16xf32> to vector<1x16xf32>
    %109 = vector.shape_cast %108 : vector<1x16xf32> to vector<1x1x16xf32>
    %110 = vector.broadcast %109 : vector<1x1x16xf32> to vector<2x3x16xf32>
    %111 = arith.addf %106, %110 : vector<2x3x16xf32>
    %c0_50 = arith.constant 0 : index
    %c0_51 = arith.constant 0 : index
    %c0_52 = arith.constant 0 : index
    %112 = vector.load %arg9[%c0_50, %c0_51, %c0_52] : memref<2x1x16xf32, #tpu.memory_space<vmem>>, vector<1x1x16xf32>
    %113 = vector.shape_cast %112 : vector<1x1x16xf32> to vector<1x16xf32>
    %c0_53 = arith.constant 0 : index
    %c0_54 = arith.constant 0 : index
    %c0_55 = arith.constant 0 : index
    %114 = vector.load %arg10[%c0_53, %c0_54, %c0_55] : memref<2x1x16xf32, #tpu.memory_space<vmem>>, vector<1x1x16xf32>
    %115 = vector.shape_cast %114 : vector<1x1x16xf32> to vector<1x16xf32>
    %cst_56 = arith.constant dense<0.000000e+00> : vector<2x3xf32>
    %116 = vector.multi_reduction <add>, %111, %cst_56 [2] : vector<2x3x16xf32> to vector<2x3xf32>
    %117 = vector.shape_cast %116 : vector<2x3xf32> to vector<2x3x1xf32>
    %cst_57 = arith.constant 1.600000e+01 : f32
    %118 = vector.broadcast %cst_57 : f32 to vector<2x3x1xf32>
    %119 = arith.divf %117, %118 : vector<2x3x1xf32>
    %120 = vector.broadcast %119 : vector<2x3x1xf32> to vector<2x3x16xf32>
    %121 = arith.subf %111, %120 : vector<2x3x16xf32>
    %122 = arith.mulf %121, %121 : vector<2x3x16xf32>
    %cst_58 = arith.constant dense<0.000000e+00> : vector<2x3xf32>
    %123 = vector.multi_reduction <add>, %122, %cst_58 [2] : vector<2x3x16xf32> to vector<2x3xf32>
    %124 = vector.shape_cast %123 : vector<2x3xf32> to vector<2x3x1xf32>
    %cst_59 = arith.constant 1.600000e+01 : f32
    %125 = vector.broadcast %cst_59 : f32 to vector<2x3x1xf32>
    %126 = arith.divf %124, %125 : vector<2x3x1xf32>
    %127 = vector.broadcast %119 : vector<2x3x1xf32> to vector<2x3x16xf32>
    %128 = arith.subf %111, %127 : vector<2x3x16xf32>
    %cst_60 = arith.constant 9.99999974E-6 : f32
    %129 = vector.broadcast %cst_60 : f32 to vector<2x3x1xf32>
    %130 = arith.addf %126, %129 : vector<2x3x1xf32>
    %131 = math.rsqrt %130 : vector<2x3x1xf32>
    %132 = vector.broadcast %131 : vector<2x3x1xf32> to vector<2x3x16xf32>
    %133 = arith.mulf %128, %132 : vector<2x3x16xf32>
    %134 = vector.shape_cast %113 : vector<1x16xf32> to vector<1x1x16xf32>
    %135 = vector.broadcast %134 : vector<1x1x16xf32> to vector<2x3x16xf32>
    %136 = arith.mulf %133, %135 : vector<2x3x16xf32>
    %137 = vector.shape_cast %115 : vector<1x16xf32> to vector<1x1x16xf32>
    %138 = vector.broadcast %137 : vector<1x1x16xf32> to vector<2x3x16xf32>
    %139 = arith.addf %136, %138 : vector<2x3x16xf32>
    %c0_61 = arith.constant 0 : index
    %c0_62 = arith.constant 0 : index
    %c0_63 = arith.constant 0 : index
    %140 = vector.load %arg11[%c0_61, %c0_62, %c0_63] : memref<2x16x64xf32, #tpu.memory_space<vmem>>, vector<1x16x64xf32>
    %141 = vector.shape_cast %140 : vector<1x16x64xf32> to vector<16x64xf32>
    %142 = vector.shape_cast %141 : vector<16x64xf32> to vector<1x16x64xf32>
    %143 = vector.broadcast %142 : vector<1x16x64xf32> to vector<2x16x64xf32>
    "tpu.trace_start"() <{level = 10 : i32, message = "snd,sdm->snm"}> : () -> ()
    %cst_64 = arith.constant dense<0.000000e+00> : vector<2x3x64xf32>
    %144 = tpu.matmul %139, %143, %cst_64 {dimension_numbers = #tpu.dot_dimension_numbers<[2], [1], [1], [2], [0, 0, 0, 1, 1, 2], [0], [0]>} : vector<2x3x16xf32>, vector<2x16x64xf32>, vector<2x3x64xf32> -> vector<2x3x64xf32>
    "tpu.trace_stop"() : () -> ()
    %c0_65 = arith.constant 0 : index
    %c0_66 = arith.constant 0 : index
    %c0_67 = arith.constant 0 : index
    %145 = vector.load %arg12[%c0_65, %c0_66, %c0_67] : memref<2x1x64xf32, #tpu.memory_space<vmem>>, vector<1x1x64xf32>
    %146 = vector.shape_cast %145 : vector<1x1x64xf32> to vector<1x64xf32>
    %147 = vector.shape_cast %146 : vector<1x64xf32> to vector<1x1x64xf32>
    %148 = vector.broadcast %147 : vector<1x1x64xf32> to vector<2x3x64xf32>
    %149 = arith.addf %144, %148 : vector<2x3x64xf32>
    %cst_68 = arith.constant 5.000000e-01 : f32
    %150 = vector.broadcast %cst_68 : f32 to vector<2x3x64xf32>
    %151 = arith.mulf %149, %150 : vector<2x3x64xf32>
    %cst_69 = arith.constant 0.707106769 : f32
    %152 = vector.broadcast %cst_69 : f32 to vector<2x3x64xf32>
    %153 = arith.mulf %149, %152 : vector<2x3x64xf32>
    %154 = math.erf %153 : vector<2x3x64xf32>
    %cst_70 = arith.constant 1.000000e+00 : f32
    %155 = vector.broadcast %cst_70 : f32 to vector<2x3x64xf32>
    %156 = arith.addf %155, %154 : vector<2x3x64xf32>
    %157 = arith.mulf %151, %156 : vector<2x3x64xf32>
    %c0_71 = arith.constant 0 : index
    %c0_72 = arith.constant 0 : index
    %c0_73 = arith.constant 0 : index
    %158 = vector.load %arg13[%c0_71, %c0_72, %c0_73] : memref<2x64x16xf32, #tpu.memory_space<vmem>>, vector<1x64x16xf32>
    %159 = vector.shape_cast %158 : vector<1x64x16xf32> to vector<64x16xf32>
    %160 = vector.shape_cast %159 : vector<64x16xf32> to vector<1x64x16xf32>
    %161 = vector.broadcast %160 : vector<1x64x16xf32> to vector<2x64x16xf32>
    "tpu.trace_start"() <{level = 10 : i32, message = "snm,smd->snd"}> : () -> ()
    %cst_74 = arith.constant dense<0.000000e+00> : vector<2x3x16xf32>
    %162 = tpu.matmul %157, %161, %cst_74 {dimension_numbers = #tpu.dot_dimension_numbers<[2], [1], [1], [2], [0, 0, 0, 1, 1, 2], [0], [0]>} : vector<2x3x64xf32>, vector<2x64x16xf32>, vector<2x3x16xf32> -> vector<2x3x16xf32>
    "tpu.trace_stop"() : () -> ()
    %163 = arith.addf %111, %162 : vector<2x3x16xf32>
    %c0_75 = arith.constant 0 : index
    %c0_76 = arith.constant 0 : index
    %c0_77 = arith.constant 0 : index
    %164 = vector.load %arg14[%c0_75, %c0_76, %c0_77] : memref<2x1x16xf32, #tpu.memory_space<vmem>>, vector<1x1x16xf32>
    %165 = vector.shape_cast %164 : vector<1x1x16xf32> to vector<1x16xf32>
    %166 = vector.shape_cast %165 : vector<1x16xf32> to vector<1x1x16xf32>
    %167 = vector.broadcast %166 : vector<1x1x16xf32> to vector<2x3x16xf32>
    %168 = arith.addf %163, %167 : vector<2x3x16xf32>
    %c1 = arith.constant 1 : index
    %c0_78 = arith.constant 0 : index
    %c0_79 = arith.constant 0 : index
    %169 = vector.load %arg2[%c1, %c0_78, %c0_79] : memref<2x1x16xf32, #tpu.memory_space<vmem>>, vector<1x1x16xf32>
    %170 = vector.shape_cast %169 : vector<1x1x16xf32> to vector<1x16xf32>
    %c1_80 = arith.constant 1 : index
    %c0_81 = arith.constant 0 : index
    %c0_82 = arith.constant 0 : index
    %171 = vector.load %arg3[%c1_80, %c0_81, %c0_82] : memref<2x1x16xf32, #tpu.memory_space<vmem>>, vector<1x1x16xf32>
    %172 = vector.shape_cast %171 : vector<1x1x16xf32> to vector<1x16xf32>
    %cst_83 = arith.constant dense<0.000000e+00> : vector<2x3xf32>
    %173 = vector.multi_reduction <add>, %168, %cst_83 [2] : vector<2x3x16xf32> to vector<2x3xf32>
    %174 = vector.shape_cast %173 : vector<2x3xf32> to vector<2x3x1xf32>
    %cst_84 = arith.constant 1.600000e+01 : f32
    %175 = vector.broadcast %cst_84 : f32 to vector<2x3x1xf32>
    %176 = arith.divf %174, %175 : vector<2x3x1xf32>
    %177 = vector.broadcast %176 : vector<2x3x1xf32> to vector<2x3x16xf32>
    %178 = arith.subf %168, %177 : vector<2x3x16xf32>
    %179 = arith.mulf %178, %178 : vector<2x3x16xf32>
    %cst_85 = arith.constant dense<0.000000e+00> : vector<2x3xf32>
    %180 = vector.multi_reduction <add>, %179, %cst_85 [2] : vector<2x3x16xf32> to vector<2x3xf32>
    %181 = vector.shape_cast %180 : vector<2x3xf32> to vector<2x3x1xf32>
    %cst_86 = arith.constant 1.600000e+01 : f32
    %182 = vector.broadcast %cst_86 : f32 to vector<2x3x1xf32>
    %183 = arith.divf %181, %182 : vector<2x3x1xf32>
    %184 = vector.broadcast %176 : vector<2x3x1xf32> to vector<2x3x16xf32>
    %185 = arith.subf %168, %184 : vector<2x3x16xf32>
    %cst_87 = arith.constant 9.99999974E-6 : f32
    %186 = vector.broadcast %cst_87 : f32 to vector<2x3x1xf32>
    %187 = arith.addf %183, %186 : vector<2x3x1xf32>
    %188 = math.rsqrt %187 : vector<2x3x1xf32>
    %189 = vector.broadcast %188 : vector<2x3x1xf32> to vector<2x3x16xf32>
    %190 = arith.mulf %185, %189 : vector<2x3x16xf32>
    %191 = vector.shape_cast %170 : vector<1x16xf32> to vector<1x1x16xf32>
    %192 = vector.broadcast %191 : vector<1x1x16xf32> to vector<2x3x16xf32>
    %193 = arith.mulf %190, %192 : vector<2x3x16xf32>
    %194 = vector.shape_cast %172 : vector<1x16xf32> to vector<1x1x16xf32>
    %195 = vector.broadcast %194 : vector<1x1x16xf32> to vector<2x3x16xf32>
    %196 = arith.addf %193, %195 : vector<2x3x16xf32>
    %c1_88 = arith.constant 1 : index
    %c0_89 = arith.constant 0 : index
    %c0_90 = arith.constant 0 : index
    %c0_91 = arith.constant 0 : index
    %197 = vector.load %arg4[%c1_88, %c0_89, %c0_90, %c0_91] : memref<2x2x16x8xf32, #tpu.memory_space<vmem>>, vector<1x2x16x8xf32>
    %198 = vector.shape_cast %197 : vector<1x2x16x8xf32> to vector<2x16x8xf32>
    %c1_92 = arith.constant 1 : index
    %c0_93 = arith.constant 0 : index
    %c0_94 = arith.constant 0 : index
    %c0_95 = arith.constant 0 : index
    %199 = vector.load %arg5[%c1_92, %c0_93, %c0_94, %c0_95] : memref<2x2x16x8xf32, #tpu.memory_space<vmem>>, vector<1x2x16x8xf32>
    %200 = vector.shape_cast %199 : vector<1x2x16x8xf32> to vector<2x16x8xf32>
    %c1_96 = arith.constant 1 : index
    %c0_97 = arith.constant 0 : index
    %c0_98 = arith.constant 0 : index
    %c0_99 = arith.constant 0 : index
    %201 = vector.load %arg6[%c1_96, %c0_97, %c0_98, %c0_99] : memref<2x2x16x8xf32, #tpu.memory_space<vmem>>, vector<1x2x16x8xf32>
    %202 = vector.shape_cast %201 : vector<1x2x16x8xf32> to vector<2x16x8xf32>
    %c1_100 = arith.constant 1 : index
    %c0_101 = arith.constant 0 : index
    %c0_102 = arith.constant 0 : index
    %c0_103 = arith.constant 0 : index
    %203 = vector.load %arg7[%c1_100, %c0_101, %c0_102, %c0_103] : memref<2x2x8x16xf32, #tpu.memory_space<vmem>>, vector<1x2x8x16xf32>
    %204 = vector.shape_cast %203 : vector<1x2x8x16xf32> to vector<2x8x16xf32>
    %cst_104 = arith.constant 0.000000e+00 : f32
    %205 = vector.broadcast %cst_104 : f32 to vector<2x3x16xf32>
    %206 = vector.extract_strided_slice %198 {offsets = [0, 0, 0], sizes = [1, 16, 8], strides = [1, 1, 1]} : vector<2x16x8xf32> to vector<1x16x8xf32>
    %207 = vector.shape_cast %206 : vector<1x16x8xf32> to vector<16x8xf32>
    %208 = vector.shape_cast %207 : vector<16x8xf32> to vector<1x16x8xf32>
    %209 = vector.broadcast %208 : vector<1x16x8xf32> to vector<2x16x8xf32>
    "tpu.trace_start"() <{level = 10 : i32, message = "snd,sdk->snk"}> : () -> ()
    %cst_105 = arith.constant dense<0.000000e+00> : vector<2x3x8xf32>
    %210 = tpu.matmul %196, %209, %cst_105 {dimension_numbers = #tpu.dot_dimension_numbers<[2], [1], [1], [2], [0, 0, 0, 1, 1, 2], [0], [0]>} : vector<2x3x16xf32>, vector<2x16x8xf32>, vector<2x3x8xf32> -> vector<2x3x8xf32>
    "tpu.trace_stop"() : () -> ()
    %211 = vector.extract_strided_slice %200 {offsets = [0, 0, 0], sizes = [1, 16, 8], strides = [1, 1, 1]} : vector<2x16x8xf32> to vector<1x16x8xf32>
    %212 = vector.shape_cast %211 : vector<1x16x8xf32> to vector<16x8xf32>
    %213 = vector.shape_cast %212 : vector<16x8xf32> to vector<1x16x8xf32>
    %214 = vector.broadcast %213 : vector<1x16x8xf32> to vector<2x16x8xf32>
    "tpu.trace_start"() <{level = 10 : i32, message = "snd,sdk->snk"}> : () -> ()
    %cst_106 = arith.constant dense<0.000000e+00> : vector<2x3x8xf32>
    %215 = tpu.matmul %196, %214, %cst_106 {dimension_numbers = #tpu.dot_dimension_numbers<[2], [1], [1], [2], [0, 0, 0, 1, 1, 2], [0], [0]>} : vector<2x3x16xf32>, vector<2x16x8xf32>, vector<2x3x8xf32> -> vector<2x3x8xf32>
    "tpu.trace_stop"() : () -> ()
    %216 = vector.extract_strided_slice %202 {offsets = [0, 0, 0], sizes = [1, 16, 8], strides = [1, 1, 1]} : vector<2x16x8xf32> to vector<1x16x8xf32>
    %217 = vector.shape_cast %216 : vector<1x16x8xf32> to vector<16x8xf32>
    %218 = vector.shape_cast %217 : vector<16x8xf32> to vector<1x16x8xf32>
    %219 = vector.broadcast %218 : vector<1x16x8xf32> to vector<2x16x8xf32>
    "tpu.trace_start"() <{level = 10 : i32, message = "snd,sdk->snk"}> : () -> ()
    %cst_107 = arith.constant dense<0.000000e+00> : vector<2x3x8xf32>
    %220 = tpu.matmul %196, %219, %cst_107 {dimension_numbers = #tpu.dot_dimension_numbers<[2], [1], [1], [2], [0, 0, 0, 1, 1, 2], [0], [0]>} : vector<2x3x16xf32>, vector<2x16x8xf32>, vector<2x3x8xf32> -> vector<2x3x8xf32>
    "tpu.trace_stop"() : () -> ()
    "tpu.trace_start"() <{level = 10 : i32, message = "sik,sjk->sij"}> : () -> ()
    %cst_108 = arith.constant dense<0.000000e+00> : vector<2x3x3xf32>
    %221 = tpu.matmul %210, %215, %cst_108 {dimension_numbers = #tpu.dot_dimension_numbers<[2], [2], [1], [1], [0, 0, 0, 1, 1, 1], [0], [0]>} : vector<2x3x8xf32>, vector<2x3x8xf32>, vector<2x3x3xf32> -> vector<2x3x3xf32>
    "tpu.trace_stop"() : () -> ()
    %cst_109 = arith.constant 0.353553385 : f32
    %222 = vector.broadcast %cst_109 : f32 to vector<2x3x3xf32>
    %223 = arith.mulf %221, %222 : vector<2x3x3xf32>
    %cst_110 = arith.constant dense<0xFF800000> : vector<2x3xf32>
    %224 = vector.multi_reduction <maximumf>, %223, %cst_110 [2] : vector<2x3x3xf32> to vector<2x3xf32>
    %225 = vector.shape_cast %224 : vector<2x3xf32> to vector<2x3x1xf32>
    %226 = vector.broadcast %225 : vector<2x3x1xf32> to vector<2x3x3xf32>
    %227 = arith.subf %223, %226 : vector<2x3x3xf32>
    %228 = math.exp %227 : vector<2x3x3xf32>
    %cst_111 = arith.constant dense<0.000000e+00> : vector<2x3xf32>
    %229 = vector.multi_reduction <add>, %228, %cst_111 [2] : vector<2x3x3xf32> to vector<2x3xf32>
    %230 = vector.shape_cast %229 : vector<2x3xf32> to vector<2x3x1xf32>
    %231 = vector.broadcast %230 : vector<2x3x1xf32> to vector<2x3x3xf32>
    %232 = arith.divf %228, %231 : vector<2x3x3xf32>
    "tpu.trace_start"() <{level = 10 : i32, message = "sij,sjk->sik"}> : () -> ()
    %cst_112 = arith.constant dense<0.000000e+00> : vector<2x3x8xf32>
    %233 = tpu.matmul %232, %220, %cst_112 {dimension_numbers = #tpu.dot_dimension_numbers<[2], [1], [1], [2], [0, 0, 0, 1, 1, 2], [0], [0]>} : vector<2x3x3xf32>, vector<2x3x8xf32>, vector<2x3x8xf32> -> vector<2x3x8xf32>
    "tpu.trace_stop"() : () -> ()
    %234 = vector.extract_strided_slice %204 {offsets = [0, 0, 0], sizes = [1, 8, 16], strides = [1, 1, 1]} : vector<2x8x16xf32> to vector<1x8x16xf32>
    %235 = vector.shape_cast %234 : vector<1x8x16xf32> to vector<8x16xf32>
    %236 = vector.shape_cast %235 : vector<8x16xf32> to vector<1x8x16xf32>
    %237 = vector.broadcast %236 : vector<1x8x16xf32> to vector<2x8x16xf32>
    "tpu.trace_start"() <{level = 10 : i32, message = "snk,skd->snd"}> : () -> ()
    %cst_113 = arith.constant dense<0.000000e+00> : vector<2x3x16xf32>
    %238 = tpu.matmul %233, %237, %cst_113 {dimension_numbers = #tpu.dot_dimension_numbers<[2], [1], [1], [2], [0, 0, 0, 1, 1, 2], [0], [0]>} : vector<2x3x8xf32>, vector<2x8x16xf32>, vector<2x3x16xf32> -> vector<2x3x16xf32>
    "tpu.trace_stop"() : () -> ()
    %239 = arith.addf %205, %238 : vector<2x3x16xf32>
    %240 = vector.extract_strided_slice %198 {offsets = [1, 0, 0], sizes = [1, 16, 8], strides = [1, 1, 1]} : vector<2x16x8xf32> to vector<1x16x8xf32>
    %241 = vector.shape_cast %240 : vector<1x16x8xf32> to vector<16x8xf32>
    %242 = vector.shape_cast %241 : vector<16x8xf32> to vector<1x16x8xf32>
    %243 = vector.broadcast %242 : vector<1x16x8xf32> to vector<2x16x8xf32>
    "tpu.trace_start"() <{level = 10 : i32, message = "snd,sdk->snk"}> : () -> ()
    %cst_114 = arith.constant dense<0.000000e+00> : vector<2x3x8xf32>
    %244 = tpu.matmul %196, %243, %cst_114 {dimension_numbers = #tpu.dot_dimension_numbers<[2], [1], [1], [2], [0, 0, 0, 1, 1, 2], [0], [0]>} : vector<2x3x16xf32>, vector<2x16x8xf32>, vector<2x3x8xf32> -> vector<2x3x8xf32>
    "tpu.trace_stop"() : () -> ()
    %245 = vector.extract_strided_slice %200 {offsets = [1, 0, 0], sizes = [1, 16, 8], strides = [1, 1, 1]} : vector<2x16x8xf32> to vector<1x16x8xf32>
    %246 = vector.shape_cast %245 : vector<1x16x8xf32> to vector<16x8xf32>
    %247 = vector.shape_cast %246 : vector<16x8xf32> to vector<1x16x8xf32>
    %248 = vector.broadcast %247 : vector<1x16x8xf32> to vector<2x16x8xf32>
    "tpu.trace_start"() <{level = 10 : i32, message = "snd,sdk->snk"}> : () -> ()
    %cst_115 = arith.constant dense<0.000000e+00> : vector<2x3x8xf32>
    %249 = tpu.matmul %196, %248, %cst_115 {dimension_numbers = #tpu.dot_dimension_numbers<[2], [1], [1], [2], [0, 0, 0, 1, 1, 2], [0], [0]>} : vector<2x3x16xf32>, vector<2x16x8xf32>, vector<2x3x8xf32> -> vector<2x3x8xf32>
    "tpu.trace_stop"() : () -> ()
    %250 = vector.extract_strided_slice %202 {offsets = [1, 0, 0], sizes = [1, 16, 8], strides = [1, 1, 1]} : vector<2x16x8xf32> to vector<1x16x8xf32>
    %251 = vector.shape_cast %250 : vector<1x16x8xf32> to vector<16x8xf32>
    %252 = vector.shape_cast %251 : vector<16x8xf32> to vector<1x16x8xf32>
    %253 = vector.broadcast %252 : vector<1x16x8xf32> to vector<2x16x8xf32>
    "tpu.trace_start"() <{level = 10 : i32, message = "snd,sdk->snk"}> : () -> ()
    %cst_116 = arith.constant dense<0.000000e+00> : vector<2x3x8xf32>
    %254 = tpu.matmul %196, %253, %cst_116 {dimension_numbers = #tpu.dot_dimension_numbers<[2], [1], [1], [2], [0, 0, 0, 1, 1, 2], [0], [0]>} : vector<2x3x16xf32>, vector<2x16x8xf32>, vector<2x3x8xf32> -> vector<2x3x8xf32>
    "tpu.trace_stop"() : () -> ()
    "tpu.trace_start"() <{level = 10 : i32, message = "sik,sjk->sij"}> : () -> ()
    %cst_117 = arith.constant dense<0.000000e+00> : vector<2x3x3xf32>
    %255 = tpu.matmul %244, %249, %cst_117 {dimension_numbers = #tpu.dot_dimension_numbers<[2], [2], [1], [1], [0, 0, 0, 1, 1, 1], [0], [0]>} : vector<2x3x8xf32>, vector<2x3x8xf32>, vector<2x3x3xf32> -> vector<2x3x3xf32>
    "tpu.trace_stop"() : () -> ()
    %cst_118 = arith.constant 0.353553385 : f32
    %256 = vector.broadcast %cst_118 : f32 to vector<2x3x3xf32>
    %257 = arith.mulf %255, %256 : vector<2x3x3xf32>
    %cst_119 = arith.constant dense<0xFF800000> : vector<2x3xf32>
    %258 = vector.multi_reduction <maximumf>, %257, %cst_119 [2] : vector<2x3x3xf32> to vector<2x3xf32>
    %259 = vector.shape_cast %258 : vector<2x3xf32> to vector<2x3x1xf32>
    %260 = vector.broadcast %259 : vector<2x3x1xf32> to vector<2x3x3xf32>
    %261 = arith.subf %257, %260 : vector<2x3x3xf32>
    %262 = math.exp %261 : vector<2x3x3xf32>
    %cst_120 = arith.constant dense<0.000000e+00> : vector<2x3xf32>
    %263 = vector.multi_reduction <add>, %262, %cst_120 [2] : vector<2x3x3xf32> to vector<2x3xf32>
    %264 = vector.shape_cast %263 : vector<2x3xf32> to vector<2x3x1xf32>
    %265 = vector.broadcast %264 : vector<2x3x1xf32> to vector<2x3x3xf32>
    %266 = arith.divf %262, %265 : vector<2x3x3xf32>
    "tpu.trace_start"() <{level = 10 : i32, message = "sij,sjk->sik"}> : () -> ()
    %cst_121 = arith.constant dense<0.000000e+00> : vector<2x3x8xf32>
    %267 = tpu.matmul %266, %254, %cst_121 {dimension_numbers = #tpu.dot_dimension_numbers<[2], [1], [1], [2], [0, 0, 0, 1, 1, 2], [0], [0]>} : vector<2x3x3xf32>, vector<2x3x8xf32>, vector<2x3x8xf32> -> vector<2x3x8xf32>
    "tpu.trace_stop"() : () -> ()
    %268 = vector.extract_strided_slice %204 {offsets = [1, 0, 0], sizes = [1, 8, 16], strides = [1, 1, 1]} : vector<2x8x16xf32> to vector<1x8x16xf32>
    %269 = vector.shape_cast %268 : vector<1x8x16xf32> to vector<8x16xf32>
    %270 = vector.shape_cast %269 : vector<8x16xf32> to vector<1x8x16xf32>
    %271 = vector.broadcast %270 : vector<1x8x16xf32> to vector<2x8x16xf32>
    "tpu.trace_start"() <{level = 10 : i32, message = "snk,skd->snd"}> : () -> ()
    %cst_122 = arith.constant dense<0.000000e+00> : vector<2x3x16xf32>
    %272 = tpu.matmul %267, %271, %cst_122 {dimension_numbers = #tpu.dot_dimension_numbers<[2], [1], [1], [2], [0, 0, 0, 1, 1, 2], [0], [0]>} : vector<2x3x8xf32>, vector<2x8x16xf32>, vector<2x3x16xf32> -> vector<2x3x16xf32>
    "tpu.trace_stop"() : () -> ()
    %273 = arith.addf %239, %272 : vector<2x3x16xf32>
    %274 = arith.addf %168, %273 : vector<2x3x16xf32>
    %c1_123 = arith.constant 1 : index
    %c0_124 = arith.constant 0 : index
    %c0_125 = arith.constant 0 : index
    %275 = vector.load %arg8[%c1_123, %c0_124, %c0_125] : memref<2x1x16xf32, #tpu.memory_space<vmem>>, vector<1x1x16xf32>
    %276 = vector.shape_cast %275 : vector<1x1x16xf32> to vector<1x16xf32>
    %277 = vector.shape_cast %276 : vector<1x16xf32> to vector<1x1x16xf32>
    %278 = vector.broadcast %277 : vector<1x1x16xf32> to vector<2x3x16xf32>
    %279 = arith.addf %274, %278 : vector<2x3x16xf32>
    %c1_126 = arith.constant 1 : index
    %c0_127 = arith.constant 0 : index
    %c0_128 = arith.constant 0 : index
    %280 = vector.load %arg9[%c1_126, %c0_127, %c0_128] : memref<2x1x16xf32, #tpu.memory_space<vmem>>, vector<1x1x16xf32>
    %281 = vector.shape_cast %280 : vector<1x1x16xf32> to vector<1x16xf32>
    %c1_129 = arith.constant 1 : index
    %c0_130 = arith.constant 0 : index
    %c0_131 = arith.constant 0 : index
    %282 = vector.load %arg10[%c1_129, %c0_130, %c0_131] : memref<2x1x16xf32, #tpu.memory_space<vmem>>, vector<1x1x16xf32>
    %283 = vector.shape_cast %282 : vector<1x1x16xf32> to vector<1x16xf32>
    %cst_132 = arith.constant dense<0.000000e+00> : vector<2x3xf32>
    %284 = vector.multi_reduction <add>, %279, %cst_132 [2] : vector<2x3x16xf32> to vector<2x3xf32>
    %285 = vector.shape_cast %284 : vector<2x3xf32> to vector<2x3x1xf32>
    %cst_133 = arith.constant 1.600000e+01 : f32
    %286 = vector.broadcast %cst_133 : f32 to vector<2x3x1xf32>
    %287 = arith.divf %285, %286 : vector<2x3x1xf32>
    %288 = vector.broadcast %287 : vector<2x3x1xf32> to vector<2x3x16xf32>
    %289 = arith.subf %279, %288 : vector<2x3x16xf32>
    %290 = arith.mulf %289, %289 : vector<2x3x16xf32>
    %cst_134 = arith.constant dense<0.000000e+00> : vector<2x3xf32>
    %291 = vector.multi_reduction <add>, %290, %cst_134 [2] : vector<2x3x16xf32> to vector<2x3xf32>
    %292 = vector.shape_cast %291 : vector<2x3xf32> to vector<2x3x1xf32>
    %cst_135 = arith.constant 1.600000e+01 : f32
    %293 = vector.broadcast %cst_135 : f32 to vector<2x3x1xf32>
    %294 = arith.divf %292, %293 : vector<2x3x1xf32>
    %295 = vector.broadcast %287 : vector<2x3x1xf32> to vector<2x3x16xf32>
    %296 = arith.subf %279, %295 : vector<2x3x16xf32>
    %cst_136 = arith.constant 9.99999974E-6 : f32
    %297 = vector.broadcast %cst_136 : f32 to vector<2x3x1xf32>
    %298 = arith.addf %294, %297 : vector<2x3x1xf32>
    %299 = math.rsqrt %298 : vector<2x3x1xf32>
    %300 = vector.broadcast %299 : vector<2x3x1xf32> to vector<2x3x16xf32>
    %301 = arith.mulf %296, %300 : vector<2x3x16xf32>
    %302 = vector.shape_cast %281 : vector<1x16xf32> to vector<1x1x16xf32>
    %303 = vector.broadcast %302 : vector<1x1x16xf32> to vector<2x3x16xf32>
    %304 = arith.mulf %301, %303 : vector<2x3x16xf32>
    %305 = vector.shape_cast %283 : vector<1x16xf32> to vector<1x1x16xf32>
    %306 = vector.broadcast %305 : vector<1x1x16xf32> to vector<2x3x16xf32>
    %307 = arith.addf %304, %306 : vector<2x3x16xf32>
    %c1_137 = arith.constant 1 : index
    %c0_138 = arith.constant 0 : index
    %c0_139 = arith.constant 0 : index
    %308 = vector.load %arg11[%c1_137, %c0_138, %c0_139] : memref<2x16x64xf32, #tpu.memory_space<vmem>>, vector<1x16x64xf32>
    %309 = vector.shape_cast %308 : vector<1x16x64xf32> to vector<16x64xf32>
    %310 = vector.shape_cast %309 : vector<16x64xf32> to vector<1x16x64xf32>
    %311 = vector.broadcast %310 : vector<1x16x64xf32> to vector<2x16x64xf32>
    "tpu.trace_start"() <{level = 10 : i32, message = "snd,sdm->snm"}> : () -> ()
    %cst_140 = arith.constant dense<0.000000e+00> : vector<2x3x64xf32>
    %312 = tpu.matmul %307, %311, %cst_140 {dimension_numbers = #tpu.dot_dimension_numbers<[2], [1], [1], [2], [0, 0, 0, 1, 1, 2], [0], [0]>} : vector<2x3x16xf32>, vector<2x16x64xf32>, vector<2x3x64xf32> -> vector<2x3x64xf32>
    "tpu.trace_stop"() : () -> ()
    %c1_141 = arith.constant 1 : index
    %c0_142 = arith.constant 0 : index
    %c0_143 = arith.constant 0 : index
    %313 = vector.load %arg12[%c1_141, %c0_142, %c0_143] : memref<2x1x64xf32, #tpu.memory_space<vmem>>, vector<1x1x64xf32>
    %314 = vector.shape_cast %313 : vector<1x1x64xf32> to vector<1x64xf32>
    %315 = vector.shape_cast %314 : vector<1x64xf32> to vector<1x1x64xf32>
    %316 = vector.broadcast %315 : vector<1x1x64xf32> to vector<2x3x64xf32>
    %317 = arith.addf %312, %316 : vector<2x3x64xf32>
    %cst_144 = arith.constant 5.000000e-01 : f32
    %318 = vector.broadcast %cst_144 : f32 to vector<2x3x64xf32>
    %319 = arith.mulf %317, %318 : vector<2x3x64xf32>
    %cst_145 = arith.constant 0.707106769 : f32
    %320 = vector.broadcast %cst_145 : f32 to vector<2x3x64xf32>
    %321 = arith.mulf %317, %320 : vector<2x3x64xf32>
    %322 = math.erf %321 : vector<2x3x64xf32>
    %cst_146 = arith.constant 1.000000e+00 : f32
    %323 = vector.broadcast %cst_146 : f32 to vector<2x3x64xf32>
    %324 = arith.addf %323, %322 : vector<2x3x64xf32>
    %325 = arith.mulf %319, %324 : vector<2x3x64xf32>
    %c1_147 = arith.constant 1 : index
    %c0_148 = arith.constant 0 : index
    %c0_149 = arith.constant 0 : index
    %326 = vector.load %arg13[%c1_147, %c0_148, %c0_149] : memref<2x64x16xf32, #tpu.memory_space<vmem>>, vector<1x64x16xf32>
    %327 = vector.shape_cast %326 : vector<1x64x16xf32> to vector<64x16xf32>
    %328 = vector.shape_cast %327 : vector<64x16xf32> to vector<1x64x16xf32>
    %329 = vector.broadcast %328 : vector<1x64x16xf32> to vector<2x64x16xf32>
    "tpu.trace_start"() <{level = 10 : i32, message = "snm,smd->snd"}> : () -> ()
    %cst_150 = arith.constant dense<0.000000e+00> : vector<2x3x16xf32>
    %330 = tpu.matmul %325, %329, %cst_150 {dimension_numbers = #tpu.dot_dimension_numbers<[2], [1], [1], [2], [0, 0, 0, 1, 1, 2], [0], [0]>} : vector<2x3x64xf32>, vector<2x64x16xf32>, vector<2x3x16xf32> -> vector<2x3x16xf32>
    "tpu.trace_stop"() : () -> ()
    %331 = arith.addf %279, %330 : vector<2x3x16xf32>
    %c1_151 = arith.constant 1 : index
    %c0_152 = arith.constant 0 : index
    %c0_153 = arith.constant 0 : index
    %332 = vector.load %arg14[%c1_151, %c0_152, %c0_153] : memref<2x1x16xf32, #tpu.memory_space<vmem>>, vector<1x1x16xf32>
    %333 = vector.shape_cast %332 : vector<1x1x16xf32> to vector<1x16xf32>
    %334 = vector.shape_cast %333 : vector<1x16xf32> to vector<1x1x16xf32>
    %335 = vector.broadcast %334 : vector<1x1x16xf32> to vector<2x3x16xf32>
    %336 = arith.addf %331, %335 : vector<2x3x16xf32>
    %c0_154 = arith.constant 0 : index
    %c0_155 = arith.constant 0 : index
    %337 = vector.load %arg15[%c0_154, %c0_155] : memref<1x16xf32, #tpu.memory_space<vmem>>, vector<1x16xf32>
    %c0_156 = arith.constant 0 : index
    %c0_157 = arith.constant 0 : index
    %338 = vector.load %arg16[%c0_156, %c0_157] : memref<1x16xf32, #tpu.memory_space<vmem>>, vector<1x16xf32>
    %cst_158 = arith.constant dense<0.000000e+00> : vector<2x3xf32>
    %339 = vector.multi_reduction <add>, %336, %cst_158 [2] : vector<2x3x16xf32> to vector<2x3xf32>
    %340 = vector.shape_cast %339 : vector<2x3xf32> to vector<2x3x1xf32>
    %cst_159 = arith.constant 1.600000e+01 : f32
    %341 = vector.broadcast %cst_159 : f32 to vector<2x3x1xf32>
    %342 = arith.divf %340, %341 : vector<2x3x1xf32>
    %343 = vector.broadcast %342 : vector<2x3x1xf32> to vector<2x3x16xf32>
    %344 = arith.subf %336, %343 : vector<2x3x16xf32>
    %345 = arith.mulf %344, %344 : vector<2x3x16xf32>
    %cst_160 = arith.constant dense<0.000000e+00> : vector<2x3xf32>
    %346 = vector.multi_reduction <add>, %345, %cst_160 [2] : vector<2x3x16xf32> to vector<2x3xf32>
    %347 = vector.shape_cast %346 : vector<2x3xf32> to vector<2x3x1xf32>
    %cst_161 = arith.constant 1.600000e+01 : f32
    %348 = vector.broadcast %cst_161 : f32 to vector<2x3x1xf32>
    %349 = arith.divf %347, %348 : vector<2x3x1xf32>
    %350 = vector.broadcast %342 : vector<2x3x1xf32> to vector<2x3x16xf32>
    %351 = arith.subf %336, %350 : vector<2x3x16xf32>
    %cst_162 = arith.constant 9.99999974E-6 : f32
    %352 = vector.broadcast %cst_162 : f32 to vector<2x3x1xf32>
    %353 = arith.addf %349, %352 : vector<2x3x1xf32>
    %354 = math.rsqrt %353 : vector<2x3x1xf32>
    %355 = vector.broadcast %354 : vector<2x3x1xf32> to vector<2x3x16xf32>
    %356 = arith.mulf %351, %355 : vector<2x3x16xf32>
    %357 = vector.shape_cast %337 : vector<1x16xf32> to vector<1x1x16xf32>
    %358 = vector.broadcast %357 : vector<1x1x16xf32> to vector<2x3x16xf32>
    %359 = arith.mulf %356, %358 : vector<2x3x16xf32>
    %360 = vector.shape_cast %338 : vector<1x16xf32> to vector<1x1x16xf32>
    %361 = vector.broadcast %360 : vector<1x1x16xf32> to vector<2x3x16xf32>
    %362 = arith.addf %359, %361 : vector<2x3x16xf32>
    %c0_163 = arith.constant 0 : index
    %c0_164 = arith.constant 0 : index
    %c0_165 = arith.constant 0 : index
    %363 = vector.load %arg17[%c0_163, %c0_164, %c0_165] : memref<2x3x16xf32, #tpu.memory_space<vmem>>, vector<2x3x16xf32>
    tpu.vector_store %arg17[%c0_163, %c0_164, %c0_165], %362 {strides = array<i32>} : memref<2x3x16xf32, #tpu.memory_space<vmem>>, vector<2x3x16xf32>,
    return
  }
  func.func @transform_0(%arg0: i32) -> (i32, i32, i32) {
    %c0_i32 = arith.constant 0 : i32
    %c0_i32_0 = arith.constant 0 : i32
    %c0_i32_1 = arith.constant 0 : i32
    return %arg0, %c0_i32, %c0_i32_0 : i32, i32, i32
  }
  func.func @transform_1(%arg0: i32) -> (i32, i32, i32) {
    %c0_i32 = arith.constant 0 : i32
    %c0_i32_0 = arith.constant 0 : i32
    %c0_i32_1 = arith.constant 0 : i32
    %c0_i32_2 = arith.constant 0 : i32
    return %c0_i32, %c0_i32_0, %c0_i32_1 : i32, i32, i32
  }
  func.func @transform_2(%arg0: i32) -> (i32, i32, i32) {
    %c0_i32 = arith.constant 0 : i32
    %c0_i32_0 = arith.constant 0 : i32
    %c0_i32_1 = arith.constant 0 : i32
    %c0_i32_2 = arith.constant 0 : i32
    return %c0_i32, %c0_i32_0, %c0_i32_1 : i32, i32, i32
  }
  func.func @transform_3(%arg0: i32) -> (i32, i32, i32, i32) {
    %c0_i32 = arith.constant 0 : i32
    %c0_i32_0 = arith.constant 0 : i32
    %c0_i32_1 = arith.constant 0 : i32
    %c0_i32_2 = arith.constant 0 : i32
    %c0_i32_3 = arith.constant 0 : i32
    return %c0_i32, %c0_i32_0, %c0_i32_1, %c0_i32_2 : i32, i32, i32, i32
  }
  func.func @transform_4(%arg0: i32) -> (i32, i32, i32, i32) {
    %c0_i32 = arith.constant 0 : i32
    %c0_i32_0 = arith.constant 0 : i32
    %c0_i32_1 = arith.constant 0 : i32
    %c0_i32_2 = arith.constant 0 : i32
    %c0_i32_3 = arith.constant 0 : i32
    return %c0_i32, %c0_i32_0, %c0_i32_1, %c0_i32_2 : i32, i32, i32, i32
  }
  func.func @transform_5(%arg0: i32) -> (i32, i32, i32, i32) {
    %c0_i32 = arith.constant 0 : i32
    %c0_i32_0 = arith.constant 0 : i32
    %c0_i32_1 = arith.constant 0 : i32
    %c0_i32_2 = arith.constant 0 : i32
    %c0_i32_3 = arith.constant 0 : i32
    return %c0_i32, %c0_i32_0, %c0_i32_1, %c0_i32_2 : i32, i32, i32, i32
  }
  func.func @transform_6(%arg0: i32) -> (i32, i32, i32, i32) {
    %c0_i32 = arith.constant 0 : i32
    %c0_i32_0 = arith.constant 0 : i32
    %c0_i32_1 = arith.constant 0 : i32
    %c0_i32_2 = arith.constant 0 : i32
    %c0_i32_3 = arith.constant 0 : i32
    return %c0_i32, %c0_i32_0, %c0_i32_1, %c0_i32_2 : i32, i32, i32, i32
  }
  func.func @transform_7(%arg0: i32) -> (i32, i32, i32) {
    %c0_i32 = arith.constant 0 : i32
    %c0_i32_0 = arith.constant 0 : i32
    %c0_i32_1 = arith.constant 0 : i32
    %c0_i32_2 = arith.constant 0 : i32
    return %c0_i32, %c0_i32_0, %c0_i32_1 : i32, i32, i32
  }
  func.func @transform_8(%arg0: i32) -> (i32, i32, i32) {
    %c0_i32 = arith.constant 0 : i32
    %c0_i32_0 = arith.constant 0 : i32
    %c0_i32_1 = arith.constant 0 : i32
    %c0_i32_2 = arith.constant 0 : i32
    return %c0_i32, %c0_i32_0, %c0_i32_1 : i32, i32, i32
  }
  func.func @transform_9(%arg0: i32) -> (i32, i32, i32) {
    %c0_i32 = arith.constant 0 : i32
    %c0_i32_0 = arith.constant 0 : i32
    %c0_i32_1 = arith.constant 0 : i32
    %c0_i32_2 = arith.constant 0 : i32
    return %c0_i32, %c0_i32_0, %c0_i32_1 : i32, i32, i32
  }
  func.func @transform_10(%arg0: i32) -> (i32, i32, i32) {
    %c0_i32 = arith.constant 0 : i32
    %c0_i32_0 = arith.constant 0 : i32
    %c0_i32_1 = arith.constant 0 : i32
    %c0_i32_2 = arith.constant 0 : i32
    return %c0_i32, %c0_i32_0, %c0_i32_1 : i32, i32, i32
  }
  func.func @transform_11(%arg0: i32) -> (i32, i32, i32) {
    %c0_i32 = arith.constant 0 : i32
    %c0_i32_0 = arith.constant 0 : i32
    %c0_i32_1 = arith.constant 0 : i32
    %c0_i32_2 = arith.constant 0 : i32
    return %c0_i32, %c0_i32_0, %c0_i32_1 : i32, i32, i32
  }
  func.func @transform_12(%arg0: i32) -> (i32, i32, i32) {
    %c0_i32 = arith.constant 0 : i32
    %c0_i32_0 = arith.constant 0 : i32
    %c0_i32_1 = arith.constant 0 : i32
    %c0_i32_2 = arith.constant 0 : i32
    return %c0_i32, %c0_i32_0, %c0_i32_1 : i32, i32, i32
  }
  func.func @transform_13(%arg0: i32) -> (i32, i32, i32) {
    %c0_i32 = arith.constant 0 : i32
    %c0_i32_0 = arith.constant 0 : i32
    %c0_i32_1 = arith.constant 0 : i32
    %c0_i32_2 = arith.constant 0 : i32
    return %c0_i32, %c0_i32_0, %c0_i32_1 : i32, i32, i32
  }
  func.func @transform_14(%arg0: i32) -> (i32, i32) {
    %c0_i32 = arith.constant 0 : i32
    %c0_i32_0 = arith.constant 0 : i32
    %c0_i32_1 = arith.constant 0 : i32
    return %c0_i32, %c0_i32_0 : i32, i32
  }
  func.func @transform_15(%arg0: i32) -> (i32, i32) {
    %c0_i32 = arith.constant 0 : i32
    %c0_i32_0 = arith.constant 0 : i32
    %c0_i32_1 = arith.constant 0 : i32
    return %c0_i32, %c0_i32_0 : i32, i32
  }
  func.func @transform_16(%arg0: i32) -> (i32, i32, i32) {
    %c0_i32 = arith.constant 0 : i32
    %c0_i32_0 = arith.constant 0 : i32
    %c0_i32_1 = arith.constant 0 : i32
    return %arg0, %c0_i32, %c0_i32_0 : i32, i32, i32
  }
}

module attributes {stable_mosaic.version = 11 : i64} {
  func.func @transformer_stack_kernel(%arg0: i32, %arg1: memref<2x5x16xf32, #tpu.memory_space<vmem>>, %arg2: memref<2x1x16xf32, #tpu.memory_space<vmem>>, %arg3: memref<2x1x16xf32, #tpu.memory_space<vmem>>, %arg4: memref<2x2x16x8xf32, #tpu.memory_space<vmem>>, %arg5: memref<2x2x16x8xf32, #tpu.memory_space<vmem>>, %arg6: memref<2x2x16x8xf32, #tpu.memory_space<vmem>>, %arg7: memref<2x2x8x16xf32, #tpu.memory_space<vmem>>, %arg8: memref<2x1x16xf32, #tpu.memory_space<vmem>>, %arg9: memref<2x1x16xf32, #tpu.memory_space<vmem>>, %arg10: memref<2x1x16xf32, #tpu.memory_space<vmem>>, %arg11: memref<2x16x64xf32, #tpu.memory_space<vmem>>, %arg12: memref<2x1x64xf32, #tpu.memory_space<vmem>>, %arg13: memref<2x64x16xf32, #tpu.memory_space<vmem>>, %arg14: memref<2x1x16xf32, #tpu.memory_space<vmem>>, %arg15: memref<1x16xf32, #tpu.memory_space<vmem>>, %arg16: memref<1x16xf32, #tpu.memory_space<vmem>>, %arg17: memref<2x5x16xf32, #tpu.memory_space<vmem>>) attributes {dimension_semantics = [#tpu.dimension_semantics<parallel>], iteration_bounds = array<i64: 2>, scalar_prefetch = 0 : i64, scratch_operands = 0 : i64, tpu.core_type = #tpu.core_type<tc>, window_params = [{transform_indices = @transform_0, window_bounds = array<i64: 2, 5, 16>}, {pipeline_mode = #tpu.pipeline_mode<synchronous>, transform_indices = @transform_1, window_bounds = array<i64: 2, 1, 16>}, {pipeline_mode = #tpu.pipeline_mode<synchronous>, transform_indices = @transform_2, window_bounds = array<i64: 2, 1, 16>}, {pipeline_mode = #tpu.pipeline_mode<synchronous>, transform_indices = @transform_3, window_bounds = array<i64: 2, 2, 16, 8>}, {pipeline_mode = #tpu.pipeline_mode<synchronous>, transform_indices = @transform_4, window_bounds = array<i64: 2, 2, 16, 8>}, {pipeline_mode = #tpu.pipeline_mode<synchronous>, transform_indices = @transform_5, window_bounds = array<i64: 2, 2, 16, 8>}, {pipeline_mode = #tpu.pipeline_mode<synchronous>, transform_indices = @transform_6, window_bounds = array<i64: 2, 2, 8, 16>}, {pipeline_mode = #tpu.pipeline_mode<synchronous>, transform_indices = @transform_7, window_bounds = array<i64: 2, 1, 16>}, {pipeline_mode = #tpu.pipeline_mode<synchronous>, transform_indices = @transform_8, window_bounds = array<i64: 2, 1, 16>}, {pipeline_mode = #tpu.pipeline_mode<synchronous>, transform_indices = @transform_9, window_bounds = array<i64: 2, 1, 16>}, {pipeline_mode = #tpu.pipeline_mode<synchronous>, transform_indices = @transform_10, window_bounds = array<i64: 2, 16, 64>}, {pipeline_mode = #tpu.pipeline_mode<synchronous>, transform_indices = @transform_11, window_bounds = array<i64: 2, 1, 64>}, {pipeline_mode = #tpu.pipeline_mode<synchronous>, transform_indices = @transform_12, window_bounds = array<i64: 2, 64, 16>}, {pipeline_mode = #tpu.pipeline_mode<synchronous>, transform_indices = @transform_13, window_bounds = array<i64: 2, 1, 16>}, {pipeline_mode = #tpu.pipeline_mode<synchronous>, transform_indices = @transform_14, window_bounds = array<i64: 1, 16>}, {pipeline_mode = #tpu.pipeline_mode<synchronous>, transform_indices = @transform_15, window_bounds = array<i64: 1, 16>}, {transform_indices = @transform_16, window_bounds = array<i64: 2, 5, 16>}]} {
    %c0 = arith.constant 0 : index
    %c0_0 = arith.constant 0 : index
    %c0_1 = arith.constant 0 : index
    %0 = vector.load %arg1[%c0, %c0_0, %c0_1] : memref<2x5x16xf32, #tpu.memory_space<vmem>>, vector<2x5x16xf32>
    %c0_2 = arith.constant 0 : index
    %c0_3 = arith.constant 0 : index
    %c0_4 = arith.constant 0 : index
    %1 = vector.load %arg2[%c0_2, %c0_3, %c0_4] : memref<2x1x16xf32, #tpu.memory_space<vmem>>, vector<1x1x16xf32>
    %2 = vector.shape_cast %1 : vector<1x1x16xf32> to vector<1x16xf32>
    %c0_5 = arith.constant 0 : index
    %c0_6 = arith.constant 0 : index
    %c0_7 = arith.constant 0 : index
    %3 = vector.load %arg3[%c0_5, %c0_6, %c0_7] : memref<2x1x16xf32, #tpu.memory_space<vmem>>, vector<1x1x16xf32>
    %4 = vector.shape_cast %3 : vector<1x1x16xf32> to vector<1x16xf32>
    %cst = arith.constant dense<0.000000e+00> : vector<2x5xf32>
    %5 = vector.multi_reduction <add>, %0, %cst [2] : vector<2x5x16xf32> to vector<2x5xf32>
    %6 = vector.shape_cast %5 : vector<2x5xf32> to vector<2x5x1xf32>
    %cst_8 = arith.constant 1.600000e+01 : f32
    %7 = vector.broadcast %cst_8 : f32 to vector<2x5x1xf32>
    %8 = arith.divf %6, %7 : vector<2x5x1xf32>
    %9 = vector.broadcast %8 : vector<2x5x1xf32> to vector<2x5x16xf32>
    %10 = arith.subf %0, %9 : vector<2x5x16xf32>
    %11 = arith.mulf %10, %10 : vector<2x5x16xf32>
    %cst_9 = arith.constant dense<0.000000e+00> : vector<2x5xf32>
    %12 = vector.multi_reduction <add>, %11, %cst_9 [2] : vector<2x5x16xf32> to vector<2x5xf32>
    %13 = vector.shape_cast %12 : vector<2x5xf32> to vector<2x5x1xf32>
    %cst_10 = arith.constant 1.600000e+01 : f32
    %14 = vector.broadcast %cst_10 : f32 to vector<2x5x1xf32>
    %15 = arith.divf %13, %14 : vector<2x5x1xf32>
    %16 = vector.broadcast %8 : vector<2x5x1xf32> to vector<2x5x16xf32>
    %17 = arith.subf %0, %16 : vector<2x5x16xf32>
    %cst_11 = arith.constant 9.99999974E-6 : f32
    %18 = vector.broadcast %cst_11 : f32 to vector<2x5x1xf32>
    %19 = arith.addf %15, %18 : vector<2x5x1xf32>
    %20 = math.rsqrt %19 : vector<2x5x1xf32>
    %21 = vector.broadcast %20 : vector<2x5x1xf32> to vector<2x5x16xf32>
    %22 = arith.mulf %17, %21 : vector<2x5x16xf32>
    %23 = vector.shape_cast %2 : vector<1x16xf32> to vector<1x1x16xf32>
    %24 = vector.broadcast %23 : vector<1x1x16xf32> to vector<2x5x16xf32>
    %25 = arith.mulf %22, %24 : vector<2x5x16xf32>
    %26 = vector.shape_cast %4 : vector<1x16xf32> to vector<1x1x16xf32>
    %27 = vector.broadcast %26 : vector<1x1x16xf32> to vector<2x5x16xf32>
    %28 = arith.addf %25, %27 : vector<2x5x16xf32>
    %c0_12 = arith.constant 0 : index
    %c0_13 = arith.constant 0 : index
    %c0_14 = arith.constant 0 : index
    %c0_15 = arith.constant 0 : index
    %29 = vector.load %arg4[%c0_12, %c0_13, %c0_14, %c0_15] : memref<2x2x16x8xf32, #tpu.memory_space<vmem>>, vector<1x2x16x8xf32>
    %30 = vector.shape_cast %29 : vector<1x2x16x8xf32> to vector<2x16x8xf32>
    %c0_16 = arith.constant 0 : index
    %c0_17 = arith.constant 0 : index
    %c0_18 = arith.constant 0 : index
    %c0_19 = arith.constant 0 : index
    %31 = vector.load %arg5[%c0_16, %c0_17, %c0_18, %c0_19] : memref<2x2x16x8xf32, #tpu.memory_space<vmem>>, vector<1x2x16x8xf32>
    %32 = vector.shape_cast %31 : vector<1x2x16x8xf32> to vector<2x16x8xf32>
    %c0_20 = arith.constant 0 : index
    %c0_21 = arith.constant 0 : index
    %c0_22 = arith.constant 0 : index
    %c0_23 = arith.constant 0 : index
    %33 = vector.load %arg6[%c0_20, %c0_21, %c0_22, %c0_23] : memref<2x2x16x8xf32, #tpu.memory_space<vmem>>, vector<1x2x16x8xf32>
    %34 = vector.shape_cast %33 : vector<1x2x16x8xf32> to vector<2x16x8xf32>
    %c0_24 = arith.constant 0 : index
    %c0_25 = arith.constant 0 : index
    %c0_26 = arith.constant 0 : index
    %c0_27 = arith.constant 0 : index
    %35 = vector.load %arg7[%c0_24, %c0_25, %c0_26, %c0_27] : memref<2x2x8x16xf32, #tpu.memory_space<vmem>>, vector<1x2x8x16xf32>
    %36 = vector.shape_cast %35 : vector<1x2x8x16xf32> to vector<2x8x16xf32>
    %cst_28 = arith.constant 0.000000e+00 : f32
    %37 = vector.broadcast %cst_28 : f32 to vector<2x5x16xf32>
    %38 = vector.extract_strided_slice %30 {offsets = [0, 0, 0], sizes = [1, 16, 8], strides = [1, 1, 1]} : vector<2x16x8xf32> to vector<1x16x8xf32>
    %39 = vector.shape_cast %38 : vector<1x16x8xf32> to vector<16x8xf32>
    %40 = vector.shape_cast %39 : vector<16x8xf32> to vector<1x16x8xf32>
    %41 = vector.broadcast %40 : vector<1x16x8xf32> to vector<2x16x8xf32>
    "tpu.trace_start"() <{level = 10 : i32, message = "snd,sdk->snk"}> : () -> ()
    %cst_29 = arith.constant dense<0.000000e+00> : vector<2x5x8xf32>
    %42 = tpu.matmul %28, %41, %cst_29 {dimension_numbers = #tpu.dot_dimension_numbers<[2], [1], [1], [2], [0, 0, 0, 1, 1, 2], [0], [0]>} : vector<2x5x16xf32>, vector<2x16x8xf32>, vector<2x5x8xf32> -> vector<2x5x8xf32>
    "tpu.trace_stop"() : () -> ()
    %43 = vector.extract_strided_slice %32 {offsets = [0, 0, 0], sizes = [1, 16, 8], strides = [1, 1, 1]} : vector<2x16x8xf32> to vector<1x16x8xf32>
    %44 = vector.shape_cast %43 : vector<1x16x8xf32> to vector<16x8xf32>
    %45 = vector.shape_cast %44 : vector<16x8xf32> to vector<1x16x8xf32>
    %46 = vector.broadcast %45 : vector<1x16x8xf32> to vector<2x16x8xf32>
    "tpu.trace_start"() <{level = 10 : i32, message = "snd,sdk->snk"}> : () -> ()
    %cst_30 = arith.constant dense<0.000000e+00> : vector<2x5x8xf32>
    %47 = tpu.matmul %28, %46, %cst_30 {dimension_numbers = #tpu.dot_dimension_numbers<[2], [1], [1], [2], [0, 0, 0, 1, 1, 2], [0], [0]>} : vector<2x5x16xf32>, vector<2x16x8xf32>, vector<2x5x8xf32> -> vector<2x5x8xf32>
    "tpu.trace_stop"() : () -> ()
    %48 = vector.extract_strided_slice %34 {offsets = [0, 0, 0], sizes = [1, 16, 8], strides = [1, 1, 1]} : vector<2x16x8xf32> to vector<1x16x8xf32>
    %49 = vector.shape_cast %48 : vector<1x16x8xf32> to vector<16x8xf32>
    %50 = vector.shape_cast %49 : vector<16x8xf32> to vector<1x16x8xf32>
    %51 = vector.broadcast %50 : vector<1x16x8xf32> to vector<2x16x8xf32>
    "tpu.trace_start"() <{level = 10 : i32, message = "snd,sdk->snk"}> : () -> ()
    %cst_31 = arith.constant dense<0.000000e+00> : vector<2x5x8xf32>
    %52 = tpu.matmul %28, %51, %cst_31 {dimension_numbers = #tpu.dot_dimension_numbers<[2], [1], [1], [2], [0, 0, 0, 1, 1, 2], [0], [0]>} : vector<2x5x16xf32>, vector<2x16x8xf32>, vector<2x5x8xf32> -> vector<2x5x8xf32>
    "tpu.trace_stop"() : () -> ()
    "tpu.trace_start"() <{level = 10 : i32, message = "sik,sjk->sij"}> : () -> ()
    %cst_32 = arith.constant dense<0.000000e+00> : vector<2x5x5xf32>
    %53 = tpu.matmul %42, %47, %cst_32 {dimension_numbers = #tpu.dot_dimension_numbers<[2], [2], [1], [1], [0, 0, 0, 1, 1, 1], [0], [0]>} : vector<2x5x8xf32>, vector<2x5x8xf32>, vector<2x5x5xf32> -> vector<2x5x5xf32>
    "tpu.trace_stop"() : () -> ()
    %cst_33 = arith.constant 0.353553385 : f32
    %54 = vector.broadcast %cst_33 : f32 to vector<2x5x5xf32>
    %55 = arith.mulf %53, %54 : vector<2x5x5xf32>
    %cst_34 = arith.constant dense<0xFF800000> : vector<2x5xf32>
    %56 = vector.multi_reduction <maximumf>, %55, %cst_34 [2] : vector<2x5x5xf32> to vector<2x5xf32>
    %57 = vector.shape_cast %56 : vector<2x5xf32> to vector<2x5x1xf32>
    %58 = vector.broadcast %57 : vector<2x5x1xf32> to vector<2x5x5xf32>
    %59 = arith.subf %55, %58 : vector<2x5x5xf32>
    %60 = math.exp %59 : vector<2x5x5xf32>
    %cst_35 = arith.constant dense<0.000000e+00> : vector<2x5xf32>
    %61 = vector.multi_reduction <add>, %60, %cst_35 [2] : vector<2x5x5xf32> to vector<2x5xf32>
    %62 = vector.shape_cast %61 : vector<2x5xf32> to vector<2x5x1xf32>
    %63 = vector.broadcast %62 : vector<2x5x1xf32> to vector<2x5x5xf32>
    %64 = arith.divf %60, %63 : vector<2x5x5xf32>
    "tpu.trace_start"() <{level = 10 : i32, message = "sij,sjk->sik"}> : () -> ()
    %cst_36 = arith.constant dense<0.000000e+00> : vector<2x5x8xf32>
    %65 = tpu.matmul %64, %52, %cst_36 {dimension_numbers = #tpu.dot_dimension_numbers<[2], [1], [1], [2], [0, 0, 0, 1, 1, 2], [0], [0]>} : vector<2x5x5xf32>, vector<2x5x8xf32>, vector<2x5x8xf32> -> vector<2x5x8xf32>
    "tpu.trace_stop"() : () -> ()
    %66 = vector.extract_strided_slice %36 {offsets = [0, 0, 0], sizes = [1, 8, 16], strides = [1, 1, 1]} : vector<2x8x16xf32> to vector<1x8x16xf32>
    %67 = vector.shape_cast %66 : vector<1x8x16xf32> to vector<8x16xf32>
    %68 = vector.shape_cast %67 : vector<8x16xf32> to vector<1x8x16xf32>
    %69 = vector.broadcast %68 : vector<1x8x16xf32> to vector<2x8x16xf32>
    "tpu.trace_start"() <{level = 10 : i32, message = "snk,skd->snd"}> : () -> ()
    %cst_37 = arith.constant dense<0.000000e+00> : vector<2x5x16xf32>
    %70 = tpu.matmul %65, %69, %cst_37 {dimension_numbers = #tpu.dot_dimension_numbers<[2], [1], [1], [2], [0, 0, 0, 1, 1, 2], [0], [0]>} : vector<2x5x8xf32>, vector<2x8x16xf32>, vector<2x5x16xf32> -> vector<2x5x16xf32>
    "tpu.trace_stop"() : () -> ()
    %71 = arith.addf %37, %70 : vector<2x5x16xf32>
    %72 = vector.extract_strided_slice %30 {offsets = [1, 0, 0], sizes = [1, 16, 8], strides = [1, 1, 1]} : vector<2x16x8xf32> to vector<1x16x8xf32>
    %73 = vector.shape_cast %72 : vector<1x16x8xf32> to vector<16x8xf32>
    %74 = vector.shape_cast %73 : vector<16x8xf32> to vector<1x16x8xf32>
    %75 = vector.broadcast %74 : vector<1x16x8xf32> to vector<2x16x8xf32>
    "tpu.trace_start"() <{level = 10 : i32, message = "snd,sdk->snk"}> : () -> ()
    %cst_38 = arith.constant dense<0.000000e+00> : vector<2x5x8xf32>
    %76 = tpu.matmul %28, %75, %cst_38 {dimension_numbers = #tpu.dot_dimension_numbers<[2], [1], [1], [2], [0, 0, 0, 1, 1, 2], [0], [0]>} : vector<2x5x16xf32>, vector<2x16x8xf32>, vector<2x5x8xf32> -> vector<2x5x8xf32>
    "tpu.trace_stop"() : () -> ()
    %77 = vector.extract_strided_slice %32 {offsets = [1, 0, 0], sizes = [1, 16, 8], strides = [1, 1, 1]} : vector<2x16x8xf32> to vector<1x16x8xf32>
    %78 = vector.shape_cast %77 : vector<1x16x8xf32> to vector<16x8xf32>
    %79 = vector.shape_cast %78 : vector<16x8xf32> to vector<1x16x8xf32>
    %80 = vector.broadcast %79 : vector<1x16x8xf32> to vector<2x16x8xf32>
    "tpu.trace_start"() <{level = 10 : i32, message = "snd,sdk->snk"}> : () -> ()
    %cst_39 = arith.constant dense<0.000000e+00> : vector<2x5x8xf32>
    %81 = tpu.matmul %28, %80, %cst_39 {dimension_numbers = #tpu.dot_dimension_numbers<[2], [1], [1], [2], [0, 0, 0, 1, 1, 2], [0], [0]>} : vector<2x5x16xf32>, vector<2x16x8xf32>, vector<2x5x8xf32> -> vector<2x5x8xf32>
    "tpu.trace_stop"() : () -> ()
    %82 = vector.extract_strided_slice %34 {offsets = [1, 0, 0], sizes = [1, 16, 8], strides = [1, 1, 1]} : vector<2x16x8xf32> to vector<1x16x8xf32>
    %83 = vector.shape_cast %82 : vector<1x16x8xf32> to vector<16x8xf32>
    %84 = vector.shape_cast %83 : vector<16x8xf32> to vector<1x16x8xf32>
    %85 = vector.broadcast %84 : vector<1x16x8xf32> to vector<2x16x8xf32>
    "tpu.trace_start"() <{level = 10 : i32, message = "snd,sdk->snk"}> : () -> ()
    %cst_40 = arith.constant dense<0.000000e+00> : vector<2x5x8xf32>
    %86 = tpu.matmul %28, %85, %cst_40 {dimension_numbers = #tpu.dot_dimension_numbers<[2], [1], [1], [2], [0, 0, 0, 1, 1, 2], [0], [0]>} : vector<2x5x16xf32>, vector<2x16x8xf32>, vector<2x5x8xf32> -> vector<2x5x8xf32>
    "tpu.trace_stop"() : () -> ()
    "tpu.trace_start"() <{level = 10 : i32, message = "sik,sjk->sij"}> : () -> ()
    %cst_41 = arith.constant dense<0.000000e+00> : vector<2x5x5xf32>
    %87 = tpu.matmul %76, %81, %cst_41 {dimension_numbers = #tpu.dot_dimension_numbers<[2], [2], [1], [1], [0, 0, 0, 1, 1, 1], [0], [0]>} : vector<2x5x8xf32>, vector<2x5x8xf32>, vector<2x5x5xf32> -> vector<2x5x5xf32>
    "tpu.trace_stop"() : () -> ()
    %cst_42 = arith.constant 0.353553385 : f32
    %88 = vector.broadcast %cst_42 : f32 to vector<2x5x5xf32>
    %89 = arith.mulf %87, %88 : vector<2x5x5xf32>
    %cst_43 = arith.constant dense<0xFF800000> : vector<2x5xf32>
    %90 = vector.multi_reduction <maximumf>, %89, %cst_43 [2] : vector<2x5x5xf32> to vector<2x5xf32>
    %91 = vector.shape_cast %90 : vector<2x5xf32> to vector<2x5x1xf32>
    %92 = vector.broadcast %91 : vector<2x5x1xf32> to vector<2x5x5xf32>
    %93 = arith.subf %89, %92 : vector<2x5x5xf32>
    %94 = math.exp %93 : vector<2x5x5xf32>
    %cst_44 = arith.constant dense<0.000000e+00> : vector<2x5xf32>
    %95 = vector.multi_reduction <add>, %94, %cst_44 [2] : vector<2x5x5xf32> to vector<2x5xf32>
    %96 = vector.shape_cast %95 : vector<2x5xf32> to vector<2x5x1xf32>
    %97 = vector.broadcast %96 : vector<2x5x1xf32> to vector<2x5x5xf32>
    %98 = arith.divf %94, %97 : vector<2x5x5xf32>
    "tpu.trace_start"() <{level = 10 : i32, message = "sij,sjk->sik"}> : () -> ()
    %cst_45 = arith.constant dense<0.000000e+00> : vector<2x5x8xf32>
    %99 = tpu.matmul %98, %86, %cst_45 {dimension_numbers = #tpu.dot_dimension_numbers<[2], [1], [1], [2], [0, 0, 0, 1, 1, 2], [0], [0]>} : vector<2x5x5xf32>, vector<2x5x8xf32>, vector<2x5x8xf32> -> vector<2x5x8xf32>
    "tpu.trace_stop"() : () -> ()
    %100 = vector.extract_strided_slice %36 {offsets = [1, 0, 0], sizes = [1, 8, 16], strides = [1, 1, 1]} : vector<2x8x16xf32> to vector<1x8x16xf32>
    %101 = vector.shape_cast %100 : vector<1x8x16xf32> to vector<8x16xf32>
    %102 = vector.shape_cast %101 : vector<8x16xf32> to vector<1x8x16xf32>
    %103 = vector.broadcast %102 : vector<1x8x16xf32> to vector<2x8x16xf32>
    "tpu.trace_start"() <{level = 10 : i32, message = "snk,skd->snd"}> : () -> ()
    %cst_46 = arith.constant dense<0.000000e+00> : vector<2x5x16xf32>
    %104 = tpu.matmul %99, %103, %cst_46 {dimension_numbers = #tpu.dot_dimension_numbers<[2], [1], [1], [2], [0, 0, 0, 1, 1, 2], [0], [0]>} : vector<2x5x8xf32>, vector<2x8x16xf32>, vector<2x5x16xf32> -> vector<2x5x16xf32>
    "tpu.trace_stop"() : () -> ()
    %105 = arith.addf %71, %104 : vector<2x5x16xf32>
    %106 = arith.addf %0, %105 : vector<2x5x16xf32>
    %c0_47 = arith.constant 0 : index
    %c0_48 = arith.constant 0 : index
    %c0_49 = arith.constant 0 : index
    %107 = vector.load %arg8[%c0_47, %c0_48, %c0_49] : memref<2x1x16xf32, #tpu.memory_space<vmem>>, vector<1x1x16xf32>
    %108 = vector.shape_cast %107 : vector<1x1x16xf32> to vector<1x16xf32>
    %109 = vector.shape_cast %108 : vector<1x16xf32> to vector<1x1x16xf32>
    %110 = vector.broadcast %109 : vector<1x1x16xf32> to vector<2x5x16xf32>
    %111 = arith.addf %106, %110 : vector<2x5x16xf32>
    %c0_50 = arith.constant 0 : index
    %c0_51 = arith.constant 0 : index
    %c0_52 = arith.constant 0 : index
    %112 = vector.load %arg9[%c0_50, %c0_51, %c0_52] : memref<2x1x16xf32, #tpu.memory_space<vmem>>, vector<1x1x16xf32>
    %113 = vector.shape_cast %112 : vector<1x1x16xf32> to vector<1x16xf32>
    %c0_53 = arith.constant 0 : index
    %c0_54 = arith.constant 0 : index
    %c0_55 = arith.constant 0 : index
    %114 = vector.load %arg10[%c0_53, %c0_54, %c0_55] : memref<2x1x16xf32, #tpu.memory_space<vmem>>, vector<1x1x16xf32>
    %115 = vector.shape_cast %114 : vector<1x1x16xf32> to vector<1x16xf32>
    %cst_56 = arith.constant dense<0.000000e+00> : vector<2x5xf32>
    %116 = vector.multi_reduction <add>, %111, %cst_56 [2] : vector<2x5x16xf32> to vector<2x5xf32>
    %117 = vector.shape_cast %116 : vector<2x5xf32> to vector<2x5x1xf32>
    %cst_57 = arith.constant 1.600000e+01 : f32
    %118 = vector.broadcast %cst_57 : f32 to vector<2x5x1xf32>
    %119 = arith.divf %117, %118 : vector<2x5x1xf32>
    %120 = vector.broadcast %119 : vector<2x5x1xf32> to vector<2x5x16xf32>
    %121 = arith.subf %111, %120 : vector<2x5x16xf32>
    %122 = arith.mulf %121, %121 : vector<2x5x16xf32>
    %cst_58 = arith.constant dense<0.000000e+00> : vector<2x5xf32>
    %123 = vector.multi_reduction <add>, %122, %cst_58 [2] : vector<2x5x16xf32> to vector<2x5xf32>
    %124 = vector.shape_cast %123 : vector<2x5xf32> to vector<2x5x1xf32>
    %cst_59 = arith.constant 1.600000e+01 : f32
    %125 = vector.broadcast %cst_59 : f32 to vector<2x5x1xf32>
    %126 = arith.divf %124, %125 : vector<2x5x1xf32>
    %127 = vector.broadcast %119 : vector<2x5x1xf32> to vector<2x5x16xf32>
    %128 = arith.subf %111, %127 : vector<2x5x16xf32>
    %cst_60 = arith.constant 9.99999974E-6 : f32
    %129 = vector.broadcast %cst_60 : f32 to vector<2x5x1xf32>
    %130 = arith.addf %126, %129 : vector<2x5x1xf32>
    %131 = math.rsqrt %130 : vector<2x5x1xf32>
    %132 = vector.broadcast %131 : vector<2x5x1xf32> to vector<2x5x16xf32>
    %133 = arith.mulf %128, %132 : vector<2x5x16xf32>
    %134 = vector.shape_cast %113 : vector<1x16xf32> to vector<1x1x16xf32>
    %135 = vector.broadcast %134 : vector<1x1x16xf32> to vector<2x5x16xf32>
    %136 = arith.mulf %133, %135 : vector<2x5x16xf32>
    %137 = vector.shape_cast %115 : vector<1x16xf32> to vector<1x1x16xf32>
    %138 = vector.broadcast %137 : vector<1x1x16xf32> to vector<2x5x16xf32>
    %139 = arith.addf %136, %138 : vector<2x5x16xf32>
    %c0_61 = arith.constant 0 : index
    %c0_62 = arith.constant 0 : index
    %c0_63 = arith.constant 0 : index
    %140 = vector.load %arg11[%c0_61, %c0_62, %c0_63] : memref<2x16x64xf32, #tpu.memory_space<vmem>>, vector<1x16x64xf32>
    %141 = vector.shape_cast %140 : vector<1x16x64xf32> to vector<16x64xf32>
    %142 = vector.shape_cast %141 : vector<16x64xf32> to vector<1x16x64xf32>
    %143 = vector.broadcast %142 : vector<1x16x64xf32> to vector<2x16x64xf32>
    "tpu.trace_start"() <{level = 10 : i32, message = "snd,sdm->snm"}> : () -> ()
    %cst_64 = arith.constant dense<0.000000e+00> : vector<2x5x64xf32>
    %144 = tpu.matmul %139, %143, %cst_64 {dimension_numbers = #tpu.dot_dimension_numbers<[2], [1], [1], [2], [0, 0, 0, 1, 1, 2], [0], [0]>} : vector<2x5x16xf32>, vector<2x16x64xf32>, vector<2x5x64xf32> -> vector<2x5x64xf32>
    "tpu.trace_stop"() : () -> ()
    %c0_65 = arith.constant 0 : index
    %c0_66 = arith.constant 0 : index
    %c0_67 = arith.constant 0 : index
    %145 = vector.load %arg12[%c0_65, %c0_66, %c0_67] : memref<2x1x64xf32, #tpu.memory_space<vmem>>, vector<1x1x64xf32>
    %146 = vector.shape_cast %145 : vector<1x1x64xf32> to vector<1x64xf32>
    %147 = vector.shape_cast %146 : vector<1x64xf32> to vector<1x1x64xf32>
    %148 = vector.broadcast %147 : vector<1x1x64xf32> to vector<2x5x64xf32>
    %149 = arith.addf %144, %148 : vector<2x5x64xf32>
    %cst_68 = arith.constant 5.000000e-01 : f32
    %150 = vector.broadcast %cst_68 : f32 to vector<2x5x64xf32>
    %151 = arith.mulf %149, %150 : vector<2x5x64xf32>
    %cst_69 = arith.constant 0.707106769 : f32
    %152 = vector.broadcast %cst_69 : f32 to vector<2x5x64xf32>
    %153 = arith.mulf %149, %152 : vector<2x5x64xf32>
    %154 = math.erf %153 : vector<2x5x64xf32>
    %cst_70 = arith.constant 1.000000e+00 : f32
    %155 = vector.broadcast %cst_70 : f32 to vector<2x5x64xf32>
    %156 = arith.addf %155, %154 : vector<2x5x64xf32>
    %157 = arith.mulf %151, %156 : vector<2x5x64xf32>
    %c0_71 = arith.constant 0 : index
    %c0_72 = arith.constant 0 : index
    %c0_73 = arith.constant 0 : index
    %158 = vector.load %arg13[%c0_71, %c0_72, %c0_73] : memref<2x64x16xf32, #tpu.memory_space<vmem>>, vector<1x64x16xf32>
    %159 = vector.shape_cast %158 : vector<1x64x16xf32> to vector<64x16xf32>
    %160 = vector.shape_cast %159 : vector<64x16xf32> to vector<1x64x16xf32>
    %161 = vector.broadcast %160 : vector<1x64x16xf32> to vector<2x64x16xf32>
    "tpu.trace_start"() <{level = 10 : i32, message = "snm,smd->snd"}> : () -> ()
    %cst_74 = arith.constant dense<0.000000e+00> : vector<2x5x16xf32>
    %162 = tpu.matmul %157, %161, %cst_74 {dimension_numbers = #tpu.dot_dimension_numbers<[2], [1], [1], [2], [0, 0, 0, 1, 1, 2], [0], [0]>} : vector<2x5x64xf32>, vector<2x64x16xf32>, vector<2x5x16xf32> -> vector<2x5x16xf32>
    "tpu.trace_stop"() : () -> ()
    %163 = arith.addf %111, %162 : vector<2x5x16xf32>
    %c0_75 = arith.constant 0 : index
    %c0_76 = arith.constant 0 : index
    %c0_77 = arith.constant 0 : index
    %164 = vector.load %arg14[%c0_75, %c0_76, %c0_77] : memref<2x1x16xf32, #tpu.memory_space<vmem>>, vector<1x1x16xf32>
    %165 = vector.shape_cast %164 : vector<1x1x16xf32> to vector<1x16xf32>
    %166 = vector.shape_cast %165 : vector<1x16xf32> to vector<1x1x16xf32>
    %167 = vector.broadcast %166 : vector<1x1x16xf32> to vector<2x5x16xf32>
    %168 = arith.addf %163, %167 : vector<2x5x16xf32>
    %c1 = arith.constant 1 : index
    %c0_78 = arith.constant 0 : index
    %c0_79 = arith.constant 0 : index
    %169 = vector.load %arg2[%c1, %c0_78, %c0_79] : memref<2x1x16xf32, #tpu.memory_space<vmem>>, vector<1x1x16xf32>
    %170 = vector.shape_cast %169 : vector<1x1x16xf32> to vector<1x16xf32>
    %c1_80 = arith.constant 1 : index
    %c0_81 = arith.constant 0 : index
    %c0_82 = arith.constant 0 : index
    %171 = vector.load %arg3[%c1_80, %c0_81, %c0_82] : memref<2x1x16xf32, #tpu.memory_space<vmem>>, vector<1x1x16xf32>
    %172 = vector.shape_cast %171 : vector<1x1x16xf32> to vector<1x16xf32>
    %cst_83 = arith.constant dense<0.000000e+00> : vector<2x5xf32>
    %173 = vector.multi_reduction <add>, %168, %cst_83 [2] : vector<2x5x16xf32> to vector<2x5xf32>
    %174 = vector.shape_cast %173 : vector<2x5xf32> to vector<2x5x1xf32>
    %cst_84 = arith.constant 1.600000e+01 : f32
    %175 = vector.broadcast %cst_84 : f32 to vector<2x5x1xf32>
    %176 = arith.divf %174, %175 : vector<2x5x1xf32>
    %177 = vector.broadcast %176 : vector<2x5x1xf32> to vector<2x5x16xf32>
    %178 = arith.subf %168, %177 : vector<2x5x16xf32>
    %179 = arith.mulf %178, %178 : vector<2x5x16xf32>
    %cst_85 = arith.constant dense<0.000000e+00> : vector<2x5xf32>
    %180 = vector.multi_reduction <add>, %179, %cst_85 [2] : vector<2x5x16xf32> to vector<2x5xf32>
    %181 = vector.shape_cast %180 : vector<2x5xf32> to vector<2x5x1xf32>
    %cst_86 = arith.constant 1.600000e+01 : f32
    %182 = vector.broadcast %cst_86 : f32 to vector<2x5x1xf32>
    %183 = arith.divf %181, %182 : vector<2x5x1xf32>
    %184 = vector.broadcast %176 : vector<2x5x1xf32> to vector<2x5x16xf32>
    %185 = arith.subf %168, %184 : vector<2x5x16xf32>
    %cst_87 = arith.constant 9.99999974E-6 : f32
    %186 = vector.broadcast %cst_87 : f32 to vector<2x5x1xf32>
    %187 = arith.addf %183, %186 : vector<2x5x1xf32>
    %188 = math.rsqrt %187 : vector<2x5x1xf32>
    %189 = vector.broadcast %188 : vector<2x5x1xf32> to vector<2x5x16xf32>
    %190 = arith.mulf %185, %189 : vector<2x5x16xf32>
    %191 = vector.shape_cast %170 : vector<1x16xf32> to vector<1x1x16xf32>
    %192 = vector.broadcast %191 : vector<1x1x16xf32> to vector<2x5x16xf32>
    %193 = arith.mulf %190, %192 : vector<2x5x16xf32>
    %194 = vector.shape_cast %172 : vector<1x16xf32> to vector<1x1x16xf32>
    %195 = vector.broadcast %194 : vector<1x1x16xf32> to vector<2x5x16xf32>
    %196 = arith.addf %193, %195 : vector<2x5x16xf32>
    %c1_88 = arith.constant 1 : index
    %c0_89 = arith.constant 0 : index
    %c0_90 = arith.constant 0 : index
    %c0_91 = arith.constant 0 : index
    %197 = vector.load %arg4[%c1_88, %c0_89, %c0_90, %c0_91] : memref<2x2x16x8xf32, #tpu.memory_space<vmem>>, vector<1x2x16x8xf32>
    %198 = vector.shape_cast %197 : vector<1x2x16x8xf32> to vector<2x16x8xf32>
    %c1_92 = arith.constant 1 : index
    %c0_93 = arith.constant 0 : index
    %c0_94 = arith.constant 0 : index
    %c0_95 = arith.constant 0 : index
    %199 = vector.load %arg5[%c1_92, %c0_93, %c0_94, %c0_95] : memref<2x2x16x8xf32, #tpu.memory_space<vmem>>, vector<1x2x16x8xf32>
    %200 = vector.shape_cast %199 : vector<1x2x16x8xf32> to vector<2x16x8xf32>
    %c1_96 = arith.constant 1 : index
    %c0_97 = arith.constant 0 : index
    %c0_98 = arith.constant 0 : index
    %c0_99 = arith.constant 0 : index
    %201 = vector.load %arg6[%c1_96, %c0_97, %c0_98, %c0_99] : memref<2x2x16x8xf32, #tpu.memory_space<vmem>>, vector<1x2x16x8xf32>
    %202 = vector.shape_cast %201 : vector<1x2x16x8xf32> to vector<2x16x8xf32>
    %c1_100 = arith.constant 1 : index
    %c0_101 = arith.constant 0 : index
    %c0_102 = arith.constant 0 : index
    %c0_103 = arith.constant 0 : index
    %203 = vector.load %arg7[%c1_100, %c0_101, %c0_102, %c0_103] : memref<2x2x8x16xf32, #tpu.memory_space<vmem>>, vector<1x2x8x16xf32>
    %204 = vector.shape_cast %203 : vector<1x2x8x16xf32> to vector<2x8x16xf32>
    %cst_104 = arith.constant 0.000000e+00 : f32
    %205 = vector.broadcast %cst_104 : f32 to vector<2x5x16xf32>
    %206 = vector.extract_strided_slice %198 {offsets = [0, 0, 0], sizes = [1, 16, 8], strides = [1, 1, 1]} : vector<2x16x8xf32> to vector<1x16x8xf32>
    %207 = vector.shape_cast %206 : vector<1x16x8xf32> to vector<16x8xf32>
    %208 = vector.shape_cast %207 : vector<16x8xf32> to vector<1x16x8xf32>
    %209 = vector.broadcast %208 : vector<1x16x8xf32> to vector<2x16x8xf32>
    "tpu.trace_start"() <{level = 10 : i32, message = "snd,sdk->snk"}> : () -> ()
    %cst_105 = arith.constant dense<0.000000e+00> : vector<2x5x8xf32>
    %210 = tpu.matmul %196, %209, %cst_105 {dimension_numbers = #tpu.dot_dimension_numbers<[2], [1], [1], [2], [0, 0, 0, 1, 1, 2], [0], [0]>} : vector<2x5x16xf32>, vector<2x16x8xf32>, vector<2x5x8xf32> -> vector<2x5x8xf32>
    "tpu.trace_stop"() : () -> ()
    %211 = vector.extract_strided_slice %200 {offsets = [0, 0, 0], sizes = [1, 16, 8], strides = [1, 1, 1]} : vector<2x16x8xf32> to vector<1x16x8xf32>
    %212 = vector.shape_cast %211 : vector<1x16x8xf32> to vector<16x8xf32>
    %213 = vector.shape_cast %212 : vector<16x8xf32> to vector<1x16x8xf32>
    %214 = vector.broadcast %213 : vector<1x16x8xf32> to vector<2x16x8xf32>
    "tpu.trace_start"() <{level = 10 : i32, message = "snd,sdk->snk"}> : () -> ()
    %cst_106 = arith.constant dense<0.000000e+00> : vector<2x5x8xf32>
    %215 = tpu.matmul %196, %214, %cst_106 {dimension_numbers = #tpu.dot_dimension_numbers<[2], [1], [1], [2], [0, 0, 0, 1, 1, 2], [0], [0]>} : vector<2x5x16xf32>, vector<2x16x8xf32>, vector<2x5x8xf32> -> vector<2x5x8xf32>
    "tpu.trace_stop"() : () -> ()
    %216 = vector.extract_strided_slice %202 {offsets = [0, 0, 0], sizes = [1, 16, 8], strides = [1, 1, 1]} : vector<2x16x8xf32> to vector<1x16x8xf32>
    %217 = vector.shape_cast %216 : vector<1x16x8xf32> to vector<16x8xf32>
    %218 = vector.shape_cast %217 : vector<16x8xf32> to vector<1x16x8xf32>
    %219 = vector.broadcast %218 : vector<1x16x8xf32> to vector<2x16x8xf32>
    "tpu.trace_start"() <{level = 10 : i32, message = "snd,sdk->snk"}> : () -> ()
    %cst_107 = arith.constant dense<0.000000e+00> : vector<2x5x8xf32>
    %220 = tpu.matmul %196, %219, %cst_107 {dimension_numbers = #tpu.dot_dimension_numbers<[2], [1], [1], [2], [0, 0, 0, 1, 1, 2], [0], [0]>} : vector<2x5x16xf32>, vector<2x16x8xf32>, vector<2x5x8xf32> -> vector<2x5x8xf32>
    "tpu.trace_stop"() : () -> ()
    "tpu.trace_start"() <{level = 10 : i32, message = "sik,sjk->sij"}> : () -> ()
    %cst_108 = arith.constant dense<0.000000e+00> : vector<2x5x5xf32>
    %221 = tpu.matmul %210, %215, %cst_108 {dimension_numbers = #tpu.dot_dimension_numbers<[2], [2], [1], [1], [0, 0, 0, 1, 1, 1], [0], [0]>} : vector<2x5x8xf32>, vector<2x5x8xf32>, vector<2x5x5xf32> -> vector<2x5x5xf32>
    "tpu.trace_stop"() : () -> ()
    %cst_109 = arith.constant 0.353553385 : f32
    %222 = vector.broadcast %cst_109 : f32 to vector<2x5x5xf32>
    %223 = arith.mulf %221, %222 : vector<2x5x5xf32>
    %cst_110 = arith.constant dense<0xFF800000> : vector<2x5xf32>
    %224 = vector.multi_reduction <maximumf>, %223, %cst_110 [2] : vector<2x5x5xf32> to vector<2x5xf32>
    %225 = vector.shape_cast %224 : vector<2x5xf32> to vector<2x5x1xf32>
    %226 = vector.broadcast %225 : vector<2x5x1xf32> to vector<2x5x5xf32>
    %227 = arith.subf %223, %226 : vector<2x5x5xf32>
    %228 = math.exp %227 : vector<2x5x5xf32>
    %cst_111 = arith.constant dense<0.000000e+00> : vector<2x5xf32>
    %229 = vector.multi_reduction <add>, %228, %cst_111 [2] : vector<2x5x5xf32> to vector<2x5xf32>
    %230 = vector.shape_cast %229 : vector<2x5xf32> to vector<2x5x1xf32>
    %231 = vector.broadcast %230 : vector<2x5x1xf32> to vector<2x5x5xf32>
    %232 = arith.divf %228, %231 : vector<2x5x5xf32>
    "tpu.trace_start"() <{level = 10 : i32, message = "sij,sjk->sik"}> : () -> ()
    %cst_112 = arith.constant dense<0.000000e+00> : vector<2x5x8xf32>
    %233 = tpu.matmul %232, %220, %cst_112 {dimension_numbers = #tpu.dot_dimension_numbers<[2], [1], [1], [2], [0, 0, 0, 1, 1, 2], [0], [0]>} : vector<2x5x5xf32>, vector<2x5x8xf32>, vector<2x5x8xf32> -> vector<2x5x8xf32>
    "tpu.trace_stop"() : () -> ()
    %234 = vector.extract_strided_slice %204 {offsets = [0, 0, 0], sizes = [1, 8, 16], strides = [1, 1, 1]} : vector<2x8x16xf32> to vector<1x8x16xf32>
    %235 = vector.shape_cast %234 : vector<1x8x16xf32> to vector<8x16xf32>
    %236 = vector.shape_cast %235 : vector<8x16xf32> to vector<1x8x16xf32>
    %237 = vector.broadcast %236 : vector<1x8x16xf32> to vector<2x8x16xf32>
    "tpu.trace_start"() <{level = 10 : i32, message = "snk,skd->snd"}> : () -> ()
    %cst_113 = arith.constant dense<0.000000e+00> : vector<2x5x16xf32>
    %238 = tpu.matmul %233, %237, %cst_113 {dimension_numbers = #tpu.dot_dimension_numbers<[2], [1], [1], [2], [0, 0, 0, 1, 1, 2], [0], [0]>} : vector<2x5x8xf32>, vector<2x8x16xf32>, vector<2x5x16xf32> -> vector<2x5x16xf32>
    "tpu.trace_stop"() : () -> ()
    %239 = arith.addf %205, %238 : vector<2x5x16xf32>
    %240 = vector.extract_strided_slice %198 {offsets = [1, 0, 0], sizes = [1, 16, 8], strides = [1, 1, 1]} : vector<2x16x8xf32> to vector<1x16x8xf32>
    %241 = vector.shape_cast %240 : vector<1x16x8xf32> to vector<16x8xf32>
    %242 = vector.shape_cast %241 : vector<16x8xf32> to vector<1x16x8xf32>
    %243 = vector.broadcast %242 : vector<1x16x8xf32> to vector<2x16x8xf32>
    "tpu.trace_start"() <{level = 10 : i32, message = "snd,sdk->snk"}> : () -> ()
    %cst_114 = arith.constant dense<0.000000e+00> : vector<2x5x8xf32>
    %244 = tpu.matmul %196, %243, %cst_114 {dimension_numbers = #tpu.dot_dimension_numbers<[2], [1], [1], [2], [0, 0, 0, 1, 1, 2], [0], [0]>} : vector<2x5x16xf32>, vector<2x16x8xf32>, vector<2x5x8xf32> -> vector<2x5x8xf32>
    "tpu.trace_stop"() : () -> ()
    %245 = vector.extract_strided_slice %200 {offsets = [1, 0, 0], sizes = [1, 16, 8], strides = [1, 1, 1]} : vector<2x16x8xf32> to vector<1x16x8xf32>
    %246 = vector.shape_cast %245 : vector<1x16x8xf32> to vector<16x8xf32>
    %247 = vector.shape_cast %246 : vector<16x8xf32> to vector<1x16x8xf32>
    %248 = vector.broadcast %247 : vector<1x16x8xf32> to vector<2x16x8xf32>
    "tpu.trace_start"() <{level = 10 : i32, message = "snd,sdk->snk"}> : () -> ()
    %cst_115 = arith.constant dense<0.000000e+00> : vector<2x5x8xf32>
    %249 = tpu.matmul %196, %248, %cst_115 {dimension_numbers = #tpu.dot_dimension_numbers<[2], [1], [1], [2], [0, 0, 0, 1, 1, 2], [0], [0]>} : vector<2x5x16xf32>, vector<2x16x8xf32>, vector<2x5x8xf32> -> vector<2x5x8xf32>
    "tpu.trace_stop"() : () -> ()
    %250 = vector.extract_strided_slice %202 {offsets = [1, 0, 0], sizes = [1, 16, 8], strides = [1, 1, 1]} : vector<2x16x8xf32> to vector<1x16x8xf32>
    %251 = vector.shape_cast %250 : vector<1x16x8xf32> to vector<16x8xf32>
    %252 = vector.shape_cast %251 : vector<16x8xf32> to vector<1x16x8xf32>
    %253 = vector.broadcast %252 : vector<1x16x8xf32> to vector<2x16x8xf32>
    "tpu.trace_start"() <{level = 10 : i32, message = "snd,sdk->snk"}> : () -> ()
    %cst_116 = arith.constant dense<0.000000e+00> : vector<2x5x8xf32>
    %254 = tpu.matmul %196, %253, %cst_116 {dimension_numbers = #tpu.dot_dimension_numbers<[2], [1], [1], [2], [0, 0, 0, 1, 1, 2], [0], [0]>} : vector<2x5x16xf32>, vector<2x16x8xf32>, vector<2x5x8xf32> -> vector<2x5x8xf32>
    "tpu.trace_stop"() : () -> ()
    "tpu.trace_start"() <{level = 10 : i32, message = "sik,sjk->sij"}> : () -> ()
    %cst_117 = arith.constant dense<0.000000e+00> : vector<2x5x5xf32>
    %255 = tpu.matmul %244, %249, %cst_117 {dimension_numbers = #tpu.dot_dimension_numbers<[2], [2], [1], [1], [0, 0, 0, 1, 1, 1], [0], [0]>} : vector<2x5x8xf32>, vector<2x5x8xf32>, vector<2x5x5xf32> -> vector<2x5x5xf32>
    "tpu.trace_stop"() : () -> ()
    %cst_118 = arith.constant 0.353553385 : f32
    %256 = vector.broadcast %cst_118 : f32 to vector<2x5x5xf32>
    %257 = arith.mulf %255, %256 : vector<2x5x5xf32>
    %cst_119 = arith.constant dense<0xFF800000> : vector<2x5xf32>
    %258 = vector.multi_reduction <maximumf>, %257, %cst_119 [2] : vector<2x5x5xf32> to vector<2x5xf32>
    %259 = vector.shape_cast %258 : vector<2x5xf32> to vector<2x5x1xf32>
    %260 = vector.broadcast %259 : vector<2x5x1xf32> to vector<2x5x5xf32>
    %261 = arith.subf %257, %260 : vector<2x5x5xf32>
    %262 = math.exp %261 : vector<2x5x5xf32>
    %cst_120 = arith.constant dense<0.000000e+00> : vector<2x5xf32>
    %263 = vector.multi_reduction <add>, %262, %cst_120 [2] : vector<2x5x5xf32> to vector<2x5xf32>
    %264 = vector.shape_cast %263 : vector<2x5xf32> to vector<2x5x1xf32>
    %265 = vector.broadcast %264 : vector<2x5x1xf32> to vector<2x5x5xf32>
    %266 = arith.divf %262, %265 : vector<2x5x5xf32>
    "tpu.trace_start"() <{level = 10 : i32, message = "sij,sjk->sik"}> : () -> ()
    %cst_121 = arith.constant dense<0.000000e+00> : vector<2x5x8xf32>
    %267 = tpu.matmul %266, %254, %cst_121 {dimension_numbers = #tpu.dot_dimension_numbers<[2], [1], [1], [2], [0, 0, 0, 1, 1, 2], [0], [0]>} : vector<2x5x5xf32>, vector<2x5x8xf32>, vector<2x5x8xf32> -> vector<2x5x8xf32>
    "tpu.trace_stop"() : () -> ()
    %268 = vector.extract_strided_slice %204 {offsets = [1, 0, 0], sizes = [1, 8, 16], strides = [1, 1, 1]} : vector<2x8x16xf32> to vector<1x8x16xf32>
    %269 = vector.shape_cast %268 : vector<1x8x16xf32> to vector<8x16xf32>
    %270 = vector.shape_cast %269 : vector<8x16xf32> to vector<1x8x16xf32>
    %271 = vector.broadcast %270 : vector<1x8x16xf32> to vector<2x8x16xf32>
    "tpu.trace_start"() <{level = 10 : i32, message = "snk,skd->snd"}> : () -> ()
    %cst_122 = arith.constant dense<0.000000e+00> : vector<2x5x16xf32>
    %272 = tpu.matmul %267, %271, %cst_122 {dimension_numbers = #tpu.dot_dimension_numbers<[2], [1], [1], [2], [0, 0, 0, 1, 1, 2], [0], [0]>} : vector<2x5x8xf32>, vector<2x8x16xf32>, vector<2x5x16xf32> -> vector<2x5x16xf32>
    "tpu.trace_stop"() : () -> ()
    %273 = arith.addf %239, %272 : vector<2x5x16xf32>
    %274 = arith.addf %168, %273 : vector<2x5x16xf32>
    %c1_123 = arith.constant 1 : index
    %c0_124 = arith.constant 0 : index
    %c0_125 = arith.constant 0 : index
    %275 = vector.load %arg8[%c1_123, %c0_124, %c0_125] : memref<2x1x16xf32, #tpu.memory_space<vmem>>, vector<1x1x16xf32>
    %276 = vector.shape_cast %275 : vector<1x1x16xf32> to vector<1x16xf32>
    %277 = vector.shape_cast %276 : vector<1x16xf32> to vector<1x1x16xf32>
    %278 = vector.broadcast %277 : vector<1x1x16xf32> to vector<2x5x16xf32>
    %279 = arith.addf %274, %278 : vector<2x5x16xf32>
    %c1_126 = arith.constant 1 : index
    %c0_127 = arith.constant 0 : index
    %c0_128 = arith.constant 0 : index
    %280 = vector.load %arg9[%c1_126, %c0_127, %c0_128] : memref<2x1x16xf32, #tpu.memory_space<vmem>>, vector<1x1x16xf32>
    %281 = vector.shape_cast %280 : vector<1x1x16xf32> to vector<1x16xf32>
    %c1_129 = arith.constant 1 : index
    %c0_130 = arith.constant 0 : index
    %c0_131 = arith.constant 0 : index
    %282 = vector.load %arg10[%c1_129, %c0_130, %c0_131] : memref<2x1x16xf32, #tpu.memory_space<vmem>>, vector<1x1x16xf32>
    %283 = vector.shape_cast %282 : vector<1x1x16xf32> to vector<1x16xf32>
    %cst_132 = arith.constant dense<0.000000e+00> : vector<2x5xf32>
    %284 = vector.multi_reduction <add>, %279, %cst_132 [2] : vector<2x5x16xf32> to vector<2x5xf32>
    %285 = vector.shape_cast %284 : vector<2x5xf32> to vector<2x5x1xf32>
    %cst_133 = arith.constant 1.600000e+01 : f32
    %286 = vector.broadcast %cst_133 : f32 to vector<2x5x1xf32>
    %287 = arith.divf %285, %286 : vector<2x5x1xf32>
    %288 = vector.broadcast %287 : vector<2x5x1xf32> to vector<2x5x16xf32>
    %289 = arith.subf %279, %288 : vector<2x5x16xf32>
    %290 = arith.mulf %289, %289 : vector<2x5x16xf32>
    %cst_134 = arith.constant dense<0.000000e+00> : vector<2x5xf32>
    %291 = vector.multi_reduction <add>, %290, %cst_134 [2] : vector<2x5x16xf32> to vector<2x5xf32>
    %292 = vector.shape_cast %291 : vector<2x5xf32> to vector<2x5x1xf32>
    %cst_135 = arith.constant 1.600000e+01 : f32
    %293 = vector.broadcast %cst_135 : f32 to vector<2x5x1xf32>
    %294 = arith.divf %292, %293 : vector<2x5x1xf32>
    %295 = vector.broadcast %287 : vector<2x5x1xf32> to vector<2x5x16xf32>
    %296 = arith.subf %279, %295 : vector<2x5x16xf32>
    %cst_136 = arith.constant 9.99999974E-6 : f32
    %297 = vector.broadcast %cst_136 : f32 to vector<2x5x1xf32>
    %298 = arith.addf %294, %297 : vector<2x5x1xf32>
    %299 = math.rsqrt %298 : vector<2x5x1xf32>
    %300 = vector.broadcast %299 : vector<2x5x1xf32> to vector<2x5x16xf32>
    %301 = arith.mulf %296, %300 : vector<2x5x16xf32>
    %302 = vector.shape_cast %281 : vector<1x16xf32> to vector<1x1x16xf32>
    %303 = vector.broadcast %302 : vector<1x1x16xf32> to vector<2x5x16xf32>
    %304 = arith.mulf %301, %303 : vector<2x5x16xf32>
    %305 = vector.shape_cast %283 : vector<1x16xf32> to vector<1x1x16xf32>
    %306 = vector.broadcast %305 : vector<1x1x16xf32> to vector<2x5x16xf32>
    %307 = arith.addf %304, %306 : vector<2x5x16xf32>
    %c1_137 = arith.constant 1 : index
    %c0_138 = arith.constant 0 : index
    %c0_139 = arith.constant 0 : index
    %308 = vector.load %arg11[%c1_137, %c0_138, %c0_139] : memref<2x16x64xf32, #tpu.memory_space<vmem>>, vector<1x16x64xf32>
    %309 = vector.shape_cast %308 : vector<1x16x64xf32> to vector<16x64xf32>
    %310 = vector.shape_cast %309 : vector<16x64xf32> to vector<1x16x64xf32>
    %311 = vector.broadcast %310 : vector<1x16x64xf32> to vector<2x16x64xf32>
    "tpu.trace_start"() <{level = 10 : i32, message = "snd,sdm->snm"}> : () -> ()
    %cst_140 = arith.constant dense<0.000000e+00> : vector<2x5x64xf32>
    %312 = tpu.matmul %307, %311, %cst_140 {dimension_numbers = #tpu.dot_dimension_numbers<[2], [1], [1], [2], [0, 0, 0, 1, 1, 2], [0], [0]>} : vector<2x5x16xf32>, vector<2x16x64xf32>, vector<2x5x64xf32> -> vector<2x5x64xf32>
    "tpu.trace_stop"() : () -> ()
    %c1_141 = arith.constant 1 : index
    %c0_142 = arith.constant 0 : index
    %c0_143 = arith.constant 0 : index
    %313 = vector.load %arg12[%c1_141, %c0_142, %c0_143] : memref<2x1x64xf32, #tpu.memory_space<vmem>>, vector<1x1x64xf32>
    %314 = vector.shape_cast %313 : vector<1x1x64xf32> to vector<1x64xf32>
    %315 = vector.shape_cast %314 : vector<1x64xf32> to vector<1x1x64xf32>
    %316 = vector.broadcast %315 : vector<1x1x64xf32> to vector<2x5x64xf32>
    %317 = arith.addf %312, %316 : vector<2x5x64xf32>
    %cst_144 = arith.constant 5.000000e-01 : f32
    %318 = vector.broadcast %cst_144 : f32 to vector<2x5x64xf32>
    %319 = arith.mulf %317, %318 : vector<2x5x64xf32>
    %cst_145 = arith.constant 0.707106769 : f32
    %320 = vector.broadcast %cst_145 : f32 to vector<2x5x64xf32>
    %321 = arith.mulf %317, %320 : vector<2x5x64xf32>
    %322 = math.erf %321 : vector<2x5x64xf32>
    %cst_146 = arith.constant 1.000000e+00 : f32
    %323 = vector.broadcast %cst_146 : f32 to vector<2x5x64xf32>
    %324 = arith.addf %323, %322 : vector<2x5x64xf32>
    %325 = arith.mulf %319, %324 : vector<2x5x64xf32>
    %c1_147 = arith.constant 1 : index
    %c0_148 = arith.constant 0 : index
    %c0_149 = arith.constant 0 : index
    %326 = vector.load %arg13[%c1_147, %c0_148, %c0_149] : memref<2x64x16xf32, #tpu.memory_space<vmem>>, vector<1x64x16xf32>
    %327 = vector.shape_cast %326 : vector<1x64x16xf32> to vector<64x16xf32>
    %328 = vector.shape_cast %327 : vector<64x16xf32> to vector<1x64x16xf32>
    %329 = vector.broadcast %328 : vector<1x64x16xf32> to vector<2x64x16xf32>
    "tpu.trace_start"() <{level = 10 : i32, message = "snm,smd->snd"}> : () -> ()
    %cst_150 = arith.constant dense<0.000000e+00> : vector<2x5x16xf32>
    %330 = tpu.matmul %325, %329, %cst_150 {dimension_numbers = #tpu.dot_dimension_numbers<[2], [1], [1], [2], [0, 0, 0, 1, 1, 2], [0], [0]>} : vector<2x5x64xf32>, vector<2x64x16xf32>, vector<2x5x16xf32> -> vector<2x5x16xf32>
    "tpu.trace_stop"() : () -> ()
    %331 = arith.addf %279, %330 : vector<2x5x16xf32>
    %c1_151 = arith.constant 1 : index
    %c0_152 = arith.constant 0 : index
    %c0_153 = arith.constant 0 : index
    %332 = vector.load %arg14[%c1_151, %c0_152, %c0_153] : memref<2x1x16xf32, #tpu.memory_space<vmem>>, vector<1x1x16xf32>
    %333 = vector.shape_cast %332 : vector<1x1x16xf32> to vector<1x16xf32>
    %334 = vector.shape_cast %333 : vector<1x16xf32> to vector<1x1x16xf32>
    %335 = vector.broadcast %334 : vector<1x1x16xf32> to vector<2x5x16xf32>
    %336 = arith.addf %331, %335 : vector<2x5x16xf32>
    %c0_154 = arith.constant 0 : index
    %c0_155 = arith.constant 0 : index
    %337 = vector.load %arg15[%c0_154, %c0_155] : memref<1x16xf32, #tpu.memory_space<vmem>>, vector<1x16xf32>
    %c0_156 = arith.constant 0 : index
    %c0_157 = arith.constant 0 : index
    %338 = vector.load %arg16[%c0_156, %c0_157] : memref<1x16xf32, #tpu.memory_space<vmem>>, vector<1x16xf32>
    %cst_158 = arith.constant dense<0.000000e+00> : vector<2x5xf32>
    %339 = vector.multi_reduction <add>, %336, %cst_158 [2] : vector<2x5x16xf32> to vector<2x5xf32>
    %340 = vector.shape_cast %339 : vector<2x5xf32> to vector<2x5x1xf32>
    %cst_159 = arith.constant 1.600000e+01 : f32
    %341 = vector.broadcast %cst_159 : f32 to vector<2x5x1xf32>
    %342 = arith.divf %340, %341 : vector<2x5x1xf32>
    %343 = vector.broadcast %342 : vector<2x5x1xf32> to vector<2x5x16xf32>
    %344 = arith.subf %336, %343 : vector<2x5x16xf32>
    %345 = arith.mulf %344, %344 : vector<2x5x16xf32>
    %cst_160 = arith.constant dense<0.000000e+00> : vector<2x5xf32>
    %346 = vector.multi_reduction <add>, %345, %cst_160 [2] : vector<2x5x16xf32> to vector<2x5xf32>
    %347 = vector.shape_cast %346 : vector<2x5xf32> to vector<2x5x1xf32>
    %cst_161 = arith.constant 1.600000e+01 : f32
    %348 = vector.broadcast %cst_161 : f32 to vector<2x5x1xf32>
    %349 = arith.divf %347, %348 : vector<2x5x1xf32>
    %350 = vector.broadcast %342 : vector<2x5x1xf32> to vector<2x5x16xf32>
    %351 = arith.subf %336, %350 : vector<2x5x16xf32>
    %cst_162 = arith.constant 9.99999974E-6 : f32
    %352 = vector.broadcast %cst_162 : f32 to vector<2x5x1xf32>
    %353 = arith.addf %349, %352 : vector<2x5x1xf32>
    %354 = math.rsqrt %353 : vector<2x5x1xf32>
    %355 = vector.broadcast %354 : vector<2x5x1xf32> to vector<2x5x16xf32>
    %356 = arith.mulf %351, %355 : vector<2x5x16xf32>
    %357 = vector.shape_cast %337 : vector<1x16xf32> to vector<1x1x16xf32>
    %358 = vector.broadcast %357 : vector<1x1x16xf32> to vector<2x5x16xf32>
    %359 = arith.mulf %356, %358 : vector<2x5x16xf32>
    %360 = vector.shape_cast %338 : vector<1x16xf32> to vector<1x1x16xf32>
    %361 = vector.broadcast %360 : vector<1x1x16xf32> to vector<2x5x16xf32>
    %362 = arith.addf %359, %361 : vector<2x5x16xf32>
    %c0_163 = arith.constant 0 : index
    %c0_164 = arith.constant 0 : index
    %c0_165 = arith.constant 0 : index
    %363 = vector.load %arg17[%c0_163, %c0_164, %c0_165] : memref<2x5x16xf32, #tpu.memory_space<vmem>>, vector<2x5x16xf32>
    tpu.vector_store %arg17[%c0_163, %c0_164, %c0_165], %362 {strides = array<i32>} : memref<2x5x16xf32, #tpu.memory_space<vmem>>, vector<2x5x16xf32>,
    return
  }
  func.func @transform_0(%arg0: i32) -> (i32, i32, i32) {
    %c0_i32 = arith.constant 0 : i32
    %c0_i32_0 = arith.constant 0 : i32
    %c0_i32_1 = arith.constant 0 : i32
    return %arg0, %c0_i32, %c0_i32_0 : i32, i32, i32
  }
  func.func @transform_1(%arg0: i32) -> (i32, i32, i32) {
    %c0_i32 = arith.constant 0 : i32
    %c0_i32_0 = arith.constant 0 : i32
    %c0_i32_1 = arith.constant 0 : i32
    %c0_i32_2 = arith.constant 0 : i32
    return %c0_i32, %c0_i32_0, %c0_i32_1 : i32, i32, i32
  }
  func.func @transform_2(%arg0: i32) -> (i32, i32, i32) {
    %c0_i32 = arith.constant 0 : i32
    %c0_i32_0 = arith.constant 0 : i32
    %c0_i32_1 = arith.constant 0 : i32
    %c0_i32_2 = arith.constant 0 : i32
    return %c0_i32, %c0_i32_0, %c0_i32_1 : i32, i32, i32
  }
  func.func @transform_3(%arg0: i32) -> (i32, i32, i32, i32) {
    %c0_i32 = arith.constant 0 : i32
    %c0_i32_0 = arith.constant 0 : i32
    %c0_i32_1 = arith.constant 0 : i32
    %c0_i32_2 = arith.constant 0 : i32
    %c0_i32_3 = arith.constant 0 : i32
    return %c0_i32, %c0_i32_0, %c0_i32_1, %c0_i32_2 : i32, i32, i32, i32
  }
  func.func @transform_4(%arg0: i32) -> (i32, i32, i32, i32) {
    %c0_i32 = arith.constant 0 : i32
    %c0_i32_0 = arith.constant 0 : i32
    %c0_i32_1 = arith.constant 0 : i32
    %c0_i32_2 = arith.constant 0 : i32
    %c0_i32_3 = arith.constant 0 : i32
    return %c0_i32, %c0_i32_0, %c0_i32_1, %c0_i32_2 : i32, i32, i32, i32
  }
  func.func @transform_5(%arg0: i32) -> (i32, i32, i32, i32) {
    %c0_i32 = arith.constant 0 : i32
    %c0_i32_0 = arith.constant 0 : i32
    %c0_i32_1 = arith.constant 0 : i32
    %c0_i32_2 = arith.constant 0 : i32
    %c0_i32_3 = arith.constant 0 : i32
    return %c0_i32, %c0_i32_0, %c0_i32_1, %c0_i32_2 : i32, i32, i32, i32
  }
  func.func @transform_6(%arg0: i32) -> (i32, i32, i32, i32) {
    %c0_i32 = arith.constant 0 : i32
    %c0_i32_0 = arith.constant 0 : i32
    %c0_i32_1 = arith.constant 0 : i32
    %c0_i32_2 = arith.constant 0 : i32
    %c0_i32_3 = arith.constant 0 : i32
    return %c0_i32, %c0_i32_0, %c0_i32_1, %c0_i32_2 : i32, i32, i32, i32
  }
  func.func @transform_7(%arg0: i32) -> (i32, i32, i32) {
    %c0_i32 = arith.constant 0 : i32
    %c0_i32_0 = arith.constant 0 : i32
    %c0_i32_1 = arith.constant 0 : i32
    %c0_i32_2 = arith.constant 0 : i32
    return %c0_i32, %c0_i32_0, %c0_i32_1 : i32, i32, i32
  }
  func.func @transform_8(%arg0: i32) -> (i32, i32, i32) {
    %c0_i32 = arith.constant 0 : i32
    %c0_i32_0 = arith.constant 0 : i32
    %c0_i32_1 = arith.constant 0 : i32
    %c0_i32_2 = arith.constant 0 : i32
    return %c0_i32, %c0_i32_0, %c0_i32_1 : i32, i32, i32
  }
  func.func @transform_9(%arg0: i32) -> (i32, i32, i32) {
    %c0_i32 = arith.constant 0 : i32
    %c0_i32_0 = arith.constant 0 : i32
    %c0_i32_1 = arith.constant 0 : i32
    %c0_i32_2 = arith.constant 0 : i32
    return %c0_i32, %c0_i32_0, %c0_i32_1 : i32, i32, i32
  }
  func.func @transform_10(%arg0: i32) -> (i32, i32, i32) {
    %c0_i32 = arith.constant 0 : i32
    %c0_i32_0 = arith.constant 0 : i32
    %c0_i32_1 = arith.constant 0 : i32
    %c0_i32_2 = arith.constant 0 : i32
    return %c0_i32, %c0_i32_0, %c0_i32_1 : i32, i32, i32
  }
  func.func @transform_11(%arg0: i32) -> (i32, i32, i32) {
    %c0_i32 = arith.constant 0 : i32
    %c0_i32_0 = arith.constant 0 : i32
    %c0_i32_1 = arith.constant 0 : i32
    %c0_i32_2 = arith.constant 0 : i32
    return %c0_i32, %c0_i32_0, %c0_i32_1 : i32, i32, i32
  }
  func.func @transform_12(%arg0: i32) -> (i32, i32, i32) {
    %c0_i32 = arith.constant 0 : i32
    %c0_i32_0 = arith.constant 0 : i32
    %c0_i32_1 = arith.constant 0 : i32
    %c0_i32_2 = arith.constant 0 : i32
    return %c0_i32, %c0_i32_0, %c0_i32_1 : i32, i32, i32
  }
  func.func @transform_13(%arg0: i32) -> (i32, i32, i32) {
    %c0_i32 = arith.constant 0 : i32
    %c0_i32_0 = arith.constant 0 : i32
    %c0_i32_1 = arith.constant 0 : i32
    %c0_i32_2 = arith.constant 0 : i32
    return %c0_i32, %c0_i32_0, %c0_i32_1 : i32, i32, i32
  }
  func.func @transform_14(%arg0: i32) -> (i32, i32) {
    %c0_i32 = arith.constant 0 : i32
    %c0_i32_0 = arith.constant 0 : i32
    %c0_i32_1 = arith.constant 0 : i32
    return %c0_i32, %c0_i32_0 : i32, i32
  }
  func.func @transform_15(%arg0: i32) -> (i32, i32) {
    %c0_i32 = arith.constant 0 : i32
    %c0_i32_0 = arith.constant 0 : i32
    %c0_i32_1 = arith.constant 0 : i32
    return %c0_i32, %c0_i32_0 : i32, i32
  }
  func.func @transform_16(%arg0: i32) -> (i32, i32, i32) {
    %c0_i32 = arith.constant 0 : i32
    %c0_i32_0 = arith.constant 0 : i32
    %c0_i32_1 = arith.constant 0 : i32
    return %arg0, %c0_i32, %c0_i32_0 : i32, i32, i32
  }
}

</mosaic_0001>

<llo_original>
// kernel: _lambda_.3
$region0: #{_lambda_.3}
  #allocation0 [shape = 'u32[]', space=smem, size = 0x4, offset = 0x4, fixed_abs, tag = 'smem constant byte address 0x4 - core index']
  #allocation1 [shape = 'u32[144,128]{1,0:T(1,128)}', space=vmem, size = 0x12000, scoped, tag = 'internal scratch']
  %s0 = inlined_call_operand.vmem [shape: f32[2,3,16], index: 0, kind: input, shape index: {}]
  %s1 = inlined_call_operand.vmem [shape: f32[2,1,16], index: 1, kind: input, shape index: {}]
  %s2 = inlined_call_operand.vmem [shape: f32[2,1,16], index: 2, kind: input, shape index: {}]
  %s3 = inlined_call_operand.vmem [shape: f32[2,2,16,8], index: 3, kind: input, shape index: {}]
  %s4 = inlined_call_operand.vmem [shape: f32[2,2,16,8], index: 4, kind: input, shape index: {}]
  %s5 = inlined_call_operand.vmem [shape: f32[2,2,16,8], index: 5, kind: input, shape index: {}]
  %s6 = inlined_call_operand.vmem [shape: f32[2,2,8,16], index: 6, kind: input, shape index: {}]
  %s7 = inlined_call_operand.vmem [shape: f32[2,1,16], index: 7, kind: input, shape index: {}]
  %s8 = inlined_call_operand.vmem [shape: f32[2,1,16], index: 8, kind: input, shape index: {}]
  %s9 = inlined_call_operand.vmem [shape: f32[2,1,16], index: 9, kind: input, shape index: {}]
  %s10 = inlined_call_operand.vmem [shape: f32[2,16,64], index: 10, kind: input, shape index: {}]
  %s11 = inlined_call_operand.vmem [shape: f32[2,1,64], index: 11, kind: input, shape index: {}]
  %s12 = inlined_call_operand.vmem [shape: f32[2,64,16], index: 12, kind: input, shape index: {}]
  %s13 = inlined_call_operand.vmem [shape: f32[2,1,16], index: 13, kind: input, shape index: {}]
  %s14 = inlined_call_operand.vmem [shape: f32[1,16], index: 14, kind: input, shape index: {}]
  %s15 = inlined_call_operand.vmem [shape: f32[1,16], index: 15, kind: input, shape index: {}]
  %s16 = inlined_call_operand.vmem [shape: f32[2,3,16], index: 16, kind: output, shape index: {}]
  %s17 = sld [smem:[#allocation0]]
  $region74: #{_lambda_.3} parent=0
    _
  %s19 = ssub.s32 1, %s17
  %s20 = scalar_select 0, %s19, %s17
  // Predicated region
  $region2: #{_lambda_.3} parent=0 // pred_check
    _
  $region3: #{_lambda_.3} parent=0 // pred_check_branch
    %22 = sbr.rel (0) target = $region5
  $region4: #{_lambda_.3} parent=0 // pred_region
    _
  $region5: #{_lambda_.3} parent=0 // pred_fallthru
    _
  // Predicated region
  $region6: #{_lambda_.3} parent=0 // pred_check
    _
  $region7: #{_lambda_.3} parent=0 // pred_check_branch
    %24 = sbr.rel (0) target = $region9
  $region8: #{_lambda_.3} parent=0 // pred_region
    _
  $region9: #{_lambda_.3} parent=0 // pred_fallthru
    _
  // Predicated region
  $region10: #{_lambda_.3} parent=0 // pred_check
    _
  $region11: #{_lambda_.3} parent=0 // pred_check_branch
    %26 = sbr.rel (0) target = $region13
  $region12: #{_lambda_.3} parent=0 // pred_region
    _
  $region13: #{_lambda_.3} parent=0 // pred_fallthru
    _
  // Predicated region
  $region14: #{_lambda_.3} parent=0 // pred_check
    _
  $region15: #{_lambda_.3} parent=0 // pred_check_branch
    %28 = sbr.rel (0) target = $region17
  $region16: #{_lambda_.3} parent=0 // pred_region
    _
  $region17: #{_lambda_.3} parent=0 // pred_fallthru
    _
  // Predicated region
  $region18: #{_lambda_.3} parent=0 // pred_check
    _
  $region19: #{_lambda_.3} parent=0 // pred_check_branch
    %30 = sbr.rel (0) target = $region21
  $region20: #{_lambda_.3} parent=0 // pred_region
    _
  $region21: #{_lambda_.3} parent=0 // pred_fallthru
    _
  // Predicated region
  $region22: #{_lambda_.3} parent=0 // pred_check
    _
  $region23: #{_lambda_.3} parent=0 // pred_check_branch
    %32 = sbr.rel (0) target = $region25
  $region24: #{_lambda_.3} parent=0 // pred_region
    _
  $region25: #{_lambda_.3} parent=0 // pred_fallthru
    _
  // Predicated region
  $region26: #{_lambda_.3} parent=0 // pred_check
    _
  $region27: #{_lambda_.3} parent=0 // pred_check_branch
    %34 = sbr.rel (0) target = $region29
  $region28: #{_lambda_.3} parent=0 // pred_region
    _
  $region29: #{_lambda_.3} parent=0 // pred_fallthru
    _
  // Predicated region
  $region30: #{_lambda_.3} parent=0 // pred_check
    _
  $region31: #{_lambda_.3} parent=0 // pred_check_branch
    %36 = sbr.rel (0) target = $region33
  $region32: #{_lambda_.3} parent=0 // pred_region
    _
  $region33: #{_lambda_.3} parent=0 // pred_fallthru
    _
  // Predicated region
  $region34: #{_lambda_.3} parent=0 // pred_check
    _
  $region35: #{_lambda_.3} parent=0 // pred_check_branch
    %38 = sbr.rel (0) target = $region37
  $region36: #{_lambda_.3} parent=0 // pred_region
    _
  $region37: #{_lambda_.3} parent=0 // pred_fallthru
    _
  // Predicated region
  $region38: #{_lambda_.3} parent=0 // pred_check
    _
  $region39: #{_lambda_.3} parent=0 // pred_check_branch
    %40 = sbr.rel (0) target = $region41
  $region40: #{_lambda_.3} parent=0 // pred_region
    _
  $region41: #{_lambda_.3} parent=0 // pred_fallthru
    _
  // Predicated region
  $region42: #{_lambda_.3} parent=0 // pred_check
    _
  $region43: #{_lambda_.3} parent=0 // pred_check_branch
    %42 = sbr.rel (0) target = $region45
  $region44: #{_lambda_.3} parent=0 // pred_region
    _
  $region45: #{_lambda_.3} parent=0 // pred_fallthru
    _
  // Predicated region
  $region46: #{_lambda_.3} parent=0 // pred_check
    _
  $region47: #{_lambda_.3} parent=0 // pred_check_branch
    %44 = sbr.rel (0) target = $region49
  $region48: #{_lambda_.3} parent=0 // pred_region
    _
  $region49: #{_lambda_.3} parent=0 // pred_fallthru
    _
  // Predicated region
  $region50: #{_lambda_.3} parent=0 // pred_check
    _
  $region51: #{_lambda_.3} parent=0 // pred_check_branch
    %46 = sbr.rel (0) target = $region53
  $region52: #{_lambda_.3} parent=0 // pred_region
    _
  $region53: #{_lambda_.3} parent=0 // pred_fallthru
    _
  // Predicated region
  $region54: #{_lambda_.3} parent=0 // pred_check
    _
  $region55: #{_lambda_.3} parent=0 // pred_check_branch
    %48 = sbr.rel (0) target = $region57
  $region56: #{_lambda_.3} parent=0 // pred_region
    _
  $region57: #{_lambda_.3} parent=0 // pred_fallthru
    _
  // Predicated region
  $region58: #{_lambda_.3} parent=0 // pred_check
    _
  $region59: #{_lambda_.3} parent=0 // pred_check_branch
    %50 = sbr.rel (0) target = $region61
  $region60: #{_lambda_.3} parent=0 // pred_region
    _
  $region61: #{_lambda_.3} parent=0 // pred_fallthru
    _
  // Predicated region
  $region62: #{_lambda_.3} parent=0 // pred_check
    _
  $region63: #{_lambda_.3} parent=0 // pred_check_branch
    %52 = sbr.rel (0) target = $region65
  $region64: #{_lambda_.3} parent=0 // pred_region
    _
  $region65: #{_lambda_.3} parent=0 // pred_fallthru
    _
  %v53 = vld [vmem:[%s0] sm:$0x7]
  %v54 = vld [vmem:[%s0 + $0x4] sm:$0x7]
  %v55 = vld [vmem:[%s1] sm:$0x1]
  %v56 = vld [vmem:[%s2] sm:$0x1]
  %vm57 = vcmask 124928
  %v58 = vsel %vm57, %v53, 0.0
  %59 = vadd.xlane.f32.xlu0 %v58
  %v60 = vpop.xlane.xlu0 %59
  %v61 = vsel %vm57, %v54, 0.0
  %62 = vadd.xlane.f32.xlu0 %v61
  %v63 = vpop.xlane.xlu0 %62
  %v64 = vrcp.pop 16.0
  %v65 = vmul.f32 %v60, %v64
  %v66 = vmul.f32 %v63, %v64
  %v67 = vsub.f32 %v53, %v65
  %v68 = vsub.f32 %v54, %v66
  %v69 = vmul.f32 %v67, %v67
  %v70 = vmul.f32 %v68, %v68
  %v71 = vsel %vm57, %v69, 0.0
  %72 = vadd.xlane.f32.xlu0 %v71
  %v73 = vpop.xlane.xlu0 %72
  %v74 = vsel %vm57, %v70, 0.0
  %75 = vadd.xlane.f32.xlu0 %v74
  %v76 = vpop.xlane.xlu0 %75
  %v77 = vmul.f32 %v73, %v64
  %v78 = vmul.f32 %v76, %v64
  %v79 = vadd.f32 %v77, 1e-05
  %v80 = vadd.f32 %v78, 1e-05
  %v81 = vrsqrt.pop %v79
  %v82 = vrsqrt.pop %v80
  %v83 = vmul.f32 %v67, %v81
  %v84 = vmul.f32 %v68, %v82
  %v86 = vlaneseq
  %v87 = vshrl.u32 %v86, 7
  %v88 = vsub.s32 0, %v87
  %v89 = vrot.slane %v55, %v88
  %v91 = vmul.f32 %v83, %v89
  %v92 = vmul.f32 %v84, %v89
  %v94 = vlaneseq
  %v95 = vshrl.u32 %v94, 7
  %v96 = vsub.s32 0, %v95
  %v97 = vrot.slane %v56, %v96
  %v99 = vadd.f32 %v91, %v97
  %v100 = vadd.f32 %v92, %v97
  %v101 = vld [vmem:[%s3] sm:$0xff]
  %v102 = vld [vmem:[%s3 + $0x8] sm:$0xff]
  %v103 = vld [vmem:[%s3 + $0x10] sm:$0xff]
  %v104 = vld [vmem:[%s3 + $0x18] sm:$0xff]
  %v105 = vld [vmem:[%s4] sm:$0xff]
  %v106 = vld [vmem:[%s4 + $0x8] sm:$0xff]
  %v107 = vld [vmem:[%s4 + $0x10] sm:$0xff]
  %v108 = vld [vmem:[%s4 + $0x18] sm:$0xff]
  %v109 = vld [vmem:[%s5] sm:$0xff]
  %v110 = vld [vmem:[%s5 + $0x8] sm:$0xff]
  %v111 = vld [vmem:[%s5 + $0x10] sm:$0xff]
  %v112 = vld [vmem:[%s5 + $0x18] sm:$0xff]
  %v113 = vld [vmem:[%s6] sm:$0xff]
  %v114 = vld [vmem:[%s6 + $0x8] sm:$0xff]
  %vm115 = vcmask 130048
  %v117 = vsel %vm115, %v99, 0
  %119 = vmatprep.subr.mxu0 0.0
  %120 = vmatpush1.msra.mxu0 %v101
  %121 = vmatprep.subr.mxu0 0.0
  %122 = vmatpush1.msra.mxu0 %v102
  %123 = vmatprep.subr.mxu0 0.0
  %124 = vmatpush1.msra.mxu0 0.0
  %125 = vmatprep.subr.mxu0 0.0
  %126 = vmatpush1.msra.mxu0 0.0
  %127 = vmatprep.subr.mxu0 0.0
  %128 = vmatpush1.msra.mxu0 0.0
  %129 = vmatprep.subr.mxu0 0.0
  %130 = vmatpush1.msra.mxu0 0.0
  %131 = vmatprep.subr.mxu0 0.0
  %132 = vmatpush1.msra.mxu0 0.0
  %133 = vmatprep.subr.mxu0 0.0
  %134 = vmatpush1.msra.mxu0 0.0
  %135 = vmatprep.subr.mxu0 0.0
  %136 = vmatpush1.msra.mxu0 0.0
  %137 = vmatprep.subr.mxu0 0.0
  %138 = vmatpush1.msra.mxu0 0.0
  %139 = vmatprep.subr.mxu0 0.0
  %140 = vmatpush1.msra.mxu0 0.0
  %141 = vmatprep.subr.mxu0 0.0
  %142 = vmatpush1.msra.mxu0 0.0
  %143 = vmatprep.subr.mxu0 0.0
  %144 = vmatpush1.msra.mxu0 0.0
  %145 = vmatprep.subr.mxu0 0.0
  %146 = vmatpush1.msra.mxu0 0.0
  %147 = vmatprep.subr.mxu0 0.0
  %148 = vmatpush1.msra.mxu0 0.0
  %149 = vmatprep.subr.mxu0 0.0
  %150 = vmatpush1.msra.mxu0 0.0
  %151 = vmatprep.subr.mxu0 0.0
  %152 = vmatpush1.msra.mxu0 0.0
  %153 = vmatprep.subr.mxu0 0.0
  %154 = vmatpush1.msra.mxu0 0.0
  %155 = vmatprep.subr.mxu0 0.0
  %156 = vmatpush1.msra.mxu0 0.0
  %157 = vmatprep.subr.mxu0 0.0
  %158 = vmatpush1.msra.mxu0 0.0
  %159 = vmatprep.subr.mxu0 0.0
  %160 = vmatpush1.msra.mxu0 0.0
  %161 = vmatprep.subr.mxu0 0.0
  %162 = vmatpush1.msra.mxu0 0.0
  %163 = vmatprep.subr.mxu0 0.0
  %164 = vmatpush1.msra.mxu0 0.0
  %165 = vmatprep.subr.mxu0 0.0
  %166 = vmatpush1.msra.mxu0 0.0
  %167 = vmatprep.subr.mxu0 0.0
  %168 = vmatpush1.msra.mxu0 0.0
  %169 = vmatprep.subr.mxu0 0.0
  %170 = vmatpush1.msra.mxu0 0.0
  %171 = vmatprep.subr.mxu0 0.0
  %172 = vmatpush1.msra.mxu0 0.0
  %173 = vmatprep.subr.mxu0 0.0
  %174 = vmatpush1.msra.mxu0 0.0
  %175 = vmatprep.subr.mxu0 0.0
  %176 = vmatpush1.msra.mxu0 0.0
  %177 = vmatprep.subr.mxu0 0.0
  %178 = vmatpush1.msra.mxu0 0.0
  %179 = vmatprep.subr.mxu0 0.0
  %180 = vmatpush1.msra.mxu0 0.0
  %181 = vmatprep.subr.mxu0 0.0
  %182 = vmatpush1.msra.mxu0 0.0
  %183 = vmatprep.mubr.f32.mxu0 0.0
  %184 = vmatmul.mubr.f32.gmra.mrb[0].mxu0 %v117
  %v185 = vpop.f32.mrb[0].mxu0
  %v186 = vadd.f32 0.0, %v185
  %v187 = vpop.f32.mrb[0].mxu0
  %188 = vdwg.mxu0
  %v190 = vsel %vm115, %v100, 0
  %192 = vmatprep.subr.mxu0 0.0
  %193 = vmatpush1.msra.mxu0 %v101
  %194 = vmatprep.subr.mxu0 0.0
  %195 = vmatpush1.msra.mxu0 %v102
  %196 = vmatprep.subr.mxu0 0.0
  %197 = vmatpush1.msra.mxu0 0.0
  %198 = vmatprep.subr.mxu0 0.0
  %199 = vmatpush1.msra.mxu0 0.0
  %200 = vmatprep.subr.mxu0 0.0
  %201 = vmatpush1.msra.mxu0 0.0
  %202 = vmatprep.subr.mxu0 0.0
  %203 = vmatpush1.msra.mxu0 0.0
  %204 = vmatprep.subr.mxu0 0.0
  %205 = vmatpush1.msra.mxu0 0.0
  %206 = vmatprep.subr.mxu0 0.0
  %207 = vmatpush1.msra.mxu0 0.0
  %208 = vmatprep.subr.mxu0 0.0
  %209 = vmatpush1.msra.mxu0 0.0
  %210 = vmatprep.subr.mxu0 0.0
  %211 = vmatpush1.msra.mxu0 0.0
  %212 = vmatprep.subr.mxu0 0.0
  %213 = vmatpush1.msra.mxu0 0.0
  %214 = vmatprep.subr.mxu0 0.0
  %215 = vmatpush1.msra.mxu0 0.0
  %216 = vmatprep.subr.mxu0 0.0
  %217 = vmatpush1.msra.mxu0 0.0
  %218 = vmatprep.subr.mxu0 0.0
  %219 = vmatpush1.msra.mxu0 0.0
  %220 = vmatprep.subr.mxu0 0.0
  %221 = vmatpush1.msra.mxu0 0.0
  %222 = vmatprep.subr.mxu0 0.0
  %223 = vmatpush1.msra.mxu0 0.0
  %224 = vmatprep.subr.mxu0 0.0
  %225 = vmatpush1.msra.mxu0 0.0
  %226 = vmatprep.subr.mxu0 0.0
  %227 = vmatpush1.msra.mxu0 0.0
  %228 = vmatprep.subr.mxu0 0.0
  %229 = vmatpush1.msra.mxu0 0.0
  %230 = vmatprep.subr.mxu0 0.0
  %231 = vmatpush1.msra.mxu0 0.0
  %232 = vmatprep.subr.mxu0 0.0
  %233 = vmatpush1.msra.mxu0 0.0
  %234 = vmatprep.subr.mxu0 0.0
  %235 = vmatpush1.msra.mxu0 0.0
  %236 = vmatprep.subr.mxu0 0.0
  %237 = vmatpush1.msra.mxu0 0.0
  %238 = vmatprep.subr.mxu0 0.0
  %239 = vmatpush1.msra.mxu0 0.0
  %240 = vmatprep.subr.mxu0 0.0
  %241 = vmatpush1.msra.mxu0 0.0
  %242 = vmatprep.subr.mxu0 0.0
  %243 = vmatpush1.msra.mxu0 0.0
  %244 = vmatprep.subr.mxu0 0.0
  %245 = vmatpush1.msra.mxu0 0.0
  %246 = vmatprep.subr.mxu0 0.0
  %247 = vmatpush1.msra.mxu0 0.0
  %248 = vmatprep.subr.mxu0 0.0
  %249 = vmatpush1.msra.mxu0 0.0
  %250 = vmatprep.subr.mxu0 0.0
  %251 = vmatpush1.msra.mxu0 0.0
  %252 = vmatprep.subr.mxu0 0.0
  %253 = vmatpush1.msra.mxu0 0.0
  %254 = vmatprep.subr.mxu0 0.0
  %255 = vmatpush1.msra.mxu0 0.0
  %256 = vmatprep.mubr.f32.mxu0 0.0
  %257 = vmatmul.mubr.f32.gmra.mrb[0].mxu0 %v190
  %v258 = vpop.f32.mrb[0].mxu0
  %v259 = vadd.f32 0.0, %v258
  %v260 = vpop.f32.mrb[0].mxu0
  %261 = vdwg.mxu0
  %262 = vmatprep.subr.mxu0 0.0
  %263 = vmatpush1.msra.mxu0 %v105
  %264 = vmatprep.subr.mxu0 0.0
  %265 = vmatpush1.msra.mxu0 %v106
  %266 = vmatprep.subr.mxu0 0.0
  %267 = vmatpush1.msra.mxu0 0.0
  %268 = vmatprep.subr.mxu0 0.0
  %269 = vmatpush1.msra.mxu0 0.0
  %270 = vmatprep.subr.mxu0 0.0
  %271 = vmatpush1.msra.mxu0 0.0
  %272 = vmatprep.subr.mxu0 0.0
  %273 = vmatpush1.msra.mxu0 0.0
  %274 = vmatprep.subr.mxu0 0.0
  %275 = vmatpush1.msra.mxu0 0.0
  %276 = vmatprep.subr.mxu0 0.0
  %277 = vmatpush1.msra.mxu0 0.0
  %278 = vmatprep.subr.mxu0 0.0
  %279 = vmatpush1.msra.mxu0 0.0
  %280 = vmatprep.subr.mxu0 0.0
  %281 = vmatpush1.msra.mxu0 0.0
  %282 = vmatprep.subr.mxu0 0.0
  %283 = vmatpush1.msra.mxu0 0.0
  %284 = vmatprep.subr.mxu0 0.0
  %285 = vmatpush1.msra.mxu0 0.0
  %286 = vmatprep.subr.mxu0 0.0
  %287 = vmatpush1.msra.mxu0 0.0
  %288 = vmatprep.subr.mxu0 0.0
  %289 = vmatpush1.msra.mxu0 0.0
  %290 = vmatprep.subr.mxu0 0.0
  %291 = vmatpush1.msra.mxu0 0.0
  %292 = vmatprep.subr.mxu0 0.0
  %293 = vmatpush1.msra.mxu0 0.0
  %294 = vmatprep.subr.mxu0 0.0
  %295 = vmatpush1.msra.mxu0 0.0
  %296 = vmatprep.subr.mxu0 0.0
  %297 = vmatpush1.msra.mxu0 0.0
  %298 = vmatprep.subr.mxu0 0.0
  %299 = vmatpush1.msra.mxu0 0.0
  %300 = vmatprep.subr.mxu0 0.0
  %301 = vmatpush1.msra.mxu0 0.0
  %302 = vmatprep.subr.mxu0 0.0
  %303 = vmatpush1.msra.mxu0 0.0
  %304 = vmatprep.subr.mxu0 0.0
  %305 = vmatpush1.msra.mxu0 0.0
  %306 = vmatprep.subr.mxu0 0.0
  %307 = vmatpush1.msra.mxu0 0.0
  %308 = vmatprep.subr.mxu0 0.0
  %309 = vmatpush1.msra.mxu0 0.0
  %310 = vmatprep.subr.mxu0 0.0
  %311 = vmatpush1.msra.mxu0 0.0
  %312 = vmatprep.subr.mxu0 0.0
  %313 = vmatpush1.msra.mxu0 0.0
  %314 = vmatprep.subr.mxu0 0.0
  %315 = vmatpush1.msra.mxu0 0.0
  %316 = vmatprep.subr.mxu0 0.0
  %317 = vmatpush1.msra.mxu0 0.0
  %318 = vmatprep.subr.mxu0 0.0
  %319 = vmatpush1.msra.mxu0 0.0
  %320 = vmatprep.subr.mxu0 0.0
  %321 = vmatpush1.msra.mxu0 0.0
  %322 = vmatprep.subr.mxu0 0.0
  %323 = vmatpush1.msra.mxu0 0.0
  %324 = vmatprep.subr.mxu0 0.0
  %325 = vmatpush1.msra.mxu0 0.0
  %326 = vmatprep.mubr.f32.mxu0 0.0
  %327 = vmatmul.mubr.f32.gmra.mrb[0].mxu0 %v117
  %v328 = vpop.f32.mrb[0].mxu0
  %v329 = vadd.f32 0.0, %v328
  %v330 = vpop.f32.mrb[0].mxu0
  %331 = vdwg.mxu0
  %332 = vmatprep.subr.mxu0 0.0
  %333 = vmatpush1.msra.mxu0 %v105
  %334 = vmatprep.subr.mxu0 0.0
  %335 = vmatpush1.msra.mxu0 %v106
  %336 = vmatprep.subr.mxu0 0.0
  %337 = vmatpush1.msra.mxu0 0.0
  %338 = vmatprep.subr.mxu0 0.0
  %339 = vmatpush1.msra.mxu0 0.0
  %340 = vmatprep.subr.mxu0 0.0
  %341 = vmatpush1.msra.mxu0 0.0
  %342 = vmatprep.subr.mxu0 0.0
  %343 = vmatpush1.msra.mxu0 0.0
  %344 = vmatprep.subr.mxu0 0.0
  %345 = vmatpush1.msra.mxu0 0.0
  %346 = vmatprep.subr.mxu0 0.0
  %347 = vmatpush1.msra.mxu0 0.0
  %348 = vmatprep.subr.mxu0 0.0
  %349 = vmatpush1.msra.mxu0 0.0
  %350 = vmatprep.subr.mxu0 0.0
  %351 = vmatpush1.msra.mxu0 0.0
  %352 = vmatprep.subr.mxu0 0.0
  %353 = vmatpush1.msra.mxu0 0.0
  %354 = vmatprep.subr.mxu0 0.0
  %355 = vmatpush1.msra.mxu0 0.0
  %356 = vmatprep.subr.mxu0 0.0
  %357 = vmatpush1.msra.mxu0 0.0
  %358 = vmatprep.subr.mxu0 0.0
  %359 = vmatpush1.msra.mxu0 0.0
  %360 = vmatprep.subr.mxu0 0.0
  %361 = vmatpush1.msra.mxu0 0.0
  %362 = vmatprep.subr.mxu0 0.0
  %363 = vmatpush1.msra.mxu0 0.0
  %364 = vmatprep.subr.mxu0 0.0
  %365 = vmatpush1.msra.mxu0 0.0
  %366 = vmatprep.subr.mxu0 0.0
  %367 = vmatpush1.msra.mxu0 0.0
  %368 = vmatprep.subr.mxu0 0.0
  %369 = vmatpush1.msra.mxu0 0.0
  %370 = vmatprep.subr.mxu0 0.0
  %371 = vmatpush1.msra.mxu0 0.0
  %372 = vmatprep.subr.mxu0 0.0
  %373 = vmatpush1.msra.mxu0 0.0
  %374 = vmatprep.subr.mxu0 0.0
  %375 = vmatpush1.msra.mxu0 0.0
  %376 = vmatprep.subr.mxu0 0.0
  %377 = vmatpush1.msra.mxu0 0.0
  %378 = vmatprep.subr.mxu0 0.0
  %379 = vmatpush1.msra.mxu0 0.0
  %380 = vmatprep.subr.mxu0 0.0
  %381 = vmatpush1.msra.mxu0 0.0
  %382 = vmatprep.subr.mxu0 0.0
  %383 = vmatpush1.msra.mxu0 0.0
  %384 = vmatprep.subr.mxu0 0.0
  %385 = vmatpush1.msra.mxu0 0.0
  %386 = vmatprep.subr.mxu0 0.0
  %387 = vmatpush1.msra.mxu0 0.0
  %388 = vmatprep.subr.mxu0 0.0
  %389 = vmatpush1.msra.mxu0 0.0
  %390 = vmatprep.subr.mxu0 0.0
  %391 = vmatpush1.msra.mxu0 0.0
  %392 = vmatprep.subr.mxu0 0.0
  %393 = vmatpush1.msra.mxu0 0.0
  %394 = vmatprep.subr.mxu0 0.0
  %395 = vmatpush1.msra.mxu0 0.0
  %396 = vmatprep.mubr.f32.mxu0 0.0
  %397 = vmatmul.mubr.f32.gmra.mrb[0].mxu0 %v190
  %v398 = vpop.f32.mrb[0].mxu0
  %v399 = vadd.f32 0.0, %v398
  %v400 = vpop.f32.mrb[0].mxu0
  %401 = vdwg.mxu0
  %402 = vmatprep.subr.mxu0 0.0
  %403 = vmatpush1.msra.mxu0 %v109
  %404 = vmatprep.subr.mxu0 0.0
  %405 = vmatpush1.msra.mxu0 %v110
  %406 = vmatprep.subr.mxu0 0.0
  %407 = vmatpush1.msra.mxu0 0.0
  %408 = vmatprep.subr.mxu0 0.0
  %409 = vmatpush1.msra.mxu0 0.0
  %410 = vmatprep.subr.mxu0 0.0
  %411 = vmatpush1.msra.mxu0 0.0
  %412 = vmatprep.subr.mxu0 0.0
  %413 = vmatpush1.msra.mxu0 0.0
  %414 = vmatprep.subr.mxu0 0.0
  %415 = vmatpush1.msra.mxu0 0.0
  %416 = vmatprep.subr.mxu0 0.0
  %417 = vmatpush1.msra.mxu0 0.0
  %418 = vmatprep.subr.mxu0 0.0
  %419 = vmatpush1.msra.mxu0 0.0
  %420 = vmatprep.subr.mxu0 0.0
  %421 = vmatpush1.msra.mxu0 0.0
  %422 = vmatprep.subr.mxu0 0.0
  %423 = vmatpush1.msra.mxu0 0.0
  %424 = vmatprep.subr.mxu0 0.0
  %425 = vmatpush1.msra.mxu0 0.0
  %426 = vmatprep.subr.mxu0 0.0
  %427 = vmatpush1.msra.mxu0 0.0
  %428 = vmatprep.subr.mxu0 0.0
  %429 = vmatpush1.msra.mxu0 0.0
  %430 = vmatprep.subr.mxu0 0.0
  %431 = vmatpush1.msra.mxu0 0.0
  %432 = vmatprep.subr.mxu0 0.0
  %433 = vmatpush1.msra.mxu0 0.0
  %434 = vmatprep.subr.mxu0 0.0
  %435 = vmatpush1.msra.mxu0 0.0
  %436 = vmatprep.subr.mxu0 0.0
  %437 = vmatpush1.msra.mxu0 0.0
  %438 = vmatprep.subr.mxu0 0.0
  %439 = vmatpush1.msra.mxu0 0.0
  %440 = vmatprep.subr.mxu0 0.0
  %441 = vmatpush1.msra.mxu0 0.0
  %442 = vmatprep.subr.mxu0 0.0
  %443 = vmatpush1.msra.mxu0 0.0
  %444 = vmatprep.subr.mxu0 0.0
  %445 = vmatpush1.msra.mxu0 0.0
  %446 = vmatprep.subr.mxu0 0.0
  %447 = vmatpush1.msra.mxu0 0.0
  %448 = vmatprep.subr.mxu0 0.0
  %449 = vmatpush1.msra.mxu0 0.0
  %450 = vmatprep.subr.mxu0 0.0
  %451 = vmatpush1.msra.mxu0 0.0
  %452 = vmatprep.subr.mxu0 0.0
  %453 = vmatpush1.msra.mxu0 0.0
  %454 = vmatprep.subr.mxu0 0.0
  %455 = vmatpush1.msra.mxu0 0.0
  %456 = vmatprep.subr.mxu0 0.0
  %457 = vmatpush1.msra.mxu0 0.0
  %458 = vmatprep.subr.mxu0 0.0
  %459 = vmatpush1.msra.mxu0 0.0
  %460 = vmatprep.subr.mxu0 0.0
  %461 = vmatpush1.msra.mxu0 0.0
  %462 = vmatprep.subr.mxu0 0.0
  %463 = vmatpush1.msra.mxu0 0.0
  %464 = vmatprep.subr.mxu0 0.0
  %465 = vmatpush1.msra.mxu0 0.0
  %466 = vmatprep.mubr.f32.mxu0 0.0
  %467 = vmatmul.mubr.f32.gmra.mrb[0].mxu0 %v117
  %v468 = vpop.f32.mrb[0].mxu0
  %v469 = vadd.f32 0.0, %v468
  %v470 = vpop.f32.mrb[0].mxu0
  %471 = vdwg.mxu0
  %472 = vmatprep.subr.mxu0 0.0
  %473 = vmatpush1.msra.mxu0 %v109
  %474 = vmatprep.subr.mxu0 0.0
  %475 = vmatpush1.msra.mxu0 %v110
  %476 = vmatprep.subr.mxu0 0.0
  %477 = vmatpush1.msra.mxu0 0.0
  %478 = vmatprep.subr.mxu0 0.0
  %479 = vmatpush1.msra.mxu0 0.0
  %480 = vmatprep.subr.mxu0 0.0
  %481 = vmatpush1.msra.mxu0 0.0
  %482 = vmatprep.subr.mxu0 0.0
  %483 = vmatpush1.msra.mxu0 0.0
  %484 = vmatprep.subr.mxu0 0.0
  %485 = vmatpush1.msra.mxu0 0.0
  %486 = vmatprep.subr.mxu0 0.0
  %487 = vmatpush1.msra.mxu0 0.0
  %488 = vmatprep.subr.mxu0 0.0
  %489 = vmatpush1.msra.mxu0 0.0
  %490 = vmatprep.subr.mxu0 0.0
  %491 = vmatpush1.msra.mxu0 0.0
  %492 = vmatprep.subr.mxu0 0.0
  %493 = vmatpush1.msra.mxu0 0.0
  %494 = vmatprep.subr.mxu0 0.0
  %495 = vmatpush1.msra.mxu0 0.0
  %496 = vmatprep.subr.mxu0 0.0
  %497 = vmatpush1.msra.mxu0 0.0
  %498 = vmatprep.subr.mxu0 0.0
  %499 = vmatpush1.msra.mxu0 0.0
  %500 = vmatprep.subr.mxu0 0.0
  %501 = vmatpush1.msra.mxu0 0.0
  %502 = vmatprep.subr.mxu0 0.0
  %503 = vmatpush1.msra.mxu0 0.0
  %504 = vmatprep.subr.mxu0 0.0
  %505 = vmatpush1.msra.mxu0 0.0
  %506 = vmatprep.subr.mxu0 0.0
  %507 = vmatpush1.msra.mxu0 0.0
  %508 = vmatprep.subr.mxu0 0.0
  %509 = vmatpush1.msra.mxu0 0.0
  %510 = vmatprep.subr.mxu0 0.0
  %511 = vmatpush1.msra.mxu0 0.0
  %512 = vmatprep.subr.mxu0 0.0
  %513 = vmatpush1.msra.mxu0 0.0
  %514 = vmatprep.subr.mxu0 0.0
  %515 = vmatpush1.msra.mxu0 0.0
  %516 = vmatprep.subr.mxu0 0.0
  %517 = vmatpush1.msra.mxu0 0.0
  %518 = vmatprep.subr.mxu0 0.0
  %519 = vmatpush1.msra.mxu0 0.0
  %520 = vmatprep.subr.mxu0 0.0
  %521 = vmatpush1.msra.mxu0 0.0
  %522 = vmatprep.subr.mxu0 0.0
  %523 = vmatpush1.msra.mxu0 0.0
  %524 = vmatprep.subr.mxu0 0.0
  %525 = vmatpush1.msra.mxu0 0.0
  %526 = vmatprep.subr.mxu0 0.0
  %527 = vmatpush1.msra.mxu0 0.0
  %528 = vmatprep.subr.mxu0 0.0
  %529 = vmatpush1.msra.mxu0 0.0
  %530 = vmatprep.subr.mxu0 0.0
  %531 = vmatpush1.msra.mxu0 0.0
  %532 = vmatprep.subr.mxu0 0.0
  %533 = vmatpush1.msra.mxu0 0.0
  %534 = vmatprep.subr.mxu0 0.0
  %535 = vmatpush1.msra.mxu0 0.0
  %536 = vmatprep.mubr.f32.mxu0 0.0
  %537 = vmatmul.mubr.f32.gmra.mrb[0].mxu0 %v190
  %v538 = vpop.f32.mrb[0].mxu0
  %v539 = vadd.f32 0.0, %v538
  %v540 = vpop.f32.mrb[0].mxu0
  %541 = vdwg.mxu0
  %vm542 = vcmask 64512
  %v544 = vsel %vm542, %v186, 0
  %v547 = vsel %vm542, %v329, 0
  %549 = vmatprep.subr.mxu0 0.0
  %550 = vmatpush1.xpose.msra.mxu0 %v547
  %551 = vmatprep.subr.mxu0 0.0
  %552 = vmatpush1.xpose.msra.mxu0 0.0
  %553 = vmatprep.subr.mxu0 0.0
  %554 = vmatpush1.xpose.msra.mxu0 0.0
  %555 = vmatprep.subr.mxu0 0.0
  %556 = vmatpush1.xpose.msra.mxu0 0.0
  %557 = vmatprep.subr.mxu0 0.0
  %558 = vmatpush1.xpose.msra.mxu0 0.0
  %559 = vmatprep.subr.mxu0 0.0
  %560 = vmatpush1.xpose.msra.mxu0 0.0
  %561 = vmatprep.subr.mxu0 0.0
  %562 = vmatpush1.xpose.msra.mxu0 0.0
  %563 = vmatprep.subr.mxu0 0.0
  %564 = vmatpush1.xpose.msra.mxu0 0.0
  %565 = vmatprep.subr.mxu0 0.0
  %566 = vmatpush1.xpose.msra.mxu0 0.0
  %567 = vmatprep.subr.mxu0 0.0
  %568 = vmatpush1.xpose.msra.mxu0 0.0
  %569 = vmatprep.subr.mxu0 0.0
  %570 = vmatpush1.xpose.msra.mxu0 0.0
  %571 = vmatprep.subr.mxu0 0.0
  %572 = vmatpush1.xpose.msra.mxu0 0.0
  %573 = vmatprep.subr.mxu0 0.0
  %574 = vmatpush1.xpose.msra.mxu0 0.0
  %575 = vmatprep.subr.mxu0 0.0
  %576 = vmatpush1.xpose.msra.mxu0 0.0
  %577 = vmatprep.subr.mxu0 0.0
  %578 = vmatpush1.xpose.msra.mxu0 0.0
  %579 = vmatprep.subr.mxu0 0.0
  %580 = vmatpush1.xpose.msra.mxu0 0.0
  %581 = vmatprep.subr.mxu0 0.0
  %582 = vmatpush1.xpose.msra.mxu0 0.0
  %583 = vmatprep.subr.mxu0 0.0
  %584 = vmatpush1.xpose.msra.mxu0 0.0
  %585 = vmatprep.subr.mxu0 0.0
  %586 = vmatpush1.xpose.msra.mxu0 0.0
  %587 = vmatprep.subr.mxu0 0.0
  %588 = vmatpush1.xpose.msra.mxu0 0.0
  %589 = vmatprep.subr.mxu0 0.0
  %590 = vmatpush1.xpose.msra.mxu0 0.0
  %591 = vmatprep.subr.mxu0 0.0
  %592 = vmatpush1.xpose.msra.mxu0 0.0
  %593 = vmatprep.subr.mxu0 0.0
  %594 = vmatpush1.xpose.msra.mxu0 0.0
  %595 = vmatprep.subr.mxu0 0.0
  %596 = vmatpush1.xpose.msra.mxu0 0.0
  %597 = vmatprep.subr.mxu0 0.0
  %598 = vmatpush1.xpose.msra.mxu0 0.0
  %599 = vmatprep.subr.mxu0 0.0
  %600 = vmatpush1.xpose.msra.mxu0 0.0
  %601 = vmatprep.subr.mxu0 0.0
  %602 = vmatpush1.xpose.msra.mxu0 0.0
  %603 = vmatprep.subr.mxu0 0.0
  %604 = vmatpush1.xpose.msra.mxu0 0.0
  %605 = vmatprep.subr.mxu0 0.0
  %606 = vmatpush1.xpose.msra.mxu0 0.0
  %607 = vmatprep.subr.mxu0 0.0
  %608 = vmatpush1.xpose.msra.mxu0 0.0
  %609 = vmatprep.subr.mxu0 0.0
  %610 = vmatpush1.xpose.msra.mxu0 0.0
  %611 = vmatprep.subr.mxu0 0.0
  %612 = vmatpush1.xpose.msra.mxu0 0.0
  %613 = vmatprep.mubr.f32.mxu0 0.0
  %614 = vmatmul.mubr.f32.gmra.mrb[0].mxu0 %v544
  %v615 = vpop.f32.mrb[0].mxu0
  %v616 = vadd.f32 0.0, %v615
  %v617 = vpop.f32.mrb[0].mxu0
  %618 = vdwg.mxu0
  %v620 = vsel %vm542, %v259, 0
  %v623 = vsel %vm542, %v399, 0
  %625 = vmatprep.subr.mxu0 0.0
  %626 = vmatpush1.xpose.msra.mxu0 %v623
  %627 = vmatprep.subr.mxu0 0.0
  %628 = vmatpush1.xpose.msra.mxu0 0.0
  %629 = vmatprep.subr.mxu0 0.0
  %630 = vmatpush1.xpose.msra.mxu0 0.0
  %631 = vmatprep.subr.mxu0 0.0
  %632 = vmatpush1.xpose.msra.mxu0 0.0
  %633 = vmatprep.subr.mxu0 0.0
  %634 = vmatpush1.xpose.msra.mxu0 0.0
  %635 = vmatprep.subr.mxu0 0.0
  %636 = vmatpush1.xpose.msra.mxu0 0.0
  %637 = vmatprep.subr.mxu0 0.0
  %638 = vmatpush1.xpose.msra.mxu0 0.0
  %639 = vmatprep.subr.mxu0 0.0
  %640 = vmatpush1.xpose.msra.mxu0 0.0
  %641 = vmatprep.subr.mxu0 0.0
  %642 = vmatpush1.xpose.msra.mxu0 0.0
  %643 = vmatprep.subr.mxu0 0.0
  %644 = vmatpush1.xpose.msra.mxu0 0.0
  %645 = vmatprep.subr.mxu0 0.0
  %646 = vmatpush1.xpose.msra.mxu0 0.0
  %647 = vmatprep.subr.mxu0 0.0
  %648 = vmatpush1.xpose.msra.mxu0 0.0
  %649 = vmatprep.subr.mxu0 0.0
  %650 = vmatpush1.xpose.msra.mxu0 0.0
  %651 = vmatprep.subr.mxu0 0.0
  %652 = vmatpush1.xpose.msra.mxu0 0.0
  %653 = vmatprep.subr.mxu0 0.0
  %654 = vmatpush1.xpose.msra.mxu0 0.0
  %655 = vmatprep.subr.mxu0 0.0
  %656 = vmatpush1.xpose.msra.mxu0 0.0
  %657 = vmatprep.subr.mxu0 0.0
  %658 = vmatpush1.xpose.msra.mxu0 0.0
  %659 = vmatprep.subr.mxu0 0.0
  %660 = vmatpush1.xpose.msra.mxu0 0.0
  %661 = vmatprep.subr.mxu0 0.0
  %662 = vmatpush1.xpose.msra.mxu0 0.0
  %663 = vmatprep.subr.mxu0 0.0
  %664 = vmatpush1.xpose.msra.mxu0 0.0
  %665 = vmatprep.subr.mxu0 0.0
  %666 = vmatpush1.xpose.msra.mxu0 0.0
  %667 = vmatprep.subr.mxu0 0.0
  %668 = vmatpush1.xpose.msra.mxu0 0.0
  %669 = vmatprep.subr.mxu0 0.0
  %670 = vmatpush1.xpose.msra.mxu0 0.0
  %671 = vmatprep.subr.mxu0 0.0
  %672 = vmatpush1.xpose.msra.mxu0 0.0
  %673 = vmatprep.subr.mxu0 0.0
  %674 = vmatpush1.xpose.msra.mxu0 0.0
  %675 = vmatprep.subr.mxu0 0.0
  %676 = vmatpush1.xpose.msra.mxu0 0.0
  %677 = vmatprep.subr.mxu0 0.0
  %678 = vmatpush1.xpose.msra.mxu0 0.0
  %679 = vmatprep.subr.mxu0 0.0
  %680 = vmatpush1.xpose.msra.mxu0 0.0
  %681 = vmatprep.subr.mxu0 0.0
  %682 = vmatpush1.xpose.msra.mxu0 0.0
  %683 = vmatprep.subr.mxu0 0.0
  %684 = vmatpush1.xpose.msra.mxu0 0.0
  %685 = vmatprep.subr.mxu0 0.0
  %686 = vmatpush1.xpose.msra.mxu0 0.0
  %687 = vmatprep.subr.mxu0 0.0
  %688 = vmatpush1.xpose.msra.mxu0 0.0
  %689 = vmatprep.mubr.f32.mxu0 0.0
  %690 = vmatmul.mubr.f32.gmra.mrb[0].mxu0 %v620
  %v691 = vpop.f32.mrb[0].mxu0
  %v692 = vadd.f32 0.0, %v691
  %v693 = vpop.f32.mrb[0].mxu0
  %694 = vdwg.mxu0
  %v695 = vmul.f32 %v616, 0.35355338
  %v696 = vmul.f32 %v692, 0.35355338
  %vm697 = vcmask 18432
  %v698 = vsel %vm697, %v695, -inf
  %699 = vmax.xlane.f32.xlu0 %v698
  %v700 = vpop.xlane.xlu0 %699
  %v701 = vsel %vm697, %v696, -inf
  %702 = vmax.xlane.f32.xlu0 %v701
  %v703 = vpop.xlane.xlu0 %702
  %v704 = vsub.f32 %v695, %v700
  %v705 = vsub.f32 %v696, %v703
  %v706 = vmul.f32 %v704, 1.442695
  %v707 = vpow.pop %v706
  %v708 = vmul.f32 %v705, 1.442695
  %v709 = vpow.pop %v708
  %v710 = vsel %vm697, %v707, 0.0
  %711 = vadd.xlane.f32.xlu0 %v710
  %v712 = vpop.xlane.xlu0 %711
  %v713 = vsel %vm697, %v709, 0.0
  %714 = vadd.xlane.f32.xlu0 %v713
  %v715 = vpop.xlane.xlu0 %714
  %v716 = vrcp.pop %v712
  %v717 = vmul.f32 %v707, %v716
  %v718 = vrcp.pop %v715
  %v719 = vmul.f32 %v709, %v718
  %vm720 = vcmask 23552
  %v722 = vsel %vm720, %v717, 0
  %vm724 = vcmask 1042432
  %v726 = vsel %vm724, %v469, 0
  %728 = vmatprep.subr.mxu0 0.0
  %729 = vmatpush1.msra.mxu0 %v726
  %730 = vmatprep.subr.mxu0 0.0
  %731 = vmatpush1.msra.mxu0 0.0
  %732 = vmatprep.subr.mxu0 0.0
  %733 = vmatpush1.msra.mxu0 0.0
  %734 = vmatprep.subr.mxu0 0.0
  %735 = vmatpush1.msra.mxu0 0.0
  %736 = vmatprep.subr.mxu0 0.0
  %737 = vmatpush1.msra.mxu0 0.0
  %738 = vmatprep.subr.mxu0 0.0
  %739 = vmatpush1.msra.mxu0 0.0
  %740 = vmatprep.subr.mxu0 0.0
  %741 = vmatpush1.msra.mxu0 0.0
  %742 = vmatprep.subr.mxu0 0.0
  %743 = vmatpush1.msra.mxu0 0.0
  %744 = vmatprep.subr.mxu0 0.0
  %745 = vmatpush1.msra.mxu0 0.0
  %746 = vmatprep.subr.mxu0 0.0
  %747 = vmatpush1.msra.mxu0 0.0
  %748 = vmatprep.subr.mxu0 0.0
  %749 = vmatpush1.msra.mxu0 0.0
  %750 = vmatprep.subr.mxu0 0.0
  %751 = vmatpush1.msra.mxu0 0.0
  %752 = vmatprep.subr.mxu0 0.0
  %753 = vmatpush1.msra.mxu0 0.0
  %754 = vmatprep.subr.mxu0 0.0
  %755 = vmatpush1.msra.mxu0 0.0
  %756 = vmatprep.subr.mxu0 0.0
  %757 = vmatpush1.msra.mxu0 0.0
  %758 = vmatprep.subr.mxu0 0.0
  %759 = vmatpush1.msra.mxu0 0.0
  %760 = vmatprep.subr.mxu0 0.0
  %761 = vmatpush1.msra.mxu0 0.0
  %762 = vmatprep.subr.mxu0 0.0
  %763 = vmatpush1.msra.mxu0 0.0
  %764 = vmatprep.subr.mxu0 0.0
  %765 = vmatpush1.msra.mxu0 0.0
  %766 = vmatprep.subr.mxu0 0.0
  %767 = vmatpush1.msra.mxu0 0.0
  %768 = vmatprep.subr.mxu0 0.0
  %769 = vmatpush1.msra.mxu0 0.0
  %770 = vmatprep.subr.mxu0 0.0
  %771 = vmatpush1.msra.mxu0 0.0
  %772 = vmatprep.subr.mxu0 0.0
  %773 = vmatpush1.msra.mxu0 0.0
  %774 = vmatprep.subr.mxu0 0.0
  %775 = vmatpush1.msra.mxu0 0.0
  %776 = vmatprep.subr.mxu0 0.0
  %777 = vmatpush1.msra.mxu0 0.0
  %778 = vmatprep.subr.mxu0 0.0
  %779 = vmatpush1.msra.mxu0 0.0
  %780 = vmatprep.subr.mxu0 0.0
  %781 = vmatpush1.msra.mxu0 0.0
  %782 = vmatprep.subr.mxu0 0.0
  %783 = vmatpush1.msra.mxu0 0.0
  %784 = vmatprep.subr.mxu0 0.0
  %785 = vmatpush1.msra.mxu0 0.0
  %786 = vmatprep.subr.mxu0 0.0
  %787 = vmatpush1.msra.mxu0 0.0
  %788 = vmatprep.subr.mxu0 0.0
  %789 = vmatpush1.msra.mxu0 0.0
  %790 = vmatprep.subr.mxu0 0.0
  %791 = vmatpush1.msra.mxu0 0.0
  %792 = vmatprep.mubr.f32.mxu0 0.0
  %793 = vmatmul.mubr.f32.gmra.mrb[0].mxu0 %v722
  %v794 = vpop.f32.mrb[0].mxu0
  %v795 = vadd.f32 0.0, %v794
  %v796 = vpop.f32.mrb[0].mxu0
  %797 = vdwg.mxu0
  %v799 = vsel %vm720, %v719, 0
  %v802 = vsel %vm724, %v539, 0
  %804 = vmatprep.subr.mxu0 0.0
  %805 = vmatpush1.msra.mxu0 %v802
  %806 = vmatprep.subr.mxu0 0.0
  %807 = vmatpush1.msra.mxu0 0.0
  %808 = vmatprep.subr.mxu0 0.0
  %809 = vmatpush1.msra.mxu0 0.0
  %810 = vmatprep.subr.mxu0 0.0
  %811 = vmatpush1.msra.mxu0 0.0
  %812 = vmatprep.subr.mxu0 0.0
  %813 = vmatpush1.msra.mxu0 0.0
  %814 = vmatprep.subr.mxu0 0.0
  %815 = vmatpush1.msra.mxu0 0.0
  %816 = vmatprep.subr.mxu0 0.0
  %817 = vmatpush1.msra.mxu0 0.0
  %818 = vmatprep.subr.mxu0 0.0
  %819 = vmatpush1.msra.mxu0 0.0
  %820 = vmatprep.subr.mxu0 0.0
  %821 = vmatpush1.msra.mxu0 0.0
  %822 = vmatprep.subr.mxu0 0.0
  %823 = vmatpush1.msra.mxu0 0.0
  %824 = vmatprep.subr.mxu0 0.0
  %825 = vmatpush1.msra.mxu0 0.0
  %826 = vmatprep.subr.mxu0 0.0
  %827 = vmatpush1.msra.mxu0 0.0
  %828 = vmatprep.subr.mxu0 0.0
  %829 = vmatpush1.msra.mxu0 0.0
  %830 = vmatprep.subr.mxu0 0.0
  %831 = vmatpush1.msra.mxu0 0.0
  %832 = vmatprep.subr.mxu0 0.0
  %833 = vmatpush1.msra.mxu0 0.0
  %834 = vmatprep.subr.mxu0 0.0
  %835 = vmatpush1.msra.mxu0 0.0
  %836 = vmatprep.subr.mxu0 0.0
  %837 = vmatpush1.msra.mxu0 0.0
  %838 = vmatprep.subr.mxu0 0.0
  %839 = vmatpush1.msra.mxu0 0.0
  %840 = vmatprep.subr.mxu0 0.0
  %841 = vmatpush1.msra.mxu0 0.0
  %842 = vmatprep.subr.mxu0 0.0
  %843 = vmatpush1.msra.mxu0 0.0
  %844 = vmatprep.subr.mxu0 0.0
  %845 = vmatpush1.msra.mxu0 0.0
  %846 = vmatprep.subr.mxu0 0.0
  %847 = vmatpush1.msra.mxu0 0.0
  %848 = vmatprep.subr.mxu0 0.0
  %849 = vmatpush1.msra.mxu0 0.0
  %850 = vmatprep.subr.mxu0 0.0
  %851 = vmatpush1.msra.mxu0 0.0
  %852 = vmatprep.subr.mxu0 0.0
  %853 = vmatpush1.msra.mxu0 0.0
  %854 = vmatprep.subr.mxu0 0.0
  %855 = vmatpush1.msra.mxu0 0.0
  %856 = vmatprep.subr.mxu0 0.0
  %857 = vmatpush1.msra.mxu0 0.0
  %858 = vmatprep.subr.mxu0 0.0
  %859 = vmatpush1.msra.mxu0 0.0
  %860 = vmatprep.subr.mxu0 0.0
  %861 = vmatpush1.msra.mxu0 0.0
  %862 = vmatprep.subr.mxu0 0.0
  %863 = vmatpush1.msra.mxu0 0.0
  %864 = vmatprep.subr.mxu0 0.0
  %865 = vmatpush1.msra.mxu0 0.0
  %866 = vmatprep.subr.mxu0 0.0
  %867 = vmatpush1.msra.mxu0 0.0
  %868 = vmatprep.mubr.f32.mxu0 0.0
  %869 = vmatmul.mubr.f32.gmra.mrb[0].mxu0 %v799
  %v870 = vpop.f32.mrb[0].mxu0
  %v871 = vadd.f32 0.0, %v870
  %v872 = vpop.f32.mrb[0].mxu0
  %873 = vdwg.mxu0
  %874 = vmatprep.subr.mxu0 0.0
  %875 = vmatpush1.msra.mxu0 %v103
  %876 = vmatprep.subr.mxu0 0.0
  %877 = vmatpush1.msra.mxu0 %v104
  %878 = vmatprep.subr.mxu0 0.0
  %879 = vmatpush1.msra.mxu0 0.0
  %880 = vmatprep.subr.mxu0 0.0
  %881 = vmatpush1.msra.mxu0 0.0
  %882 = vmatprep.subr.mxu0 0.0
  %883 = vmatpush1.msra.mxu0 0.0
  %884 = vmatprep.subr.mxu0 0.0
  %885 = vmatpush1.msra.mxu0 0.0
  %886 = vmatprep.subr.mxu0 0.0
  %887 = vmatpush1.msra.mxu0 0.0
  %888 = vmatprep.subr.mxu0 0.0
  %889 = vmatpush1.msra.mxu0 0.0
  %890 = vmatprep.subr.mxu0 0.0
  %891 = vmatpush1.msra.mxu0 0.0
  %892 = vmatprep.subr.mxu0 0.0
  %893 = vmatpush1.msra.mxu0 0.0
  %894 = vmatprep.subr.mxu0 0.0
  %895 = vmatpush1.msra.mxu0 0.0
  %896 = vmatprep.subr.mxu0 0.0
  %897 = vmatpush1.msra.mxu0 0.0
  %898 = vmatprep.subr.mxu0 0.0
  %899 = vmatpush1.msra.mxu0 0.0
  %900 = vmatprep.subr.mxu0 0.0
  %901 = vmatpush1.msra.mxu0 0.0
  %902 = vmatprep.subr.mxu0 0.0
  %903 = vmatpush1.msra.mxu0 0.0
  %904 = vmatprep.subr.mxu0 0.0
  %905 = vmatpush1.msra.mxu0 0.0
  %906 = vmatprep.subr.mxu0 0.0
  %907 = vmatpush1.msra.mxu0 0.0
  %908 = vmatprep.subr.mxu0 0.0
  %909 = vmatpush1.msra.mxu0 0.0
  %910 = vmatprep.subr.mxu0 0.0
  %911 = vmatpush1.msra.mxu0 0.0
  %912 = vmatprep.subr.mxu0 0.0
  %913 = vmatpush1.msra.mxu0 0.0
  %914 = vmatprep.subr.mxu0 0.0
  %915 = vmatpush1.msra.mxu0 0.0
  %916 = vmatprep.subr.mxu0 0.0
  %917 = vmatpush1.msra.mxu0 0.0
  %918 = vmatprep.subr.mxu0 0.0
  %919 = vmatpush1.msra.mxu0 0.0
  %920 = vmatprep.subr.mxu0 0.0
  %921 = vmatpush1.msra.mxu0 0.0
  %922 = vmatprep.subr.mxu0 0.0
  %923 = vmatpush1.msra.mxu0 0.0
  %924 = vmatprep.subr.mxu0 0.0
  %925 = vmatpush1.msra.mxu0 0.0
  %926 = vmatprep.subr.mxu0 0.0
  %927 = vmatpush1.msra.mxu0 0.0
  %928 = vmatprep.subr.mxu0 0.0
  %929 = vmatpush1.msra.mxu0 0.0
  %930 = vmatprep.subr.mxu0 0.0
  %931 = vmatpush1.msra.mxu0 0.0
  %932 = vmatprep.subr.mxu0 0.0
  %933 = vmatpush1.msra.mxu0 0.0
  %934 = vmatprep.subr.mxu0 0.0
  %935 = vmatpush1.msra.mxu0 0.0
  %936 = vmatprep.subr.mxu0 0.0
  %937 = vmatpush1.msra.mxu0 0.0
  %938 = vmatprep.mubr.f32.mxu0 0.0
  %939 = vmatmul.mubr.f32.gmra.mrb[0].mxu0 %v117
  %v940 = vpop.f32.mrb[0].mxu0
  %v941 = vadd.f32 0.0, %v940
  %v942 = vpop.f32.mrb[0].mxu0
  %943 = vdwg.mxu0
  %944 = vmatprep.subr.mxu0 0.0
  %945 = vmatpush1.msra.mxu0 %v103
  %946 = vmatprep.subr.mxu0 0.0
  %947 = vmatpush1.msra.mxu0 %v104
  %948 = vmatprep.subr.mxu0 0.0
  %949 = vmatpush1.msra.mxu0 0.0
  %950 = vmatprep.subr.mxu0 0.0
  %951 = vmatpush1.msra.mxu0 0.0
  %952 = vmatprep.subr.mxu0 0.0
  %953 = vmatpush1.msra.mxu0 0.0
  %954 = vmatprep.subr.mxu0 0.0
  %955 = vmatpush1.msra.mxu0 0.0
  %956 = vmatprep.subr.mxu0 0.0
  %957 = vmatpush1.msra.mxu0 0.0
  %958 = vmatprep.subr.mxu0 0.0
  %959 = vmatpush1.msra.mxu0 0.0
  %960 = vmatprep.subr.mxu0 0.0
  %961 = vmatpush1.msra.mxu0 0.0
  %962 = vmatprep.subr.mxu0 0.0
  %963 = vmatpush1.msra.mxu0 0.0
  %964 = vmatprep.subr.mxu0 0.0
  %965 = vmatpush1.msra.mxu0 0.0
  %966 = vmatprep.subr.mxu0 0.0
  %967 = vmatpush1.msra.mxu0 0.0
  %968 = vmatprep.subr.mxu0 0.0
  %969 = vmatpush1.msra.mxu0 0.0
  %970 = vmatprep.subr.mxu0 0.0
  %971 = vmatpush1.msra.mxu0 0.0
  %972 = vmatprep.subr.mxu0 0.0
  %973 = vmatpush1.msra.mxu0 0.0
  %974 = vmatprep.subr.mxu0 0.0
  %975 = vmatpush1.msra.mxu0 0.0
  %976 = vmatprep.subr.mxu0 0.0
  %977 = vmatpush1.msra.mxu0 0.0
  %978 = vmatprep.subr.mxu0 0.0
  %979 = vmatpush1.msra.mxu0 0.0
  %980 = vmatprep.subr.mxu0 0.0
  %981 = vmatpush1.msra.mxu0 0.0
  %982 = vmatprep.subr.mxu0 0.0
  %983 = vmatpush1.msra.mxu0 0.0
  %984 = vmatprep.subr.mxu0 0.0
  %985 = vmatpush1.msra.mxu0 0.0
  %986 = vmatprep.subr.mxu0 0.0
  %987 = vmatpush1.msra.mxu0 0.0
  %988 = vmatprep.subr.mxu0 0.0
  %989 = vmatpush1.msra.mxu0 0.0
  %990 = vmatprep.subr.mxu0 0.0
  %991 = vmatpush1.msra.mxu0 0.0
  %992 = vmatprep.subr.mxu0 0.0
  %993 = vmatpush1.msra.mxu0 0.0
  %994 = vmatprep.subr.mxu0 0.0
  %995 = vmatpush1.msra.mxu0 0.0
  %996 = vmatprep.subr.mxu0 0.0
  %997 = vmatpush1.msra.mxu0 0.0
  %998 = vmatprep.subr.mxu0 0.0
  %999 = vmatpush1.msra.mxu0 0.0
  %1000 = vmatprep.subr.mxu0 0.0
  %1001 = vmatpush1.msra.mxu0 0.0
  %1002 = vmatprep.subr.mxu0 0.0
  %1003 = vmatpush1.msra.mxu0 0.0
  %1004 = vmatprep.subr.mxu0 0.0
  %1005 = vmatpush1.msra.mxu0 0.0
  %1006 = vmatprep.subr.mxu0 0.0
  %1007 = vmatpush1.msra.mxu0 0.0
  %1008 = vmatprep.mubr.f32.mxu0 0.0
  %1009 = vmatmul.mubr.f32.gmra.mrb[0].mxu0 %v190
  %v1010 = vpop.f32.mrb[0].mxu0
  %v1011 = vadd.f32 0.0, %v1010
  %v1012 = vpop.f32.mrb[0].mxu0
  %1013 = vdwg.mxu0
  %1014 = vmatprep.subr.mxu0 0.0
  %1015 = vmatpush1.msra.mxu0 %v107
  %1016 = vmatprep.subr.mxu0 0.0
  %1017 = vmatpush1.msra.mxu0 %v108
  %1018 = vmatprep.subr.mxu0 0.0
  %1019 = vmatpush1.msra.mxu0 0.0
  %1020 = vmatprep.subr.mxu0 0.0
  %1021 = vmatpush1.msra.mxu0 0.0
  %1022 = vmatprep.subr.mxu0 0.0
  %1023 = vmatpush1.msra.mxu0 0.0
  %1024 = vmatprep.subr.mxu0 0.0
  %1025 = vmatpush1.msra.mxu0 0.0
  %1026 = vmatprep.subr.mxu0 0.0
  %1027 = vmatpush1.msra.mxu0 0.0
  %1028 = vmatprep.subr.mxu0 0.0
  %1029 = vmatpush1.msra.mxu0 0.0
  %1030 = vmatprep.subr.mxu0 0.0
  %1031 = vmatpush1.msra.mxu0 0.0
  %1032 = vmatprep.subr.mxu0 0.0
  %1033 = vmatpush1.msra.mxu0 0.0
  %1034 = vmatprep.subr.mxu0 0.0
  %1035 = vmatpush1.msra.mxu0 0.0
  %1036 = vmatprep.subr.mxu0 0.0
  %1037 = vmatpush1.msra.mxu0 0.0
  %1038 = vmatprep.subr.mxu0 0.0
  %1039 = vmatpush1.msra.mxu0 0.0
  %1040 = vmatprep.subr.mxu0 0.0
  %1041 = vmatpush1.msra.mxu0 0.0
  %1042 = vmatprep.subr.mxu0 0.0
  %1043 = vmatpush1.msra.mxu0 0.0
  %1044 = vmatprep.subr.mxu0 0.0
  %1045 = vmatpush1.msra.mxu0 0.0
  %1046 = vmatprep.subr.mxu0 0.0
  %1047 = vmatpush1.msra.mxu0 0.0
  %1048 = vmatprep.subr.mxu0 0.0
  %1049 = vmatpush1.msra.mxu0 0.0
  %1050 = vmatprep.subr.mxu0 0.0
  %1051 = vmatpush1.msra.mxu0 0.0
  %1052 = vmatprep.subr.mxu0 0.0
  %1053 = vmatpush1.msra.mxu0 0.0
  %1054 = vmatprep.subr.mxu0 0.0
  %1055 = vmatpush1.msra.mxu0 0.0
  %1056 = vmatprep.subr.mxu0 0.0
  %1057 = vmatpush1.msra.mxu0 0.0
  %1058 = vmatprep.subr.mxu0 0.0
  %1059 = vmatpush1.msra.mxu0 0.0
  %1060 = vmatprep.subr.mxu0 0.0
  %1061 = vmatpush1.msra.mxu0 0.0
  %1062 = vmatprep.subr.mxu0 0.0
  %1063 = vmatpush1.msra.mxu0 0.0
  %1064 = vmatprep.subr.mxu0 0.0
  %1065 = vmatpush1.msra.mxu0 0.0
  %1066 = vmatprep.subr.mxu0 0.0
  %1067 = vmatpush1.msra.mxu0 0.0
  %1068 = vmatprep.subr.mxu0 0.0
  %1069 = vmatpush1.msra.mxu0 0.0
  %1070 = vmatprep.subr.mxu0 0.0
  %1071 = vmatpush1.msra.mxu0 0.0
  %1072 = vmatprep.subr.mxu0 0.0
  %1073 = vmatpush1.msra.mxu0 0.0
  %1074 = vmatprep.subr.mxu0 0.0
  %1075 = vmatpush1.msra.mxu0 0.0
  %1076 = vmatprep.subr.mxu0 0.0
  %1077 = vmatpush1.msra.mxu0 0.0
  %1078 = vmatprep.mubr.f32.mxu0 0.0
  %1079 = vmatmul.mubr.f32.gmra.mrb[0].mxu0 %v117
  %v1080 = vpop.f32.mrb[0].mxu0
  %v1081 = vadd.f32 0.0, %v1080
  %v1082 = vpop.f32.mrb[0].mxu0
  %1083 = vdwg.mxu0
  %1084 = vmatprep.subr.mxu0 0.0
  %1085 = vmatpush1.msra.mxu0 %v107
  %1086 = vmatprep.subr.mxu0 0.0
  %1087 = vmatpush1.msra.mxu0 %v108
  %1088 = vmatprep.subr.mxu0 0.0
  %1089 = vmatpush1.msra.mxu0 0.0
  %1090 = vmatprep.subr.mxu0 0.0
  %1091 = vmatpush1.msra.mxu0 0.0
  %1092 = vmatprep.subr.mxu0 0.0
  %1093 = vmatpush1.msra.mxu0 0.0
  %1094 = vmatprep.subr.mxu0 0.0
  %1095 = vmatpush1.msra.mxu0 0.0
  %1096 = vmatprep.subr.mxu0 0.0
  %1097 = vmatpush1.msra.mxu0 0.0
  %1098 = vmatprep.subr.mxu0 0.0
  %1099 = vmatpush1.msra.mxu0 0.0
  %1100 = vmatprep.subr.mxu0 0.0
  %1101 = vmatpush1.msra.mxu0 0.0
  %1102 = vmatprep.subr.mxu0 0.0
  %1103 = vmatpush1.msra.mxu0 0.0
  %1104 = vmatprep.subr.mxu0 0.0
  %1105 = vmatpush1.msra.mxu0 0.0
  %1106 = vmatprep.subr.mxu0 0.0
  %1107 = vmatpush1.msra.mxu0 0.0
  %1108 = vmatprep.subr.mxu0 0.0
  %1109 = vmatpush1.msra.mxu0 0.0
  %1110 = vmatprep.subr.mxu0 0.0
  %1111 = vmatpush1.msra.mxu0 0.0
  %1112 = vmatprep.subr.mxu0 0.0
  %1113 = vmatpush1.msra.mxu0 0.0
  %1114 = vmatprep.subr.mxu0 0.0
  %1115 = vmatpush1.msra.mxu0 0.0
  %1116 = vmatprep.subr.mxu0 0.0
  %1117 = vmatpush1.msra.mxu0 0.0
  %1118 = vmatprep.subr.mxu0 0.0
  %1119 = vmatpush1.msra.mxu0 0.0
  %1120 = vmatprep.subr.mxu0 0.0
  %1121 = vmatpush1.msra.mxu0 0.0
  %1122 = vmatprep.subr.mxu0 0.0
  %1123 = vmatpush1.msra.mxu0 0.0
  %1124 = vmatprep.subr.mxu0 0.0
  %1125 = vmatpush1.msra.mxu0 0.0
  %1126 = vmatprep.subr.mxu0 0.0
  %1127 = vmatpush1.msra.mxu0 0.0
  %1128 = vmatprep.subr.mxu0 0.0
  %1129 = vmatpush1.msra.mxu0 0.0
  %1130 = vmatprep.subr.mxu0 0.0
  %1131 = vmatpush1.msra.mxu0 0.0
  %1132 = vmatprep.subr.mxu0 0.0
  %1133 = vmatpush1.msra.mxu0 0.0
  %1134 = vmatprep.subr.mxu0 0.0
  %1135 = vmatpush1.msra.mxu0 0.0
  %1136 = vmatprep.subr.mxu0 0.0
  %1137 = vmatpush1.msra.mxu0 0.0
  %1138 = vmatprep.subr.mxu0 0.0
  %1139 = vmatpush1.msra.mxu0 0.0
  %1140 = vmatprep.subr.mxu0 0.0
  %1141 = vmatpush1.msra.mxu0 0.0
  %1142 = vmatprep.subr.mxu0 0.0
  %1143 = vmatpush1.msra.mxu0 0.0
  %1144 = vmatprep.subr.mxu0 0.0
  %1145 = vmatpush1.msra.mxu0 0.0
  %1146 = vmatprep.subr.mxu0 0.0
  %1147 = vmatpush1.msra.mxu0 0.0
  %1148 = vmatprep.mubr.f32.mxu0 0.0
  %1149 = vmatmul.mubr.f32.gmra.mrb[0].mxu0 %v190
  %v1150 = vpop.f32.mrb[0].mxu0
  %v1151 = vadd.f32 0.0, %v1150
  %v1152 = vpop.f32.mrb[0].mxu0
  %1153 = vdwg.mxu0
  %1154 = vmatprep.subr.mxu0 0.0
  %1155 = vmatpush1.msra.mxu0 %v111
  %1156 = vmatprep.subr.mxu0 0.0
  %1157 = vmatpush1.msra.mxu0 %v112
  %1158 = vmatprep.subr.mxu0 0.0
  %1159 = vmatpush1.msra.mxu0 0.0
  %1160 = vmatprep.subr.mxu0 0.0
  %1161 = vmatpush1.msra.mxu0 0.0
  %1162 = vmatprep.subr.mxu0 0.0
  %1163 = vmatpush1.msra.mxu0 0.0
  %1164 = vmatprep.subr.mxu0 0.0
  %1165 = vmatpush1.msra.mxu0 0.0
  %1166 = vmatprep.subr.mxu0 0.0
  %1167 = vmatpush1.msra.mxu0 0.0
  %1168 = vmatprep.subr.mxu0 0.0
  %1169 = vmatpush1.msra.mxu0 0.0
  %1170 = vmatprep.subr.mxu0 0.0
  %1171 = vmatpush1.msra.mxu0 0.0
  %1172 = vmatprep.subr.mxu0 0.0
  %1173 = vmatpush1.msra.mxu0 0.0
  %1174 = vmatprep.subr.mxu0 0.0
  %1175 = vmatpush1.msra.mxu0 0.0
  %1176 = vmatprep.subr.mxu0 0.0
  %1177 = vmatpush1.msra.mxu0 0.0
  %1178 = vmatprep.subr.mxu0 0.0
  %1179 = vmatpush1.msra.mxu0 0.0
  %1180 = vmatprep.subr.mxu0 0.0
  %1181 = vmatpush1.msra.mxu0 0.0
  %1182 = vmatprep.subr.mxu0 0.0
  %1183 = vmatpush1.msra.mxu0 0.0
  %1184 = vmatprep.subr.mxu0 0.0
  %1185 = vmatpush1.msra.mxu0 0.0
  %1186 = vmatprep.subr.mxu0 0.0
  %1187 = vmatpush1.msra.mxu0 0.0
  %1188 = vmatprep.subr.mxu0 0.0
  %1189 = vmatpush1.msra.mxu0 0.0
  %1190 = vmatprep.subr.mxu0 0.0
  %1191 = vmatpush1.msra.mxu0 0.0
  %1192 = vmatprep.subr.mxu0 0.0
  %1193 = vmatpush1.msra.mxu0 0.0
  %1194 = vmatprep.subr.mxu0 0.0
  %1195 = vmatpush1.msra.mxu0 0.0
  %1196 = vmatprep.subr.mxu0 0.0
  %1197 = vmatpush1.msra.mxu0 0.0
  %1198 = vmatprep.subr.mxu0 0.0
  %1199 = vmatpush1.msra.mxu0 0.0
  %1200 = vmatprep.subr.mxu0 0.0
  %1201 = vmatpush1.msra.mxu0 0.0
  %1202 = vmatprep.subr.mxu0 0.0
  %1203 = vmatpush1.msra.mxu0 0.0
  %1204 = vmatprep.subr.mxu0 0.0
  %1205 = vmatpush1.msra.mxu0 0.0
  %1206 = vmatprep.subr.mxu0 0.0
  %1207 = vmatpush1.msra.mxu0 0.0
  %1208 = vmatprep.subr.mxu0 0.0
  %1209 = vmatpush1.msra.mxu0 0.0
  %1210 = vmatprep.subr.mxu0 0.0
  %1211 = vmatpush1.msra.mxu0 0.0
  %1212 = vmatprep.subr.mxu0 0.0
  %1213 = vmatpush1.msra.mxu0 0.0
  %1214 = vmatprep.subr.mxu0 0.0
  %1215 = vmatpush1.msra.mxu0 0.0
  %1216 = vmatprep.subr.mxu0 0.0
  %1217 = vmatpush1.msra.mxu0 0.0
  %1218 = vmatprep.mubr.f32.mxu0 0.0
  %1219 = vmatmul.mubr.f32.gmra.mrb[0].mxu0 %v117
  %v1220 = vpop.f32.mrb[0].mxu0
  %v1221 = vadd.f32 0.0, %v1220
  %v1222 = vpop.f32.mrb[0].mxu0
  %1223 = vdwg.mxu0
  %1224 = vmatprep.subr.mxu0 0.0
  %1225 = vmatpush1.msra.mxu0 %v111
  %1226 = vmatprep.subr.mxu0 0.0
  %1227 = vmatpush1.msra.mxu0 %v112
  %1228 = vmatprep.subr.mxu0 0.0
  %1229 = vmatpush1.msra.mxu0 0.0
  %1230 = vmatprep.subr.mxu0 0.0
  %1231 = vmatpush1.msra.mxu0 0.0
  %1232 = vmatprep.subr.mxu0 0.0
  %1233 = vmatpush1.msra.mxu0 0.0
  %1234 = vmatprep.subr.mxu0 0.0
  %1235 = vmatpush1.msra.mxu0 0.0
  %1236 = vmatprep.subr.mxu0 0.0
  %1237 = vmatpush1.msra.mxu0 0.0
  %1238 = vmatprep.subr.mxu0 0.0
  %1239 = vmatpush1.msra.mxu0 0.0
  %1240 = vmatprep.subr.mxu0 0.0
  %1241 = vmatpush1.msra.mxu0 0.0
  %1242 = vmatprep.subr.mxu0 0.0
  %1243 = vmatpush1.msra.mxu0 0.0
  %1244 = vmatprep.subr.mxu0 0.0
  %1245 = vmatpush1.msra.mxu0 0.0
  %1246 = vmatprep.subr.mxu0 0.0
  %1247 = vmatpush1.msra.mxu0 0.0
  %1248 = vmatprep.subr.mxu0 0.0
  %1249 = vmatpush1.msra.mxu0 0.0
  %1250 = vmatprep.subr.mxu0 0.0
  %1251 = vmatpush1.msra.mxu0 0.0
  %1252 = vmatprep.subr.mxu0 0.0
  %1253 = vmatpush1.msra.mxu0 0.0
  %1254 = vmatprep.subr.mxu0 0.0
  %1255 = vmatpush1.msra.mxu0 0.0
  %1256 = vmatprep.subr.mxu0 0.0
  %1257 = vmatpush1.msra.mxu0 0.0
  %1258 = vmatprep.subr.mxu0 0.0
  %1259 = vmatpush1.msra.mxu0 0.0
  %1260 = vmatprep.subr.mxu0 0.0
  %1261 = vmatpush1.msra.mxu0 0.0
  %1262 = vmatprep.subr.mxu0 0.0
  %1263 = vmatpush1.msra.mxu0 0.0
  %1264 = vmatprep.subr.mxu0 0.0
  %1265 = vmatpush1.msra.mxu0 0.0
  %1266 = vmatprep.subr.mxu0 0.0
  %1267 = vmatpush1.msra.mxu0 0.0
  %1268 = vmatprep.subr.mxu0 0.0
  %1269 = vmatpush1.msra.mxu0 0.0
  %1270 = vmatprep.subr.mxu0 0.0
  %1271 = vmatpush1.msra.mxu0 0.0
  %1272 = vmatprep.subr.mxu0 0.0
  %1273 = vmatpush1.msra.mxu0 0.0
  %1274 = vmatprep.subr.mxu0 0.0
  %1275 = vmatpush1.msra.mxu0 0.0
  %1276 = vmatprep.subr.mxu0 0.0
  %1277 = vmatpush1.msra.mxu0 0.0
  %1278 = vmatprep.subr.mxu0 0.0
  %1279 = vmatpush1.msra.mxu0 0.0
  %1280 = vmatprep.subr.mxu0 0.0
  %1281 = vmatpush1.msra.mxu0 0.0
  %1282 = vmatprep.subr.mxu0 0.0
  %1283 = vmatpush1.msra.mxu0 0.0
  %1284 = vmatprep.subr.mxu0 0.0
  %1285 = vmatpush1.msra.mxu0 0.0
  %1286 = vmatprep.subr.mxu0 0.0
  %1287 = vmatpush1.msra.mxu0 0.0
  %1288 = vmatprep.mubr.f32.mxu0 0.0
  %1289 = vmatmul.mubr.f32.gmra.mrb[0].mxu0 %v190
  %v1290 = vpop.f32.mrb[0].mxu0
  %v1291 = vadd.f32 0.0, %v1290
  %v1292 = vpop.f32.mrb[0].mxu0
  %1293 = vdwg.mxu0
  %v1295 = vsel %vm542, %v941, 0
  %v1298 = vsel %vm542, %v1081, 0
  %1300 = vmatprep.subr.mxu0 0.0
  %1301 = vmatpush1.xpose.msra.mxu0 %v1298
  %1302 = vmatprep.subr.mxu0 0.0
  %1303 = vmatpush1.xpose.msra.mxu0 0.0
  %1304 = vmatprep.subr.mxu0 0.0
  %1305 = vmatpush1.xpose.msra.mxu0 0.0
  %1306 = vmatprep.subr.mxu0 0.0
  %1307 = vmatpush1.xpose.msra.mxu0 0.0
  %1308 = vmatprep.subr.mxu0 0.0
  %1309 = vmatpush1.xpose.msra.mxu0 0.0
  %1310 = vmatprep.subr.mxu0 0.0
  %1311 = vmatpush1.xpose.msra.mxu0 0.0
  %1312 = vmatprep.subr.mxu0 0.0
  %1313 = vmatpush1.xpose.msra.mxu0 0.0
  %1314 = vmatprep.subr.mxu0 0.0
  %1315 = vmatpush1.xpose.msra.mxu0 0.0
  %1316 = vmatprep.subr.mxu0 0.0
  %1317 = vmatpush1.xpose.msra.mxu0 0.0
  %1318 = vmatprep.subr.mxu0 0.0
  %1319 = vmatpush1.xpose.msra.mxu0 0.0
  %1320 = vmatprep.subr.mxu0 0.0
  %1321 = vmatpush1.xpose.msra.mxu0 0.0
  %1322 = vmatprep.subr.mxu0 0.0
  %1323 = vmatpush1.xpose.msra.mxu0 0.0
  %1324 = vmatprep.subr.mxu0 0.0
  %1325 = vmatpush1.xpose.msra.mxu0 0.0
  %1326 = vmatprep.subr.mxu0 0.0
  %1327 = vmatpush1.xpose.msra.mxu0 0.0
  %1328 = vmatprep.subr.mxu0 0.0
  %1329 = vmatpush1.xpose.msra.mxu0 0.0
  %1330 = vmatprep.subr.mxu0 0.0
  %1331 = vmatpush1.xpose.msra.mxu0 0.0
  %1332 = vmatprep.subr.mxu0 0.0
  %1333 = vmatpush1.xpose.msra.mxu0 0.0
  %1334 = vmatprep.subr.mxu0 0.0
  %1335 = vmatpush1.xpose.msra.mxu0 0.0
  %1336 = vmatprep.subr.mxu0 0.0
  %1337 = vmatpush1.xpose.msra.mxu0 0.0
  %1338 = vmatprep.subr.mxu0 0.0
  %1339 = vmatpush1.xpose.msra.mxu0 0.0
  %1340 = vmatprep.subr.mxu0 0.0
  %1341 = vmatpush1.xpose.msra.mxu0 0.0
  %1342 = vmatprep.subr.mxu0 0.0
  %1343 = vmatpush1.xpose.msra.mxu0 0.0
  %1344 = vmatprep.subr.mxu0 0.0
  %1345 = vmatpush1.xpose.msra.mxu0 0.0
  %1346 = vmatprep.subr.mxu0 0.0
  %1347 = vmatpush1.xpose.msra.mxu0 0.0
  %1348 = vmatprep.subr.mxu0 0.0
  %1349 = vmatpush1.xpose.msra.mxu0 0.0
  %1350 = vmatprep.subr.mxu0 0.0
  %1351 = vmatpush1.xpose.msra.mxu0 0.0
  %1352 = vmatprep.subr.mxu0 0.0
  %1353 = vmatpush1.xpose.msra.mxu0 0.0
  %1354 = vmatprep.subr.mxu0 0.0
  %1355 = vmatpush1.xpose.msra.mxu0 0.0
  %1356 = vmatprep.subr.mxu0 0.0
  %1357 = vmatpush1.xpose.msra.mxu0 0.0
  %1358 = vmatprep.subr.mxu0 0.0
  %1359 = vmatpush1.xpose.msra.mxu0 0.0
  %1360 = vmatprep.subr.mxu0 0.0
  %1361 = vmatpush1.xpose.msra.mxu0 0.0
  %1362 = vmatprep.subr.mxu0 0.0
  %1363 = vmatpush1.xpose.msra.mxu0 0.0
  %1364 = vmatprep.mubr.f32.mxu0 0.0
  %1365 = vmatmul.mubr.f32.gmra.mrb[0].mxu0 %v1295
  %v1366 = vpop.f32.mrb[0].mxu0
  %v1367 = vadd.f32 0.0, %v1366
  %v1368 = vpop.f32.mrb[0].mxu0
  %1369 = vdwg.mxu0
  %v1371 = vsel %vm542, %v1011, 0
  %v1374 = vsel %vm542, %v1151, 0
  %1376 = vmatprep.subr.mxu0 0.0
  %1377 = vmatpush1.xpose.msra.mxu0 %v1374
  %1378 = vmatprep.subr.mxu0 0.0
  %1379 = vmatpush1.xpose.msra.mxu0 0.0
  %1380 = vmatprep.subr.mxu0 0.0
  %1381 = vmatpush1.xpose.msra.mxu0 0.0
  %1382 = vmatprep.subr.mxu0 0.0
  %1383 = vmatpush1.xpose.msra.mxu0 0.0
  %1384 = vmatprep.subr.mxu0 0.0
  %1385 = vmatpush1.xpose.msra.mxu0 0.0
  %1386 = vmatprep.subr.mxu0 0.0
  %1387 = vmatpush1.xpose.msra.mxu0 0.0
  %1388 = vmatprep.subr.mxu0 0.0
  %1389 = vmatpush1.xpose.msra.mxu0 0.0
  %1390 = vmatprep.subr.mxu0 0.0
  %1391 = vmatpush1.xpose.msra.mxu0 0.0
  %1392 = vmatprep.subr.mxu0 0.0
  %1393 = vmatpush1.xpose.msra.mxu0 0.0
  %1394 = vmatprep.subr.mxu0 0.0
  %1395 = vmatpush1.xpose.msra.mxu0 0.0
  %1396 = vmatprep.subr.mxu0 0.0
  %1397 = vmatpush1.xpose.msra.mxu0 0.0
  %1398 = vmatprep.subr.mxu0 0.0
  %1399 = vmatpush1.xpose.msra.mxu0 0.0
  %1400 = vmatprep.subr.mxu0 0.0
  %1401 = vmatpush1.xpose.msra.mxu0 0.0
  %1402 = vmatprep.subr.mxu0 0.0
  %1403 = vmatpush1.xpose.msra.mxu0 0.0
  %1404 = vmatprep.subr.mxu0 0.0
  %1405 = vmatpush1.xpose.msra.mxu0 0.0
  %1406 = vmatprep.subr.mxu0 0.0
  %1407 = vmatpush1.xpose.msra.mxu0 0.0
  %1408 = vmatprep.subr.mxu0 0.0
  %1409 = vmatpush1.xpose.msra.mxu0 0.0
  %1410 = vmatprep.subr.mxu0 0.0
  %1411 = vmatpush1.xpose.msra.mxu0 0.0
  %1412 = vmatprep.subr.mxu0 0.0
  %1413 = vmatpush1.xpose.msra.mxu0 0.0
  %1414 = vmatprep.subr.mxu0 0.0
  %1415 = vmatpush1.xpose.msra.mxu0 0.0
  %1416 = vmatprep.subr.mxu0 0.0
  %1417 = vmatpush1.xpose.msra.mxu0 0.0
  %1418 = vmatprep.subr.mxu0 0.0
  %1419 = vmatpush1.xpose.msra.mxu0 0.0
  %1420 = vmatprep.subr.mxu0 0.0
  %1421 = vmatpush1.xpose.msra.mxu0 0.0
  %1422 = vmatprep.subr.mxu0 0.0
  %1423 = vmatpush1.xpose.msra.mxu0 0.0
  %1424 = vmatprep.subr.mxu0 0.0
  %1425 = vmatpush1.xpose.msra.mxu0 0.0
  %1426 = vmatprep.subr.mxu0 0.0
  %1427 = vmatpush1.xpose.msra.mxu0 0.0
  %1428 = vmatprep.subr.mxu0 0.0
  %1429 = vmatpush1.xpose.msra.mxu0 0.0
  %1430 = vmatprep.subr.mxu0 0.0
  %1431 = vmatpush1.xpose.msra.mxu0 0.0
  %1432 = vmatprep.subr.mxu0 0.0
  %1433 = vmatpush1.xpose.msra.mxu0 0.0
  %1434 = vmatprep.subr.mxu0 0.0
  %1435 = vmatpush1.xpose.msra.mxu0 0.0
  %1436 = vmatprep.subr.mxu0 0.0
  %1437 = vmatpush1.xpose.msra.mxu0 0.0
  %1438 = vmatprep.subr.mxu0 0.0
  %1439 = vmatpush1.xpose.msra.mxu0 0.0
  %1440 = vmatprep.mubr.f32.mxu0 0.0
  %1441 = vmatmul.mubr.f32.gmra.mrb[0].mxu0 %v1371
  %v1442 = vpop.f32.mrb[0].mxu0
  %v1443 = vadd.f32 0.0, %v1442
  %v1444 = vpop.f32.mrb[0].mxu0
  %1445 = vdwg.mxu0
  %v1446 = vmul.f32 %v1367, 0.35355338
  %v1447 = vmul.f32 %v1443, 0.35355338
  %v1448 = vsel %vm697, %v1446, -inf
  %1449 = vmax.xlane.f32.xlu0 %v1448
  %v1450 = vpop.xlane.xlu0 %1449
  %v1451 = vsel %vm697, %v1447, -inf
  %1452 = vmax.xlane.f32.xlu0 %v1451
  %v1453 = vpop.xlane.xlu0 %1452
  %v1454 = vsub.f32 %v1446, %v1450
  %v1455 = vsub.f32 %v1447, %v1453
  %v1456 = vmul.f32 %v1454, 1.442695
  %v1457 = vpow.pop %v1456
  %v1458 = vmul.f32 %v1455, 1.442695
  %v1459 = vpow.pop %v1458
  %v1460 = vsel %vm697, %v1457, 0.0
  %1461 = vadd.xlane.f32.xlu0 %v1460
  %v1462 = vpop.xlane.xlu0 %1461
  %v1463 = vsel %vm697, %v1459, 0.0
  %1464 = vadd.xlane.f32.xlu0 %v1463
  %v1465 = vpop.xlane.xlu0 %1464
  %v1466 = vrcp.pop %v1462
  %v1467 = vmul.f32 %v1457, %v1466
  %v1468 = vrcp.pop %v1465
  %v1469 = vmul.f32 %v1459, %v1468
  %v1471 = vsel %vm720, %v1467, 0
  %v1474 = vsel %vm724, %v1221, 0
  %1476 = vmatprep.subr.mxu0 0.0
  %1477 = vmatpush1.msra.mxu0 %v1474
  %1478 = vmatprep.subr.mxu0 0.0
  %1479 = vmatpush1.msra.mxu0 0.0
  %1480 = vmatprep.subr.mxu0 0.0
  %1481 = vmatpush1.msra.mxu0 0.0
  %1482 = vmatprep.subr.mxu0 0.0
  %1483 = vmatpush1.msra.mxu0 0.0
  %1484 = vmatprep.subr.mxu0 0.0
  %1485 = vmatpush1.msra.mxu0 0.0
  %1486 = vmatprep.subr.mxu0 0.0
  %1487 = vmatpush1.msra.mxu0 0.0
  %1488 = vmatprep.subr.mxu0 0.0
  %1489 = vmatpush1.msra.mxu0 0.0
  %1490 = vmatprep.subr.mxu0 0.0
  %1491 = vmatpush1.msra.mxu0 0.0
  %1492 = vmatprep.subr.mxu0 0.0
  %1493 = vmatpush1.msra.mxu0 0.0
  %1494 = vmatprep.subr.mxu0 0.0
  %1495 = vmatpush1.msra.mxu0 0.0
  %1496 = vmatprep.subr.mxu0 0.0
  %1497 = vmatpush1.msra.mxu0 0.0
  %1498 = vmatprep.subr.mxu0 0.0
  %1499 = vmatpush1.msra.mxu0 0.0
  %1500 = vmatprep.subr.mxu0 0.0
  %1501 = vmatpush1.msra.mxu0 0.0
  %1502 = vmatprep.subr.mxu0 0.0
  %1503 = vmatpush1.msra.mxu0 0.0
  %1504 = vmatprep.subr.mxu0 0.0
  %1505 = vmatpush1.msra.mxu0 0.0
  %1506 = vmatprep.subr.mxu0 0.0
  %1507 = vmatpush1.msra.mxu0 0.0
  %1508 = vmatprep.subr.mxu0 0.0
  %1509 = vmatpush1.msra.mxu0 0.0
  %1510 = vmatprep.subr.mxu0 0.0
  %1511 = vmatpush1.msra.mxu0 0.0
  %1512 = vmatprep.subr.mxu0 0.0
  %1513 = vmatpush1.msra.mxu0 0.0
  %1514 = vmatprep.subr.mxu0 0.0
  %1515 = vmatpush1.msra.mxu0 0.0
  %1516 = vmatprep.subr.mxu0 0.0
  %1517 = vmatpush1.msra.mxu0 0.0
  %1518 = vmatprep.subr.mxu0 0.0
  %1519 = vmatpush1.msra.mxu0 0.0
  %1520 = vmatprep.subr.mxu0 0.0
  %1521 = vmatpush1.msra.mxu0 0.0
  %1522 = vmatprep.subr.mxu0 0.0
  %1523 = vmatpush1.msra.mxu0 0.0
  %1524 = vmatprep.subr.mxu0 0.0
  %1525 = vmatpush1.msra.mxu0 0.0
  %1526 = vmatprep.subr.mxu0 0.0
  %1527 = vmatpush1.msra.mxu0 0.0
  %1528 = vmatprep.subr.mxu0 0.0
  %1529 = vmatpush1.msra.mxu0 0.0
  %1530 = vmatprep.subr.mxu0 0.0
  %1531 = vmatpush1.msra.mxu0 0.0
  %1532 = vmatprep.subr.mxu0 0.0
  %1533 = vmatpush1.msra.mxu0 0.0
  %1534 = vmatprep.subr.mxu0 0.0
  %1535 = vmatpush1.msra.mxu0 0.0
  %1536 = vmatprep.subr.mxu0 0.0
  %1537 = vmatpush1.msra.mxu0 0.0
  %1538 = vmatprep.subr.mxu0 0.0
  %1539 = vmatpush1.msra.mxu0 0.0
  %1540 = vmatprep.mubr.f32.mxu0 0.0
  %1541 = vmatmul.mubr.f32.gmra.mrb[0].mxu0 %v1471
  %v1542 = vpop.f32.mrb[0].mxu0
  %v1543 = vadd.f32 0.0, %v1542
  %v1544 = vpop.f32.mrb[0].mxu0
  %1545 = vdwg.mxu0
  %v1547 = vsel %vm720, %v1469, 0
  %v1550 = vsel %vm724, %v1291, 0
  %1552 = vmatprep.subr.mxu0 0.0
  %1553 = vmatpush1.msra.mxu0 %v1550
  %1554 = vmatprep.subr.mxu0 0.0
  %1555 = vmatpush1.msra.mxu0 0.0
  %1556 = vmatprep.subr.mxu0 0.0
  %1557 = vmatpush1.msra.mxu0 0.0
  %1558 = vmatprep.subr.mxu0 0.0
  %1559 = vmatpush1.msra.mxu0 0.0
  %1560 = vmatprep.subr.mxu0 0.0
  %1561 = vmatpush1.msra.mxu0 0.0
  %1562 = vmatprep.subr.mxu0 0.0
  %1563 = vmatpush1.msra.mxu0 0.0
  %1564 = vmatprep.subr.mxu0 0.0
  %1565 = vmatpush1.msra.mxu0 0.0
  %1566 = vmatprep.subr.mxu0 0.0
  %1567 = vmatpush1.msra.mxu0 0.0
  %1568 = vmatprep.subr.mxu0 0.0
  %1569 = vmatpush1.msra.mxu0 0.0
  %1570 = vmatprep.subr.mxu0 0.0
  %1571 = vmatpush1.msra.mxu0 0.0
  %1572 = vmatprep.subr.mxu0 0.0
  %1573 = vmatpush1.msra.mxu0 0.0
  %1574 = vmatprep.subr.mxu0 0.0
  %1575 = vmatpush1.msra.mxu0 0.0
  %1576 = vmatprep.subr.mxu0 0.0
  %1577 = vmatpush1.msra.mxu0 0.0
  %1578 = vmatprep.subr.mxu0 0.0
  %1579 = vmatpush1.msra.mxu0 0.0
  %1580 = vmatprep.subr.mxu0 0.0
  %1581 = vmatpush1.msra.mxu0 0.0
  %1582 = vmatprep.subr.mxu0 0.0
  %1583 = vmatpush1.msra.mxu0 0.0
  %1584 = vmatprep.subr.mxu0 0.0
  %1585 = vmatpush1.msra.mxu0 0.0
  %1586 = vmatprep.subr.mxu0 0.0
  %1587 = vmatpush1.msra.mxu0 0.0
  %1588 = vmatprep.subr.mxu0 0.0
  %1589 = vmatpush1.msra.mxu0 0.0
  %1590 = vmatprep.subr.mxu0 0.0
  %1591 = vmatpush1.msra.mxu0 0.0
  %1592 = vmatprep.subr.mxu0 0.0
  %1593 = vmatpush1.msra.mxu0 0.0
  %1594 = vmatprep.subr.mxu0 0.0
  %1595 = vmatpush1.msra.mxu0 0.0
  %1596 = vmatprep.subr.mxu0 0.0
  %1597 = vmatpush1.msra.mxu0 0.0
  %1598 = vmatprep.subr.mxu0 0.0
  %1599 = vmatpush1.msra.mxu0 0.0
  %1600 = vmatprep.subr.mxu0 0.0
  %1601 = vmatpush1.msra.mxu0 0.0
  %1602 = vmatprep.subr.mxu0 0.0
  %1603 = vmatpush1.msra.mxu0 0.0
  %1604 = vmatprep.subr.mxu0 0.0
  %1605 = vmatpush1.msra.mxu0 0.0
  %1606 = vmatprep.subr.mxu0 0.0
  %1607 = vmatpush1.msra.mxu0 0.0
  %1608 = vmatprep.subr.mxu0 0.0
  %1609 = vmatpush1.msra.mxu0 0.0
  %1610 = vmatprep.subr.mxu0 0.0
  %1611 = vmatpush1.msra.mxu0 0.0
  %1612 = vmatprep.subr.mxu0 0.0
  %1613 = vmatpush1.msra.mxu0 0.0
  %1614 = vmatprep.subr.mxu0 0.0
  %1615 = vmatpush1.msra.mxu0 0.0
  %1616 = vmatprep.mubr.f32.mxu0 0.0
  %1617 = vmatmul.mubr.f32.gmra.mrb[0].mxu0 %v1547
  %v1618 = vpop.f32.mrb[0].mxu0
  %v1619 = vadd.f32 0.0, %v1618
  %v1620 = vpop.f32.mrb[0].mxu0
  %1621 = vdwg.mxu0
  %v1623 = vsel %vm542, %v1543, 0
  %1625 = vmatprep.subr.mxu0 0.0
  %1626 = vmatpush1.msra.mxu0 %v114
  %1627 = vmatprep.subr.mxu0 0.0
  %1628 = vmatpush1.msra.mxu0 0.0
  %1629 = vmatprep.subr.mxu0 0.0
  %1630 = vmatpush1.msra.mxu0 0.0
  %1631 = vmatprep.subr.mxu0 0.0
  %1632 = vmatpush1.msra.mxu0 0.0
  %1633 = vmatprep.subr.mxu0 0.0
  %1634 = vmatpush1.msra.mxu0 0.0
  %1635 = vmatprep.subr.mxu0 0.0
  %1636 = vmatpush1.msra.mxu0 0.0
  %1637 = vmatprep.subr.mxu0 0.0
  %1638 = vmatpush1.msra.mxu0 0.0
  %1639 = vmatprep.subr.mxu0 0.0
  %1640 = vmatpush1.msra.mxu0 0.0
  %1641 = vmatprep.subr.mxu0 0.0
  %1642 = vmatpush1.msra.mxu0 0.0
  %1643 = vmatprep.subr.mxu0 0.0
  %1644 = vmatpush1.msra.mxu0 0.0
  %1645 = vmatprep.subr.mxu0 0.0
  %1646 = vmatpush1.msra.mxu0 0.0
  %1647 = vmatprep.subr.mxu0 0.0
  %1648 = vmatpush1.msra.mxu0 0.0
  %1649 = vmatprep.subr.mxu0 0.0
  %1650 = vmatpush1.msra.mxu0 0.0
  %1651 = vmatprep.subr.mxu0 0.0
  %1652 = vmatpush1.msra.mxu0 0.0
  %1653 = vmatprep.subr.mxu0 0.0
  %1654 = vmatpush1.msra.mxu0 0.0
  %1655 = vmatprep.subr.mxu0 0.0
  %1656 = vmatpush1.msra.mxu0 0.0
  %1657 = vmatprep.subr.mxu0 0.0
  %1658 = vmatpush1.msra.mxu0 0.0
  %1659 = vmatprep.subr.mxu0 0.0
  %1660 = vmatpush1.msra.mxu0 0.0
  %1661 = vmatprep.subr.mxu0 0.0
  %1662 = vmatpush1.msra.mxu0 0.0
  %1663 = vmatprep.subr.mxu0 0.0
  %1664 = vmatpush1.msra.mxu0 0.0
  %1665 = vmatprep.subr.mxu0 0.0
  %1666 = vmatpush1.msra.mxu0 0.0
  %1667 = vmatprep.subr.mxu0 0.0
  %1668 = vmatpush1.msra.mxu0 0.0
  %1669 = vmatprep.subr.mxu0 0.0
  %1670 = vmatpush1.msra.mxu0 0.0
  %1671 = vmatprep.subr.mxu0 0.0
  %1672 = vmatpush1.msra.mxu0 0.0
  %1673 = vmatprep.subr.mxu0 0.0
  %1674 = vmatpush1.msra.mxu0 0.0
  %1675 = vmatprep.subr.mxu0 0.0
  %1676 = vmatpush1.msra.mxu0 0.0
  %1677 = vmatprep.subr.mxu0 0.0
  %1678 = vmatpush1.msra.mxu0 0.0
  %1679 = vmatprep.subr.mxu0 0.0
  %1680 = vmatpush1.msra.mxu0 0.0
  %1681 = vmatprep.subr.mxu0 0.0
  %1682 = vmatpush1.msra.mxu0 0.0
  %1683 = vmatprep.subr.mxu0 0.0
  %1684 = vmatpush1.msra.mxu0 0.0
  %1685 = vmatprep.subr.mxu0 0.0
  %1686 = vmatpush1.msra.mxu0 0.0
  %1687 = vmatprep.subr.mxu0 0.0
  %1688 = vmatpush1.msra.mxu0 0.0
  %1689 = vmatprep.mubr.f32.mxu0 0.0
  %1690 = vmatmul.mubr.f32.gmra.mrb[0].mxu0 %v1623
  %v1691 = vpop.f32.mrb[0].mxu0
  %v1692 = vadd.f32 0.0, %v1691
  %v1693 = vpop.f32.mrb[0].mxu0
  %1694 = vdwg.mxu0
  %v1696 = vsel %vm542, %v1619, 0
  %1698 = vmatprep.subr.mxu0 0.0
  %1699 = vmatpush1.msra.mxu0 %v114
  %1700 = vmatprep.subr.mxu0 0.0
  %1701 = vmatpush1.msra.mxu0 0.0
  %1702 = vmatprep.subr.mxu0 0.0
  %1703 = vmatpush1.msra.mxu0 0.0
  %1704 = vmatprep.subr.mxu0 0.0
  %1705 = vmatpush1.msra.mxu0 0.0
  %1706 = vmatprep.subr.mxu0 0.0
  %1707 = vmatpush1.msra.mxu0 0.0
  %1708 = vmatprep.subr.mxu0 0.0
  %1709 = vmatpush1.msra.mxu0 0.0
  %1710 = vmatprep.subr.mxu0 0.0
  %1711 = vmatpush1.msra.mxu0 0.0
  %1712 = vmatprep.subr.mxu0 0.0
  %1713 = vmatpush1.msra.mxu0 0.0
  %1714 = vmatprep.subr.mxu0 0.0
  %1715 = vmatpush1.msra.mxu0 0.0
  %1716 = vmatprep.subr.mxu0 0.0
  %1717 = vmatpush1.msra.mxu0 0.0
  %1718 = vmatprep.subr.mxu0 0.0
  %1719 = vmatpush1.msra.mxu0 0.0
  %1720 = vmatprep.subr.mxu0 0.0
  %1721 = vmatpush1.msra.mxu0 0.0
  %1722 = vmatprep.subr.mxu0 0.0
  %1723 = vmatpush1.msra.mxu0 0.0
  %1724 = vmatprep.subr.mxu0 0.0
  %1725 = vmatpush1.msra.mxu0 0.0
  %1726 = vmatprep.subr.mxu0 0.0
  %1727 = vmatpush1.msra.mxu0 0.0
  %1728 = vmatprep.subr.mxu0 0.0
  %1729 = vmatpush1.msra.mxu0 0.0
  %1730 = vmatprep.subr.mxu0 0.0
  %1731 = vmatpush1.msra.mxu0 0.0
  %1732 = vmatprep.subr.mxu0 0.0
  %1733 = vmatpush1.msra.mxu0 0.0
  %1734 = vmatprep.subr.mxu0 0.0
  %1735 = vmatpush1.msra.mxu0 0.0
  %1736 = vmatprep.subr.mxu0 0.0
  %1737 = vmatpush1.msra.mxu0 0.0
  %1738 = vmatprep.subr.mxu0 0.0
  %1739 = vmatpush1.msra.mxu0 0.0
  %1740 = vmatprep.subr.mxu0 0.0
  %1741 = vmatpush1.msra.mxu0 0.0
  %1742 = vmatprep.subr.mxu0 0.0
  %1743 = vmatpush1.msra.mxu0 0.0
  %1744 = vmatprep.subr.mxu0 0.0
  %1745 = vmatpush1.msra.mxu0 0.0
  %1746 = vmatprep.subr.mxu0 0.0
  %1747 = vmatpush1.msra.mxu0 0.0
  %1748 = vmatprep.subr.mxu0 0.0
  %1749 = vmatpush1.msra.mxu0 0.0
  %1750 = vmatprep.subr.mxu0 0.0
  %1751 = vmatpush1.msra.mxu0 0.0
  %1752 = vmatprep.subr.mxu0 0.0
  %1753 = vmatpush1.msra.mxu0 0.0
  %1754 = vmatprep.subr.mxu0 0.0
  %1755 = vmatpush1.msra.mxu0 0.0
  %1756 = vmatprep.subr.mxu0 0.0
  %1757 = vmatpush1.msra.mxu0 0.0
  %1758 = vmatprep.subr.mxu0 0.0
  %1759 = vmatpush1.msra.mxu0 0.0
  %1760 = vmatprep.subr.mxu0 0.0
  %1761 = vmatpush1.msra.mxu0 0.0
  %1762 = vmatprep.mubr.f32.mxu0 0.0
  %1763 = vmatmul.mubr.f32.gmra.mrb[0].mxu0 %v1696
  %v1764 = vpop.f32.mrb[0].mxu0
  %v1765 = vadd.f32 0.0, %v1764
  %v1766 = vpop.f32.mrb[0].mxu0
  %1767 = vdwg.mxu0
  %v1769 = vsel %vm542, %v795, 0
  %1771 = vmatprep.subr.mxu0 0.0
  %1772 = vmatpush1.msra.mxu0 %v113
  %1773 = vmatprep.subr.mxu0 0.0
  %1774 = vmatpush1.msra.mxu0 0.0
  %1775 = vmatprep.subr.mxu0 0.0
  %1776 = vmatpush1.msra.mxu0 0.0
  %1777 = vmatprep.subr.mxu0 0.0
  %1778 = vmatpush1.msra.mxu0 0.0
  %1779 = vmatprep.subr.mxu0 0.0
  %1780 = vmatpush1.msra.mxu0 0.0
  %1781 = vmatprep.subr.mxu0 0.0
  %1782 = vmatpush1.msra.mxu0 0.0
  %1783 = vmatprep.subr.mxu0 0.0
  %1784 = vmatpush1.msra.mxu0 0.0
  %1785 = vmatprep.subr.mxu0 0.0
  %1786 = vmatpush1.msra.mxu0 0.0
  %1787 = vmatprep.subr.mxu0 0.0
  %1788 = vmatpush1.msra.mxu0 0.0
  %1789 = vmatprep.subr.mxu0 0.0
  %1790 = vmatpush1.msra.mxu0 0.0
  %1791 = vmatprep.subr.mxu0 0.0
  %1792 = vmatpush1.msra.mxu0 0.0
  %1793 = vmatprep.subr.mxu0 0.0
  %1794 = vmatpush1.msra.mxu0 0.0
  %1795 = vmatprep.subr.mxu0 0.0
  %1796 = vmatpush1.msra.mxu0 0.0
  %1797 = vmatprep.subr.mxu0 0.0
  %1798 = vmatpush1.msra.mxu0 0.0
  %1799 = vmatprep.subr.mxu0 0.0
  %1800 = vmatpush1.msra.mxu0 0.0
  %1801 = vmatprep.subr.mxu0 0.0
  %1802 = vmatpush1.msra.mxu0 0.0
  %1803 = vmatprep.subr.mxu0 0.0
  %1804 = vmatpush1.msra.mxu0 0.0
  %1805 = vmatprep.subr.mxu0 0.0
  %1806 = vmatpush1.msra.mxu0 0.0
  %1807 = vmatprep.subr.mxu0 0.0
  %1808 = vmatpush1.msra.mxu0 0.0
  %1809 = vmatprep.subr.mxu0 0.0
  %1810 = vmatpush1.msra.mxu0 0.0
  %1811 = vmatprep.subr.mxu0 0.0
  %1812 = vmatpush1.msra.mxu0 0.0
  %1813 = vmatprep.subr.mxu0 0.0
  %1814 = vmatpush1.msra.mxu0 0.0
  %1815 = vmatprep.subr.mxu0 0.0
  %1816 = vmatpush1.msra.mxu0 0.0
  %1817 = vmatprep.subr.mxu0 0.0
  %1818 = vmatpush1.msra.mxu0 0.0
  %1819 = vmatprep.subr.mxu0 0.0
  %1820 = vmatpush1.msra.mxu0 0.0
  %1821 = vmatprep.subr.mxu0 0.0
  %1822 = vmatpush1.msra.mxu0 0.0
  %1823 = vmatprep.subr.mxu0 0.0
  %1824 = vmatpush1.msra.mxu0 0.0
  %1825 = vmatprep.subr.mxu0 0.0
  %1826 = vmatpush1.msra.mxu0 0.0
  %1827 = vmatprep.subr.mxu0 0.0
  %1828 = vmatpush1.msra.mxu0 0.0
  %1829 = vmatprep.subr.mxu0 0.0
  %1830 = vmatpush1.msra.mxu0 0.0
  %1831 = vmatprep.subr.mxu0 0.0
  %1832 = vmatpush1.msra.mxu0 0.0
  %1833 = vmatprep.subr.mxu0 0.0
  %1834 = vmatpush1.msra.mxu0 0.0
  %1835 = vmatprep.mubr.f32.mxu0 0.0
  %1836 = vmatmul.mubr.f32.gmra.mrb[0].mxu0 %v1769
  %v1837 = vpop.f32.mrb[0].mxu0
  %v1838 = vadd.f32 %v1692, %v1837
  %v1839 = vpop.f32.mrb[0].mxu0
  %1840 = vdwg.mxu0
  %v1842 = vsel %vm542, %v871, 0
  %1844 = vmatprep.subr.mxu0 0.0
  %1845 = vmatpush1.msra.mxu0 %v113
  %1846 = vmatprep.subr.mxu0 0.0
  %1847 = vmatpush1.msra.mxu0 0.0
  %1848 = vmatprep.subr.mxu0 0.0
  %1849 = vmatpush1.msra.mxu0 0.0
  %1850 = vmatprep.subr.mxu0 0.0
  %1851 = vmatpush1.msra.mxu0 0.0
  %1852 = vmatprep.subr.mxu0 0.0
  %1853 = vmatpush1.msra.mxu0 0.0
  %1854 = vmatprep.subr.mxu0 0.0
  %1855 = vmatpush1.msra.mxu0 0.0
  %1856 = vmatprep.subr.mxu0 0.0
  %1857 = vmatpush1.msra.mxu0 0.0
  %1858 = vmatprep.subr.mxu0 0.0
  %1859 = vmatpush1.msra.mxu0 0.0
  %1860 = vmatprep.subr.mxu0 0.0
  %1861 = vmatpush1.msra.mxu0 0.0
  %1862 = vmatprep.subr.mxu0 0.0
  %1863 = vmatpush1.msra.mxu0 0.0
  %1864 = vmatprep.subr.mxu0 0.0
  %1865 = vmatpush1.msra.mxu0 0.0
  %1866 = vmatprep.subr.mxu0 0.0
  %1867 = vmatpush1.msra.mxu0 0.0
  %1868 = vmatprep.subr.mxu0 0.0
  %1869 = vmatpush1.msra.mxu0 0.0
  %1870 = vmatprep.subr.mxu0 0.0
  %1871 = vmatpush1.msra.mxu0 0.0
  %1872 = vmatprep.subr.mxu0 0.0
  %1873 = vmatpush1.msra.mxu0 0.0
  %1874 = vmatprep.subr.mxu0 0.0
  %1875 = vmatpush1.msra.mxu0 0.0
  %1876 = vmatprep.subr.mxu0 0.0
  %1877 = vmatpush1.msra.mxu0 0.0
  %1878 = vmatprep.subr.mxu0 0.0
  %1879 = vmatpush1.msra.mxu0 0.0
  %1880 = vmatprep.subr.mxu0 0.0
  %1881 = vmatpush1.msra.mxu0 0.0
  %1882 = vmatprep.subr.mxu0 0.0
  %1883 = vmatpush1.msra.mxu0 0.0
  %1884 = vmatprep.subr.mxu0 0.0
  %1885 = vmatpush1.msra.mxu0 0.0
  %1886 = vmatprep.subr.mxu0 0.0
  %1887 = vmatpush1.msra.mxu0 0.0
  %1888 = vmatprep.subr.mxu0 0.0
  %1889 = vmatpush1.msra.mxu0 0.0
  %1890 = vmatprep.subr.mxu0 0.0
  %1891 = vmatpush1.msra.mxu0 0.0
  %1892 = vmatprep.subr.mxu0 0.0
  %1893 = vmatpush1.msra.mxu0 0.0
  %1894 = vmatprep.subr.mxu0 0.0
  %1895 = vmatpush1.msra.mxu0 0.0
  %1896 = vmatprep.subr.mxu0 0.0
  %1897 = vmatpush1.msra.mxu0 0.0
  %1898 = vmatprep.subr.mxu0 0.0
  %1899 = vmatpush1.msra.mxu0 0.0
  %1900 = vmatprep.subr.mxu0 0.0
  %1901 = vmatpush1.msra.mxu0 0.0
  %1902 = vmatprep.subr.mxu0 0.0
  %1903 = vmatpush1.msra.mxu0 0.0
  %1904 = vmatprep.subr.mxu0 0.0
  %1905 = vmatpush1.msra.mxu0 0.0
  %1906 = vmatprep.subr.mxu0 0.0
  %1907 = vmatpush1.msra.mxu0 0.0
  %1908 = vmatprep.mubr.f32.mxu0 0.0
  %1909 = vmatmul.mubr.f32.gmra.mrb[0].mxu0 %v1842
  %v1910 = vpop.f32.mrb[0].mxu0
  %v1911 = vadd.f32 %v1765, %v1910
  %v1912 = vpop.f32.mrb[0].mxu0
  %1913 = vdwg.mxu0
  %v1914 = vadd.f32 %v53, %v1838
  %v1915 = vadd.f32 %v54, %v1911
  %v1916 = vld [vmem:[%s7] sm:$0x1]
  %v1918 = vlaneseq
  %v1919 = vshrl.u32 %v1918, 7
  %v1920 = vsub.s32 0, %v1919
  %v1921 = vrot.slane %v1916, %v1920
  %v1923 = vadd.f32 %v1914, %v1921
  %v1924 = vadd.f32 %v1915, %v1921
  %v1925 = vld [vmem:[%s8] sm:$0x1]
  %v1926 = vld [vmem:[%s9] sm:$0x1]
  %v1927 = vsel %vm57, %v1923, 0.0
  %1928 = vadd.xlane.f32.xlu0 %v1927
  %v1929 = vpop.xlane.xlu0 %1928
  %v1930 = vsel %vm57, %v1924, 0.0
  %1931 = vadd.xlane.f32.xlu0 %v1930
  %v1932 = vpop.xlane.xlu0 %1931
  %v1933 = vmul.f32 %v1929, %v64
  %v1934 = vmul.f32 %v1932, %v64
  %v1935 = vsub.f32 %v1923, %v1933
  %v1936 = vsub.f32 %v1924, %v1934
  %v1937 = vmul.f32 %v1935, %v1935
  %v1938 = vmul.f32 %v1936, %v1936
  %v1939 = vsel %vm57, %v1937, 0.0
  %1940 = vadd.xlane.f32.xlu0 %v1939
  %v1941 = vpop.xlane.xlu0 %1940
  %v1942 = vsel %vm57, %v1938, 0.0
  %1943 = vadd.xlane.f32.xlu0 %v1942
  %v1944 = vpop.xlane.xlu0 %1943
  %v1945 = vmul.f32 %v1941, %v64
  %v1946 = vmul.f32 %v1944, %v64
  %v1947 = vadd.f32 %v1945, 1e-05
  %v1948 = vadd.f32 %v1946, 1e-05
  %v1949 = vrsqrt.pop %v1947
  %v1950 = vrsqrt.pop %v1948
  %v1951 = vmul.f32 %v1935, %v1949
  %v1952 = vmul.f32 %v1936, %v1950
  %v1954 = vlaneseq
  %v1955 = vshrl.u32 %v1954, 7
  %v1956 = vsub.s32 0, %v1955
  %v1957 = vrot.slane %v1925, %v1956
  %v1959 = vmul.f32 %v1951, %v1957
  %v1960 = vmul.f32 %v1952, %v1957
  %v1962 = vlaneseq
  %v1963 = vshrl.u32 %v1962, 7
  %v1964 = vsub.s32 0, %v1963
  %v1965 = vrot.slane %v1926, %v1964
  %v1967 = vadd.f32 %v1959, %v1965
  %v1968 = vadd.f32 %v1960, %v1965
  %v1969 = vld [vmem:[%s10] sm:$0xff]
  %v1970 = vld [vmem:[%s10 + $0x8] sm:$0xff]
  %v1971 = vld [vmem:[%s11] sm:$0x1]
  %v1973 = vlaneseq
  %v1974 = vshrl.u32 %v1973, 7
  %v1975 = vsub.s32 0, %v1974
  %v1976 = vrot.slane %v1971, %v1975
  %v1979 = vsel %vm115, %v1967, 0
  %1981 = vmatprep.subr.mxu0 0.0
  %1982 = vmatpush1.msra.mxu0 %v1969
  %1983 = vmatprep.subr.mxu0 0.0
  %1984 = vmatpush1.msra.mxu0 %v1970
  %1985 = vmatprep.subr.mxu0 0.0
  %1986 = vmatpush1.msra.mxu0 0.0
  %1987 = vmatprep.subr.mxu0 0.0
  %1988 = vmatpush1.msra.mxu0 0.0
  %1989 = vmatprep.subr.mxu0 0.0
  %1990 = vmatpush1.msra.mxu0 0.0
  %1991 = vmatprep.subr.mxu0 0.0
  %1992 = vmatpush1.msra.mxu0 0.0
  %1993 = vmatprep.subr.mxu0 0.0
  %1994 = vmatpush1.msra.mxu0 0.0
  %1995 = vmatprep.subr.mxu0 0.0
  %1996 = vmatpush1.msra.mxu0 0.0
  %1997 = vmatprep.subr.mxu0 0.0
  %1998 = vmatpush1.msra.mxu0 0.0
  %1999 = vmatprep.subr.mxu0 0.0
  %2000 = vmatpush1.msra.mxu0 0.0
  %2001 = vmatprep.subr.mxu0 0.0
  %2002 = vmatpush1.msra.mxu0 0.0
  %2003 = vmatprep.subr.mxu0 0.0
  %2004 = vmatpush1.msra.mxu0 0.0
  %2005 = vmatprep.subr.mxu0 0.0
  %2006 = vmatpush1.msra.mxu0 0.0
  %2007 = vmatprep.subr.mxu0 0.0
  %2008 = vmatpush1.msra.mxu0 0.0
  %2009 = vmatprep.subr.mxu0 0.0
  %2010 = vmatpush1.msra.mxu0 0.0
  %2011 = vmatprep.subr.mxu0 0.0
  %2012 = vmatpush1.msra.mxu0 0.0
  %2013 = vmatprep.subr.mxu0 0.0
  %2014 = vmatpush1.msra.mxu0 0.0
  %2015 = vmatprep.subr.mxu0 0.0
  %2016 = vmatpush1.msra.mxu0 0.0
  %2017 = vmatprep.subr.mxu0 0.0
  %2018 = vmatpush1.msra.mxu0 0.0
  %2019 = vmatprep.subr.mxu0 0.0
  %2020 = vmatpush1.msra.mxu0 0.0
  %2021 = vmatprep.subr.mxu0 0.0
  %2022 = vmatpush1.msra.mxu0 0.0
  %2023 = vmatprep.subr.mxu0 0.0
  %2024 = vmatpush1.msra.mxu0 0.0
  %2025 = vmatprep.subr.mxu0 0.0
  %2026 = vmatpush1.msra.mxu0 0.0
  %2027 = vmatprep.subr.mxu0 0.0
  %2028 = vmatpush1.msra.mxu0 0.0
  %2029 = vmatprep.subr.mxu0 0.0
  %2030 = vmatpush1.msra.mxu0 0.0
  %2031 = vmatprep.subr.mxu0 0.0
  %2032 = vmatpush1.msra.mxu0 0.0
  %2033 = vmatprep.subr.mxu0 0.0
  %2034 = vmatpush1.msra.mxu0 0.0
  %2035 = vmatprep.subr.mxu0 0.0
  %2036 = vmatpush1.msra.mxu0 0.0
  %2037 = vmatprep.subr.mxu0 0.0
  %2038 = vmatpush1.msra.mxu0 0.0
  %2039 = vmatprep.subr.mxu0 0.0
  %2040 = vmatpush1.msra.mxu0 0.0
  %2041 = vmatprep.subr.mxu0 0.0
  %2042 = vmatpush1.msra.mxu0 0.0
  %2043 = vmatprep.subr.mxu0 0.0
  %2044 = vmatpush1.msra.mxu0 0.0
  %2045 = vmatprep.mubr.f32.mxu0 0.0
  %2046 = vmatmul.mubr.f32.gmra.mrb[0].mxu0 %v1979
  %v2047 = vpop.f32.mrb[0].mxu0
  %v2048 = vadd.f32 %v1976, %v2047
  %v2049 = vpop.f32.mrb[0].mxu0
  %2050 = vdwg.mxu0
  %v2052 = vsel %vm115, %v1968, 0
  %2054 = vmatprep.subr.mxu0 0.0
  %2055 = vmatpush1.msra.mxu0 %v1969
  %2056 = vmatprep.subr.mxu0 0.0
  %2057 = vmatpush1.msra.mxu0 %v1970
  %2058 = vmatprep.subr.mxu0 0.0
  %2059 = vmatpush1.msra.mxu0 0.0
  %2060 = vmatprep.subr.mxu0 0.0
  %2061 = vmatpush1.msra.mxu0 0.0
  %2062 = vmatprep.subr.mxu0 0.0
  %2063 = vmatpush1.msra.mxu0 0.0
  %2064 = vmatprep.subr.mxu0 0.0
  %2065 = vmatpush1.msra.mxu0 0.0
  %2066 = vmatprep.subr.mxu0 0.0
  %2067 = vmatpush1.msra.mxu0 0.0
  %2068 = vmatprep.subr.mxu0 0.0
  %2069 = vmatpush1.msra.mxu0 0.0
  %2070 = vmatprep.subr.mxu0 0.0
  %2071 = vmatpush1.msra.mxu0 0.0
  %2072 = vmatprep.subr.mxu0 0.0
  %2073 = vmatpush1.msra.mxu0 0.0
  %2074 = vmatprep.subr.mxu0 0.0
  %2075 = vmatpush1.msra.mxu0 0.0
  %2076 = vmatprep.subr.mxu0 0.0
  %2077 = vmatpush1.msra.mxu0 0.0
  %2078 = vmatprep.subr.mxu0 0.0
  %2079 = vmatpush1.msra.mxu0 0.0
  %2080 = vmatprep.subr.mxu0 0.0
  %2081 = vmatpush1.msra.mxu0 0.0
  %2082 = vmatprep.subr.mxu0 0.0
  %2083 = vmatpush1.msra.mxu0 0.0
  %2084 = vmatprep.subr.mxu0 0.0
  %2085 = vmatpush1.msra.mxu0 0.0
  %2086 = vmatprep.subr.mxu0 0.0
  %2087 = vmatpush1.msra.mxu0 0.0
  %2088 = vmatprep.subr.mxu0 0.0
  %2089 = vmatpush1.msra.mxu0 0.0
  %2090 = vmatprep.subr.mxu0 0.0
  %2091 = vmatpush1.msra.mxu0 0.0
  %2092 = vmatprep.subr.mxu0 0.0
  %2093 = vmatpush1.msra.mxu0 0.0
  %2094 = vmatprep.subr.mxu0 0.0
  %2095 = vmatpush1.msra.mxu0 0.0
  %2096 = vmatprep.subr.mxu0 0.0
  %2097 = vmatpush1.msra.mxu0 0.0
  %2098 = vmatprep.subr.mxu0 0.0
  %2099 = vmatpush1.msra.mxu0 0.0
  %2100 = vmatprep.subr.mxu0 0.0
  %2101 = vmatpush1.msra.mxu0 0.0
  %2102 = vmatprep.subr.mxu0 0.0
  %2103 = vmatpush1.msra.mxu0 0.0
  %2104 = vmatprep.subr.mxu0 0.0
  %2105 = vmatpush1.msra.mxu0 0.0
  %2106 = vmatprep.subr.mxu0 0.0
  %2107 = vmatpush1.msra.mxu0 0.0
  %2108 = vmatprep.subr.mxu0 0.0
  %2109 = vmatpush1.msra.mxu0 0.0
  %2110 = vmatprep.subr.mxu0 0.0
  %2111 = vmatpush1.msra.mxu0 0.0
  %2112 = vmatprep.subr.mxu0 0.0
  %2113 = vmatpush1.msra.mxu0 0.0
  %2114 = vmatprep.subr.mxu0 0.0
  %2115 = vmatpush1.msra.mxu0 0.0
  %2116 = vmatprep.subr.mxu0 0.0
  %2117 = vmatpush1.msra.mxu0 0.0
  %2118 = vmatprep.mubr.f32.mxu0 0.0
  %2119 = vmatmul.mubr.f32.gmra.mrb[0].mxu0 %v2052
  %v2120 = vpop.f32.mrb[0].mxu0
  %v2121 = vadd.f32 %v1976, %v2120
  %v2122 = vpop.f32.mrb[0].mxu0
  %2123 = vdwg.mxu0
  %v2124 = vmul.f32 %v2048, 0.5
  %v2125 = vmul.f32 %v2121, 0.5
  %v2126 = vmul.f32 %v2048, 0.70710677
  %v2127 = vmul.f32 %v2121, 0.70710677
  %v2128 = verf.f32.pop %v2126
  %v2129 = verf.f32.pop %v2127
  %v2130 = vadd.f32 %v2128, 1.0
  %v2131 = vadd.f32 %v2129, 1.0
  %v2132 = vmul.f32 %v2124, %v2130
  %v2133 = vmul.f32 %v2125, %v2131
  %v2134 = vld [vmem:[%s12] sm:$0xff]
  %v2135 = vld [vmem:[%s12 + $0x8] sm:$0xff]
  %v2136 = vld [vmem:[%s12 + $0x10] sm:$0xff]
  %v2137 = vld [vmem:[%s12 + $0x18] sm:$0xff]
  %v2138 = vld [vmem:[%s12 + $0x20] sm:$0xff]
  %v2139 = vld [vmem:[%s12 + $0x28] sm:$0xff]
  %v2140 = vld [vmem:[%s12 + $0x30] sm:$0xff]
  %v2141 = vld [vmem:[%s12 + $0x38] sm:$0xff]
  %vm2142 = vcmask 523264
  %v2144 = vsel %vm2142, %v2132, 0
  %2146 = vmatprep.subr.mxu0 0.0
  %2147 = vmatpush1.msra.mxu0 %v2134
  %2148 = vmatprep.subr.mxu0 0.0
  %2149 = vmatpush1.msra.mxu0 %v2135
  %2150 = vmatprep.subr.mxu0 0.0
  %2151 = vmatpush1.msra.mxu0 %v2136
  %2152 = vmatprep.subr.mxu0 0.0
  %2153 = vmatpush1.msra.mxu0 %v2137
  %2154 = vmatprep.subr.mxu0 0.0
  %2155 = vmatpush1.msra.mxu0 %v2138
  %2156 = vmatprep.subr.mxu0 0.0
  %2157 = vmatpush1.msra.mxu0 %v2139
  %2158 = vmatprep.subr.mxu0 0.0
  %2159 = vmatpush1.msra.mxu0 %v2140
  %2160 = vmatprep.subr.mxu0 0.0
  %2161 = vmatpush1.msra.mxu0 %v2141
  %2162 = vmatprep.subr.mxu0 0.0
  %2163 = vmatpush1.msra.mxu0 0.0
  %2164 = vmatprep.subr.mxu0 0.0
  %2165 = vmatpush1.msra.mxu0 0.0
  %2166 = vmatprep.subr.mxu0 0.0
  %2167 = vmatpush1.msra.mxu0 0.0
  %2168 = vmatprep.subr.mxu0 0.0
  %2169 = vmatpush1.msra.mxu0 0.0
  %2170 = vmatprep.subr.mxu0 0.0
  %2171 = vmatpush1.msra.mxu0 0.0
  %2172 = vmatprep.subr.mxu0 0.0
  %2173 = vmatpush1.msra.mxu0 0.0
  %2174 = vmatprep.subr.mxu0 0.0
  %2175 = vmatpush1.msra.mxu0 0.0
  %2176 = vmatprep.subr.mxu0 0.0
  %2177 = vmatpush1.msra.mxu0 0.0
  %2178 = vmatprep.subr.mxu0 0.0
  %2179 = vmatpush1.msra.mxu0 0.0
  %2180 = vmatprep.subr.mxu0 0.0
  %2181 = vmatpush1.msra.mxu0 0.0
  %2182 = vmatprep.subr.mxu0 0.0
  %2183 = vmatpush1.msra.mxu0 0.0
  %2184 = vmatprep.subr.mxu0 0.0
  %2185 = vmatpush1.msra.mxu0 0.0
  %2186 = vmatprep.subr.mxu0 0.0
  %2187 = vmatpush1.msra.mxu0 0.0
  %2188 = vmatprep.subr.mxu0 0.0
  %2189 = vmatpush1.msra.mxu0 0.0
  %2190 = vmatprep.subr.mxu0 0.0
  %2191 = vmatpush1.msra.mxu0 0.0
  %2192 = vmatprep.subr.mxu0 0.0
  %2193 = vmatpush1.msra.mxu0 0.0
  %2194 = vmatprep.subr.mxu0 0.0
  %2195 = vmatpush1.msra.mxu0 0.0
  %2196 = vmatprep.subr.mxu0 0.0
  %2197 = vmatpush1.msra.mxu0 0.0
  %2198 = vmatprep.subr.mxu0 0.0
  %2199 = vmatpush1.msra.mxu0 0.0
  %2200 = vmatprep.subr.mxu0 0.0
  %2201 = vmatpush1.msra.mxu0 0.0
  %2202 = vmatprep.subr.mxu0 0.0
  %2203 = vmatpush1.msra.mxu0 0.0
  %2204 = vmatprep.subr.mxu0 0.0
  %2205 = vmatpush1.msra.mxu0 0.0
  %2206 = vmatprep.subr.mxu0 0.0
  %2207 = vmatpush1.msra.mxu0 0.0
  %2208 = vmatprep.subr.mxu0 0.0
  %2209 = vmatpush1.msra.mxu0 0.0
  %2210 = vmatprep.mubr.f32.mxu0 0.0
  %2211 = vmatmul.mubr.f32.gmra.mrb[0].mxu0 %v2144
  %v2212 = vpop.f32.mrb[0].mxu0
  %v2213 = vadd.f32 0.0, %v2212
  %v2214 = vpop.f32.mrb[0].mxu0
  %2215 = vdwg.mxu0
  %v2217 = vsel %vm2142, %v2133, 0
  %2219 = vmatprep.subr.mxu0 0.0
  %2220 = vmatpush1.msra.mxu0 %v2134
  %2221 = vmatprep.subr.mxu0 0.0
  %2222 = vmatpush1.msra.mxu0 %v2135
  %2223 = vmatprep.subr.mxu0 0.0
  %2224 = vmatpush1.msra.mxu0 %v2136
  %2225 = vmatprep.subr.mxu0 0.0
  %2226 = vmatpush1.msra.mxu0 %v2137
  %2227 = vmatprep.subr.mxu0 0.0
  %2228 = vmatpush1.msra.mxu0 %v2138
  %2229 = vmatprep.subr.mxu0 0.0
  %2230 = vmatpush1.msra.mxu0 %v2139
  %2231 = vmatprep.subr.mxu0 0.0
  %2232 = vmatpush1.msra.mxu0 %v2140
  %2233 = vmatprep.subr.mxu0 0.0
  %2234 = vmatpush1.msra.mxu0 %v2141
  %2235 = vmatprep.subr.mxu0 0.0
  %2236 = vmatpush1.msra.mxu0 0.0
  %2237 = vmatprep.subr.mxu0 0.0
  %2238 = vmatpush1.msra.mxu0 0.0
  %2239 = vmatprep.subr.mxu0 0.0
  %2240 = vmatpush1.msra.mxu0 0.0
  %2241 = vmatprep.subr.mxu0 0.0
  %2242 = vmatpush1.msra.mxu0 0.0
  %2243 = vmatprep.subr.mxu0 0.0
  %2244 = vmatpush1.msra.mxu0 0.0
  %2245 = vmatprep.subr.mxu0 0.0
  %2246 = vmatpush1.msra.mxu0 0.0
  %2247 = vmatprep.subr.mxu0 0.0
  %2248 = vmatpush1.msra.mxu0 0.0
  %2249 = vmatprep.subr.mxu0 0.0
  %2250 = vmatpush1.msra.mxu0 0.0
  %2251 = vmatprep.subr.mxu0 0.0
  %2252 = vmatpush1.msra.mxu0 0.0
  %2253 = vmatprep.subr.mxu0 0.0
  %2254 = vmatpush1.msra.mxu0 0.0
  %2255 = vmatprep.subr.mxu0 0.0
  %2256 = vmatpush1.msra.mxu0 0.0
  %2257 = vmatprep.subr.mxu0 0.0
  %2258 = vmatpush1.msra.mxu0 0.0
  %2259 = vmatprep.subr.mxu0 0.0
  %2260 = vmatpush1.msra.mxu0 0.0
  %2261 = vmatprep.subr.mxu0 0.0
  %2262 = vmatpush1.msra.mxu0 0.0
  %2263 = vmatprep.subr.mxu0 0.0
  %2264 = vmatpush1.msra.mxu0 0.0
  %2265 = vmatprep.subr.mxu0 0.0
  %2266 = vmatpush1.msra.mxu0 0.0
  %2267 = vmatprep.subr.mxu0 0.0
  %2268 = vmatpush1.msra.mxu0 0.0
  %2269 = vmatprep.subr.mxu0 0.0
  %2270 = vmatpush1.msra.mxu0 0.0
  %2271 = vmatprep.subr.mxu0 0.0
  %2272 = vmatpush1.msra.mxu0 0.0
  %2273 = vmatprep.subr.mxu0 0.0
  %2274 = vmatpush1.msra.mxu0 0.0
  %2275 = vmatprep.subr.mxu0 0.0
  %2276 = vmatpush1.msra.mxu0 0.0
  %2277 = vmatprep.subr.mxu0 0.0
  %2278 = vmatpush1.msra.mxu0 0.0
  %2279 = vmatprep.subr.mxu0 0.0
  %2280 = vmatpush1.msra.mxu0 0.0
  %2281 = vmatprep.subr.mxu0 0.0
  %2282 = vmatpush1.msra.mxu0 0.0
  %2283 = vmatprep.mubr.f32.mxu0 0.0
  %2284 = vmatmul.mubr.f32.gmra.mrb[0].mxu0 %v2217
  %v2285 = vpop.f32.mrb[0].mxu0
  %v2286 = vadd.f32 0.0, %v2285
  %v2287 = vpop.f32.mrb[0].mxu0
  %2288 = vdwg.mxu0
  %v2289 = vadd.f32 %v1923, %v2213
  %v2290 = vadd.f32 %v1924, %v2286
  %v2291 = vld [vmem:[%s13] sm:$0x1]
  %v2293 = vlaneseq
  %v2294 = vshrl.u32 %v2293, 7
  %v2295 = vsub.s32 0, %v2294
  %v2296 = vrot.slane %v2291, %v2295
  %v2298 = vadd.f32 %v2289, %v2296
  %v2299 = vadd.f32 %v2290, %v2296
  %s2300 = scalar_lea.vmem %s1, 1
  %v2301 = vld [vmem:[%s2300] sm:$0x1]
  %s2302 = scalar_lea.vmem %s2, 1
  %v2303 = vld [vmem:[%s2302] sm:$0x1]
  %v2304 = vsel %vm57, %v2298, 0.0
  %2305 = vadd.xlane.f32.xlu0 %v2304
  %v2306 = vpop.xlane.xlu0 %2305
  %v2307 = vsel %vm57, %v2299, 0.0
  %2308 = vadd.xlane.f32.xlu0 %v2307
  %v2309 = vpop.xlane.xlu0 %2308
  %v2310 = vmul.f32 %v2306, %v64
  %v2311 = vmul.f32 %v2309, %v64
  %v2312 = vsub.f32 %v2298, %v2310
  %v2313 = vsub.f32 %v2299, %v2311
  %v2314 = vmul.f32 %v2312, %v2312
  %v2315 = vmul.f32 %v2313, %v2313
  %v2316 = vsel %vm57, %v2314, 0.0
  %2317 = vadd.xlane.f32.xlu0 %v2316
  %v2318 = vpop.xlane.xlu0 %2317
  %v2319 = vsel %vm57, %v2315, 0.0
  %2320 = vadd.xlane.f32.xlu0 %v2319
  %v2321 = vpop.xlane.xlu0 %2320
  %v2322 = vmul.f32 %v2318, %v64
  %v2323 = vmul.f32 %v2321, %v64
  %v2324 = vadd.f32 %v2322, 1e-05
  %v2325 = vadd.f32 %v2323, 1e-05
  %v2326 = vrsqrt.pop %v2324
  %v2327 = vrsqrt.pop %v2325
  %v2328 = vmul.f32 %v2312, %v2326
  %v2329 = vmul.f32 %v2313, %v2327
  %v2331 = vlaneseq
  %v2332 = vshrl.u32 %v2331, 7
  %v2333 = vsub.s32 0, %v2332
  %v2334 = vrot.slane %v2301, %v2333
  %v2336 = vmul.f32 %v2328, %v2334
  %v2337 = vmul.f32 %v2329, %v2334
  %v2339 = vlaneseq
  %v2340 = vshrl.u32 %v2339, 7
  %v2341 = vsub.s32 0, %v2340
  %v2342 = vrot.slane %v2303, %v2341
  %v2344 = vadd.f32 %v2336, %v2342
  %v2345 = vadd.f32 %v2337, %v2342
  %s2346 = scalar_lea.vmem %s3, 32
  %v2347 = vld [vmem:[%s2346] sm:$0xff]
  %v2348 = vld [vmem:[%s2346 + $0x8] sm:$0xff]
  %v2349 = vld [vmem:[%s2346 + $0x10] sm:$0xff]
  %v2350 = vld [vmem:[%s2346 + $0x18] sm:$0xff]
  %s2351 = scalar_lea.vmem %s4, 32
  %v2352 = vld [vmem:[%s2351] sm:$0xff]
  %v2353 = vld [vmem:[%s2351 + $0x8] sm:$0xff]
  %v2354 = vld [vmem:[%s2351 + $0x10] sm:$0xff]
  %v2355 = vld [vmem:[%s2351 + $0x18] sm:$0xff]
  %s2356 = scalar_lea.vmem %s5, 32
  %v2357 = vld [vmem:[%s2356] sm:$0xff]
  %v2358 = vld [vmem:[%s2356 + $0x8] sm:$0xff]
  %v2359 = vld [vmem:[%s2356 + $0x10] sm:$0xff]
  %v2360 = vld [vmem:[%s2356 + $0x18] sm:$0xff]
  %s2361 = scalar_lea.vmem %s6, 16
  %v2362 = vld [vmem:[%s2361] sm:$0xff]
  %v2363 = vld [vmem:[%s2361 + $0x8] sm:$0xff]
  %v2365 = vsel %vm115, %v2344, 0
  %2367 = vmatprep.subr.mxu0 0.0
  %2368 = vmatpush1.msra.mxu0 %v2347
  %2369 = vmatprep.subr.mxu0 0.0
  %2370 = vmatpush1.msra.mxu0 %v2348
  %2371 = vmatprep.subr.mxu0 0.0
  %2372 = vmatpush1.msra.mxu0 0.0
  %2373 = vmatprep.subr.mxu0 0.0
  %2374 = vmatpush1.msra.mxu0 0.0
  %2375 = vmatprep.subr.mxu0 0.0
  %2376 = vmatpush1.msra.mxu0 0.0
  %2377 = vmatprep.subr.mxu0 0.0
  %2378 = vmatpush1.msra.mxu0 0.0
  %2379 = vmatprep.subr.mxu0 0.0
  %2380 = vmatpush1.msra.mxu0 0.0
  %2381 = vmatprep.subr.mxu0 0.0
  %2382 = vmatpush1.msra.mxu0 0.0
  %2383 = vmatprep.subr.mxu0 0.0
  %2384 = vmatpush1.msra.mxu0 0.0
  %2385 = vmatprep.subr.mxu0 0.0
  %2386 = vmatpush1.msra.mxu0 0.0
  %2387 = vmatprep.subr.mxu0 0.0
  %2388 = vmatpush1.msra.mxu0 0.0
  %2389 = vmatprep.subr.mxu0 0.0
  %2390 = vmatpush1.msra.mxu0 0.0
  %2391 = vmatprep.subr.mxu0 0.0
  %2392 = vmatpush1.msra.mxu0 0.0
  %2393 = vmatprep.subr.mxu0 0.0
  %2394 = vmatpush1.msra.mxu0 0.0
  %2395 = vmatprep.subr.mxu0 0.0
  %2396 = vmatpush1.msra.mxu0 0.0
  %2397 = vmatprep.subr.mxu0 0.0
  %2398 = vmatpush1.msra.mxu0 0.0
  %2399 = vmatprep.subr.mxu0 0.0
  %2400 = vmatpush1.msra.mxu0 0.0
  %2401 = vmatprep.subr.mxu0 0.0
  %2402 = vmatpush1.msra.mxu0 0.0
  %2403 = vmatprep.subr.mxu0 0.0
  %2404 = vmatpush1.msra.mxu0 0.0
  %2405 = vmatprep.subr.mxu0 0.0
  %2406 = vmatpush1.msra.mxu0 0.0
  %2407 = vmatprep.subr.mxu0 0.0
  %2408 = vmatpush1.msra.mxu0 0.0
  %2409 = vmatprep.subr.mxu0 0.0
  %2410 = vmatpush1.msra.mxu0 0.0
  %2411 = vmatprep.subr.mxu0 0.0
  %2412 = vmatpush1.msra.mxu0 0.0
  %2413 = vmatprep.subr.mxu0 0.0
  %2414 = vmatpush1.msra.mxu0 0.0
  %2415 = vmatprep.subr.mxu0 0.0
  %2416 = vmatpush1.msra.mxu0 0.0
  %2417 = vmatprep.subr.mxu0 0.0
  %2418 = vmatpush1.msra.mxu0 0.0
  %2419 = vmatprep.subr.mxu0 0.0
  %2420 = vmatpush1.msra.mxu0 0.0
  %2421 = vmatprep.subr.mxu0 0.0
  %2422 = vmatpush1.msra.mxu0 0.0
  %2423 = vmatprep.subr.mxu0 0.0
  %2424 = vmatpush1.msra.mxu0 0.0
  %2425 = vmatprep.subr.mxu0 0.0
  %2426 = vmatpush1.msra.mxu0 0.0
  %2427 = vmatprep.subr.mxu0 0.0
  %2428 = vmatpush1.msra.mxu0 0.0
  %2429 = vmatprep.subr.mxu0 0.0
  %2430 = vmatpush1.msra.mxu0 0.0
  %2431 = vmatprep.mubr.f32.mxu0 0.0
  %2432 = vmatmul.mubr.f32.gmra.mrb[0].mxu0 %v2365
  %v2433 = vpop.f32.mrb[0].mxu0
  %v2434 = vadd.f32 0.0, %v2433
  %v2435 = vpop.f32.mrb[0].mxu0
  %2436 = vdwg.mxu0
  %v2438 = vsel %vm115, %v2345, 0
  %2440 = vmatprep.subr.mxu0 0.0
  %2441 = vmatpush1.msra.mxu0 %v2347
  %2442 = vmatprep.subr.mxu0 0.0
  %2443 = vmatpush1.msra.mxu0 %v2348
  %2444 = vmatprep.subr.mxu0 0.0
  %2445 = vmatpush1.msra.mxu0 0.0
  %2446 = vmatprep.subr.mxu0 0.0
  %2447 = vmatpush1.msra.mxu0 0.0
  %2448 = vmatprep.subr.mxu0 0.0
  %2449 = vmatpush1.msra.mxu0 0.0
  %2450 = vmatprep.subr.mxu0 0.0
  %2451 = vmatpush1.msra.mxu0 0.0
  %2452 = vmatprep.subr.mxu0 0.0
  %2453 = vmatpush1.msra.mxu0 0.0
  %2454 = vmatprep.subr.mxu0 0.0
  %2455 = vmatpush1.msra.mxu0 0.0
  %2456 = vmatprep.subr.mxu0 0.0
  %2457 = vmatpush1.msra.mxu0 0.0
  %2458 = vmatprep.subr.mxu0 0.0
  %2459 = vmatpush1.msra.mxu0 0.0
  %2460 = vmatprep.subr.mxu0 0.0
  %2461 = vmatpush1.msra.mxu0 0.0
  %2462 = vmatprep.subr.mxu0 0.0
  %2463 = vmatpush1.msra.mxu0 0.0
  %2464 = vmatprep.subr.mxu0 0.0
  %2465 = vmatpush1.msra.mxu0 0.0
  %2466 = vmatprep.subr.mxu0 0.0
  %2467 = vmatpush1.msra.mxu0 0.0
  %2468 = vmatprep.subr.mxu0 0.0
  %2469 = vmatpush1.msra.mxu0 0.0
  %2470 = vmatprep.subr.mxu0 0.0
  %2471 = vmatpush1.msra.mxu0 0.0
  %2472 = vmatprep.subr.mxu0 0.0
  %2473 = vmatpush1.msra.mxu0 0.0
  %2474 = vmatprep.subr.mxu0 0.0
  %2475 = vmatpush1.msra.mxu0 0.0
  %2476 = vmatprep.subr.mxu0 0.0
  %2477 = vmatpush1.msra.mxu0 0.0
  %2478 = vmatprep.subr.mxu0 0.0
  %2479 = vmatpush1.msra.mxu0 0.0
  %2480 = vmatprep.subr.mxu0 0.0
  %2481 = vmatpush1.msra.mxu0 0.0
  %2482 = vmatprep.subr.mxu0 0.0
  %2483 = vmatpush1.msra.mxu0 0.0
  %2484 = vmatprep.subr.mxu0 0.0
  %2485 = vmatpush1.msra.mxu0 0.0
  %2486 = vmatprep.subr.mxu0 0.0
  %2487 = vmatpush1.msra.mxu0 0.0
  %2488 = vmatprep.subr.mxu0 0.0
  %2489 = vmatpush1.msra.mxu0 0.0
  %2490 = vmatprep.subr.mxu0 0.0
  %2491 = vmatpush1.msra.mxu0 0.0
  %2492 = vmatprep.subr.mxu0 0.0
  %2493 = vmatpush1.msra.mxu0 0.0
  %2494 = vmatprep.subr.mxu0 0.0
  %2495 = vmatpush1.msra.mxu0 0.0
  %2496 = vmatprep.subr.mxu0 0.0
  %2497 = vmatpush1.msra.mxu0 0.0
  %2498 = vmatprep.subr.mxu0 0.0
  %2499 = vmatpush1.msra.mxu0 0.0
  %2500 = vmatprep.subr.mxu0 0.0
  %2501 = vmatpush1.msra.mxu0 0.0
  %2502 = vmatprep.subr.mxu0 0.0
  %2503 = vmatpush1.msra.mxu0 0.0
  %2504 = vmatprep.mubr.f32.mxu0 0.0
  %2505 = vmatmul.mubr.f32.gmra.mrb[0].mxu0 %v2438
  %v2506 = vpop.f32.mrb[0].mxu0
  %v2507 = vadd.f32 0.0, %v2506
  %v2508 = vpop.f32.mrb[0].mxu0
  %2509 = vdwg.mxu0
  %2510 = vmatprep.subr.mxu0 0.0
  %2511 = vmatpush1.msra.mxu0 %v2352
  %2512 = vmatprep.subr.mxu0 0.0
  %2513 = vmatpush1.msra.mxu0 %v2353
  %2514 = vmatprep.subr.mxu0 0.0
  %2515 = vmatpush1.msra.mxu0 0.0
  %2516 = vmatprep.subr.mxu0 0.0
  %2517 = vmatpush1.msra.mxu0 0.0
  %2518 = vmatprep.subr.mxu0 0.0
  %2519 = vmatpush1.msra.mxu0 0.0
  %2520 = vmatprep.subr.mxu0 0.0
  %2521 = vmatpush1.msra.mxu0 0.0
  %2522 = vmatprep.subr.mxu0 0.0
  %2523 = vmatpush1.msra.mxu0 0.0
  %2524 = vmatprep.subr.mxu0 0.0
  %2525 = vmatpush1.msra.mxu0 0.0
  %2526 = vmatprep.subr.mxu0 0.0
  %2527 = vmatpush1.msra.mxu0 0.0
  %2528 = vmatprep.subr.mxu0 0.0
  %2529 = vmatpush1.msra.mxu0 0.0
  %2530 = vmatprep.subr.mxu0 0.0
  %2531 = vmatpush1.msra.mxu0 0.0
  %2532 = vmatprep.subr.mxu0 0.0
  %2533 = vmatpush1.msra.mxu0 0.0
  %2534 = vmatprep.subr.mxu0 0.0
  %2535 = vmatpush1.msra.mxu0 0.0
  %2536 = vmatprep.subr.mxu0 0.0
  %2537 = vmatpush1.msra.mxu0 0.0
  %2538 = vmatprep.subr.mxu0 0.0
  %2539 = vmatpush1.msra.mxu0 0.0
  %2540 = vmatprep.subr.mxu0 0.0
  %2541 = vmatpush1.msra.mxu0 0.0
  %2542 = vmatprep.subr.mxu0 0.0
  %2543 = vmatpush1.msra.mxu0 0.0
  %2544 = vmatprep.subr.mxu0 0.0
  %2545 = vmatpush1.msra.mxu0 0.0
  %2546 = vmatprep.subr.mxu0 0.0
  %2547 = vmatpush1.msra.mxu0 0.0
  %2548 = vmatprep.subr.mxu0 0.0
  %2549 = vmatpush1.msra.mxu0 0.0
  %2550 = vmatprep.subr.mxu0 0.0
  %2551 = vmatpush1.msra.mxu0 0.0
  %2552 = vmatprep.subr.mxu0 0.0
  %2553 = vmatpush1.msra.mxu0 0.0
  %2554 = vmatprep.subr.mxu0 0.0
  %2555 = vmatpush1.msra.mxu0 0.0
  %2556 = vmatprep.subr.mxu0 0.0
  %2557 = vmatpush1.msra.mxu0 0.0
  %2558 = vmatprep.subr.mxu0 0.0
  %2559 = vmatpush1.msra.mxu0 0.0
  %2560 = vmatprep.subr.mxu0 0.0
  %2561 = vmatpush1.msra.mxu0 0.0
  %2562 = vmatprep.subr.mxu0 0.0
  %2563 = vmatpush1.msra.mxu0 0.0
  %2564 = vmatprep.subr.mxu0 0.0
  %2565 = vmatpush1.msra.mxu0 0.0
  %2566 = vmatprep.subr.mxu0 0.0
  %2567 = vmatpush1.msra.mxu0 0.0
  %2568 = vmatprep.subr.mxu0 0.0
  %2569 = vmatpush1.msra.mxu0 0.0
  %2570 = vmatprep.subr.mxu0 0.0
  %2571 = vmatpush1.msra.mxu0 0.0
  %2572 = vmatprep.subr.mxu0 0.0
  %2573 = vmatpush1.msra.mxu0 0.0
  %2574 = vmatprep.mubr.f32.mxu0 0.0
  %2575 = vmatmul.mubr.f32.gmra.mrb[0].mxu0 %v2365
  %v2576 = vpop.f32.mrb[0].mxu0
  %v2577 = vadd.f32 0.0, %v2576
  %v2578 = vpop.f32.mrb[0].mxu0
  %2579 = vdwg.mxu0
  %2580 = vmatprep.subr.mxu0 0.0
  %2581 = vmatpush1.msra.mxu0 %v2352
  %2582 = vmatprep.subr.mxu0 0.0
  %2583 = vmatpush1.msra.mxu0 %v2353
  %2584 = vmatprep.subr.mxu0 0.0
  %2585 = vmatpush1.msra.mxu0 0.0
  %2586 = vmatprep.subr.mxu0 0.0
  %2587 = vmatpush1.msra.mxu0 0.0
  %2588 = vmatprep.subr.mxu0 0.0
  %2589 = vmatpush1.msra.mxu0 0.0
  %2590 = vmatprep.subr.mxu0 0.0
  %2591 = vmatpush1.msra.mxu0 0.0
  %2592 = vmatprep.subr.mxu0 0.0
  %2593 = vmatpush1.msra.mxu0 0.0
  %2594 = vmatprep.subr.mxu0 0.0
  %2595 = vmatpush1.msra.mxu0 0.0
  %2596 = vmatprep.subr.mxu0 0.0
  %2597 = vmatpush1.msra.mxu0 0.0
  %2598 = vmatprep.subr.mxu0 0.0
  %2599 = vmatpush1.msra.mxu0 0.0
  %2600 = vmatprep.subr.mxu0 0.0
  %2601 = vmatpush1.msra.mxu0 0.0
  %2602 = vmatprep.subr.mxu0 0.0
  %2603 = vmatpush1.msra.mxu0 0.0
  %2604 = vmatprep.subr.mxu0 0.0
  %2605 = vmatpush1.msra.mxu0 0.0
  %2606 = vmatprep.subr.mxu0 0.0
  %2607 = vmatpush1.msra.mxu0 0.0
  %2608 = vmatprep.subr.mxu0 0.0
  %2609 = vmatpush1.msra.mxu0 0.0
  %2610 = vmatprep.subr.mxu0 0.0
  %2611 = vmatpush1.msra.mxu0 0.0
  %2612 = vmatprep.subr.mxu0 0.0
  %2613 = vmatpush1.msra.mxu0 0.0
  %2614 = vmatprep.subr.mxu0 0.0
  %2615 = vmatpush1.msra.mxu0 0.0
  %2616 = vmatprep.subr.mxu0 0.0
  %2617 = vmatpush1.msra.mxu0 0.0
  %2618 = vmatprep.subr.mxu0 0.0
  %2619 = vmatpush1.msra.mxu0 0.0
  %2620 = vmatprep.subr.mxu0 0.0
  %2621 = vmatpush1.msra.mxu0 0.0
  %2622 = vmatprep.subr.mxu0 0.0
  %2623 = vmatpush1.msra.mxu0 0.0
  %2624 = vmatprep.subr.mxu0 0.0
  %2625 = vmatpush1.msra.mxu0 0.0
  %2626 = vmatprep.subr.mxu0 0.0
  %2627 = vmatpush1.msra.mxu0 0.0
  %2628 = vmatprep.subr.mxu0 0.0
  %2629 = vmatpush1.msra.mxu0 0.0
  %2630 = vmatprep.subr.mxu0 0.0
  %2631 = vmatpush1.msra.mxu0 0.0
  %2632 = vmatprep.subr.mxu0 0.0
  %2633 = vmatpush1.msra.mxu0 0.0
  %2634 = vmatprep.subr.mxu0 0.0
  %2635 = vmatpush1.msra.mxu0 0.0
  %2636 = vmatprep.subr.mxu0 0.0
  %2637 = vmatpush1.msra.mxu0 0.0
  %2638 = vmatprep.subr.mxu0 0.0
  %2639 = vmatpush1.msra.mxu0 0.0
  %2640 = vmatprep.subr.mxu0 0.0
  %2641 = vmatpush1.msra.mxu0 0.0
  %2642 = vmatprep.subr.mxu0 0.0
  %2643 = vmatpush1.msra.mxu0 0.0
  %2644 = vmatprep.mubr.f32.mxu0 0.0
  %2645 = vmatmul.mubr.f32.gmra.mrb[0].mxu0 %v2438
  %v2646 = vpop.f32.mrb[0].mxu0
  %v2647 = vadd.f32 0.0, %v2646
  %v2648 = vpop.f32.mrb[0].mxu0
  %2649 = vdwg.mxu0
  %2650 = vmatprep.subr.mxu0 0.0
  %2651 = vmatpush1.msra.mxu0 %v2357
  %2652 = vmatprep.subr.mxu0 0.0
  %2653 = vmatpush1.msra.mxu0 %v2358
  %2654 = vmatprep.subr.mxu0 0.0
  %2655 = vmatpush1.msra.mxu0 0.0
  %2656 = vmatprep.subr.mxu0 0.0
  %2657 = vmatpush1.msra.mxu0 0.0
  %2658 = vmatprep.subr.mxu0 0.0
  %2659 = vmatpush1.msra.mxu0 0.0
  %2660 = vmatprep.subr.mxu0 0.0
  %2661 = vmatpush1.msra.mxu0 0.0
  %2662 = vmatprep.subr.mxu0 0.0
  %2663 = vmatpush1.msra.mxu0 0.0
  %2664 = vmatprep.subr.mxu0 0.0
  %2665 = vmatpush1.msra.mxu0 0.0
  %2666 = vmatprep.subr.mxu0 0.0
  %2667 = vmatpush1.msra.mxu0 0.0
  %2668 = vmatprep.subr.mxu0 0.0
  %2669 = vmatpush1.msra.mxu0 0.0
  %2670 = vmatprep.subr.mxu0 0.0
  %2671 = vmatpush1.msra.mxu0 0.0
  %2672 = vmatprep.subr.mxu0 0.0
  %2673 = vmatpush1.msra.mxu0 0.0
  %2674 = vmatprep.subr.mxu0 0.0
  %2675 = vmatpush1.msra.mxu0 0.0
  %2676 = vmatprep.subr.mxu0 0.0
  %2677 = vmatpush1.msra.mxu0 0.0
  %2678 = vmatprep.subr.mxu0 0.0
  %2679 = vmatpush1.msra.mxu0 0.0
  %2680 = vmatprep.subr.mxu0 0.0
  %2681 = vmatpush1.msra.mxu0 0.0
  %2682 = vmatprep.subr.mxu0 0.0
  %2683 = vmatpush1.msra.mxu0 0.0
  %2684 = vmatprep.subr.mxu0 0.0
  %2685 = vmatpush1.msra.mxu0 0.0
  %2686 = vmatprep.subr.mxu0 0.0
  %2687 = vmatpush1.msra.mxu0 0.0
  %2688 = vmatprep.subr.mxu0 0.0
  %2689 = vmatpush1.msra.mxu0 0.0
  %2690 = vmatprep.subr.mxu0 0.0
  %2691 = vmatpush1.msra.mxu0 0.0
  %2692 = vmatprep.subr.mxu0 0.0
  %2693 = vmatpush1.msra.mxu0 0.0
  %2694 = vmatprep.subr.mxu0 0.0
  %2695 = vmatpush1.msra.mxu0 0.0
  %2696 = vmatprep.subr.mxu0 0.0
  %2697 = vmatpush1.msra.mxu0 0.0
  %2698 = vmatprep.subr.mxu0 0.0
  %2699 = vmatpush1.msra.mxu0 0.0
  %2700 = vmatprep.subr.mxu0 0.0
  %2701 = vmatpush1.msra.mxu0 0.0
  %2702 = vmatprep.subr.mxu0 0.0
  %2703 = vmatpush1.msra.mxu0 0.0
  %2704 = vmatprep.subr.mxu0 0.0
  %2705 = vmatpush1.msra.mxu0 0.0
  %2706 = vmatprep.subr.mxu0 0.0
  %2707 = vmatpush1.msra.mxu0 0.0
  %2708 = vmatprep.subr.mxu0 0.0
  %2709 = vmatpush1.msra.mxu0 0.0
  %2710 = vmatprep.subr.mxu0 0.0
  %2711 = vmatpush1.msra.mxu0 0.0
  %2712 = vmatprep.subr.mxu0 0.0
  %2713 = vmatpush1.msra.mxu0 0.0
  %2714 = vmatprep.mubr.f32.mxu0 0.0
  %2715 = vmatmul.mubr.f32.gmra.mrb[0].mxu0 %v2365
  %v2716 = vpop.f32.mrb[0].mxu0
  %v2717 = vadd.f32 0.0, %v2716
  %v2718 = vpop.f32.mrb[0].mxu0
  %2719 = vdwg.mxu0
  %2720 = vmatprep.subr.mxu0 0.0
  %2721 = vmatpush1.msra.mxu0 %v2357
  %2722 = vmatprep.subr.mxu0 0.0
  %2723 = vmatpush1.msra.mxu0 %v2358
  %2724 = vmatprep.subr.mxu0 0.0
  %2725 = vmatpush1.msra.mxu0 0.0
  %2726 = vmatprep.subr.mxu0 0.0
  %2727 = vmatpush1.msra.mxu0 0.0
  %2728 = vmatprep.subr.mxu0 0.0
  %2729 = vmatpush1.msra.mxu0 0.0
  %2730 = vmatprep.subr.mxu0 0.0
  %2731 = vmatpush1.msra.mxu0 0.0
  %2732 = vmatprep.subr.mxu0 0.0
  %2733 = vmatpush1.msra.mxu0 0.0
  %2734 = vmatprep.subr.mxu0 0.0
  %2735 = vmatpush1.msra.mxu0 0.0
  %2736 = vmatprep.subr.mxu0 0.0
  %2737 = vmatpush1.msra.mxu0 0.0
  %2738 = vmatprep.subr.mxu0 0.0
  %2739 = vmatpush1.msra.mxu0 0.0
  %2740 = vmatprep.subr.mxu0 0.0
  %2741 = vmatpush1.msra.mxu0 0.0
  %2742 = vmatprep.subr.mxu0 0.0
  %2743 = vmatpush1.msra.mxu0 0.0
  %2744 = vmatprep.subr.mxu0 0.0
  %2745 = vmatpush1.msra.mxu0 0.0
  %2746 = vmatprep.subr.mxu0 0.0
  %2747 = vmatpush1.msra.mxu0 0.0
  %2748 = vmatprep.subr.mxu0 0.0
  %2749 = vmatpush1.msra.mxu0 0.0
  %2750 = vmatprep.subr.mxu0 0.0
  %2751 = vmatpush1.msra.mxu0 0.0
  %2752 = vmatprep.subr.mxu0 0.0
  %2753 = vmatpush1.msra.mxu0 0.0
  %2754 = vmatprep.subr.mxu0 0.0
  %2755 = vmatpush1.msra.mxu0 0.0
  %2756 = vmatprep.subr.mxu0 0.0
  %2757 = vmatpush1.msra.mxu0 0.0
  %2758 = vmatprep.subr.mxu0 0.0
  %2759 = vmatpush1.msra.mxu0 0.0
  %2760 = vmatprep.subr.mxu0 0.0
  %2761 = vmatpush1.msra.mxu0 0.0
  %2762 = vmatprep.subr.mxu0 0.0
  %2763 = vmatpush1.msra.mxu0 0.0
  %2764 = vmatprep.subr.mxu0 0.0
  %2765 = vmatpush1.msra.mxu0 0.0
  %2766 = vmatprep.subr.mxu0 0.0
  %2767 = vmatpush1.msra.mxu0 0.0
  %2768 = vmatprep.subr.mxu0 0.0
  %2769 = vmatpush1.msra.mxu0 0.0
  %2770 = vmatprep.subr.mxu0 0.0
  %2771 = vmatpush1.msra.mxu0 0.0
  %2772 = vmatprep.subr.mxu0 0.0
  %2773 = vmatpush1.msra.mxu0 0.0
  %2774 = vmatprep.subr.mxu0 0.0
  %2775 = vmatpush1.msra.mxu0 0.0
  %2776 = vmatprep.subr.mxu0 0.0
  %2777 = vmatpush1.msra.mxu0 0.0
  %2778 = vmatprep.subr.mxu0 0.0
  %2779 = vmatpush1.msra.mxu0 0.0
  %2780 = vmatprep.subr.mxu0 0.0
  %2781 = vmatpush1.msra.mxu0 0.0
  %2782 = vmatprep.subr.mxu0 0.0
  %2783 = vmatpush1.msra.mxu0 0.0
  %2784 = vmatprep.mubr.f32.mxu0 0.0
  %2785 = vmatmul.mubr.f32.gmra.mrb[0].mxu0 %v2438
  %v2786 = vpop.f32.mrb[0].mxu0
  %v2787 = vadd.f32 0.0, %v2786
  %v2788 = vpop.f32.mrb[0].mxu0
  %2789 = vdwg.mxu0
  %v2791 = vsel %vm542, %v2434, 0
  %v2794 = vsel %vm542, %v2577, 0
  %2796 = vmatprep.subr.mxu0 0.0
  %2797 = vmatpush1.xpose.msra.mxu0 %v2794
  %2798 = vmatprep.subr.mxu0 0.0
  %2799 = vmatpush1.xpose.msra.mxu0 0.0
  %2800 = vmatprep.subr.mxu0 0.0
  %2801 = vmatpush1.xpose.msra.mxu0 0.0
  %2802 = vmatprep.subr.mxu0 0.0
  %2803 = vmatpush1.xpose.msra.mxu0 0.0
  %2804 = vmatprep.subr.mxu0 0.0
  %2805 = vmatpush1.xpose.msra.mxu0 0.0
  %2806 = vmatprep.subr.mxu0 0.0
  %2807 = vmatpush1.xpose.msra.mxu0 0.0
  %2808 = vmatprep.subr.mxu0 0.0
  %2809 = vmatpush1.xpose.msra.mxu0 0.0
  %2810 = vmatprep.subr.mxu0 0.0
  %2811 = vmatpush1.xpose.msra.mxu0 0.0
  %2812 = vmatprep.subr.mxu0 0.0
  %2813 = vmatpush1.xpose.msra.mxu0 0.0
  %2814 = vmatprep.subr.mxu0 0.0
  %2815 = vmatpush1.xpose.msra.mxu0 0.0
  %2816 = vmatprep.subr.mxu0 0.0
  %2817 = vmatpush1.xpose.msra.mxu0 0.0
  %2818 = vmatprep.subr.mxu0 0.0
  %2819 = vmatpush1.xpose.msra.mxu0 0.0
  %2820 = vmatprep.subr.mxu0 0.0
  %2821 = vmatpush1.xpose.msra.mxu0 0.0
  %2822 = vmatprep.subr.mxu0 0.0
  %2823 = vmatpush1.xpose.msra.mxu0 0.0
  %2824 = vmatprep.subr.mxu0 0.0
  %2825 = vmatpush1.xpose.msra.mxu0 0.0
  %2826 = vmatprep.subr.mxu0 0.0
  %2827 = vmatpush1.xpose.msra.mxu0 0.0
  %2828 = vmatprep.subr.mxu0 0.0
  %2829 = vmatpush1.xpose.msra.mxu0 0.0
  %2830 = vmatprep.subr.mxu0 0.0
  %2831 = vmatpush1.xpose.msra.mxu0 0.0
  %2832 = vmatprep.subr.mxu0 0.0
  %2833 = vmatpush1.xpose.msra.mxu0 0.0
  %2834 = vmatprep.subr.mxu0 0.0
  %2835 = vmatpush1.xpose.msra.mxu0 0.0
  %2836 = vmatprep.subr.mxu0 0.0
  %2837 = vmatpush1.xpose.msra.mxu0 0.0
  %2838 = vmatprep.subr.mxu0 0.0
  %2839 = vmatpush1.xpose.msra.mxu0 0.0
  %2840 = vmatprep.subr.mxu0 0.0
  %2841 = vmatpush1.xpose.msra.mxu0 0.0
  %2842 = vmatprep.subr.mxu0 0.0
  %2843 = vmatpush1.xpose.msra.mxu0 0.0
  %2844 = vmatprep.subr.mxu0 0.0
  %2845 = vmatpush1.xpose.msra.mxu0 0.0
  %2846 = vmatprep.subr.mxu0 0.0
  %2847 = vmatpush1.xpose.msra.mxu0 0.0
  %2848 = vmatprep.subr.mxu0 0.0
  %2849 = vmatpush1.xpose.msra.mxu0 0.0
  %2850 = vmatprep.subr.mxu0 0.0
  %2851 = vmatpush1.xpose.msra.mxu0 0.0
  %2852 = vmatprep.subr.mxu0 0.0
  %2853 = vmatpush1.xpose.msra.mxu0 0.0
  %2854 = vmatprep.subr.mxu0 0.0
  %2855 = vmatpush1.xpose.msra.mxu0 0.0
  %2856 = vmatprep.subr.mxu0 0.0
  %2857 = vmatpush1.xpose.msra.mxu0 0.0
  %2858 = vmatprep.subr.mxu0 0.0
  %2859 = vmatpush1.xpose.msra.mxu0 0.0
  %2860 = vmatprep.mubr.f32.mxu0 0.0
  %2861 = vmatmul.mubr.f32.gmra.mrb[0].mxu0 %v2791
  %v2862 = vpop.f32.mrb[0].mxu0
  %v2863 = vadd.f32 0.0, %v2862
  %v2864 = vpop.f32.mrb[0].mxu0
  %2865 = vdwg.mxu0
  %v2867 = vsel %vm542, %v2507, 0
  %v2870 = vsel %vm542, %v2647, 0
  %2872 = vmatprep.subr.mxu0 0.0
  %2873 = vmatpush1.xpose.msra.mxu0 %v2870
  %2874 = vmatprep.subr.mxu0 0.0
  %2875 = vmatpush1.xpose.msra.mxu0 0.0
  %2876 = vmatprep.subr.mxu0 0.0
  %2877 = vmatpush1.xpose.msra.mxu0 0.0
  %2878 = vmatprep.subr.mxu0 0.0
  %2879 = vmatpush1.xpose.msra.mxu0 0.0
  %2880 = vmatprep.subr.mxu0 0.0
  %2881 = vmatpush1.xpose.msra.mxu0 0.0
  %2882 = vmatprep.subr.mxu0 0.0
  %2883 = vmatpush1.xpose.msra.mxu0 0.0
  %2884 = vmatprep.subr.mxu0 0.0
  %2885 = vmatpush1.xpose.msra.mxu0 0.0
  %2886 = vmatprep.subr.mxu0 0.0
  %2887 = vmatpush1.xpose.msra.mxu0 0.0
  %2888 = vmatprep.subr.mxu0 0.0
  %2889 = vmatpush1.xpose.msra.mxu0 0.0
  %2890 = vmatprep.subr.mxu0 0.0
  %2891 = vmatpush1.xpose.msra.mxu0 0.0
  %2892 = vmatprep.subr.mxu0 0.0
  %2893 = vmatpush1.xpose.msra.mxu0 0.0
  %2894 = vmatprep.subr.mxu0 0.0
  %2895 = vmatpush1.xpose.msra.mxu0 0.0
  %2896 = vmatprep.subr.mxu0 0.0
  %2897 = vmatpush1.xpose.msra.mxu0 0.0
  %2898 = vmatprep.subr.mxu0 0.0
  %2899 = vmatpush1.xpose.msra.mxu0 0.0
  %2900 = vmatprep.subr.mxu0 0.0
  %2901 = vmatpush1.xpose.msra.mxu0 0.0
  %2902 = vmatprep.subr.mxu0 0.0
  %2903 = vmatpush1.xpose.msra.mxu0 0.0
  %2904 = vmatprep.subr.mxu0 0.0
  %2905 = vmatpush1.xpose.msra.mxu0 0.0
  %2906 = vmatprep.subr.mxu0 0.0
  %2907 = vmatpush1.xpose.msra.mxu0 0.0
  %2908 = vmatprep.subr.mxu0 0.0
  %2909 = vmatpush1.xpose.msra.mxu0 0.0
  %2910 = vmatprep.subr.mxu0 0.0
  %2911 = vmatpush1.xpose.msra.mxu0 0.0
  %2912 = vmatprep.subr.mxu0 0.0
  %2913 = vmatpush1.xpose.msra.mxu0 0.0
  %2914 = vmatprep.subr.mxu0 0.0
  %2915 = vmatpush1.xpose.msra.mxu0 0.0
  %2916 = vmatprep.subr.mxu0 0.0
  %2917 = vmatpush1.xpose.msra.mxu0 0.0
  %2918 = vmatprep.subr.mxu0 0.0
  %2919 = vmatpush1.xpose.msra.mxu0 0.0
  %2920 = vmatprep.subr.mxu0 0.0
  %2921 = vmatpush1.xpose.msra.mxu0 0.0
  %2922 = vmatprep.subr.mxu0 0.0
  %2923 = vmatpush1.xpose.msra.mxu0 0.0
  %2924 = vmatprep.subr.mxu0 0.0
  %2925 = vmatpush1.xpose.msra.mxu0 0.0
  %2926 = vmatprep.subr.mxu0 0.0
  %2927 = vmatpush1.xpose.msra.mxu0 0.0
  %2928 = vmatprep.subr.mxu0 0.0
  %2929 = vmatpush1.xpose.msra.mxu0 0.0
  %2930 = vmatprep.subr.mxu0 0.0
  %2931 = vmatpush1.xpose.msra.mxu0 0.0
  %2932 = vmatprep.subr.mxu0 0.0
  %2933 = vmatpush1.xpose.msra.mxu0 0.0
  %2934 = vmatprep.subr.mxu0 0.0
  %2935 = vmatpush1.xpose.msra.mxu0 0.0
  %2936 = vmatprep.mubr.f32.mxu0 0.0
  %2937 = vmatmul.mubr.f32.gmra.mrb[0].mxu0 %v2867
  %v2938 = vpop.f32.mrb[0].mxu0
  %v2939 = vadd.f32 0.0, %v2938
  %v2940 = vpop.f32.mrb[0].mxu0
  %2941 = vdwg.mxu0
  %v2942 = vmul.f32 %v2863, 0.35355338
  %v2943 = vmul.f32 %v2939, 0.35355338
  %v2944 = vsel %vm697, %v2942, -inf
  %2945 = vmax.xlane.f32.xlu0 %v2944
  %v2946 = vpop.xlane.xlu0 %2945
  %v2947 = vsel %vm697, %v2943, -inf
  %2948 = vmax.xlane.f32.xlu0 %v2947
  %v2949 = vpop.xlane.xlu0 %2948
  %v2950 = vsub.f32 %v2942, %v2946
  %v2951 = vsub.f32 %v2943, %v2949
  %v2952 = vmul.f32 %v2950, 1.442695
  %v2953 = vpow.pop %v2952
  %v2954 = vmul.f32 %v2951, 1.442695
  %v2955 = vpow.pop %v2954
  %v2956 = vsel %vm697, %v2953, 0.0
  %2957 = vadd.xlane.f32.xlu0 %v2956
  %v2958 = vpop.xlane.xlu0 %2957
  %v2959 = vsel %vm697, %v2955, 0.0
  %2960 = vadd.xlane.f32.xlu0 %v2959
  %v2961 = vpop.xlane.xlu0 %2960
  %v2962 = vrcp.pop %v2958
  %v2963 = vmul.f32 %v2953, %v2962
  %v2964 = vrcp.pop %v2961
  %v2965 = vmul.f32 %v2955, %v2964
  %v2967 = vsel %vm720, %v2963, 0
  %v2970 = vsel %vm724, %v2717, 0
  %2972 = vmatprep.subr.mxu0 0.0
  %2973 = vmatpush1.msra.mxu0 %v2970
  %2974 = vmatprep.subr.mxu0 0.0
  %2975 = vmatpush1.msra.mxu0 0.0
  %2976 = vmatprep.subr.mxu0 0.0
  %2977 = vmatpush1.msra.mxu0 0.0
  %2978 = vmatprep.subr.mxu0 0.0
  %2979 = vmatpush1.msra.mxu0 0.0
  %2980 = vmatprep.subr.mxu0 0.0
  %2981 = vmatpush1.msra.mxu0 0.0
  %2982 = vmatprep.subr.mxu0 0.0
  %2983 = vmatpush1.msra.mxu0 0.0
  %2984 = vmatprep.subr.mxu0 0.0
  %2985 = vmatpush1.msra.mxu0 0.0
  %2986 = vmatprep.subr.mxu0 0.0
  %2987 = vmatpush1.msra.mxu0 0.0
  %2988 = vmatprep.subr.mxu0 0.0
  %2989 = vmatpush1.msra.mxu0 0.0
  %2990 = vmatprep.subr.mxu0 0.0
  %2991 = vmatpush1.msra.mxu0 0.0
  %2992 = vmatprep.subr.mxu0 0.0
  %2993 = vmatpush1.msra.mxu0 0.0
  %2994 = vmatprep.subr.mxu0 0.0
  %2995 = vmatpush1.msra.mxu0 0.0
  %2996 = vmatprep.subr.mxu0 0.0
  %2997 = vmatpush1.msra.mxu0 0.0
  %2998 = vmatprep.subr.mxu0 0.0
  %2999 = vmatpush1.msra.mxu0 0.0
  %3000 = vmatprep.subr.mxu0 0.0
  %3001 = vmatpush1.msra.mxu0 0.0
  %3002 = vmatprep.subr.mxu0 0.0
  %3003 = vmatpush1.msra.mxu0 0.0
  %3004 = vmatprep.subr.mxu0 0.0
  %3005 = vmatpush1.msra.mxu0 0.0
  %3006 = vmatprep.subr.mxu0 0.0
  %3007 = vmatpush1.msra.mxu0 0.0
  %3008 = vmatprep.subr.mxu0 0.0
  %3009 = vmatpush1.msra.mxu0 0.0
  %3010 = vmatprep.subr.mxu0 0.0
  %3011 = vmatpush1.msra.mxu0 0.0
  %3012 = vmatprep.subr.mxu0 0.0
  %3013 = vmatpush1.msra.mxu0 0.0
  %3014 = vmatprep.subr.mxu0 0.0
  %3015 = vmatpush1.msra.mxu0 0.0
  %3016 = vmatprep.subr.mxu0 0.0
  %3017 = vmatpush1.msra.mxu0 0.0
  %3018 = vmatprep.subr.mxu0 0.0
  %3019 = vmatpush1.msra.mxu0 0.0
  %3020 = vmatprep.subr.mxu0 0.0
  %3021 = vmatpush1.msra.mxu0 0.0
  %3022 = vmatprep.subr.mxu0 0.0
  %3023 = vmatpush1.msra.mxu0 0.0
  %3024 = vmatprep.subr.mxu0 0.0
  %3025 = vmatpush1.msra.mxu0 0.0
  %3026 = vmatprep.subr.mxu0 0.0
  %3027 = vmatpush1.msra.mxu0 0.0
  %3028 = vmatprep.subr.mxu0 0.0
  %3029 = vmatpush1.msra.mxu0 0.0
  %3030 = vmatprep.subr.mxu0 0.0
  %3031 = vmatpush1.msra.mxu0 0.0
  %3032 = vmatprep.subr.mxu0 0.0
  %3033 = vmatpush1.msra.mxu0 0.0
  %3034 = vmatprep.subr.mxu0 0.0
  %3035 = vmatpush1.msra.mxu0 0.0
  %3036 = vmatprep.mubr.f32.mxu0 0.0
  %3037 = vmatmul.mubr.f32.gmra.mrb[0].mxu0 %v2967
  %v3038 = vpop.f32.mrb[0].mxu0
  %v3039 = vadd.f32 0.0, %v3038
  %v3040 = vpop.f32.mrb[0].mxu0
  %3041 = vdwg.mxu0
  %v3043 = vsel %vm720, %v2965, 0
  %v3046 = vsel %vm724, %v2787, 0
  %3048 = vmatprep.subr.mxu0 0.0
  %3049 = vmatpush1.msra.mxu0 %v3046
  %3050 = vmatprep.subr.mxu0 0.0
  %3051 = vmatpush1.msra.mxu0 0.0
  %3052 = vmatprep.subr.mxu0 0.0
  %3053 = vmatpush1.msra.mxu0 0.0
  %3054 = vmatprep.subr.mxu0 0.0
  %3055 = vmatpush1.msra.mxu0 0.0
  %3056 = vmatprep.subr.mxu0 0.0
  %3057 = vmatpush1.msra.mxu0 0.0
  %3058 = vmatprep.subr.mxu0 0.0
  %3059 = vmatpush1.msra.mxu0 0.0
  %3060 = vmatprep.subr.mxu0 0.0
  %3061 = vmatpush1.msra.mxu0 0.0
  %3062 = vmatprep.subr.mxu0 0.0
  %3063 = vmatpush1.msra.mxu0 0.0
  %3064 = vmatprep.subr.mxu0 0.0
  %3065 = vmatpush1.msra.mxu0 0.0
  %3066 = vmatprep.subr.mxu0 0.0
  %3067 = vmatpush1.msra.mxu0 0.0
  %3068 = vmatprep.subr.mxu0 0.0
  %3069 = vmatpush1.msra.mxu0 0.0
  %3070 = vmatprep.subr.mxu0 0.0
  %3071 = vmatpush1.msra.mxu0 0.0
  %3072 = vmatprep.subr.mxu0 0.0
  %3073 = vmatpush1.msra.mxu0 0.0
  %3074 = vmatprep.subr.mxu0 0.0
  %3075 = vmatpush1.msra.mxu0 0.0
  %3076 = vmatprep.subr.mxu0 0.0
  %3077 = vmatpush1.msra.mxu0 0.0
  %3078 = vmatprep.subr.mxu0 0.0
  %3079 = vmatpush1.msra.mxu0 0.0
  %3080 = vmatprep.subr.mxu0 0.0
  %3081 = vmatpush1.msra.mxu0 0.0
  %3082 = vmatprep.subr.mxu0 0.0
  %3083 = vmatpush1.msra.mxu0 0.0
  %3084 = vmatprep.subr.mxu0 0.0
  %3085 = vmatpush1.msra.mxu0 0.0
  %3086 = vmatprep.subr.mxu0 0.0
  %3087 = vmatpush1.msra.mxu0 0.0
  %3088 = vmatprep.subr.mxu0 0.0
  %3089 = vmatpush1.msra.mxu0 0.0
  %3090 = vmatprep.subr.mxu0 0.0
  %3091 = vmatpush1.msra.mxu0 0.0
  %3092 = vmatprep.subr.mxu0 0.0
  %3093 = vmatpush1.msra.mxu0 0.0
  %3094 = vmatprep.subr.mxu0 0.0
  %3095 = vmatpush1.msra.mxu0 0.0
  %3096 = vmatprep.subr.mxu0 0.0
  %3097 = vmatpush1.msra.mxu0 0.0
  %3098 = vmatprep.subr.mxu0 0.0
  %3099 = vmatpush1.msra.mxu0 0.0
  %3100 = vmatprep.subr.mxu0 0.0
  %3101 = vmatpush1.msra.mxu0 0.0
  %3102 = vmatprep.subr.mxu0 0.0
  %3103 = vmatpush1.msra.mxu0 0.0
  %3104 = vmatprep.subr.mxu0 0.0
  %3105 = vmatpush1.msra.mxu0 0.0
  %3106 = vmatprep.subr.mxu0 0.0
  %3107 = vmatpush1.msra.mxu0 0.0
  %3108 = vmatprep.subr.mxu0 0.0
  %3109 = vmatpush1.msra.mxu0 0.0
  %3110 = vmatprep.subr.mxu0 0.0
  %3111 = vmatpush1.msra.mxu0 0.0
  %3112 = vmatprep.mubr.f32.mxu0 0.0
  %3113 = vmatmul.mubr.f32.gmra.mrb[0].mxu0 %v3043
  %v3114 = vpop.f32.mrb[0].mxu0
  %v3115 = vadd.f32 0.0, %v3114
  %v3116 = vpop.f32.mrb[0].mxu0
  %3117 = vdwg.mxu0
  %3118 = vmatprep.subr.mxu0 0.0
  %3119 = vmatpush1.msra.mxu0 %v2349
  %3120 = vmatprep.subr.mxu0 0.0
  %3121 = vmatpush1.msra.mxu0 %v2350
  %3122 = vmatprep.subr.mxu0 0.0
  %3123 = vmatpush1.msra.mxu0 0.0
  %3124 = vmatprep.subr.mxu0 0.0
  %3125 = vmatpush1.msra.mxu0 0.0
  %3126 = vmatprep.subr.mxu0 0.0
  %3127 = vmatpush1.msra.mxu0 0.0
  %3128 = vmatprep.subr.mxu0 0.0
  %3129 = vmatpush1.msra.mxu0 0.0
  %3130 = vmatprep.subr.mxu0 0.0
  %3131 = vmatpush1.msra.mxu0 0.0
  %3132 = vmatprep.subr.mxu0 0.0
  %3133 = vmatpush1.msra.mxu0 0.0
  %3134 = vmatprep.subr.mxu0 0.0
  %3135 = vmatpush1.msra.mxu0 0.0
  %3136 = vmatprep.subr.mxu0 0.0
  %3137 = vmatpush1.msra.mxu0 0.0
  %3138 = vmatprep.subr.mxu0 0.0
  %3139 = vmatpush1.msra.mxu0 0.0
  %3140 = vmatprep.subr.mxu0 0.0
  %3141 = vmatpush1.msra.mxu0 0.0
  %3142 = vmatprep.subr.mxu0 0.0
  %3143 = vmatpush1.msra.mxu0 0.0
  %3144 = vmatprep.subr.mxu0 0.0
  %3145 = vmatpush1.msra.mxu0 0.0
  %3146 = vmatprep.subr.mxu0 0.0
  %3147 = vmatpush1.msra.mxu0 0.0
  %3148 = vmatprep.subr.mxu0 0.0
  %3149 = vmatpush1.msra.mxu0 0.0
  %3150 = vmatprep.subr.mxu0 0.0
  %3151 = vmatpush1.msra.mxu0 0.0
  %3152 = vmatprep.subr.mxu0 0.0
  %3153 = vmatpush1.msra.mxu0 0.0
  %3154 = vmatprep.subr.mxu0 0.0
  %3155 = vmatpush1.msra.mxu0 0.0
  %3156 = vmatprep.subr.mxu0 0.0
  %3157 = vmatpush1.msra.mxu0 0.0
  %3158 = vmatprep.subr.mxu0 0.0
  %3159 = vmatpush1.msra.mxu0 0.0
  %3160 = vmatprep.subr.mxu0 0.0
  %3161 = vmatpush1.msra.mxu0 0.0
  %3162 = vmatprep.subr.mxu0 0.0
  %3163 = vmatpush1.msra.mxu0 0.0
  %3164 = vmatprep.subr.mxu0 0.0
  %3165 = vmatpush1.msra.mxu0 0.0
  %3166 = vmatprep.subr.mxu0 0.0
  %3167 = vmatpush1.msra.mxu0 0.0
  %3168 = vmatprep.subr.mxu0 0.0
  %3169 = vmatpush1.msra.mxu0 0.0
  %3170 = vmatprep.subr.mxu0 0.0
  %3171 = vmatpush1.msra.mxu0 0.0
  %3172 = vmatprep.subr.mxu0 0.0
  %3173 = vmatpush1.msra.mxu0 0.0
  %3174 = vmatprep.subr.mxu0 0.0
  %3175 = vmatpush1.msra.mxu0 0.0
  %3176 = vmatprep.subr.mxu0 0.0
  %3177 = vmatpush1.msra.mxu0 0.0
  %3178 = vmatprep.subr.mxu0 0.0
  %3179 = vmatpush1.msra.mxu0 0.0
  %3180 = vmatprep.subr.mxu0 0.0
  %3181 = vmatpush1.msra.mxu0 0.0
  %3182 = vmatprep.mubr.f32.mxu0 0.0
  %3183 = vmatmul.mubr.f32.gmra.mrb[0].mxu0 %v2365
  %v3184 = vpop.f32.mrb[0].mxu0
  %v3185 = vadd.f32 0.0, %v3184
  %v3186 = vpop.f32.mrb[0].mxu0
  %3187 = vdwg.mxu0
  %3188 = vmatprep.subr.mxu0 0.0
  %3189 = vmatpush1.msra.mxu0 %v2349
  %3190 = vmatprep.subr.mxu0 0.0
  %3191 = vmatpush1.msra.mxu0 %v2350
  %3192 = vmatprep.subr.mxu0 0.0
  %3193 = vmatpush1.msra.mxu0 0.0
  %3194 = vmatprep.subr.mxu0 0.0
  %3195 = vmatpush1.msra.mxu0 0.0
  %3196 = vmatprep.subr.mxu0 0.0
  %3197 = vmatpush1.msra.mxu0 0.0
  %3198 = vmatprep.subr.mxu0 0.0
  %3199 = vmatpush1.msra.mxu0 0.0
  %3200 = vmatprep.subr.mxu0 0.0
  %3201 = vmatpush1.msra.mxu0 0.0
  %3202 = vmatprep.subr.mxu0 0.0
  %3203 = vmatpush1.msra.mxu0 0.0
  %3204 = vmatprep.subr.mxu0 0.0
  %3205 = vmatpush1.msra.mxu0 0.0
  %3206 = vmatprep.subr.mxu0 0.0
  %3207 = vmatpush1.msra.mxu0 0.0
  %3208 = vmatprep.subr.mxu0 0.0
  %3209 = vmatpush1.msra.mxu0 0.0
  %3210 = vmatprep.subr.mxu0 0.0
  %3211 = vmatpush1.msra.mxu0 0.0
  %3212 = vmatprep.subr.mxu0 0.0
  %3213 = vmatpush1.msra.mxu0 0.0
  %3214 = vmatprep.subr.mxu0 0.0
  %3215 = vmatpush1.msra.mxu0 0.0
  %3216 = vmatprep.subr.mxu0 0.0
  %3217 = vmatpush1.msra.mxu0 0.0
  %3218 = vmatprep.subr.mxu0 0.0
  %3219 = vmatpush1.msra.mxu0 0.0
  %3220 = vmatprep.subr.mxu0 0.0
  %3221 = vmatpush1.msra.mxu0 0.0
  %3222 = vmatprep.subr.mxu0 0.0
  %3223 = vmatpush1.msra.mxu0 0.0
  %3224 = vmatprep.subr.mxu0 0.0
  %3225 = vmatpush1.msra.mxu0 0.0
  %3226 = vmatprep.subr.mxu0 0.0
  %3227 = vmatpush1.msra.mxu0 0.0
  %3228 = vmatprep.subr.mxu0 0.0
  %3229 = vmatpush1.msra.mxu0 0.0
  %3230 = vmatprep.subr.mxu0 0.0
  %3231 = vmatpush1.msra.mxu0 0.0
  %3232 = vmatprep.subr.mxu0 0.0
  %3233 = vmatpush1.msra.mxu0 0.0
  %3234 = vmatprep.subr.mxu0 0.0
  %3235 = vmatpush1.msra.mxu0 0.0
  %3236 = vmatprep.subr.mxu0 0.0
  %3237 = vmatpush1.msra.mxu0 0.0
  %3238 = vmatprep.subr.mxu0 0.0
  %3239 = vmatpush1.msra.mxu0 0.0
  %3240 = vmatprep.subr.mxu0 0.0
  %3241 = vmatpush1.msra.mxu0 0.0
  %3242 = vmatprep.subr.mxu0 0.0
  %3243 = vmatpush1.msra.mxu0 0.0
  %3244 = vmatprep.subr.mxu0 0.0
  %3245 = vmatpush1.msra.mxu0 0.0
  %3246 = vmatprep.subr.mxu0 0.0
  %3247 = vmatpush1.msra.mxu0 0.0
  %3248 = vmatprep.subr.mxu0 0.0
  %3249 = vmatpush1.msra.mxu0 0.0
  %3250 = vmatprep.subr.mxu0 0.0
  %3251 = vmatpush1.msra.mxu0 0.0
  %3252 = vmatprep.mubr.f32.mxu0 0.0
  %3253 = vmatmul.mubr.f32.gmra.mrb[0].mxu0 %v2438
  %v3254 = vpop.f32.mrb[0].mxu0
  %v3255 = vadd.f32 0.0, %v3254
  %v3256 = vpop.f32.mrb[0].mxu0
  %3257 = vdwg.mxu0
  %3258 = vmatprep.subr.mxu0 0.0
  %3259 = vmatpush1.msra.mxu0 %v2354
  %3260 = vmatprep.subr.mxu0 0.0
  %3261 = vmatpush1.msra.mxu0 %v2355
  %3262 = vmatprep.subr.mxu0 0.0
  %3263 = vmatpush1.msra.mxu0 0.0
  %3264 = vmatprep.subr.mxu0 0.0
  %3265 = vmatpush1.msra.mxu0 0.0
  %3266 = vmatprep.subr.mxu0 0.0
  %3267 = vmatpush1.msra.mxu0 0.0
  %3268 = vmatprep.subr.mxu0 0.0
  %3269 = vmatpush1.msra.mxu0 0.0
  %3270 = vmatprep.subr.mxu0 0.0
  %3271 = vmatpush1.msra.mxu0 0.0
  %3272 = vmatprep.subr.mxu0 0.0
  %3273 = vmatpush1.msra.mxu0 0.0
  %3274 = vmatprep.subr.mxu0 0.0
  %3275 = vmatpush1.msra.mxu0 0.0
  %3276 = vmatprep.subr.mxu0 0.0
  %3277 = vmatpush1.msra.mxu0 0.0
  %3278 = vmatprep.subr.mxu0 0.0
  %3279 = vmatpush1.msra.mxu0 0.0
  %3280 = vmatprep.subr.mxu0 0.0
  %3281 = vmatpush1.msra.mxu0 0.0
  %3282 = vmatprep.subr.mxu0 0.0
  %3283 = vmatpush1.msra.mxu0 0.0
  %3284 = vmatprep.subr.mxu0 0.0
  %3285 = vmatpush1.msra.mxu0 0.0
  %3286 = vmatprep.subr.mxu0 0.0
  %3287 = vmatpush1.msra.mxu0 0.0
  %3288 = vmatprep.subr.mxu0 0.0
  %3289 = vmatpush1.msra.mxu0 0.0
  %3290 = vmatprep.subr.mxu0 0.0
  %3291 = vmatpush1.msra.mxu0 0.0
  %3292 = vmatprep.subr.mxu0 0.0
  %3293 = vmatpush1.msra.mxu0 0.0
  %3294 = vmatprep.subr.mxu0 0.0
  %3295 = vmatpush1.msra.mxu0 0.0
  %3296 = vmatprep.subr.mxu0 0.0
  %3297 = vmatpush1.msra.mxu0 0.0
  %3298 = vmatprep.subr.mxu0 0.0
  %3299 = vmatpush1.msra.mxu0 0.0
  %3300 = vmatprep.subr.mxu0 0.0
  %3301 = vmatpush1.msra.mxu0 0.0
  %3302 = vmatprep.subr.mxu0 0.0
  %3303 = vmatpush1.msra.mxu0 0.0
  %3304 = vmatprep.subr.mxu0 0.0
  %3305 = vmatpush1.msra.mxu0 0.0
  %3306 = vmatprep.subr.mxu0 0.0
  %3307 = vmatpush1.msra.mxu0 0.0
  %3308 = vmatprep.subr.mxu0 0.0
  %3309 = vmatpush1.msra.mxu0 0.0
  %3310 = vmatprep.subr.mxu0 0.0
  %3311 = vmatpush1.msra.mxu0 0.0
  %3312 = vmatprep.subr.mxu0 0.0
  %3313 = vmatpush1.msra.mxu0 0.0
  %3314 = vmatprep.subr.mxu0 0.0
  %3315 = vmatpush1.msra.mxu0 0.0
  %3316 = vmatprep.subr.mxu0 0.0
  %3317 = vmatpush1.msra.mxu0 0.0
  %3318 = vmatprep.subr.mxu0 0.0
  %3319 = vmatpush1.msra.mxu0 0.0
  %3320 = vmatprep.subr.mxu0 0.0
  %3321 = vmatpush1.msra.mxu0 0.0
  %3322 = vmatprep.mubr.f32.mxu0 0.0
  %3323 = vmatmul.mubr.f32.gmra.mrb[0].mxu0 %v2365
  %v3324 = vpop.f32.mrb[0].mxu0
  %v3325 = vadd.f32 0.0, %v3324
  %v3326 = vpop.f32.mrb[0].mxu0
  %3327 = vdwg.mxu0
  %3328 = vmatprep.subr.mxu0 0.0
  %3329 = vmatpush1.msra.mxu0 %v2354
  %3330 = vmatprep.subr.mxu0 0.0
  %3331 = vmatpush1.msra.mxu0 %v2355
  %3332 = vmatprep.subr.mxu0 0.0
  %3333 = vmatpush1.msra.mxu0 0.0
  %3334 = vmatprep.subr.mxu0 0.0
  %3335 = vmatpush1.msra.mxu0 0.0
  %3336 = vmatprep.subr.mxu0 0.0
  %3337 = vmatpush1.msra.mxu0 0.0
  %3338 = vmatprep.subr.mxu0 0.0
  %3339 = vmatpush1.msra.mxu0 0.0
  %3340 = vmatprep.subr.mxu0 0.0
  %3341 = vmatpush1.msra.mxu0 0.0
  %3342 = vmatprep.subr.mxu0 0.0
  %3343 = vmatpush1.msra.mxu0 0.0
  %3344 = vmatprep.subr.mxu0 0.0
  %3345 = vmatpush1.msra.mxu0 0.0
  %3346 = vmatprep.subr.mxu0 0.0
  %3347 = vmatpush1.msra.mxu0 0.0
  %3348 = vmatprep.subr.mxu0 0.0
  %3349 = vmatpush1.msra.mxu0 0.0
  %3350 = vmatprep.subr.mxu0 0.0
  %3351 = vmatpush1.msra.mxu0 0.0
  %3352 = vmatprep.subr.mxu0 0.0
  %3353 = vmatpush1.msra.mxu0 0.0
  %3354 = vmatprep.subr.mxu0 0.0
  %3355 = vmatpush1.msra.mxu0 0.0
  %3356 = vmatprep.subr.mxu0 0.0
  %3357 = vmatpush1.msra.mxu0 0.0
  %3358 = vmatprep.subr.mxu0 0.0
  %3359 = vmatpush1.msra.mxu0 0.0
  %3360 = vmatprep.subr.mxu0 0.0
  %3361 = vmatpush1.msra.mxu0 0.0
  %3362 = vmatprep.subr.mxu0 0.0
  %3363 = vmatpush1.msra.mxu0 0.0
  %3364 = vmatprep.subr.mxu0 0.0
  %3365 = vmatpush1.msra.mxu0 0.0
  %3366 = vmatprep.subr.mxu0 0.0
  %3367 = vmatpush1.msra.mxu0 0.0
  %3368 = vmatprep.subr.mxu0 0.0
  %3369 = vmatpush1.msra.mxu0 0.0
  %3370 = vmatprep.subr.mxu0 0.0
  %3371 = vmatpush1.msra.mxu0 0.0
  %3372 = vmatprep.subr.mxu0 0.0
  %3373 = vmatpush1.msra.mxu0 0.0
  %3374 = vmatprep.subr.mxu0 0.0
  %3375 = vmatpush1.msra.mxu0 0.0
  %3376 = vmatprep.subr.mxu0 0.0
  %3377 = vmatpush1.msra.mxu0 0.0
  %3378 = vmatprep.subr.mxu0 0.0
  %3379 = vmatpush1.msra.mxu0 0.0
  %3380 = vmatprep.subr.mxu0 0.0
  %3381 = vmatpush1.msra.mxu0 0.0
  %3382 = vmatprep.subr.mxu0 0.0
  %3383 = vmatpush1.msra.mxu0 0.0
  %3384 = vmatprep.subr.mxu0 0.0
  %3385 = vmatpush1.msra.mxu0 0.0
  %3386 = vmatprep.subr.mxu0 0.0
  %3387 = vmatpush1.msra.mxu0 0.0
  %3388 = vmatprep.subr.mxu0 0.0
  %3389 = vmatpush1.msra.mxu0 0.0
  %3390 = vmatprep.subr.mxu0 0.0
  %3391 = vmatpush1.msra.mxu0 0.0
  %3392 = vmatprep.mubr.f32.mxu0 0.0
  %3393 = vmatmul.mubr.f32.gmra.mrb[0].mxu0 %v2438
  %v3394 = vpop.f32.mrb[0].mxu0
  %v3395 = vadd.f32 0.0, %v3394
  %v3396 = vpop.f32.mrb[0].mxu0
  %3397 = vdwg.mxu0
  %3398 = vmatprep.subr.mxu0 0.0
  %3399 = vmatpush1.msra.mxu0 %v2359
  %3400 = vmatprep.subr.mxu0 0.0
  %3401 = vmatpush1.msra.mxu0 %v2360
  %3402 = vmatprep.subr.mxu0 0.0
  %3403 = vmatpush1.msra.mxu0 0.0
  %3404 = vmatprep.subr.mxu0 0.0
  %3405 = vmatpush1.msra.mxu0 0.0
  %3406 = vmatprep.subr.mxu0 0.0
  %3407 = vmatpush1.msra.mxu0 0.0
  %3408 = vmatprep.subr.mxu0 0.0
  %3409 = vmatpush1.msra.mxu0 0.0
  %3410 = vmatprep.subr.mxu0 0.0
  %3411 = vmatpush1.msra.mxu0 0.0
  %3412 = vmatprep.subr.mxu0 0.0
  %3413 = vmatpush1.msra.mxu0 0.0
  %3414 = vmatprep.subr.mxu0 0.0
  %3415 = vmatpush1.msra.mxu0 0.0
  %3416 = vmatprep.subr.mxu0 0.0
  %3417 = vmatpush1.msra.mxu0 0.0
  %3418 = vmatprep.subr.mxu0 0.0
  %3419 = vmatpush1.msra.mxu0 0.0
  %3420 = vmatprep.subr.mxu0 0.0
  %3421 = vmatpush1.msra.mxu0 0.0
  %3422 = vmatprep.subr.mxu0 0.0
  %3423 = vmatpush1.msra.mxu0 0.0
  %3424 = vmatprep.subr.mxu0 0.0
  %3425 = vmatpush1.msra.mxu0 0.0
  %3426 = vmatprep.subr.mxu0 0.0
  %3427 = vmatpush1.msra.mxu0 0.0
  %3428 = vmatprep.subr.mxu0 0.0
  %3429 = vmatpush1.msra.mxu0 0.0
  %3430 = vmatprep.subr.mxu0 0.0
  %3431 = vmatpush1.msra.mxu0 0.0
  %3432 = vmatprep.subr.mxu0 0.0
  %3433 = vmatpush1.msra.mxu0 0.0
  %3434 = vmatprep.subr.mxu0 0.0
  %3435 = vmatpush1.msra.mxu0 0.0
  %3436 = vmatprep.subr.mxu0 0.0
  %3437 = vmatpush1.msra.mxu0 0.0
  %3438 = vmatprep.subr.mxu0 0.0
  %3439 = vmatpush1.msra.mxu0 0.0
  %3440 = vmatprep.subr.mxu0 0.0
  %3441 = vmatpush1.msra.mxu0 0.0
  %3442 = vmatprep.subr.mxu0 0.0
  %3443 = vmatpush1.msra.mxu0 0.0
  %3444 = vmatprep.subr.mxu0 0.0
  %3445 = vmatpush1.msra.mxu0 0.0
  %3446 = vmatprep.subr.mxu0 0.0
  %3447 = vmatpush1.msra.mxu0 0.0
  %3448 = vmatprep.subr.mxu0 0.0
  %3449 = vmatpush1.msra.mxu0 0.0
  %3450 = vmatprep.subr.mxu0 0.0
  %3451 = vmatpush1.msra.mxu0 0.0
  %3452 = vmatprep.subr.mxu0 0.0
  %3453 = vmatpush1.msra.mxu0 0.0
  %3454 = vmatprep.subr.mxu0 0.0
  %3455 = vmatpush1.msra.mxu0 0.0
  %3456 = vmatprep.subr.mxu0 0.0
  %3457 = vmatpush1.msra.mxu0 0.0
  %3458 = vmatprep.subr.mxu0 0.0
  %3459 = vmatpush1.msra.mxu0 0.0
  %3460 = vmatprep.subr.mxu0 0.0
  %3461 = vmatpush1.msra.mxu0 0.0
  %3462 = vmatprep.mubr.f32.mxu0 0.0
  %3463 = vmatmul.mubr.f32.gmra.mrb[0].mxu0 %v2365
  %v3464 = vpop.f32.mrb[0].mxu0
  %v3465 = vadd.f32 0.0, %v3464
  %v3466 = vpop.f32.mrb[0].mxu0
  %3467 = vdwg.mxu0
  %3468 = vmatprep.subr.mxu0 0.0
  %3469 = vmatpush1.msra.mxu0 %v2359
  %3470 = vmatprep.subr.mxu0 0.0
  %3471 = vmatpush1.msra.mxu0 %v2360
  %3472 = vmatprep.subr.mxu0 0.0
  %3473 = vmatpush1.msra.mxu0 0.0
  %3474 = vmatprep.subr.mxu0 0.0
  %3475 = vmatpush1.msra.mxu0 0.0
  %3476 = vmatprep.subr.mxu0 0.0
  %3477 = vmatpush1.msra.mxu0 0.0
  %3478 = vmatprep.subr.mxu0 0.0
  %3479 = vmatpush1.msra.mxu0 0.0
  %3480 = vmatprep.subr.mxu0 0.0
  %3481 = vmatpush1.msra.mxu0 0.0
  %3482 = vmatprep.subr.mxu0 0.0
  %3483 = vmatpush1.msra.mxu0 0.0
  %3484 = vmatprep.subr.mxu0 0.0
  %3485 = vmatpush1.msra.mxu0 0.0
  %3486 = vmatprep.subr.mxu0 0.0
  %3487 = vmatpush1.msra.mxu0 0.0
  %3488 = vmatprep.subr.mxu0 0.0
  %3489 = vmatpush1.msra.mxu0 0.0
  %3490 = vmatprep.subr.mxu0 0.0
  %3491 = vmatpush1.msra.mxu0 0.0
  %3492 = vmatprep.subr.mxu0 0.0
  %3493 = vmatpush1.msra.mxu0 0.0
  %3494 = vmatprep.subr.mxu0 0.0
  %3495 = vmatpush1.msra.mxu0 0.0
  %3496 = vmatprep.subr.mxu0 0.0
  %3497 = vmatpush1.msra.mxu0 0.0
  %3498 = vmatprep.subr.mxu0 0.0
  %3499 = vmatpush1.msra.mxu0 0.0
  %3500 = vmatprep.subr.mxu0 0.0
  %3501 = vmatpush1.msra.mxu0 0.0
  %3502 = vmatprep.subr.mxu0 0.0
  %3503 = vmatpush1.msra.mxu0 0.0
  %3504 = vmatprep.subr.mxu0 0.0
  %3505 = vmatpush1.msra.mxu0 0.0
  %3506 = vmatprep.subr.mxu0 0.0
  %3507 = vmatpush1.msra.mxu0 0.0
  %3508 = vmatprep.subr.mxu0 0.0
  %3509 = vmatpush1.msra.mxu0 0.0
  %3510 = vmatprep.subr.mxu0 0.0
  %3511 = vmatpush1.msra.mxu0 0.0
  %3512 = vmatprep.subr.mxu0 0.0
  %3513 = vmatpush1.msra.mxu0 0.0
  %3514 = vmatprep.subr.mxu0 0.0
  %3515 = vmatpush1.msra.mxu0 0.0
  %3516 = vmatprep.subr.mxu0 0.0
  %3517 = vmatpush1.msra.mxu0 0.0
  %3518 = vmatprep.subr.mxu0 0.0
  %3519 = vmatpush1.msra.mxu0 0.0
  %3520 = vmatprep.subr.mxu0 0.0
  %3521 = vmatpush1.msra.mxu0 0.0
  %3522 = vmatprep.subr.mxu0 0.0
  %3523 = vmatpush1.msra.mxu0 0.0
  %3524 = vmatprep.subr.mxu0 0.0
  %3525 = vmatpush1.msra.mxu0 0.0
  %3526 = vmatprep.subr.mxu0 0.0
  %3527 = vmatpush1.msra.mxu0 0.0
  %3528 = vmatprep.subr.mxu0 0.0
  %3529 = vmatpush1.msra.mxu0 0.0
  %3530 = vmatprep.subr.mxu0 0.0
  %3531 = vmatpush1.msra.mxu0 0.0
  %3532 = vmatprep.mubr.f32.mxu0 0.0
  %3533 = vmatmul.mubr.f32.gmra.mrb[0].mxu0 %v2438
  %v3534 = vpop.f32.mrb[0].mxu0
  %v3535 = vadd.f32 0.0, %v3534
  %v3536 = vpop.f32.mrb[0].mxu0
  %3537 = vdwg.mxu0
  %v3539 = vsel %vm542, %v3185, 0
  %v3542 = vsel %vm542, %v3325, 0
  %3544 = vmatprep.subr.mxu0 0.0
  %3545 = vmatpush1.xpose.msra.mxu0 %v3542
  %3546 = vmatprep.subr.mxu0 0.0
  %3547 = vmatpush1.xpose.msra.mxu0 0.0
  %3548 = vmatprep.subr.mxu0 0.0
  %3549 = vmatpush1.xpose.msra.mxu0 0.0
  %3550 = vmatprep.subr.mxu0 0.0
  %3551 = vmatpush1.xpose.msra.mxu0 0.0
  %3552 = vmatprep.subr.mxu0 0.0
  %3553 = vmatpush1.xpose.msra.mxu0 0.0
  %3554 = vmatprep.subr.mxu0 0.0
  %3555 = vmatpush1.xpose.msra.mxu0 0.0
  %3556 = vmatprep.subr.mxu0 0.0
  %3557 = vmatpush1.xpose.msra.mxu0 0.0
  %3558 = vmatprep.subr.mxu0 0.0
  %3559 = vmatpush1.xpose.msra.mxu0 0.0
  %3560 = vmatprep.subr.mxu0 0.0
  %3561 = vmatpush1.xpose.msra.mxu0 0.0
  %3562 = vmatprep.subr.mxu0 0.0
  %3563 = vmatpush1.xpose.msra.mxu0 0.0
  %3564 = vmatprep.subr.mxu0 0.0
  %3565 = vmatpush1.xpose.msra.mxu0 0.0
  %3566 = vmatprep.subr.mxu0 0.0
  %3567 = vmatpush1.xpose.msra.mxu0 0.0
  %3568 = vmatprep.subr.mxu0 0.0
  %3569 = vmatpush1.xpose.msra.mxu0 0.0
  %3570 = vmatprep.subr.mxu0 0.0
  %3571 = vmatpush1.xpose.msra.mxu0 0.0
  %3572 = vmatprep.subr.mxu0 0.0
  %3573 = vmatpush1.xpose.msra.mxu0 0.0
  %3574 = vmatprep.subr.mxu0 0.0
  %3575 = vmatpush1.xpose.msra.mxu0 0.0
  %3576 = vmatprep.subr.mxu0 0.0
  %3577 = vmatpush1.xpose.msra.mxu0 0.0
  %3578 = vmatprep.subr.mxu0 0.0
  %3579 = vmatpush1.xpose.msra.mxu0 0.0
  %3580 = vmatprep.subr.mxu0 0.0
  %3581 = vmatpush1.xpose.msra.mxu0 0.0
  %3582 = vmatprep.subr.mxu0 0.0
  %3583 = vmatpush1.xpose.msra.mxu0 0.0
  %3584 = vmatprep.subr.mxu0 0.0
  %3585 = vmatpush1.xpose.msra.mxu0 0.0
  %3586 = vmatprep.subr.mxu0 0.0
  %3587 = vmatpush1.xpose.msra.mxu0 0.0
  %3588 = vmatprep.subr.mxu0 0.0
  %3589 = vmatpush1.xpose.msra.mxu0 0.0
  %3590 = vmatprep.subr.mxu0 0.0
  %3591 = vmatpush1.xpose.msra.mxu0 0.0
  %3592 = vmatprep.subr.mxu0 0.0
  %3593 = vmatpush1.xpose.msra.mxu0 0.0
  %3594 = vmatprep.subr.mxu0 0.0
  %3595 = vmatpush1.xpose.msra.mxu0 0.0
  %3596 = vmatprep.subr.mxu0 0.0
  %3597 = vmatpush1.xpose.msra.mxu0 0.0
  %3598 = vmatprep.subr.mxu0 0.0
  %3599 = vmatpush1.xpose.msra.mxu0 0.0
  %3600 = vmatprep.subr.mxu0 0.0
  %3601 = vmatpush1.xpose.msra.mxu0 0.0
  %3602 = vmatprep.subr.mxu0 0.0
  %3603 = vmatpush1.xpose.msra.mxu0 0.0
  %3604 = vmatprep.subr.mxu0 0.0
  %3605 = vmatpush1.xpose.msra.mxu0 0.0
  %3606 = vmatprep.subr.mxu0 0.0
  %3607 = vmatpush1.xpose.msra.mxu0 0.0
  %3608 = vmatprep.mubr.f32.mxu0 0.0
  %3609 = vmatmul.mubr.f32.gmra.mrb[0].mxu0 %v3539
  %v3610 = vpop.f32.mrb[0].mxu0
  %v3611 = vadd.f32 0.0, %v3610
  %v3612 = vpop.f32.mrb[0].mxu0
  %3613 = vdwg.mxu0
  %v3615 = vsel %vm542, %v3255, 0
  %v3618 = vsel %vm542, %v3395, 0
  %3620 = vmatprep.subr.mxu0 0.0
  %3621 = vmatpush1.xpose.msra.mxu0 %v3618
  %3622 = vmatprep.subr.mxu0 0.0
  %3623 = vmatpush1.xpose.msra.mxu0 0.0
  %3624 = vmatprep.subr.mxu0 0.0
  %3625 = vmatpush1.xpose.msra.mxu0 0.0
  %3626 = vmatprep.subr.mxu0 0.0
  %3627 = vmatpush1.xpose.msra.mxu0 0.0
  %3628 = vmatprep.subr.mxu0 0.0
  %3629 = vmatpush1.xpose.msra.mxu0 0.0
  %3630 = vmatprep.subr.mxu0 0.0
  %3631 = vmatpush1.xpose.msra.mxu0 0.0
  %3632 = vmatprep.subr.mxu0 0.0
  %3633 = vmatpush1.xpose.msra.mxu0 0.0
  %3634 = vmatprep.subr.mxu0 0.0
  %3635 = vmatpush1.xpose.msra.mxu0 0.0
  %3636 = vmatprep.subr.mxu0 0.0
  %3637 = vmatpush1.xpose.msra.mxu0 0.0
  %3638 = vmatprep.subr.mxu0 0.0
  %3639 = vmatpush1.xpose.msra.mxu0 0.0
  %3640 = vmatprep.subr.mxu0 0.0
  %3641 = vmatpush1.xpose.msra.mxu0 0.0
  %3642 = vmatprep.subr.mxu0 0.0
  %3643 = vmatpush1.xpose.msra.mxu0 0.0
  %3644 = vmatprep.subr.mxu0 0.0
  %3645 = vmatpush1.xpose.msra.mxu0 0.0
  %3646 = vmatprep.subr.mxu0 0.0
  %3647 = vmatpush1.xpose.msra.mxu0 0.0
  %3648 = vmatprep.subr.mxu0 0.0
  %3649 = vmatpush1.xpose.msra.mxu0 0.0
  %3650 = vmatprep.subr.mxu0 0.0
  %3651 = vmatpush1.xpose.msra.mxu0 0.0
  %3652 = vmatprep.subr.mxu0 0.0
  %3653 = vmatpush1.xpose.msra.mxu0 0.0
  %3654 = vmatprep.subr.mxu0 0.0
  %3655 = vmatpush1.xpose.msra.mxu0 0.0
  %3656 = vmatprep.subr.mxu0 0.0
  %3657 = vmatpush1.xpose.msra.mxu0 0.0
  %3658 = vmatprep.subr.mxu0 0.0
  %3659 = vmatpush1.xpose.msra.mxu0 0.0
  %3660 = vmatprep.subr.mxu0 0.0
  %3661 = vmatpush1.xpose.msra.mxu0 0.0
  %3662 = vmatprep.subr.mxu0 0.0
  %3663 = vmatpush1.xpose.msra.mxu0 0.0
  %3664 = vmatprep.subr.mxu0 0.0
  %3665 = vmatpush1.xpose.msra.mxu0 0.0
  %3666 = vmatprep.subr.mxu0 0.0
  %3667 = vmatpush1.xpose.msra.mxu0 0.0
  %3668 = vmatprep.subr.mxu0 0.0
  %3669 = vmatpush1.xpose.msra.mxu0 0.0
  %3670 = vmatprep.subr.mxu0 0.0
  %3671 = vmatpush1.xpose.msra.mxu0 0.0
  %3672 = vmatprep.subr.mxu0 0.0
  %3673 = vmatpush1.xpose.msra.mxu0 0.0
  %3674 = vmatprep.subr.mxu0 0.0
  %3675 = vmatpush1.xpose.msra.mxu0 0.0
  %3676 = vmatprep.subr.mxu0 0.0
  %3677 = vmatpush1.xpose.msra.mxu0 0.0
  %3678 = vmatprep.subr.mxu0 0.0
  %3679 = vmatpush1.xpose.msra.mxu0 0.0
  %3680 = vmatprep.subr.mxu0 0.0
  %3681 = vmatpush1.xpose.msra.mxu0 0.0
  %3682 = vmatprep.subr.mxu0 0.0
  %3683 = vmatpush1.xpose.msra.mxu0 0.0
  %3684 = vmatprep.mubr.f32.mxu0 0.0
  %3685 = vmatmul.mubr.f32.gmra.mrb[0].mxu0 %v3615
  %v3686 = vpop.f32.mrb[0].mxu0
  %v3687 = vadd.f32 0.0, %v3686
  %v3688 = vpop.f32.mrb[0].mxu0
  %3689 = vdwg.mxu0
  %v3690 = vmul.f32 %v3611, 0.35355338
  %v3691 = vmul.f32 %v3687, 0.35355338
  %v3692 = vsel %vm697, %v3690, -inf
  %3693 = vmax.xlane.f32.xlu0 %v3692
  %v3694 = vpop.xlane.xlu0 %3693
  %v3695 = vsel %vm697, %v3691, -inf
  %3696 = vmax.xlane.f32.xlu0 %v3695
  %v3697 = vpop.xlane.xlu0 %3696
  %v3698 = vsub.f32 %v3690, %v3694
  %v3699 = vsub.f32 %v3691, %v3697
  %v3700 = vmul.f32 %v3698, 1.442695
  %v3701 = vpow.pop %v3700
  %v3702 = vmul.f32 %v3699, 1.442695
  %v3703 = vpow.pop %v3702
  %v3704 = vsel %vm697, %v3701, 0.0
  %3705 = vadd.xlane.f32.xlu0 %v3704
  %v3706 = vpop.xlane.xlu0 %3705
  %v3707 = vsel %vm697, %v3703, 0.0
  %3708 = vadd.xlane.f32.xlu0 %v3707
  %v3709 = vpop.xlane.xlu0 %3708
  %v3710 = vrcp.pop %v3706
  %v3711 = vmul.f32 %v3701, %v3710
  %v3712 = vrcp.pop %v3709
  %v3713 = vmul.f32 %v3703, %v3712
  %v3715 = vsel %vm720, %v3711, 0
  %v3718 = vsel %vm724, %v3465, 0
  %3720 = vmatprep.subr.mxu0 0.0
  %3721 = vmatpush1.msra.mxu0 %v3718
  %3722 = vmatprep.subr.mxu0 0.0
  %3723 = vmatpush1.msra.mxu0 0.0
  %3724 = vmatprep.subr.mxu0 0.0
  %3725 = vmatpush1.msra.mxu0 0.0
  %3726 = vmatprep.subr.mxu0 0.0
  %3727 = vmatpush1.msra.mxu0 0.0
  %3728 = vmatprep.subr.mxu0 0.0
  %3729 = vmatpush1.msra.mxu0 0.0
  %3730 = vmatprep.subr.mxu0 0.0
  %3731 = vmatpush1.msra.mxu0 0.0
  %3732 = vmatprep.subr.mxu0 0.0
  %3733 = vmatpush1.msra.mxu0 0.0
  %3734 = vmatprep.subr.mxu0 0.0
  %3735 = vmatpush1.msra.mxu0 0.0
  %3736 = vmatprep.subr.mxu0 0.0
  %3737 = vmatpush1.msra.mxu0 0.0
  %3738 = vmatprep.subr.mxu0 0.0
  %3739 = vmatpush1.msra.mxu0 0.0
  %3740 = vmatprep.subr.mxu0 0.0
  %3741 = vmatpush1.msra.mxu0 0.0
  %3742 = vmatprep.subr.mxu0 0.0
  %3743 = vmatpush1.msra.mxu0 0.0
  %3744 = vmatprep.subr.mxu0 0.0
  %3745 = vmatpush1.msra.mxu0 0.0
  %3746 = vmatprep.subr.mxu0 0.0
  %3747 = vmatpush1.msra.mxu0 0.0
  %3748 = vmatprep.subr.mxu0 0.0
  %3749 = vmatpush1.msra.mxu0 0.0
  %3750 = vmatprep.subr.mxu0 0.0
  %3751 = vmatpush1.msra.mxu0 0.0
  %3752 = vmatprep.subr.mxu0 0.0
  %3753 = vmatpush1.msra.mxu0 0.0
  %3754 = vmatprep.subr.mxu0 0.0
  %3755 = vmatpush1.msra.mxu0 0.0
  %3756 = vmatprep.subr.mxu0 0.0
  %3757 = vmatpush1.msra.mxu0 0.0
  %3758 = vmatprep.subr.mxu0 0.0
  %3759 = vmatpush1.msra.mxu0 0.0
  %3760 = vmatprep.subr.mxu0 0.0
  %3761 = vmatpush1.msra.mxu0 0.0
  %3762 = vmatprep.subr.mxu0 0.0
  %3763 = vmatpush1.msra.mxu0 0.0
  %3764 = vmatprep.subr.mxu0 0.0
  %3765 = vmatpush1.msra.mxu0 0.0
  %3766 = vmatprep.subr.mxu0 0.0
  %3767 = vmatpush1.msra.mxu0 0.0
  %3768 = vmatprep.subr.mxu0 0.0
  %3769 = vmatpush1.msra.mxu0 0.0
  %3770 = vmatprep.subr.mxu0 0.0
  %3771 = vmatpush1.msra.mxu0 0.0
  %3772 = vmatprep.subr.mxu0 0.0
  %3773 = vmatpush1.msra.mxu0 0.0
  %3774 = vmatprep.subr.mxu0 0.0
  %3775 = vmatpush1.msra.mxu0 0.0
  %3776 = vmatprep.subr.mxu0 0.0
  %3777 = vmatpush1.msra.mxu0 0.0
  %3778 = vmatprep.subr.mxu0 0.0
  %3779 = vmatpush1.msra.mxu0 0.0
  %3780 = vmatprep.subr.mxu0 0.0
  %3781 = vmatpush1.msra.mxu0 0.0
  %3782 = vmatprep.subr.mxu0 0.0
  %3783 = vmatpush1.msra.mxu0 0.0
  %3784 = vmatprep.mubr.f32.mxu0 0.0
  %3785 = vmatmul.mubr.f32.gmra.mrb[0].mxu0 %v3715
  %v3786 = vpop.f32.mrb[0].mxu0
  %v3787 = vadd.f32 0.0, %v3786
  %v3788 = vpop.f32.mrb[0].mxu0
  %3789 = vdwg.mxu0
  %v3791 = vsel %vm720, %v3713, 0
  %v3794 = vsel %vm724, %v3535, 0
  %3796 = vmatprep.subr.mxu0 0.0
  %3797 = vmatpush1.msra.mxu0 %v3794
  %3798 = vmatprep.subr.mxu0 0.0
  %3799 = vmatpush1.msra.mxu0 0.0
  %3800 = vmatprep.subr.mxu0 0.0
  %3801 = vmatpush1.msra.mxu0 0.0
  %3802 = vmatprep.subr.mxu0 0.0
  %3803 = vmatpush1.msra.mxu0 0.0
  %3804 = vmatprep.subr.mxu0 0.0
  %3805 = vmatpush1.msra.mxu0 0.0
  %3806 = vmatprep.subr.mxu0 0.0
  %3807 = vmatpush1.msra.mxu0 0.0
  %3808 = vmatprep.subr.mxu0 0.0
  %3809 = vmatpush1.msra.mxu0 0.0
  %3810 = vmatprep.subr.mxu0 0.0
  %3811 = vmatpush1.msra.mxu0 0.0
  %3812 = vmatprep.subr.mxu0 0.0
  %3813 = vmatpush1.msra.mxu0 0.0
  %3814 = vmatprep.subr.mxu0 0.0
  %3815 = vmatpush1.msra.mxu0 0.0
  %3816 = vmatprep.subr.mxu0 0.0
  %3817 = vmatpush1.msra.mxu0 0.0
  %3818 = vmatprep.subr.mxu0 0.0
  %3819 = vmatpush1.msra.mxu0 0.0
  %3820 = vmatprep.subr.mxu0 0.0
  %3821 = vmatpush1.msra.mxu0 0.0
  %3822 = vmatprep.subr.mxu0 0.0
  %3823 = vmatpush1.msra.mxu0 0.0
  %3824 = vmatprep.subr.mxu0 0.0
  %3825 = vmatpush1.msra.mxu0 0.0
  %3826 = vmatprep.subr.mxu0 0.0
  %3827 = vmatpush1.msra.mxu0 0.0
  %3828 = vmatprep.subr.mxu0 0.0
  %3829 = vmatpush1.msra.mxu0 0.0
  %3830 = vmatprep.subr.mxu0 0.0
  %3831 = vmatpush1.msra.mxu0 0.0
  %3832 = vmatprep.subr.mxu0 0.0
  %3833 = vmatpush1.msra.mxu0 0.0
  %3834 = vmatprep.subr.mxu0 0.0
  %3835 = vmatpush1.msra.mxu0 0.0
  %3836 = vmatprep.subr.mxu0 0.0
  %3837 = vmatpush1.msra.mxu0 0.0
  %3838 = vmatprep.subr.mxu0 0.0
  %3839 = vmatpush1.msra.mxu0 0.0
  %3840 = vmatprep.subr.mxu0 0.0
  %3841 = vmatpush1.msra.mxu0 0.0
  %3842 = vmatprep.subr.mxu0 0.0
  %3843 = vmatpush1.msra.mxu0 0.0
  %3844 = vmatprep.subr.mxu0 0.0
  %3845 = vmatpush1.msra.mxu0 0.0
  %3846 = vmatprep.subr.mxu0 0.0
  %3847 = vmatpush1.msra.mxu0 0.0
  %3848 = vmatprep.subr.mxu0 0.0
  %3849 = vmatpush1.msra.mxu0 0.0
  %3850 = vmatprep.subr.mxu0 0.0
  %3851 = vmatpush1.msra.mxu0 0.0
  %3852 = vmatprep.subr.mxu0 0.0
  %3853 = vmatpush1.msra.mxu0 0.0
  %3854 = vmatprep.subr.mxu0 0.0
  %3855 = vmatpush1.msra.mxu0 0.0
  %3856 = vmatprep.subr.mxu0 0.0
  %3857 = vmatpush1.msra.mxu0 0.0
  %3858 = vmatprep.subr.mxu0 0.0
  %3859 = vmatpush1.msra.mxu0 0.0
  %3860 = vmatprep.mubr.f32.mxu0 0.0
  %3861 = vmatmul.mubr.f32.gmra.mrb[0].mxu0 %v3791
  %v3862 = vpop.f32.mrb[0].mxu0
  %v3863 = vadd.f32 0.0, %v3862
  %v3864 = vpop.f32.mrb[0].mxu0
  %3865 = vdwg.mxu0
  %v3867 = vsel %vm542, %v3787, 0
  %3869 = vmatprep.subr.mxu0 0.0
  %3870 = vmatpush1.msra.mxu0 %v2363
  %3871 = vmatprep.subr.mxu0 0.0
  %3872 = vmatpush1.msra.mxu0 0.0
  %3873 = vmatprep.subr.mxu0 0.0
  %3874 = vmatpush1.msra.mxu0 0.0
  %3875 = vmatprep.subr.mxu0 0.0
  %3876 = vmatpush1.msra.mxu0 0.0
  %3877 = vmatprep.subr.mxu0 0.0
  %3878 = vmatpush1.msra.mxu0 0.0
  %3879 = vmatprep.subr.mxu0 0.0
  %3880 = vmatpush1.msra.mxu0 0.0
  %3881 = vmatprep.subr.mxu0 0.0
  %3882 = vmatpush1.msra.mxu0 0.0
  %3883 = vmatprep.subr.mxu0 0.0
  %3884 = vmatpush1.msra.mxu0 0.0
  %3885 = vmatprep.subr.mxu0 0.0
  %3886 = vmatpush1.msra.mxu0 0.0
  %3887 = vmatprep.subr.mxu0 0.0
  %3888 = vmatpush1.msra.mxu0 0.0
  %3889 = vmatprep.subr.mxu0 0.0
  %3890 = vmatpush1.msra.mxu0 0.0
  %3891 = vmatprep.subr.mxu0 0.0
  %3892 = vmatpush1.msra.mxu0 0.0
  %3893 = vmatprep.subr.mxu0 0.0
  %3894 = vmatpush1.msra.mxu0 0.0
  %3895 = vmatprep.subr.mxu0 0.0
  %3896 = vmatpush1.msra.mxu0 0.0
  %3897 = vmatprep.subr.mxu0 0.0
  %3898 = vmatpush1.msra.mxu0 0.0
  %3899 = vmatprep.subr.mxu0 0.0
  %3900 = vmatpush1.msra.mxu0 0.0
  %3901 = vmatprep.subr.mxu0 0.0
  %3902 = vmatpush1.msra.mxu0 0.0
  %3903 = vmatprep.subr.mxu0 0.0
  %3904 = vmatpush1.msra.mxu0 0.0
  %3905 = vmatprep.subr.mxu0 0.0
  %3906 = vmatpush1.msra.mxu0 0.0
  %3907 = vmatprep.subr.mxu0 0.0
  %3908 = vmatpush1.msra.mxu0 0.0
  %3909 = vmatprep.subr.mxu0 0.0
  %3910 = vmatpush1.msra.mxu0 0.0
  %3911 = vmatprep.subr.mxu0 0.0
  %3912 = vmatpush1.msra.mxu0 0.0
  %3913 = vmatprep.subr.mxu0 0.0
  %3914 = vmatpush1.msra.mxu0 0.0
  %3915 = vmatprep.subr.mxu0 0.0
  %3916 = vmatpush1.msra.mxu0 0.0
  %3917 = vmatprep.subr.mxu0 0.0
  %3918 = vmatpush1.msra.mxu0 0.0
  %3919 = vmatprep.subr.mxu0 0.0
  %3920 = vmatpush1.msra.mxu0 0.0
  %3921 = vmatprep.subr.mxu0 0.0
  %3922 = vmatpush1.msra.mxu0 0.0
  %3923 = vmatprep.subr.mxu0 0.0
  %3924 = vmatpush1.msra.mxu0 0.0
  %3925 = vmatprep.subr.mxu0 0.0
  %3926 = vmatpush1.msra.mxu0 0.0
  %3927 = vmatprep.subr.mxu0 0.0
  %3928 = vmatpush1.msra.mxu0 0.0
  %3929 = vmatprep.subr.mxu0 0.0
  %3930 = vmatpush1.msra.mxu0 0.0
  %3931 = vmatprep.subr.mxu0 0.0
  %3932 = vmatpush1.msra.mxu0 0.0
  %3933 = vmatprep.mubr.f32.mxu0 0.0
  %3934 = vmatmul.mubr.f32.gmra.mrb[0].mxu0 %v3867
  %v3935 = vpop.f32.mrb[0].mxu0
  %v3936 = vadd.f32 0.0, %v3935
  %v3937 = vpop.f32.mrb[0].mxu0
  %3938 = vdwg.mxu0
  %v3940 = vsel %vm542, %v3863, 0
  %3942 = vmatprep.subr.mxu0 0.0
  %3943 = vmatpush1.msra.mxu0 %v2363
  %3944 = vmatprep.subr.mxu0 0.0
  %3945 = vmatpush1.msra.mxu0 0.0
  %3946 = vmatprep.subr.mxu0 0.0
  %3947 = vmatpush1.msra.mxu0 0.0
  %3948 = vmatprep.subr.mxu0 0.0
  %3949 = vmatpush1.msra.mxu0 0.0
  %3950 = vmatprep.subr.mxu0 0.0
  %3951 = vmatpush1.msra.mxu0 0.0
  %3952 = vmatprep.subr.mxu0 0.0
  %3953 = vmatpush1.msra.mxu0 0.0
  %3954 = vmatprep.subr.mxu0 0.0
  %3955 = vmatpush1.msra.mxu0 0.0
  %3956 = vmatprep.subr.mxu0 0.0
  %3957 = vmatpush1.msra.mxu0 0.0
  %3958 = vmatprep.subr.mxu0 0.0
  %3959 = vmatpush1.msra.mxu0 0.0
  %3960 = vmatprep.subr.mxu0 0.0
  %3961 = vmatpush1.msra.mxu0 0.0
  %3962 = vmatprep.subr.mxu0 0.0
  %3963 = vmatpush1.msra.mxu0 0.0
  %3964 = vmatprep.subr.mxu0 0.0
  %3965 = vmatpush1.msra.mxu0 0.0
  %3966 = vmatprep.subr.mxu0 0.0
  %3967 = vmatpush1.msra.mxu0 0.0
  %3968 = vmatprep.subr.mxu0 0.0
  %3969 = vmatpush1.msra.mxu0 0.0
  %3970 = vmatprep.subr.mxu0 0.0
  %3971 = vmatpush1.msra.mxu0 0.0
  %3972 = vmatprep.subr.mxu0 0.0
  %3973 = vmatpush1.msra.mxu0 0.0
  %3974 = vmatprep.subr.mxu0 0.0
  %3975 = vmatpush1.msra.mxu0 0.0
  %3976 = vmatprep.subr.mxu0 0.0
  %3977 = vmatpush1.msra.mxu0 0.0
  %3978 = vmatprep.subr.mxu0 0.0
  %3979 = vmatpush1.msra.mxu0 0.0
  %3980 = vmatprep.subr.mxu0 0.0
  %3981 = vmatpush1.msra.mxu0 0.0
  %3982 = vmatprep.subr.mxu0 0.0
  %3983 = vmatpush1.msra.mxu0 0.0
  %3984 = vmatprep.subr.mxu0 0.0
  %3985 = vmatpush1.msra.mxu0 0.0
  %3986 = vmatprep.subr.mxu0 0.0
  %3987 = vmatpush1.msra.mxu0 0.0
  %3988 = vmatprep.subr.mxu0 0.0
  %3989 = vmatpush1.msra.mxu0 0.0
  %3990 = vmatprep.subr.mxu0 0.0
  %3991 = vmatpush1.msra.mxu0 0.0
  %3992 = vmatprep.subr.mxu0 0.0
  %3993 = vmatpush1.msra.mxu0 0.0
  %3994 = vmatprep.subr.mxu0 0.0
  %3995 = vmatpush1.msra.mxu0 0.0
  %3996 = vmatprep.subr.mxu0 0.0
  %3997 = vmatpush1.msra.mxu0 0.0
  %3998 = vmatprep.subr.mxu0 0.0
  %3999 = vmatpush1.msra.mxu0 0.0
  %4000 = vmatprep.subr.mxu0 0.0
  %4001 = vmatpush1.msra.mxu0 0.0
  %4002 = vmatprep.subr.mxu0 0.0
  %4003 = vmatpush1.msra.mxu0 0.0
  %4004 = vmatprep.subr.mxu0 0.0
  %4005 = vmatpush1.msra.mxu0 0.0
  %4006 = vmatprep.mubr.f32.mxu0 0.0
  %4007 = vmatmul.mubr.f32.gmra.mrb[0].mxu0 %v3940
  %v4008 = vpop.f32.mrb[0].mxu0
  %v4009 = vadd.f32 0.0, %v4008
  %v4010 = vpop.f32.mrb[0].mxu0
  %4011 = vdwg.mxu0
  %v4013 = vsel %vm542, %v3039, 0
  %4015 = vmatprep.subr.mxu0 0.0
  %4016 = vmatpush1.msra.mxu0 %v2362
  %4017 = vmatprep.subr.mxu0 0.0
  %4018 = vmatpush1.msra.mxu0 0.0
  %4019 = vmatprep.subr.mxu0 0.0
  %4020 = vmatpush1.msra.mxu0 0.0
  %4021 = vmatprep.subr.mxu0 0.0
  %4022 = vmatpush1.msra.mxu0 0.0
  %4023 = vmatprep.subr.mxu0 0.0
  %4024 = vmatpush1.msra.mxu0 0.0
  %4025 = vmatprep.subr.mxu0 0.0
  %4026 = vmatpush1.msra.mxu0 0.0
  %4027 = vmatprep.subr.mxu0 0.0
  %4028 = vmatpush1.msra.mxu0 0.0
  %4029 = vmatprep.subr.mxu0 0.0
  %4030 = vmatpush1.msra.mxu0 0.0
  %4031 = vmatprep.subr.mxu0 0.0
  %4032 = vmatpush1.msra.mxu0 0.0
  %4033 = vmatprep.subr.mxu0 0.0
  %4034 = vmatpush1.msra.mxu0 0.0
  %4035 = vmatprep.subr.mxu0 0.0
  %4036 = vmatpush1.msra.mxu0 0.0
  %4037 = vmatprep.subr.mxu0 0.0
  %4038 = vmatpush1.msra.mxu0 0.0
  %4039 = vmatprep.subr.mxu0 0.0
  %4040 = vmatpush1.msra.mxu0 0.0
  %4041 = vmatprep.subr.mxu0 0.0
  %4042 = vmatpush1.msra.mxu0 0.0
  %4043 = vmatprep.subr.mxu0 0.0
  %4044 = vmatpush1.msra.mxu0 0.0
  %4045 = vmatprep.subr.mxu0 0.0
  %4046 = vmatpush1.msra.mxu0 0.0
  %4047 = vmatprep.subr.mxu0 0.0
  %4048 = vmatpush1.msra.mxu0 0.0
  %4049 = vmatprep.subr.mxu0 0.0
  %4050 = vmatpush1.msra.mxu0 0.0
  %4051 = vmatprep.subr.mxu0 0.0
  %4052 = vmatpush1.msra.mxu0 0.0
  %4053 = vmatprep.subr.mxu0 0.0
  %4054 = vmatpush1.msra.mxu0 0.0
  %4055 = vmatprep.subr.mxu0 0.0
  %4056 = vmatpush1.msra.mxu0 0.0
  %4057 = vmatprep.subr.mxu0 0.0
  %4058 = vmatpush1.msra.mxu0 0.0
  %4059 = vmatprep.subr.mxu0 0.0
  %4060 = vmatpush1.msra.mxu0 0.0
  %4061 = vmatprep.subr.mxu0 0.0
  %4062 = vmatpush1.msra.mxu0 0.0
  %4063 = vmatprep.subr.mxu0 0.0
  %4064 = vmatpush1.msra.mxu0 0.0
  %4065 = vmatprep.subr.mxu0 0.0
  %4066 = vmatpush1.msra.mxu0 0.0
  %4067 = vmatprep.subr.mxu0 0.0
  %4068 = vmatpush1.msra.mxu0 0.0
  %4069 = vmatprep.subr.mxu0 0.0
  %4070 = vmatpush1.msra.mxu0 0.0
  %4071 = vmatprep.subr.mxu0 0.0
  %4072 = vmatpush1.msra.mxu0 0.0
  %4073 = vmatprep.subr.mxu0 0.0
  %4074 = vmatpush1.msra.mxu0 0.0
  %4075 = vmatprep.subr.mxu0 0.0
  %4076 = vmatpush1.msra.mxu0 0.0
  %4077 = vmatprep.subr.mxu0 0.0
  %4078 = vmatpush1.msra.mxu0 0.0
  %4079 = vmatprep.mubr.f32.mxu0 0.0
  %4080 = vmatmul.mubr.f32.gmra.mrb[0].mxu0 %v4013
  %v4081 = vpop.f32.mrb[0].mxu0
  %v4082 = vadd.f32 %v3936, %v4081
  %v4083 = vpop.f32.mrb[0].mxu0
  %4084 = vdwg.mxu0
  %v4086 = vsel %vm542, %v3115, 0
  %4088 = vmatprep.subr.mxu0 0.0
  %4089 = vmatpush1.msra.mxu0 %v2362
  %4090 = vmatprep.subr.mxu0 0.0
  %4091 = vmatpush1.msra.mxu0 0.0
  %4092 = vmatprep.subr.mxu0 0.0
  %4093 = vmatpush1.msra.mxu0 0.0
  %4094 = vmatprep.subr.mxu0 0.0
  %4095 = vmatpush1.msra.mxu0 0.0
  %4096 = vmatprep.subr.mxu0 0.0
  %4097 = vmatpush1.msra.mxu0 0.0
  %4098 = vmatprep.subr.mxu0 0.0
  %4099 = vmatpush1.msra.mxu0 0.0
  %4100 = vmatprep.subr.mxu0 0.0
  %4101 = vmatpush1.msra.mxu0 0.0
  %4102 = vmatprep.subr.mxu0 0.0
  %4103 = vmatpush1.msra.mxu0 0.0
  %4104 = vmatprep.subr.mxu0 0.0
  %4105 = vmatpush1.msra.mxu0 0.0
  %4106 = vmatprep.subr.mxu0 0.0
  %4107 = vmatpush1.msra.mxu0 0.0
  %4108 = vmatprep.subr.mxu0 0.0
  %4109 = vmatpush1.msra.mxu0 0.0
  %4110 = vmatprep.subr.mxu0 0.0
  %4111 = vmatpush1.msra.mxu0 0.0
  %4112 = vmatprep.subr.mxu0 0.0
  %4113 = vmatpush1.msra.mxu0 0.0
  %4114 = vmatprep.subr.mxu0 0.0
  %4115 = vmatpush1.msra.mxu0 0.0
  %4116 = vmatprep.subr.mxu0 0.0
  %4117 = vmatpush1.msra.mxu0 0.0
  %4118 = vmatprep.subr.mxu0 0.0
  %4119 = vmatpush1.msra.mxu0 0.0
  %4120 = vmatprep.subr.mxu0 0.0
  %4121 = vmatpush1.msra.mxu0 0.0
  %4122 = vmatprep.subr.mxu0 0.0
  %4123 = vmatpush1.msra.mxu0 0.0
  %4124 = vmatprep.subr.mxu0 0.0
  %4125 = vmatpush1.msra.mxu0 0.0
  %4126 = vmatprep.subr.mxu0 0.0
  %4127 = vmatpush1.msra.mxu0 0.0
  %4128 = vmatprep.subr.mxu0 0.0
  %4129 = vmatpush1.msra.mxu0 0.0
  %4130 = vmatprep.subr.mxu0 0.0
  %4131 = vmatpush1.msra.mxu0 0.0
  %4132 = vmatprep.subr.mxu0 0.0
  %4133 = vmatpush1.msra.mxu0 0.0
  %4134 = vmatprep.subr.mxu0 0.0
  %4135 = vmatpush1.msra.mxu0 0.0
  %4136 = vmatprep.subr.mxu0 0.0
  %4137 = vmatpush1.msra.mxu0 0.0
  %4138 = vmatprep.subr.mxu0 0.0
  %4139 = vmatpush1.msra.mxu0 0.0
  %4140 = vmatprep.subr.mxu0 0.0
  %4141 = vmatpush1.msra.mxu0 0.0
  %4142 = vmatprep.subr.mxu0 0.0
  %4143 = vmatpush1.msra.mxu0 0.0
  %4144 = vmatprep.subr.mxu0 0.0
  %4145 = vmatpush1.msra.mxu0 0.0
  %4146 = vmatprep.subr.mxu0 0.0
  %4147 = vmatpush1.msra.mxu0 0.0
  %4148 = vmatprep.subr.mxu0 0.0
  %4149 = vmatpush1.msra.mxu0 0.0
  %4150 = vmatprep.subr.mxu0 0.0
  %4151 = vmatpush1.msra.mxu0 0.0
  %4152 = vmatprep.mubr.f32.mxu0 0.0
  %4153 = vmatmul.mubr.f32.gmra.mrb[0].mxu0 %v4086
  %v4154 = vpop.f32.mrb[0].mxu0
  %v4155 = vadd.f32 %v4009, %v4154
  %v4156 = vpop.f32.mrb[0].mxu0
  %4157 = vdwg.mxu0
  %v4158 = vadd.f32 %v2298, %v4082
  %v4159 = vadd.f32 %v2299, %v4155
  %s4160 = scalar_lea.vmem %s7, 1
  %v4161 = vld [vmem:[%s4160] sm:$0x1]
  %v4163 = vlaneseq
  %v4164 = vshrl.u32 %v4163, 7
  %v4165 = vsub.s32 0, %v4164
  %v4166 = vrot.slane %v4161, %v4165
  %v4168 = vadd.f32 %v4158, %v4166
  %v4169 = vadd.f32 %v4159, %v4166
  %s4170 = scalar_lea.vmem %s8, 1
  %v4171 = vld [vmem:[%s4170] sm:$0x1]
  %s4172 = scalar_lea.vmem %s9, 1
  %v4173 = vld [vmem:[%s4172] sm:$0x1]
  %v4174 = vsel %vm57, %v4168, 0.0
  %4175 = vadd.xlane.f32.xlu0 %v4174
  %v4176 = vpop.xlane.xlu0 %4175
  %v4177 = vsel %vm57, %v4169, 0.0
  %4178 = vadd.xlane.f32.xlu0 %v4177
  %v4179 = vpop.xlane.xlu0 %4178
  %v4180 = vmul.f32 %v4176, %v64
  %v4181 = vmul.f32 %v4179, %v64
  %v4182 = vsub.f32 %v4168, %v4180
  %v4183 = vsub.f32 %v4169, %v4181
  %v4184 = vmul.f32 %v4182, %v4182
  %v4185 = vmul.f32 %v4183, %v4183
  %v4186 = vsel %vm57, %v4184, 0.0
  %4187 = vadd.xlane.f32.xlu0 %v4186
  %v4188 = vpop.xlane.xlu0 %4187
  %v4189 = vsel %vm57, %v4185, 0.0
  %4190 = vadd.xlane.f32.xlu0 %v4189
  %v4191 = vpop.xlane.xlu0 %4190
  %v4192 = vmul.f32 %v4188, %v64
  %v4193 = vmul.f32 %v4191, %v64
  %v4194 = vadd.f32 %v4192, 1e-05
  %v4195 = vadd.f32 %v4193, 1e-05
  %v4196 = vrsqrt.pop %v4194
  %v4197 = vrsqrt.pop %v4195
  %v4198 = vmul.f32 %v4182, %v4196
  %v4199 = vmul.f32 %v4183, %v4197
  %v4201 = vlaneseq
  %v4202 = vshrl.u32 %v4201, 7
  %v4203 = vsub.s32 0, %v4202
  %v4204 = vrot.slane %v4171, %v4203
  %v4206 = vmul.f32 %v4198, %v4204
  %v4207 = vmul.f32 %v4199, %v4204
  %v4209 = vlaneseq
  %v4210 = vshrl.u32 %v4209, 7
  %v4211 = vsub.s32 0, %v4210
  %v4212 = vrot.slane %v4173, %v4211
  %v4214 = vadd.f32 %v4206, %v4212
  %v4215 = vadd.f32 %v4207, %v4212
  %s4216 = scalar_lea.vmem %s10, 16
  %v4217 = vld [vmem:[%s4216] sm:$0xff]
  %v4218 = vld [vmem:[%s4216 + $0x8] sm:$0xff]
  %s4219 = scalar_lea.vmem %s11, 1
  %v4220 = vld [vmem:[%s4219] sm:$0x1]
  %v4222 = vlaneseq
  %v4223 = vshrl.u32 %v4222, 7
  %v4224 = vsub.s32 0, %v4223
  %v4225 = vrot.slane %v4220, %v4224
  %v4228 = vsel %vm115, %v4214, 0
  %4230 = vmatprep.subr.mxu0 0.0
  %4231 = vmatpush1.msra.mxu0 %v4217
  %4232 = vmatprep.subr.mxu0 0.0
  %4233 = vmatpush1.msra.mxu0 %v4218
  %4234 = vmatprep.subr.mxu0 0.0
  %4235 = vmatpush1.msra.mxu0 0.0
  %4236 = vmatprep.subr.mxu0 0.0
  %4237 = vmatpush1.msra.mxu0 0.0
  %4238 = vmatprep.subr.mxu0 0.0
  %4239 = vmatpush1.msra.mxu0 0.0
  %4240 = vmatprep.subr.mxu0 0.0
  %4241 = vmatpush1.msra.mxu0 0.0
  %4242 = vmatprep.subr.mxu0 0.0
  %4243 = vmatpush1.msra.mxu0 0.0
  %4244 = vmatprep.subr.mxu0 0.0
  %4245 = vmatpush1.msra.mxu0 0.0
  %4246 = vmatprep.subr.mxu0 0.0
  %4247 = vmatpush1.msra.mxu0 0.0
  %4248 = vmatprep.subr.mxu0 0.0
  %4249 = vmatpush1.msra.mxu0 0.0
  %4250 = vmatprep.subr.mxu0 0.0
  %4251 = vmatpush1.msra.mxu0 0.0
  %4252 = vmatprep.subr.mxu0 0.0
  %4253 = vmatpush1.msra.mxu0 0.0
  %4254 = vmatprep.subr.mxu0 0.0
  %4255 = vmatpush1.msra.mxu0 0.0
  %4256 = vmatprep.subr.mxu0 0.0
  %4257 = vmatpush1.msra.mxu0 0.0
  %4258 = vmatprep.subr.mxu0 0.0
  %4259 = vmatpush1.msra.mxu0 0.0
  %4260 = vmatprep.subr.mxu0 0.0
  %4261 = vmatpush1.msra.mxu0 0.0
  %4262 = vmatprep.subr.mxu0 0.0
  %4263 = vmatpush1.msra.mxu0 0.0
  %4264 = vmatprep.subr.mxu0 0.0
  %4265 = vmatpush1.msra.mxu0 0.0
  %4266 = vmatprep.subr.mxu0 0.0
  %4267 = vmatpush1.msra.mxu0 0.0
  %4268 = vmatprep.subr.mxu0 0.0
  %4269 = vmatpush1.msra.mxu0 0.0
  %4270 = vmatprep.subr.mxu0 0.0
  %4271 = vmatpush1.msra.mxu0 0.0
  %4272 = vmatprep.subr.mxu0 0.0
  %4273 = vmatpush1.msra.mxu0 0.0
  %4274 = vmatprep.subr.mxu0 0.0
  %4275 = vmatpush1.msra.mxu0 0.0
  %4276 = vmatprep.subr.mxu0 0.0
  %4277 = vmatpush1.msra.mxu0 0.0
  %4278 = vmatprep.subr.mxu0 0.0
  %4279 = vmatpush1.msra.mxu0 0.0
  %4280 = vmatprep.subr.mxu0 0.0
  %4281 = vmatpush1.msra.mxu0 0.0
  %4282 = vmatprep.subr.mxu0 0.0
  %4283 = vmatpush1.msra.mxu0 0.0
  %4284 = vmatprep.subr.mxu0 0.0
  %4285 = vmatpush1.msra.mxu0 0.0
  %4286 = vmatprep.subr.mxu0 0.0
  %4287 = vmatpush1.msra.mxu0 0.0
  %4288 = vmatprep.subr.mxu0 0.0
  %4289 = vmatpush1.msra.mxu0 0.0
  %4290 = vmatprep.subr.mxu0 0.0
  %4291 = vmatpush1.msra.mxu0 0.0
  %4292 = vmatprep.subr.mxu0 0.0
  %4293 = vmatpush1.msra.mxu0 0.0
  %4294 = vmatprep.mubr.f32.mxu0 0.0
  %4295 = vmatmul.mubr.f32.gmra.mrb[0].mxu0 %v4228
  %v4296 = vpop.f32.mrb[0].mxu0
  %v4297 = vadd.f32 %v4225, %v4296
  %v4298 = vpop.f32.mrb[0].mxu0
  %4299 = vdwg.mxu0
  %v4301 = vsel %vm115, %v4215, 0
  %4303 = vmatprep.subr.mxu0 0.0
  %4304 = vmatpush1.msra.mxu0 %v4217
  %4305 = vmatprep.subr.mxu0 0.0
  %4306 = vmatpush1.msra.mxu0 %v4218
  %4307 = vmatprep.subr.mxu0 0.0
  %4308 = vmatpush1.msra.mxu0 0.0
  %4309 = vmatprep.subr.mxu0 0.0
  %4310 = vmatpush1.msra.mxu0 0.0
  %4311 = vmatprep.subr.mxu0 0.0
  %4312 = vmatpush1.msra.mxu0 0.0
  %4313 = vmatprep.subr.mxu0 0.0
  %4314 = vmatpush1.msra.mxu0 0.0
  %4315 = vmatprep.subr.mxu0 0.0
  %4316 = vmatpush1.msra.mxu0 0.0
  %4317 = vmatprep.subr.mxu0 0.0
  %4318 = vmatpush1.msra.mxu0 0.0
  %4319 = vmatprep.subr.mxu0 0.0
  %4320 = vmatpush1.msra.mxu0 0.0
  %4321 = vmatprep.subr.mxu0 0.0
  %4322 = vmatpush1.msra.mxu0 0.0
  %4323 = vmatprep.subr.mxu0 0.0
  %4324 = vmatpush1.msra.mxu0 0.0
  %4325 = vmatprep.subr.mxu0 0.0
  %4326 = vmatpush1.msra.mxu0 0.0
  %4327 = vmatprep.subr.mxu0 0.0
  %4328 = vmatpush1.msra.mxu0 0.0
  %4329 = vmatprep.subr.mxu0 0.0
  %4330 = vmatpush1.msra.mxu0 0.0
  %4331 = vmatprep.subr.mxu0 0.0
  %4332 = vmatpush1.msra.mxu0 0.0
  %4333 = vmatprep.subr.mxu0 0.0
  %4334 = vmatpush1.msra.mxu0 0.0
  %4335 = vmatprep.subr.mxu0 0.0
  %4336 = vmatpush1.msra.mxu0 0.0
  %4337 = vmatprep.subr.mxu0 0.0
  %4338 = vmatpush1.msra.mxu0 0.0
  %4339 = vmatprep.subr.mxu0 0.0
  %4340 = vmatpush1.msra.mxu0 0.0
  %4341 = vmatprep.subr.mxu0 0.0
  %4342 = vmatpush1.msra.mxu0 0.0
  %4343 = vmatprep.subr.mxu0 0.0
  %4344 = vmatpush1.msra.mxu0 0.0
  %4345 = vmatprep.subr.mxu0 0.0
  %4346 = vmatpush1.msra.mxu0 0.0
  %4347 = vmatprep.subr.mxu0 0.0
  %4348 = vmatpush1.msra.mxu0 0.0
  %4349 = vmatprep.subr.mxu0 0.0
  %4350 = vmatpush1.msra.mxu0 0.0
  %4351 = vmatprep.subr.mxu0 0.0
  %4352 = vmatpush1.msra.mxu0 0.0
  %4353 = vmatprep.subr.mxu0 0.0
  %4354 = vmatpush1.msra.mxu0 0.0
  %4355 = vmatprep.subr.mxu0 0.0
  %4356 = vmatpush1.msra.mxu0 0.0
  %4357 = vmatprep.subr.mxu0 0.0
  %4358 = vmatpush1.msra.mxu0 0.0
  %4359 = vmatprep.subr.mxu0 0.0
  %4360 = vmatpush1.msra.mxu0 0.0
  %4361 = vmatprep.subr.mxu0 0.0
  %4362 = vmatpush1.msra.mxu0 0.0
  %4363 = vmatprep.subr.mxu0 0.0
  %4364 = vmatpush1.msra.mxu0 0.0
  %4365 = vmatprep.subr.mxu0 0.0
  %4366 = vmatpush1.msra.mxu0 0.0
  %4367 = vmatprep.mubr.f32.mxu0 0.0
  %4368 = vmatmul.mubr.f32.gmra.mrb[0].mxu0 %v4301
  %v4369 = vpop.f32.mrb[0].mxu0
  %v4370 = vadd.f32 %v4225, %v4369
  %v4371 = vpop.f32.mrb[0].mxu0
  %4372 = vdwg.mxu0
  %v4373 = vmul.f32 %v4297, 0.5
  %v4374 = vmul.f32 %v4370, 0.5
  %v4375 = vmul.f32 %v4297, 0.70710677
  %v4376 = vmul.f32 %v4370, 0.70710677
  %v4377 = verf.f32.pop %v4375
  %v4378 = verf.f32.pop %v4376
  %v4379 = vadd.f32 %v4377, 1.0
  %v4380 = vadd.f32 %v4378, 1.0
  %v4381 = vmul.f32 %v4373, %v4379
  %v4382 = vmul.f32 %v4374, %v4380
  %s4383 = scalar_lea.vmem %s12, 64
  %v4384 = vld [vmem:[%s4383] sm:$0xff]
  %v4385 = vld [vmem:[%s4383 + $0x8] sm:$0xff]
  %v4386 = vld [vmem:[%s4383 + $0x10] sm:$0xff]
  %v4387 = vld [vmem:[%s4383 + $0x18] sm:$0xff]
  %v4388 = vld [vmem:[%s4383 + $0x20] sm:$0xff]
  %v4389 = vld [vmem:[%s4383 + $0x28] sm:$0xff]
  %v4390 = vld [vmem:[%s4383 + $0x30] sm:$0xff]
  %v4391 = vld [vmem:[%s4383 + $0x38] sm:$0xff]
  %v4393 = vsel %vm2142, %v4381, 0
  %4395 = vmatprep.subr.mxu0 0.0
  %4396 = vmatpush1.msra.mxu0 %v4384
  %4397 = vmatprep.subr.mxu0 0.0
  %4398 = vmatpush1.msra.mxu0 %v4385
  %4399 = vmatprep.subr.mxu0 0.0
  %4400 = vmatpush1.msra.mxu0 %v4386
  %4401 = vmatprep.subr.mxu0 0.0
  %4402 = vmatpush1.msra.mxu0 %v4387
  %4403 = vmatprep.subr.mxu0 0.0
  %4404 = vmatpush1.msra.mxu0 %v4388
  %4405 = vmatprep.subr.mxu0 0.0
  %4406 = vmatpush1.msra.mxu0 %v4389
  %4407 = vmatprep.subr.mxu0 0.0
  %4408 = vmatpush1.msra.mxu0 %v4390
  %4409 = vmatprep.subr.mxu0 0.0
  %4410 = vmatpush1.msra.mxu0 %v4391
  %4411 = vmatprep.subr.mxu0 0.0
  %4412 = vmatpush1.msra.mxu0 0.0
  %4413 = vmatprep.subr.mxu0 0.0
  %4414 = vmatpush1.msra.mxu0 0.0
  %4415 = vmatprep.subr.mxu0 0.0
  %4416 = vmatpush1.msra.mxu0 0.0
  %4417 = vmatprep.subr.mxu0 0.0
  %4418 = vmatpush1.msra.mxu0 0.0
  %4419 = vmatprep.subr.mxu0 0.0
  %4420 = vmatpush1.msra.mxu0 0.0
  %4421 = vmatprep.subr.mxu0 0.0
  %4422 = vmatpush1.msra.mxu0 0.0
  %4423 = vmatprep.subr.mxu0 0.0
  %4424 = vmatpush1.msra.mxu0 0.0
  %4425 = vmatprep.subr.mxu0 0.0
  %4426 = vmatpush1.msra.mxu0 0.0
  %4427 = vmatprep.subr.mxu0 0.0
  %4428 = vmatpush1.msra.mxu0 0.0
  %4429 = vmatprep.subr.mxu0 0.0
  %4430 = vmatpush1.msra.mxu0 0.0
  %4431 = vmatprep.subr.mxu0 0.0
  %4432 = vmatpush1.msra.mxu0 0.0
  %4433 = vmatprep.subr.mxu0 0.0
  %4434 = vmatpush1.msra.mxu0 0.0
  %4435 = vmatprep.subr.mxu0 0.0
  %4436 = vmatpush1.msra.mxu0 0.0
  %4437 = vmatprep.subr.mxu0 0.0
  %4438 = vmatpush1.msra.mxu0 0.0
  %4439 = vmatprep.subr.mxu0 0.0
  %4440 = vmatpush1.msra.mxu0 0.0
  %4441 = vmatprep.subr.mxu0 0.0
  %4442 = vmatpush1.msra.mxu0 0.0
  %4443 = vmatprep.subr.mxu0 0.0
  %4444 = vmatpush1.msra.mxu0 0.0
  %4445 = vmatprep.subr.mxu0 0.0
  %4446 = vmatpush1.msra.mxu0 0.0
  %4447 = vmatprep.subr.mxu0 0.0
  %4448 = vmatpush1.msra.mxu0 0.0
  %4449 = vmatprep.subr.mxu0 0.0
  %4450 = vmatpush1.msra.mxu0 0.0
  %4451 = vmatprep.subr.mxu0 0.0
  %4452 = vmatpush1.msra.mxu0 0.0
  %4453 = vmatprep.subr.mxu0 0.0
  %4454 = vmatpush1.msra.mxu0 0.0
  %4455 = vmatprep.subr.mxu0 0.0
  %4456 = vmatpush1.msra.mxu0 0.0
  %4457 = vmatprep.subr.mxu0 0.0
  %4458 = vmatpush1.msra.mxu0 0.0
  %4459 = vmatprep.mubr.f32.mxu0 0.0
  %4460 = vmatmul.mubr.f32.gmra.mrb[0].mxu0 %v4393
  %v4461 = vpop.f32.mrb[0].mxu0
  %v4462 = vadd.f32 0.0, %v4461
  %v4463 = vpop.f32.mrb[0].mxu0
  %4464 = vdwg.mxu0
  %v4466 = vsel %vm2142, %v4382, 0
  %4468 = vmatprep.subr.mxu0 0.0
  %4469 = vmatpush1.msra.mxu0 %v4384
  %4470 = vmatprep.subr.mxu0 0.0
  %4471 = vmatpush1.msra.mxu0 %v4385
  %4472 = vmatprep.subr.mxu0 0.0
  %4473 = vmatpush1.msra.mxu0 %v4386
  %4474 = vmatprep.subr.mxu0 0.0
  %4475 = vmatpush1.msra.mxu0 %v4387
  %4476 = vmatprep.subr.mxu0 0.0
  %4477 = vmatpush1.msra.mxu0 %v4388
  %4478 = vmatprep.subr.mxu0 0.0
  %4479 = vmatpush1.msra.mxu0 %v4389
  %4480 = vmatprep.subr.mxu0 0.0
  %4481 = vmatpush1.msra.mxu0 %v4390
  %4482 = vmatprep.subr.mxu0 0.0
  %4483 = vmatpush1.msra.mxu0 %v4391
  %4484 = vmatprep.subr.mxu0 0.0
  %4485 = vmatpush1.msra.mxu0 0.0
  %4486 = vmatprep.subr.mxu0 0.0
  %4487 = vmatpush1.msra.mxu0 0.0
  %4488 = vmatprep.subr.mxu0 0.0
  %4489 = vmatpush1.msra.mxu0 0.0
  %4490 = vmatprep.subr.mxu0 0.0
  %4491 = vmatpush1.msra.mxu0 0.0
  %4492 = vmatprep.subr.mxu0 0.0
  %4493 = vmatpush1.msra.mxu0 0.0
  %4494 = vmatprep.subr.mxu0 0.0
  %4495 = vmatpush1.msra.mxu0 0.0
  %4496 = vmatprep.subr.mxu0 0.0
  %4497 = vmatpush1.msra.mxu0 0.0
  %4498 = vmatprep.subr.mxu0 0.0
  %4499 = vmatpush1.msra.mxu0 0.0
  %4500 = vmatprep.subr.mxu0 0.0
  %4501 = vmatpush1.msra.mxu0 0.0
  %4502 = vmatprep.subr.mxu0 0.0
  %4503 = vmatpush1.msra.mxu0 0.0
  %4504 = vmatprep.subr.mxu0 0.0
  %4505 = vmatpush1.msra.mxu0 0.0
  %4506 = vmatprep.subr.mxu0 0.0
  %4507 = vmatpush1.msra.mxu0 0.0
  %4508 = vmatprep.subr.mxu0 0.0
  %4509 = vmatpush1.msra.mxu0 0.0
  %4510 = vmatprep.subr.mxu0 0.0
  %4511 = vmatpush1.msra.mxu0 0.0
  %4512 = vmatprep.subr.mxu0 0.0
  %4513 = vmatpush1.msra.mxu0 0.0
  %4514 = vmatprep.subr.mxu0 0.0
  %4515 = vmatpush1.msra.mxu0 0.0
  %4516 = vmatprep.subr.mxu0 0.0
  %4517 = vmatpush1.msra.mxu0 0.0
  %4518 = vmatprep.subr.mxu0 0.0
  %4519 = vmatpush1.msra.mxu0 0.0
  %4520 = vmatprep.subr.mxu0 0.0
  %4521 = vmatpush1.msra.mxu0 0.0
  %4522 = vmatprep.subr.mxu0 0.0
  %4523 = vmatpush1.msra.mxu0 0.0
  %4524 = vmatprep.subr.mxu0 0.0
  %4525 = vmatpush1.msra.mxu0 0.0
  %4526 = vmatprep.subr.mxu0 0.0
  %4527 = vmatpush1.msra.mxu0 0.0
  %4528 = vmatprep.subr.mxu0 0.0
  %4529 = vmatpush1.msra.mxu0 0.0
  %4530 = vmatprep.subr.mxu0 0.0
  %4531 = vmatpush1.msra.mxu0 0.0
  %4532 = vmatprep.mubr.f32.mxu0 0.0
  %4533 = vmatmul.mubr.f32.gmra.mrb[0].mxu0 %v4466
  %v4534 = vpop.f32.mrb[0].mxu0
  %v4535 = vadd.f32 0.0, %v4534
  %v4536 = vpop.f32.mrb[0].mxu0
  %4537 = vdwg.mxu0
  %v4538 = vadd.f32 %v4168, %v4462
  %v4539 = vadd.f32 %v4169, %v4535
  %s4540 = scalar_lea.vmem %s13, 1
  %v4541 = vld [vmem:[%s4540] sm:$0x1]
  %v4543 = vlaneseq
  %v4544 = vshrl.u32 %v4543, 7
  %v4545 = vsub.s32 0, %v4544
  %v4546 = vrot.slane %v4541, %v4545
  %v4548 = vadd.f32 %v4538, %v4546
  %v4549 = vadd.f32 %v4539, %v4546
  %v4550 = vld [vmem:[%s14] sm:$0x1]
  %v4551 = vld [vmem:[%s15] sm:$0x1]
  %v4552 = vsel %vm57, %v4548, 0.0
  %4553 = vadd.xlane.f32.xlu0 %v4552
  %v4554 = vpop.xlane.xlu0 %4553
  %v4555 = vsel %vm57, %v4549, 0.0
  %4556 = vadd.xlane.f32.xlu0 %v4555
  %v4557 = vpop.xlane.xlu0 %4556
  %v4558 = vmul.f32 %v4554, %v64
  %v4559 = vmul.f32 %v4557, %v64
  %v4560 = vsub.f32 %v4548, %v4558
  %v4561 = vsub.f32 %v4549, %v4559
  %v4562 = vmul.f32 %v4560, %v4560
  %v4563 = vmul.f32 %v4561, %v4561
  %v4564 = vsel %vm57, %v4562, 0.0
  %4565 = vadd.xlane.f32.xlu0 %v4564
  %v4566 = vpop.xlane.xlu0 %4565
  %v4567 = vsel %vm57, %v4563, 0.0
  %4568 = vadd.xlane.f32.xlu0 %v4567
  %v4569 = vpop.xlane.xlu0 %4568
  %v4570 = vmul.f32 %v4566, %v64
  %v4571 = vmul.f32 %v4569, %v64
  %v4572 = vadd.f32 %v4570, 1e-05
  %v4573 = vadd.f32 %v4571, 1e-05
  %v4574 = vrsqrt.pop %v4572
  %v4575 = vrsqrt.pop %v4573
  %v4576 = vmul.f32 %v4560, %v4574
  %v4577 = vmul.f32 %v4561, %v4575
  %v4579 = vlaneseq
  %v4580 = vshrl.u32 %v4579, 7
  %v4581 = vsub.s32 0, %v4580
  %v4582 = vrot.slane %v4550, %v4581
  %v4584 = vmul.f32 %v4576, %v4582
  %v4585 = vmul.f32 %v4577, %v4582
  %v4587 = vlaneseq
  %v4588 = vshrl.u32 %v4587, 7
  %v4589 = vsub.s32 0, %v4588
  %v4590 = vrot.slane %v4551, %v4589
  %v4592 = vadd.f32 %v4584, %v4590
  %v4593 = vadd.f32 %v4585, %v4590
  %4594 = vst.msk [vmem:[%s16] sm:$0x7] %vm57, %v4592
  %4595 = vst.msk [vmem:[%s16 + $0x4] sm:$0x7] %vm57, %v4593
  // Predicated region
  $region66: #{_lambda_.3} parent=0 // pred_check
    _
  $region67: #{_lambda_.3} parent=0 // pred_check_branch
    %4597 = sbr.rel (0) target = $region69
  $region68: #{_lambda_.3} parent=0 // pred_region
    _
  $region69: #{_lambda_.3} parent=0 // pred_fallthru
    _
  // Predicated region
  $region70: #{_lambda_.3} parent=0 // pred_check
    _
  $region71: #{_lambda_.3} parent=0 // pred_check_branch
    %4599 = sbr.rel (0) target = $region73
  $region72: #{_lambda_.3} parent=0 // pred_region
    _
  $region73: #{_lambda_.3} parent=0 // pred_fallthru
    _

// kernel: _lambda_.2
$region0: #{_lambda_.2}
  #allocation0 [shape = 'u32[]', space=smem, size = 0x4, offset = 0x4, fixed_abs, tag = 'smem constant byte address 0x4 - core index']
  #allocation1 [shape = 'u32[144,128]{1,0:T(1,128)}', space=vmem, size = 0x12000, scoped, tag = 'internal scratch']
  %s0 = inlined_call_operand.vmem [shape: f32[4,5,16], index: 0, kind: input, shape index: {}]
  %s1 = inlined_call_operand.vmem [shape: f32[2,1,16], index: 1, kind: input, shape index: {}]
  %s2 = inlined_call_operand.vmem [shape: f32[2,1,16], index: 2, kind: input, shape index: {}]
  %s3 = inlined_call_operand.vmem [shape: f32[2,2,16,8], index: 3, kind: input, shape index: {}]
  %s4 = inlined_call_operand.vmem [shape: f32[2,2,16,8], index: 4, kind: input, shape index: {}]
  %s5 = inlined_call_operand.vmem [shape: f32[2,2,16,8], index: 5, kind: input, shape index: {}]
  %s6 = inlined_call_operand.vmem [shape: f32[2,2,8,16], index: 6, kind: input, shape index: {}]
  %s7 = inlined_call_operand.vmem [shape: f32[2,1,16], index: 7, kind: input, shape index: {}]
  %s8 = inlined_call_operand.vmem [shape: f32[2,1,16], index: 8, kind: input, shape index: {}]
  %s9 = inlined_call_operand.vmem [shape: f32[2,1,16], index: 9, kind: input, shape index: {}]
  %s10 = inlined_call_operand.vmem [shape: f32[2,16,64], index: 10, kind: input, shape index: {}]
  %s11 = inlined_call_operand.vmem [shape: f32[2,1,64], index: 11, kind: input, shape index: {}]
  %s12 = inlined_call_operand.vmem [shape: f32[2,64,16], index: 12, kind: input, shape index: {}]
  %s13 = inlined_call_operand.vmem [shape: f32[2,1,16], index: 13, kind: input, shape index: {}]
  %s14 = inlined_call_operand.vmem [shape: f32[1,16], index: 14, kind: input, shape index: {}]
  %s15 = inlined_call_operand.vmem [shape: f32[1,16], index: 15, kind: input, shape index: {}]
  %s16 = inlined_call_operand.vmem [shape: f32[4,5,16], index: 16, kind: output, shape index: {}]
  %s17 = sld [smem:[#allocation0]]
  $region97: #{_lambda_.2} parent=0
    _
  %s19 = ssub.s32 1, %s17
  %s20 = scalar_select 0, %s19, %s17
  loop: start=0, step=1, limit=4
  $region2: #{_lambda_.2} parent=0 // loop_pre_header
    _
  $region3: #{_lambda_.2} parent=0 // loop_header
    %s22 = sphi 0, %s26
    %p23 = scmp.ge.s32.totalorder %s22, 4
    %s32 = sphi 0, %s34
    %s35 = sphi 0, %s32
    %s36 = sphi 0, %s35
    %s52 = sphi 0, %s36
    %s56 = sphi 0, %s56
    %s58 = sphi 0, %s56
    %s59 = sphi 0, %s58
    %s73 = sphi 0, %s59
    %s77 = sphi 0, %s77
    %s79 = sphi 0, %s77
    %s80 = sphi 0, %s79
    %s94 = sphi 0, %s80
    %s98 = sphi 0, %s98
    %s100 = sphi 0, %s98
    %s101 = sphi 0, %s100
    %s115 = sphi 0, %s101
    %s119 = sphi 0, %s119
    %s121 = sphi 0, %s119
    %s122 = sphi 0, %s121
    %s136 = sphi 0, %s122
    %s140 = sphi 0, %s140
    %s142 = sphi 0, %s140
    %s143 = sphi 0, %s142
    %s157 = sphi 0, %s143
    %s161 = sphi 0, %s161
    %s163 = sphi 0, %s161
    %s164 = sphi 0, %s163
    %s178 = sphi 0, %s164
    %s182 = sphi 0, %s182
    %s184 = sphi 0, %s182
    %s185 = sphi 0, %s184
    %s199 = sphi 0, %s185
    %s203 = sphi 0, %s203
    %s205 = sphi 0, %s203
    %s206 = sphi 0, %s205
    %s220 = sphi 0, %s206
    %s224 = sphi 0, %s224
    %s226 = sphi 0, %s224
    %s227 = sphi 0, %s226
    %s241 = sphi 0, %s227
    %s245 = sphi 0, %s245
    %s247 = sphi 0, %s245
    %s248 = sphi 0, %s247
    %s262 = sphi 0, %s248
    %s266 = sphi 0, %s266
    %s268 = sphi 0, %s266
    %s269 = sphi 0, %s268
    %s283 = sphi 0, %s269
    %s287 = sphi 0, %s287
    %s289 = sphi 0, %s287
    %s290 = sphi 0, %s289
    %s304 = sphi 0, %s290
    %s308 = sphi 0, %s308
    %s310 = sphi 0, %s308
    %s311 = sphi 0, %s310
    %s325 = sphi 0, %s311
    %s329 = sphi 0, %s329
    %s331 = sphi 0, %s329
    %s332 = sphi 0, %s331
    %s346 = sphi 0, %s332
    %s350 = sphi 0, %s350
    %s352 = sphi 0, %s350
    %s353 = sphi 0, %s352
    %s367 = sphi 0, %s353
    %s373 = sphi 0, %s375
    %s376 = sphi 0, %s373
    %s377 = sphi 0, %s376
    %s393 = sphi 0, %s377
  $region4: #{_lambda_.2} parent=0 // loop_header_branch
    %25 = sbr.rel (%p23) target = $region8
  $region5: #{_lambda_.2} parent=0 // loop_body
    %s27 = ssub.s32 %s22, 1
    %s28 = ssub.s32 %s22, 2
    %s29 = sadd.s32 %s22, 1
    %s30 = ssub.s32 %s22, %s29
    %p31 = scmp.eq.s32.totalorder %s30, 0
    %s33 = sadd.s32 %s32, 1
    %s34 = scalar_select %p31, %s32, %s33
    %p37 = pneg %p31
    %p38 = scmp.eq.s32.totalorder %s22, 1
    %p39 = por %p37, %p38
    %p40 = scmp.ne.s32.totalorder %s32, %s35
    %p41 = scmp.eq.s32.totalorder %s22, 0
    %p42 = por %p40, %p41
    %p43 = scmp.ne.s32.totalorder %s32, %s35
    %p44 = scmp.eq.s32.totalorder %s27, 1
    %p45 = por %p43, %p44
    %p46 = scmp.ne.s32.totalorder %s35, %s36
    %p47 = scmp.eq.s32.totalorder %s27, 0
    %p48 = por %p46, %p47
    %p49 = scmp.ne.s32.totalorder %s35, %s36
    %p50 = scmp.eq.s32.totalorder %s28, 1
    %p51 = por %p49, %p50
    %p53 = scmp.ne.s32.totalorder %s36, %s52
    %p54 = scmp.eq.s32.totalorder %s28, 0
    %p55 = por %p53, %p54
    %s57 = sadd.s32 %s56, 1
    %p60 = scmp.eq.s32.totalorder %s22, 1
    %p61 = scmp.ne.s32.totalorder %s56, %s58
    %p62 = scmp.eq.s32.totalorder %s22, 0
    %p63 = por %p61, %p62
    %p64 = scmp.ne.s32.totalorder %s56, %s58
    %p65 = scmp.eq.s32.totalorder %s27, 1
    %p66 = por %p64, %p65
    %p67 = scmp.ne.s32.totalorder %s58, %s59
    %p68 = scmp.eq.s32.totalorder %s27, 0
    %p69 = por %p67, %p68
    %p70 = scmp.ne.s32.totalorder %s58, %s59
    %p71 = scmp.eq.s32.totalorder %s28, 1
    %p72 = por %p70, %p71
    %p74 = scmp.ne.s32.totalorder %s59, %s73
    %p75 = scmp.eq.s32.totalorder %s28, 0
    %p76 = por %p74, %p75
    %s78 = sadd.s32 %s77, 1
    %p81 = scmp.eq.s32.totalorder %s22, 1
    %p82 = scmp.ne.s32.totalorder %s77, %s79
    %p83 = scmp.eq.s32.totalorder %s22, 0
    %p84 = por %p82, %p83
    %p85 = scmp.ne.s32.totalorder %s77, %s79
    %p86 = scmp.eq.s32.totalorder %s27, 1
    %p87 = por %p85, %p86
    %p88 = scmp.ne.s32.totalorder %s79, %s80
    %p89 = scmp.eq.s32.totalorder %s27, 0
    %p90 = por %p88, %p89
    %p91 = scmp.ne.s32.totalorder %s79, %s80
    %p92 = scmp.eq.s32.totalorder %s28, 1
    %p93 = por %p91, %p92
    %p95 = scmp.ne.s32.totalorder %s80, %s94
    %p96 = scmp.eq.s32.totalorder %s28, 0
    %p97 = por %p95, %p96
    %s99 = sadd.s32 %s98, 1
    %p102 = scmp.eq.s32.totalorder %s22, 1
    %p103 = scmp.ne.s32.totalorder %s98, %s100
    %p104 = scmp.eq.s32.totalorder %s22, 0
    %p105 = por %p103, %p104
    %p106 = scmp.ne.s32.totalorder %s98, %s100
    %p107 = scmp.eq.s32.totalorder %s27, 1
    %p108 = por %p106, %p107
    %p109 = scmp.ne.s32.totalorder %s100, %s101
    %p110 = scmp.eq.s32.totalorder %s27, 0
    %p111 = por %p109, %p110
    %p112 = scmp.ne.s32.totalorder %s100, %s101
    %p113 = scmp.eq.s32.totalorder %s28, 1
    %p114 = por %p112, %p113
    %p116 = scmp.ne.s32.totalorder %s101, %s115
    %p117 = scmp.eq.s32.totalorder %s28, 0
    %p118 = por %p116, %p117
    %s120 = sadd.s32 %s119, 1
    %p123 = scmp.eq.s32.totalorder %s22, 1
    %p124 = scmp.ne.s32.totalorder %s119, %s121
    %p125 = scmp.eq.s32.totalorder %s22, 0
    %p126 = por %p124, %p125
    %p127 = scmp.ne.s32.totalorder %s119, %s121
    %p128 = scmp.eq.s32.totalorder %s27, 1
    %p129 = por %p127, %p128
    %p130 = scmp.ne.s32.totalorder %s121, %s122
    %p131 = scmp.eq.s32.totalorder %s27, 0
    %p132 = por %p130, %p131
    %p133 = scmp.ne.s32.totalorder %s121, %s122
    %p134 = scmp.eq.s32.totalorder %s28, 1
    %p135 = por %p133, %p134
    %p137 = scmp.ne.s32.totalorder %s122, %s136
    %p138 = scmp.eq.s32.totalorder %s28, 0
    %p139 = por %p137, %p138
    %s141 = sadd.s32 %s140, 1
    %p144 = scmp.eq.s32.totalorder %s22, 1
    %p145 = scmp.ne.s32.totalorder %s140, %s142
    %p146 = scmp.eq.s32.totalorder %s22, 0
    %p147 = por %p145, %p146
    %p148 = scmp.ne.s32.totalorder %s140, %s142
    %p149 = scmp.eq.s32.totalorder %s27, 1
    %p150 = por %p148, %p149
    %p151 = scmp.ne.s32.totalorder %s142, %s143
    %p152 = scmp.eq.s32.totalorder %s27, 0
    %p153 = por %p151, %p152
    %p154 = scmp.ne.s32.totalorder %s142, %s143
    %p155 = scmp.eq.s32.totalorder %s28, 1
    %p156 = por %p154, %p155
    %p158 = scmp.ne.s32.totalorder %s143, %s157
    %p159 = scmp.eq.s32.totalorder %s28, 0
    %p160 = por %p158, %p159
    %s162 = sadd.s32 %s161, 1
    %p165 = scmp.eq.s32.totalorder %s22, 1
    %p166 = scmp.ne.s32.totalorder %s161, %s163
    %p167 = scmp.eq.s32.totalorder %s22, 0
    %p168 = por %p166, %p167
    %p169 = scmp.ne.s32.totalorder %s161, %s163
    %p170 = scmp.eq.s32.totalorder %s27, 1
    %p171 = por %p169, %p170
    %p172 = scmp.ne.s32.totalorder %s163, %s164
    %p173 = scmp.eq.s32.totalorder %s27, 0
    %p174 = por %p172, %p173
    %p175 = scmp.ne.s32.totalorder %s163, %s164
    %p176 = scmp.eq.s32.totalorder %s28, 1
    %p177 = por %p175, %p176
    %p179 = scmp.ne.s32.totalorder %s164, %s178
    %p180 = scmp.eq.s32.totalorder %s28, 0
    %p181 = por %p179, %p180
    %s183 = sadd.s32 %s182, 1
    %p186 = scmp.eq.s32.totalorder %s22, 1
    %p187 = scmp.ne.s32.totalorder %s182, %s184
    %p188 = scmp.eq.s32.totalorder %s22, 0
    %p189 = por %p187, %p188
    %p190 = scmp.ne.s32.totalorder %s182, %s184
    %p191 = scmp.eq.s32.totalorder %s27, 1
    %p192 = por %p190, %p191
    %p193 = scmp.ne.s32.totalorder %s184, %s185
    %p194 = scmp.eq.s32.totalorder %s27, 0
    %p195 = por %p193, %p194
    %p196 = scmp.ne.s32.totalorder %s184, %s185
    %p197 = scmp.eq.s32.totalorder %s28, 1
    %p198 = por %p196, %p197
    %p200 = scmp.ne.s32.totalorder %s185, %s199
    %p201 = scmp.eq.s32.totalorder %s28, 0
    %p202 = por %p200, %p201
    %s204 = sadd.s32 %s203, 1
    %p207 = scmp.eq.s32.totalorder %s22, 1
    %p208 = scmp.ne.s32.totalorder %s203, %s205
    %p209 = scmp.eq.s32.totalorder %s22, 0
    %p210 = por %p208, %p209
    %p211 = scmp.ne.s32.totalorder %s203, %s205
    %p212 = scmp.eq.s32.totalorder %s27, 1
    %p213 = por %p211, %p212
    %p214 = scmp.ne.s32.totalorder %s205, %s206
    %p215 = scmp.eq.s32.totalorder %s27, 0
    %p216 = por %p214, %p215
    %p217 = scmp.ne.s32.totalorder %s205, %s206
    %p218 = scmp.eq.s32.totalorder %s28, 1
    %p219 = por %p217, %p218
    %p221 = scmp.ne.s32.totalorder %s206, %s220
    %p222 = scmp.eq.s32.totalorder %s28, 0
    %p223 = por %p221, %p222
    %s225 = sadd.s32 %s224, 1
    %p228 = scmp.eq.s32.totalorder %s22, 1
    %p229 = scmp.ne.s32.totalorder %s224, %s226
    %p230 = scmp.eq.s32.totalorder %s22, 0
    %p231 = por %p229, %p230
    %p232 = scmp.ne.s32.totalorder %s224, %s226
    %p233 = scmp.eq.s32.totalorder %s27, 1
    %p234 = por %p232, %p233
    %p235 = scmp.ne.s32.totalorder %s226, %s227
    %p236 = scmp.eq.s32.totalorder %s27, 0
    %p237 = por %p235, %p236
    %p238 = scmp.ne.s32.totalorder %s226, %s227
    %p239 = scmp.eq.s32.totalorder %s28, 1
    %p240 = por %p238, %p239
    %p242 = scmp.ne.s32.totalorder %s227, %s241
    %p243 = scmp.eq.s32.totalorder %s28, 0
    %p244 = por %p242, %p243
    %s246 = sadd.s32 %s245, 1
    %p249 = scmp.eq.s32.totalorder %s22, 1
    %p250 = scmp.ne.s32.totalorder %s245, %s247
    %p251 = scmp.eq.s32.totalorder %s22, 0
    %p252 = por %p250, %p251
    %p253 = scmp.ne.s32.totalorder %s245, %s247
    %p254 = scmp.eq.s32.totalorder %s27, 1
    %p255 = por %p253, %p254
    %p256 = scmp.ne.s32.totalorder %s247, %s248
    %p257 = scmp.eq.s32.totalorder %s27, 0
    %p258 = por %p256, %p257
    %p259 = scmp.ne.s32.totalorder %s247, %s248
    %p260 = scmp.eq.s32.totalorder %s28, 1
    %p261 = por %p259, %p260
    %p263 = scmp.ne.s32.totalorder %s248, %s262
    %p264 = scmp.eq.s32.totalorder %s28, 0
    %p265 = por %p263, %p264
    %s267 = sadd.s32 %s266, 1
    %p270 = scmp.eq.s32.totalorder %s22, 1
    %p271 = scmp.ne.s32.totalorder %s266, %s268
    %p272 = scmp.eq.s32.totalorder %s22, 0
    %p273 = por %p271, %p272
    %p274 = scmp.ne.s32.totalorder %s266, %s268
    %p275 = scmp.eq.s32.totalorder %s27, 1
    %p276 = por %p274, %p275
    %p277 = scmp.ne.s32.totalorder %s268, %s269
    %p278 = scmp.eq.s32.totalorder %s27, 0
    %p279 = por %p277, %p278
    %p280 = scmp.ne.s32.totalorder %s268, %s269
    %p281 = scmp.eq.s32.totalorder %s28, 1
    %p282 = por %p280, %p281
    %p284 = scmp.ne.s32.totalorder %s269, %s283
    %p285 = scmp.eq.s32.totalorder %s28, 0
    %p286 = por %p284, %p285
    %s288 = sadd.s32 %s287, 1
    %p291 = scmp.eq.s32.totalorder %s22, 1
    %p292 = scmp.ne.s32.totalorder %s287, %s289
    %p293 = scmp.eq.s32.totalorder %s22, 0
    %p294 = por %p292, %p293
    %p295 = scmp.ne.s32.totalorder %s287, %s289
    %p296 = scmp.eq.s32.totalorder %s27, 1
    %p297 = por %p295, %p296
    %p298 = scmp.ne.s32.totalorder %s289, %s290
    %p299 = scmp.eq.s32.totalorder %s27, 0
    %p300 = por %p298, %p299
    %p301 = scmp.ne.s32.totalorder %s289, %s290
    %p302 = scmp.eq.s32.totalorder %s28, 1
    %p303 = por %p301, %p302
    %p305 = scmp.ne.s32.totalorder %s290, %s304
    %p306 = scmp.eq.s32.totalorder %s28, 0
    %p307 = por %p305, %p306
    %s309 = sadd.s32 %s308, 1
    %p312 = scmp.eq.s32.totalorder %s22, 1
    %p313 = scmp.ne.s32.totalorder %s308, %s310
    %p314 = scmp.eq.s32.totalorder %s22, 0
    %p315 = por %p313, %p314
    %p316 = scmp.ne.s32.totalorder %s308, %s310
    %p317 = scmp.eq.s32.totalorder %s27, 1
    %p318 = por %p316, %p317
    %p319 = scmp.ne.s32.totalorder %s310, %s311
    %p320 = scmp.eq.s32.totalorder %s27, 0
    %p321 = por %p319, %p320
    %p322 = scmp.ne.s32.totalorder %s310, %s311
    %p323 = scmp.eq.s32.totalorder %s28, 1
    %p324 = por %p322, %p323
    %p326 = scmp.ne.s32.totalorder %s311, %s325
    %p327 = scmp.eq.s32.totalorder %s28, 0
    %p328 = por %p326, %p327
    %s330 = sadd.s32 %s329, 1
    %p333 = scmp.eq.s32.totalorder %s22, 1
    %p334 = scmp.ne.s32.totalorder %s329, %s331
    %p335 = scmp.eq.s32.totalorder %s22, 0
    %p336 = por %p334, %p335
    %p337 = scmp.ne.s32.totalorder %s329, %s331
    %p338 = scmp.eq.s32.totalorder %s27, 1
    %p339 = por %p337, %p338
    %p340 = scmp.ne.s32.totalorder %s331, %s332
    %p341 = scmp.eq.s32.totalorder %s27, 0
    %p342 = por %p340, %p341
    %p343 = scmp.ne.s32.totalorder %s331, %s332
    %p344 = scmp.eq.s32.totalorder %s28, 1
    %p345 = por %p343, %p344
    %p347 = scmp.ne.s32.totalorder %s332, %s346
    %p348 = scmp.eq.s32.totalorder %s28, 0
    %p349 = por %p347, %p348
    %s351 = sadd.s32 %s350, 1
    %p354 = scmp.eq.s32.totalorder %s22, 1
    %p355 = scmp.ne.s32.totalorder %s350, %s352
    %p356 = scmp.eq.s32.totalorder %s22, 0
    %p357 = por %p355, %p356
    %p358 = scmp.ne.s32.totalorder %s350, %s352
    %p359 = scmp.eq.s32.totalorder %s27, 1
    %p360 = por %p358, %p359
    %p361 = scmp.ne.s32.totalorder %s352, %s353
    %p362 = scmp.eq.s32.totalorder %s27, 0
    %p363 = por %p361, %p362
    %p364 = scmp.ne.s32.totalorder %s352, %s353
    %p365 = scmp.eq.s32.totalorder %s28, 1
    %p366 = por %p364, %p365
    %p368 = scmp.ne.s32.totalorder %s353, %s367
    %p369 = scmp.eq.s32.totalorder %s28, 0
    %p370 = por %p368, %p369
    %s371 = ssub.s32 %s22, %s29
    %p372 = scmp.eq.s32.totalorder %s371, 0
    %s374 = sadd.s32 %s373, 1
    %s375 = scalar_select %p372, %s373, %s374
    %p378 = pneg %p372
    %p379 = scmp.eq.s32.totalorder %s22, 1
    %p380 = por %p378, %p379
    %p381 = scmp.ne.s32.totalorder %s373, %s376
    %p382 = scmp.eq.s32.totalorder %s22, 0
    %p383 = por %p381, %p382
    %p384 = scmp.ne.s32.totalorder %s373, %s376
    %p385 = scmp.eq.s32.totalorder %s27, 1
    %p386 = por %p384, %p385
    %p387 = scmp.ne.s32.totalorder %s376, %s377
    %p388 = scmp.eq.s32.totalorder %s27, 0
    %p389 = por %p387, %p388
    %p390 = scmp.ne.s32.totalorder %s376, %s377
    %p391 = scmp.eq.s32.totalorder %s28, 1
    %p392 = por %p390, %p391
    %p394 = scmp.ne.s32.totalorder %s377, %s393
    %p395 = scmp.eq.s32.totalorder %s28, 0
    %p396 = por %p394, %p395
    %p397 = scmp.le.s32.totalorder 1, %s22
    %p398 = scmp.lt.s32.totalorder %s22, 3
    %p399 = pnand %p397, %p398
    %p400 = pneg %p399
    // Predicated region
    $region9: #{_lambda_.2} parent=5 // pred_check
      _
    $region10: #{_lambda_.2} parent=5 // pred_check_branch
      %402 = sbr.rel (%p399) target = $region12
    $region11: #{_lambda_.2} parent=5 // pred_region
      %s403 = ssub.s32 %s22, 1
      // Predicated region
      $region13: #{_lambda_.2} parent=11 // pred_check
        %p404 = pneg %p69
      $region14: #{_lambda_.2} parent=11 // pred_check_branch
        %406 = sbr.rel (%p404) target = $region16
      $region15: #{_lambda_.2} parent=11 // pred_region
        _
      $region16: #{_lambda_.2} parent=11 // pred_fallthru
        _
      // Predicated region
      $region17: #{_lambda_.2} parent=11 // pred_check
        %p407 = pneg %p90
      $region18: #{_lambda_.2} parent=11 // pred_check_branch
        %409 = sbr.rel (%p407) target = $region20
      $region19: #{_lambda_.2} parent=11 // pred_region
        _
      $region20: #{_lambda_.2} parent=11 // pred_fallthru
        _
      // Predicated region
      $region21: #{_lambda_.2} parent=11 // pred_check
        %p410 = pneg %p111
      $region22: #{_lambda_.2} parent=11 // pred_check_branch
        %412 = sbr.rel (%p410) target = $region24
      $region23: #{_lambda_.2} parent=11 // pred_region
        _
      $region24: #{_lambda_.2} parent=11 // pred_fallthru
        _
      // Predicated region
      $region25: #{_lambda_.2} parent=11 // pred_check
        %p413 = pneg %p132
      $region26: #{_lambda_.2} parent=11 // pred_check_branch
        %415 = sbr.rel (%p413) target = $region28
      $region27: #{_lambda_.2} parent=11 // pred_region
        _
      $region28: #{_lambda_.2} parent=11 // pred_fallthru
        _
      // Predicated region
      $region29: #{_lambda_.2} parent=11 // pred_check
        %p416 = pneg %p153
      $region30: #{_lambda_.2} parent=11 // pred_check_branch
        %418 = sbr.rel (%p416) target = $region32
      $region31: #{_lambda_.2} parent=11 // pred_region
        _
      $region32: #{_lambda_.2} parent=11 // pred_fallthru
        _
      // Predicated region
      $region33: #{_lambda_.2} parent=11 // pred_check
        %p419 = pneg %p174
      $region34: #{_lambda_.2} parent=11 // pred_check_branch
        %421 = sbr.rel (%p419) target = $region36
      $region35: #{_lambda_.2} parent=11 // pred_region
        _
      $region36: #{_lambda_.2} parent=11 // pred_fallthru
        _
      // Predicated region
      $region37: #{_lambda_.2} parent=11 // pred_check
        %p422 = pneg %p195
      $region38: #{_lambda_.2} parent=11 // pred_check_branch
        %424 = sbr.rel (%p422) target = $region40
      $region39: #{_lambda_.2} parent=11 // pred_region
        _
      $region40: #{_lambda_.2} parent=11 // pred_fallthru
        _
      // Predicated region
      $region41: #{_lambda_.2} parent=11 // pred_check
        %p425 = pneg %p216
      $region42: #{_lambda_.2} parent=11 // pred_check_branch
        %427 = sbr.rel (%p425) target = $region44
      $region43: #{_lambda_.2} parent=11 // pred_region
        _
      $region44: #{_lambda_.2} parent=11 // pred_fallthru
        _
      // Predicated region
      $region45: #{_lambda_.2} parent=11 // pred_check
        %p428 = pneg %p237
      $region46: #{_lambda_.2} parent=11 // pred_check_branch
        %430 = sbr.rel (%p428) target = $region48
      $region47: #{_lambda_.2} parent=11 // pred_region
        _
      $region48: #{_lambda_.2} parent=11 // pred_fallthru
        _
      // Predicated region
      $region49: #{_lambda_.2} parent=11 // pred_check
        %p431 = pneg %p258
      $region50: #{_lambda_.2} parent=11 // pred_check_branch
        %433 = sbr.rel (%p431) target = $region52
      $region51: #{_lambda_.2} parent=11 // pred_region
        _
      $region52: #{_lambda_.2} parent=11 // pred_fallthru
        _
      // Predicated region
      $region53: #{_lambda_.2} parent=11 // pred_check
        %p434 = pneg %p279
      $region54: #{_lambda_.2} parent=11 // pred_check_branch
        %436 = sbr.rel (%p434) target = $region56
      $region55: #{_lambda_.2} parent=11 // pred_region
        _
      $region56: #{_lambda_.2} parent=11 // pred_fallthru
        _
      // Predicated region
      $region57: #{_lambda_.2} parent=11 // pred_check
        %p437 = pneg %p300
      $region58: #{_lambda_.2} parent=11 // pred_check_branch
        %439 = sbr.rel (%p437) target = $region60
      $region59: #{_lambda_.2} parent=11 // pred_region
        _
      $region60: #{_lambda_.2} parent=11 // pred_fallthru
        _
      // Predicated region
      $region61: #{_lambda_.2} parent=11 // pred_check
        %p440 = pneg %p321
      $region62: #{_lambda_.2} parent=11 // pred_check_branch
        %442 = sbr.rel (%p440) target = $region64
      $region63: #{_lambda_.2} parent=11 // pred_region
        _
      $region64: #{_lambda_.2} parent=11 // pred_fallthru
        _
      // Predicated region
      $region65: #{_lambda_.2} parent=11 // pred_check
        %p443 = pneg %p342
      $region66: #{_lambda_.2} parent=11 // pred_check_branch
        %445 = sbr.rel (%p443) target = $region68
      $region67: #{_lambda_.2} parent=11 // pred_region
        _
      $region68: #{_lambda_.2} parent=11 // pred_fallthru
        _
      // Predicated region
      $region69: #{_lambda_.2} parent=11 // pred_check
        %p446 = pneg %p363
      $region70: #{_lambda_.2} parent=11 // pred_check_branch
        %448 = sbr.rel (%p446) target = $region72
      $region71: #{_lambda_.2} parent=11 // pred_region
        _
      $region72: #{_lambda_.2} parent=11 // pred_fallthru
        _
    $region12: #{_lambda_.2} parent=5 // pred_fallthru
      _
    %p449 = scmp.lt.s32.totalorder %s22, 2
    // Predicated region
    $region73: #{_lambda_.2} parent=5 // pred_check
      %p450 = pneg %p449
    $region74: #{_lambda_.2} parent=5 // pred_check_branch
      %452 = sbr.rel (%p450) target = $region76
    $region75: #{_lambda_.2} parent=5 // pred_region
      // Predicated region
      $region77: #{_lambda_.2} parent=75 // pred_check
        %p453 = pneg %p42
      $region78: #{_lambda_.2} parent=75 // pred_check_branch
        %455 = sbr.rel (%p453) target = $region80
      $region79: #{_lambda_.2} parent=75 // pred_region
        %s456 = smul.u32 2, %s22
        %p457 = scmp.lt.s32.totalorder %s456, 3
        %s458 = scalar_select %p457, %s456, 3
        %s459 = smul.addr %s458, 8
        %s460 = scalar_lea.vmem %s0, %s459
        %s461 = smul.u32 2, %s22
      $region80: #{_lambda_.2} parent=75 // pred_fallthru
        _
    $region76: #{_lambda_.2} parent=5 // pred_fallthru
      _
    %p462 = scmp.le.s32.totalorder 1, %s22
    %p463 = scmp.lt.s32.totalorder %s22, 3
    %p464 = pnand %p462, %p463
    %p465 = pneg %p464
    // Predicated region
    $region81: #{_lambda_.2} parent=5 // pred_check
      _
    $region82: #{_lambda_.2} parent=5 // pred_check_branch
      %467 = sbr.rel (%p464) target = $region84
    $region83: #{_lambda_.2} parent=5 // pred_region
      %s468 = ssub.s32 %s22, 1
      %s469 = smul.u32 2, %s27
      %p470 = scmp.lt.s32.totalorder %s469, 3
      %s471 = scalar_select %p470, %s469, 3
      %s472 = smul.addr %s471, 8
      %s473 = scalar_lea.vmem %s0, %s472
      %p474 = pneg %p48
      %p475 = pneg %p45
      %p476 = pneg %p69
      %p477 = pneg %p66
      %p478 = pneg %p90
      %p479 = pneg %p87
      %p480 = pneg %p111
      %p481 = pneg %p108
      %p482 = pneg %p132
      %p483 = pneg %p129
      %p484 = pneg %p153
      %p485 = pneg %p150
      %p486 = pneg %p174
      %p487 = pneg %p171
      %p488 = pneg %p195
      %p489 = pneg %p192
      %p490 = pneg %p216
      %p491 = pneg %p213
      %p492 = pneg %p237
      %p493 = pneg %p234
      %p494 = pneg %p258
      %p495 = pneg %p255
      %p496 = pneg %p279
      %p497 = pneg %p276
      %p498 = pneg %p300
      %p499 = pneg %p297
      %p500 = pneg %p321
      %p501 = pneg %p318
      %p502 = pneg %p342
      %p503 = pneg %p339
      %p504 = pneg %p363
      %p505 = pneg %p360
      %p506 = pneg %p389
      %p507 = pneg %p386
      %s508 = smul.u32 2, %s27
      %p509 = scmp.lt.s32.totalorder %s508, 3
      %s510 = scalar_select %p509, %s508, 3
      %s511 = smul.addr %s510, 8
      %s512 = scalar_lea.vmem %s16, %s511
      %s513 = smul.u32 2, %s27
      %p514 = scmp.lt.s32.totalorder %s513, 3
      %s515 = scalar_select %p514, %s513, 3
      %s516 = smul.addr %s515, 8
      %s517 = scalar_lea.vmem %s0, %s516
      %s518 = smul.u32 2, %s27
      %s519 = smul.u32 2, %s27
      %p520 = scmp.lt.s32.totalorder %s519, 3
      %s521 = scalar_select %p520, %s519, 3
      %s522 = smul.addr %s521, 8
      %s523 = scalar_lea.vmem %s16, %s522
      %s524 = smul.u32 2, %s27
      %v525 = vld [vmem:[%s517] sm:$0x1f]
      %v526 = vld [vmem:[%s517 + $0x8] sm:$0x1f]
      %v527 = vld [vmem:[%s1] sm:$0x1]
      %v528 = vld [vmem:[%s2] sm:$0x1]
      %vm529 = vcmask 126976
      %v530 = vsel %vm529, %v525, 0.0
      %531 = vadd.xlane.f32.xlu0 %v530
      %v532 = vpop.xlane.xlu0 %531
      %v533 = vsel %vm529, %v526, 0.0
      %534 = vadd.xlane.f32.xlu0 %v533
      %v535 = vpop.xlane.xlu0 %534
      %v536 = vrcp.pop 16.0
      %v537 = vmul.f32 %v532, %v536
      %v538 = vmul.f32 %v535, %v536
      %v539 = vsub.f32 %v525, %v537
      %v540 = vsub.f32 %v526, %v538
      %v541 = vmul.f32 %v539, %v539
      %v542 = vmul.f32 %v540, %v540
      %v543 = vsel %vm529, %v541, 0.0
      %544 = vadd.xlane.f32.xlu0 %v543
      %v545 = vpop.xlane.xlu0 %544
      %v546 = vsel %vm529, %v542, 0.0
      %547 = vadd.xlane.f32.xlu0 %v546
      %v548 = vpop.xlane.xlu0 %547
      %v549 = vmul.f32 %v545, %v536
      %v550 = vmul.f32 %v548, %v536
      %v551 = vadd.f32 %v549, 1e-05
      %v552 = vadd.f32 %v550, 1e-05
      %v553 = vrsqrt.pop %v551
      %v554 = vrsqrt.pop %v552
      %v555 = vmul.f32 %v539, %v553
      %v556 = vmul.f32 %v540, %v554
      %v558 = vlaneseq
      %v559 = vshrl.u32 %v558, 7
      %v560 = vsub.s32 0, %v559
      %v561 = vrot.slane %v527, %v560
      %v563 = vmul.f32 %v555, %v561
      %v564 = vmul.f32 %v556, %v561
      %v566 = vlaneseq
      %v567 = vshrl.u32 %v566, 7
      %v568 = vsub.s32 0, %v567
      %v569 = vrot.slane %v528, %v568
      %v571 = vadd.f32 %v563, %v569
      %v572 = vadd.f32 %v564, %v569
      %v573 = vld [vmem:[%s3] sm:$0xff]
      %v574 = vld [vmem:[%s3 + $0x8] sm:$0xff]
      %v575 = vld [vmem:[%s3 + $0x10] sm:$0xff]
      %v576 = vld [vmem:[%s3 + $0x18] sm:$0xff]
      %v577 = vld [vmem:[%s4] sm:$0xff]
      %v578 = vld [vmem:[%s4 + $0x8] sm:$0xff]
      %v579 = vld [vmem:[%s4 + $0x10] sm:$0xff]
      %v580 = vld [vmem:[%s4 + $0x18] sm:$0xff]
      %v581 = vld [vmem:[%s5] sm:$0xff]
      %v582 = vld [vmem:[%s5 + $0x8] sm:$0xff]
      %v583 = vld [vmem:[%s5 + $0x10] sm:$0xff]
      %v584 = vld [vmem:[%s5 + $0x18] sm:$0xff]
      %v585 = vld [vmem:[%s6] sm:$0xff]
      %v586 = vld [vmem:[%s6 + $0x8] sm:$0xff]
      %vm587 = vcmask 130048
      %v589 = vsel %vm587, %v571, 0
      %591 = vmatprep.subr.mxu0 0.0
      %592 = vmatpush1.msra.mxu0 %v573
      %593 = vmatprep.subr.mxu0 0.0
      %594 = vmatpush1.msra.mxu0 %v574
      %595 = vmatprep.subr.mxu0 0.0
      %596 = vmatpush1.msra.mxu0 0.0
      %597 = vmatprep.subr.mxu0 0.0
      %598 = vmatpush1.msra.mxu0 0.0
      %599 = vmatprep.subr.mxu0 0.0
      %600 = vmatpush1.msra.mxu0 0.0
      %601 = vmatprep.subr.mxu0 0.0
      %602 = vmatpush1.msra.mxu0 0.0
      %603 = vmatprep.subr.mxu0 0.0
      %604 = vmatpush1.msra.mxu0 0.0
      %605 = vmatprep.subr.mxu0 0.0
      %606 = vmatpush1.msra.mxu0 0.0
      %607 = vmatprep.subr.mxu0 0.0
      %608 = vmatpush1.msra.mxu0 0.0
      %609 = vmatprep.subr.mxu0 0.0
      %610 = vmatpush1.msra.mxu0 0.0
      %611 = vmatprep.subr.mxu0 0.0
      %612 = vmatpush1.msra.mxu0 0.0
      %613 = vmatprep.subr.mxu0 0.0
      %614 = vmatpush1.msra.mxu0 0.0
      %615 = vmatprep.subr.mxu0 0.0
      %616 = vmatpush1.msra.mxu0 0.0
      %617 = vmatprep.subr.mxu0 0.0
      %618 = vmatpush1.msra.mxu0 0.0
      %619 = vmatprep.subr.mxu0 0.0
      %620 = vmatpush1.msra.mxu0 0.0
      %621 = vmatprep.subr.mxu0 0.0
      %622 = vmatpush1.msra.mxu0 0.0
      %623 = vmatprep.subr.mxu0 0.0
      %624 = vmatpush1.msra.mxu0 0.0
      %625 = vmatprep.subr.mxu0 0.0
      %626 = vmatpush1.msra.mxu0 0.0
      %627 = vmatprep.subr.mxu0 0.0
      %628 = vmatpush1.msra.mxu0 0.0
      %629 = vmatprep.subr.mxu0 0.0
      %630 = vmatpush1.msra.mxu0 0.0
      %631 = vmatprep.subr.mxu0 0.0
      %632 = vmatpush1.msra.mxu0 0.0
      %633 = vmatprep.subr.mxu0 0.0
      %634 = vmatpush1.msra.mxu0 0.0
      %635 = vmatprep.subr.mxu0 0.0
      %636 = vmatpush1.msra.mxu0 0.0
      %637 = vmatprep.subr.mxu0 0.0
      %638 = vmatpush1.msra.mxu0 0.0
      %639 = vmatprep.subr.mxu0 0.0
      %640 = vmatpush1.msra.mxu0 0.0
      %641 = vmatprep.subr.mxu0 0.0
      %642 = vmatpush1.msra.mxu0 0.0
      %643 = vmatprep.subr.mxu0 0.0
      %644 = vmatpush1.msra.mxu0 0.0
      %645 = vmatprep.subr.mxu0 0.0
      %646 = vmatpush1.msra.mxu0 0.0
      %647 = vmatprep.subr.mxu0 0.0
      %648 = vmatpush1.msra.mxu0 0.0
      %649 = vmatprep.subr.mxu0 0.0
      %650 = vmatpush1.msra.mxu0 0.0
      %651 = vmatprep.subr.mxu0 0.0
      %652 = vmatpush1.msra.mxu0 0.0
      %653 = vmatprep.subr.mxu0 0.0
      %654 = vmatpush1.msra.mxu0 0.0
      %655 = vmatprep.mubr.f32.mxu0 0.0
      %656 = vmatmul.mubr.f32.gmra.mrb[0].mxu0 %v589
      %v657 = vpop.f32.mrb[0].mxu0
      %v658 = vadd.f32 0.0, %v657
      %v659 = vpop.f32.mrb[0].mxu0
      %660 = vdwg.mxu0
      %v662 = vsel %vm587, %v572, 0
      %664 = vmatprep.subr.mxu0 0.0
      %665 = vmatpush1.msra.mxu0 %v573
      %666 = vmatprep.subr.mxu0 0.0
      %667 = vmatpush1.msra.mxu0 %v574
      %668 = vmatprep.subr.mxu0 0.0
      %669 = vmatpush1.msra.mxu0 0.0
      %670 = vmatprep.subr.mxu0 0.0
      %671 = vmatpush1.msra.mxu0 0.0
      %672 = vmatprep.subr.mxu0 0.0
      %673 = vmatpush1.msra.mxu0 0.0
      %674 = vmatprep.subr.mxu0 0.0
      %675 = vmatpush1.msra.mxu0 0.0
      %676 = vmatprep.subr.mxu0 0.0
      %677 = vmatpush1.msra.mxu0 0.0
      %678 = vmatprep.subr.mxu0 0.0
      %679 = vmatpush1.msra.mxu0 0.0
      %680 = vmatprep.subr.mxu0 0.0
      %681 = vmatpush1.msra.mxu0 0.0
      %682 = vmatprep.subr.mxu0 0.0
      %683 = vmatpush1.msra.mxu0 0.0
      %684 = vmatprep.subr.mxu0 0.0
      %685 = vmatpush1.msra.mxu0 0.0
      %686 = vmatprep.subr.mxu0 0.0
      %687 = vmatpush1.msra.mxu0 0.0
      %688 = vmatprep.subr.mxu0 0.0
      %689 = vmatpush1.msra.mxu0 0.0
      %690 = vmatprep.subr.mxu0 0.0
      %691 = vmatpush1.msra.mxu0 0.0
      %692 = vmatprep.subr.mxu0 0.0
      %693 = vmatpush1.msra.mxu0 0.0
      %694 = vmatprep.subr.mxu0 0.0
      %695 = vmatpush1.msra.mxu0 0.0
      %696 = vmatprep.subr.mxu0 0.0
      %697 = vmatpush1.msra.mxu0 0.0
      %698 = vmatprep.subr.mxu0 0.0
      %699 = vmatpush1.msra.mxu0 0.0
      %700 = vmatprep.subr.mxu0 0.0
      %701 = vmatpush1.msra.mxu0 0.0
      %702 = vmatprep.subr.mxu0 0.0
      %703 = vmatpush1.msra.mxu0 0.0
      %704 = vmatprep.subr.mxu0 0.0
      %705 = vmatpush1.msra.mxu0 0.0
      %706 = vmatprep.subr.mxu0 0.0
      %707 = vmatpush1.msra.mxu0 0.0
      %708 = vmatprep.subr.mxu0 0.0
      %709 = vmatpush1.msra.mxu0 0.0
      %710 = vmatprep.subr.mxu0 0.0
      %711 = vmatpush1.msra.mxu0 0.0
      %712 = vmatprep.subr.mxu0 0.0
      %713 = vmatpush1.msra.mxu0 0.0
      %714 = vmatprep.subr.mxu0 0.0
      %715 = vmatpush1.msra.mxu0 0.0
      %716 = vmatprep.subr.mxu0 0.0
      %717 = vmatpush1.msra.mxu0 0.0
      %718 = vmatprep.subr.mxu0 0.0
      %719 = vmatpush1.msra.mxu0 0.0
      %720 = vmatprep.subr.mxu0 0.0
      %721 = vmatpush1.msra.mxu0 0.0
      %722 = vmatprep.subr.mxu0 0.0
      %723 = vmatpush1.msra.mxu0 0.0
      %724 = vmatprep.subr.mxu0 0.0
      %725 = vmatpush1.msra.mxu0 0.0
      %726 = vmatprep.subr.mxu0 0.0
      %727 = vmatpush1.msra.mxu0 0.0
      %728 = vmatprep.mubr.f32.mxu0 0.0
      %729 = vmatmul.mubr.f32.gmra.mrb[0].mxu0 %v662
      %v730 = vpop.f32.mrb[0].mxu0
      %v731 = vadd.f32 0.0, %v730
      %v732 = vpop.f32.mrb[0].mxu0
      %733 = vdwg.mxu0
      %734 = vmatprep.subr.mxu0 0.0
      %735 = vmatpush1.msra.mxu0 %v577
      %736 = vmatprep.subr.mxu0 0.0
      %737 = vmatpush1.msra.mxu0 %v578
      %738 = vmatprep.subr.mxu0 0.0
      %739 = vmatpush1.msra.mxu0 0.0
      %740 = vmatprep.subr.mxu0 0.0
      %741 = vmatpush1.msra.mxu0 0.0
      %742 = vmatprep.subr.mxu0 0.0
      %743 = vmatpush1.msra.mxu0 0.0
      %744 = vmatprep.subr.mxu0 0.0
      %745 = vmatpush1.msra.mxu0 0.0
      %746 = vmatprep.subr.mxu0 0.0
      %747 = vmatpush1.msra.mxu0 0.0
      %748 = vmatprep.subr.mxu0 0.0
      %749 = vmatpush1.msra.mxu0 0.0
      %750 = vmatprep.subr.mxu0 0.0
      %751 = vmatpush1.msra.mxu0 0.0
      %752 = vmatprep.subr.mxu0 0.0
      %753 = vmatpush1.msra.mxu0 0.0
      %754 = vmatprep.subr.mxu0 0.0
      %755 = vmatpush1.msra.mxu0 0.0
      %756 = vmatprep.subr.mxu0 0.0
      %757 = vmatpush1.msra.mxu0 0.0
      %758 = vmatprep.subr.mxu0 0.0
      %759 = vmatpush1.msra.mxu0 0.0
      %760 = vmatprep.subr.mxu0 0.0
      %761 = vmatpush1.msra.mxu0 0.0
      %762 = vmatprep.subr.mxu0 0.0
      %763 = vmatpush1.msra.mxu0 0.0
      %764 = vmatprep.subr.mxu0 0.0
      %765 = vmatpush1.msra.mxu0 0.0
      %766 = vmatprep.subr.mxu0 0.0
      %767 = vmatpush1.msra.mxu0 0.0
      %768 = vmatprep.subr.mxu0 0.0
      %769 = vmatpush1.msra.mxu0 0.0
      %770 = vmatprep.subr.mxu0 0.0
      %771 = vmatpush1.msra.mxu0 0.0
      %772 = vmatprep.subr.mxu0 0.0
      %773 = vmatpush1.msra.mxu0 0.0
      %774 = vmatprep.subr.mxu0 0.0
      %775 = vmatpush1.msra.mxu0 0.0
      %776 = vmatprep.subr.mxu0 0.0
      %777 = vmatpush1.msra.mxu0 0.0
      %778 = vmatprep.subr.mxu0 0.0
      %779 = vmatpush1.msra.mxu0 0.0
      %780 = vmatprep.subr.mxu0 0.0
      %781 = vmatpush1.msra.mxu0 0.0
      %782 = vmatprep.subr.mxu0 0.0
      %783 = vmatpush1.msra.mxu0 0.0
      %784 = vmatprep.subr.mxu0 0.0
      %785 = vmatpush1.msra.mxu0 0.0
      %786 = vmatprep.subr.mxu0 0.0
      %787 = vmatpush1.msra.mxu0 0.0
      %788 = vmatprep.subr.mxu0 0.0
      %789 = vmatpush1.msra.mxu0 0.0
      %790 = vmatprep.subr.mxu0 0.0
      %791 = vmatpush1.msra.mxu0 0.0
      %792 = vmatprep.subr.mxu0 0.0
      %793 = vmatpush1.msra.mxu0 0.0
      %794 = vmatprep.subr.mxu0 0.0
      %795 = vmatpush1.msra.mxu0 0.0
      %796 = vmatprep.subr.mxu0 0.0
      %797 = vmatpush1.msra.mxu0 0.0
      %798 = vmatprep.mubr.f32.mxu0 0.0
      %799 = vmatmul.mubr.f32.gmra.mrb[0].mxu0 %v589
      %v800 = vpop.f32.mrb[0].mxu0
      %v801 = vadd.f32 0.0, %v800
      %v802 = vpop.f32.mrb[0].mxu0
      %803 = vdwg.mxu0
      %804 = vmatprep.subr.mxu0 0.0
      %805 = vmatpush1.msra.mxu0 %v577
      %806 = vmatprep.subr.mxu0 0.0
      %807 = vmatpush1.msra.mxu0 %v578
      %808 = vmatprep.subr.mxu0 0.0
      %809 = vmatpush1.msra.mxu0 0.0
      %810 = vmatprep.subr.mxu0 0.0
      %811 = vmatpush1.msra.mxu0 0.0
      %812 = vmatprep.subr.mxu0 0.0
      %813 = vmatpush1.msra.mxu0 0.0
      %814 = vmatprep.subr.mxu0 0.0
      %815 = vmatpush1.msra.mxu0 0.0
      %816 = vmatprep.subr.mxu0 0.0
      %817 = vmatpush1.msra.mxu0 0.0
      %818 = vmatprep.subr.mxu0 0.0
      %819 = vmatpush1.msra.mxu0 0.0
      %820 = vmatprep.subr.mxu0 0.0
      %821 = vmatpush1.msra.mxu0 0.0
      %822 = vmatprep.subr.mxu0 0.0
      %823 = vmatpush1.msra.mxu0 0.0
      %824 = vmatprep.subr.mxu0 0.0
      %825 = vmatpush1.msra.mxu0 0.0
      %826 = vmatprep.subr.mxu0 0.0
      %827 = vmatpush1.msra.mxu0 0.0
      %828 = vmatprep.subr.mxu0 0.0
      %829 = vmatpush1.msra.mxu0 0.0
      %830 = vmatprep.subr.mxu0 0.0
      %831 = vmatpush1.msra.mxu0 0.0
      %832 = vmatprep.subr.mxu0 0.0
      %833 = vmatpush1.msra.mxu0 0.0
      %834 = vmatprep.subr.mxu0 0.0
      %835 = vmatpush1.msra.mxu0 0.0
      %836 = vmatprep.subr.mxu0 0.0
      %837 = vmatpush1.msra.mxu0 0.0
      %838 = vmatprep.subr.mxu0 0.0
      %839 = vmatpush1.msra.mxu0 0.0
      %840 = vmatprep.subr.mxu0 0.0
      %841 = vmatpush1.msra.mxu0 0.0
      %842 = vmatprep.subr.mxu0 0.0
      %843 = vmatpush1.msra.mxu0 0.0
      %844 = vmatprep.subr.mxu0 0.0
      %845 = vmatpush1.msra.mxu0 0.0
      %846 = vmatprep.subr.mxu0 0.0
      %847 = vmatpush1.msra.mxu0 0.0
      %848 = vmatprep.subr.mxu0 0.0
      %849 = vmatpush1.msra.mxu0 0.0
      %850 = vmatprep.subr.mxu0 0.0
      %851 = vmatpush1.msra.mxu0 0.0
      %852 = vmatprep.subr.mxu0 0.0
      %853 = vmatpush1.msra.mxu0 0.0
      %854 = vmatprep.subr.mxu0 0.0
      %855 = vmatpush1.msra.mxu0 0.0
      %856 = vmatprep.subr.mxu0 0.0
      %857 = vmatpush1.msra.mxu0 0.0
      %858 = vmatprep.subr.mxu0 0.0
      %859 = vmatpush1.msra.mxu0 0.0
      %860 = vmatprep.subr.mxu0 0.0
      %861 = vmatpush1.msra.mxu0 0.0
      %862 = vmatprep.subr.mxu0 0.0
      %863 = vmatpush1.msra.mxu0 0.0
      %864 = vmatprep.subr.mxu0 0.0
      %865 = vmatpush1.msra.mxu0 0.0
      %866 = vmatprep.subr.mxu0 0.0
      %867 = vmatpush1.msra.mxu0 0.0
      %868 = vmatprep.mubr.f32.mxu0 0.0
      %869 = vmatmul.mubr.f32.gmra.mrb[0].mxu0 %v662
      %v870 = vpop.f32.mrb[0].mxu0
      %v871 = vadd.f32 0.0, %v870
      %v872 = vpop.f32.mrb[0].mxu0
      %873 = vdwg.mxu0
      %874 = vmatprep.subr.mxu0 0.0
      %875 = vmatpush1.msra.mxu0 %v581
      %876 = vmatprep.subr.mxu0 0.0
      %877 = vmatpush1.msra.mxu0 %v582
      %878 = vmatprep.subr.mxu0 0.0
      %879 = vmatpush1.msra.mxu0 0.0
      %880 = vmatprep.subr.mxu0 0.0
      %881 = vmatpush1.msra.mxu0 0.0
      %882 = vmatprep.subr.mxu0 0.0
      %883 = vmatpush1.msra.mxu0 0.0
      %884 = vmatprep.subr.mxu0 0.0
      %885 = vmatpush1.msra.mxu0 0.0
      %886 = vmatprep.subr.mxu0 0.0
      %887 = vmatpush1.msra.mxu0 0.0
      %888 = vmatprep.subr.mxu0 0.0
      %889 = vmatpush1.msra.mxu0 0.0
      %890 = vmatprep.subr.mxu0 0.0
      %891 = vmatpush1.msra.mxu0 0.0
      %892 = vmatprep.subr.mxu0 0.0
      %893 = vmatpush1.msra.mxu0 0.0
      %894 = vmatprep.subr.mxu0 0.0
      %895 = vmatpush1.msra.mxu0 0.0
      %896 = vmatprep.subr.mxu0 0.0
      %897 = vmatpush1.msra.mxu0 0.0
      %898 = vmatprep.subr.mxu0 0.0
      %899 = vmatpush1.msra.mxu0 0.0
      %900 = vmatprep.subr.mxu0 0.0
      %901 = vmatpush1.msra.mxu0 0.0
      %902 = vmatprep.subr.mxu0 0.0
      %903 = vmatpush1.msra.mxu0 0.0
      %904 = vmatprep.subr.mxu0 0.0
      %905 = vmatpush1.msra.mxu0 0.0
      %906 = vmatprep.subr.mxu0 0.0
      %907 = vmatpush1.msra.mxu0 0.0
      %908 = vmatprep.subr.mxu0 0.0
      %909 = vmatpush1.msra.mxu0 0.0
      %910 = vmatprep.subr.mxu0 0.0
      %911 = vmatpush1.msra.mxu0 0.0
      %912 = vmatprep.subr.mxu0 0.0
      %913 = vmatpush1.msra.mxu0 0.0
      %914 = vmatprep.subr.mxu0 0.0
      %915 = vmatpush1.msra.mxu0 0.0
      %916 = vmatprep.subr.mxu0 0.0
      %917 = vmatpush1.msra.mxu0 0.0
      %918 = vmatprep.subr.mxu0 0.0
      %919 = vmatpush1.msra.mxu0 0.0
      %920 = vmatprep.subr.mxu0 0.0
      %921 = vmatpush1.msra.mxu0 0.0
      %922 = vmatprep.subr.mxu0 0.0
      %923 = vmatpush1.msra.mxu0 0.0
      %924 = vmatprep.subr.mxu0 0.0
      %925 = vmatpush1.msra.mxu0 0.0
      %926 = vmatprep.subr.mxu0 0.0
      %927 = vmatpush1.msra.mxu0 0.0
      %928 = vmatprep.subr.mxu0 0.0
      %929 = vmatpush1.msra.mxu0 0.0
      %930 = vmatprep.subr.mxu0 0.0
      %931 = vmatpush1.msra.mxu0 0.0
      %932 = vmatprep.subr.mxu0 0.0
      %933 = vmatpush1.msra.mxu0 0.0
      %934 = vmatprep.subr.mxu0 0.0
      %935 = vmatpush1.msra.mxu0 0.0
      %936 = vmatprep.subr.mxu0 0.0
      %937 = vmatpush1.msra.mxu0 0.0
      %938 = vmatprep.mubr.f32.mxu0 0.0
      %939 = vmatmul.mubr.f32.gmra.mrb[0].mxu0 %v589
      %v940 = vpop.f32.mrb[0].mxu0
      %v941 = vadd.f32 0.0, %v940
      %v942 = vpop.f32.mrb[0].mxu0
      %943 = vdwg.mxu0
      %944 = vmatprep.subr.mxu0 0.0
      %945 = vmatpush1.msra.mxu0 %v581
      %946 = vmatprep.subr.mxu0 0.0
      %947 = vmatpush1.msra.mxu0 %v582
      %948 = vmatprep.subr.mxu0 0.0
      %949 = vmatpush1.msra.mxu0 0.0
      %950 = vmatprep.subr.mxu0 0.0
      %951 = vmatpush1.msra.mxu0 0.0
      %952 = vmatprep.subr.mxu0 0.0
      %953 = vmatpush1.msra.mxu0 0.0
      %954 = vmatprep.subr.mxu0 0.0
      %955 = vmatpush1.msra.mxu0 0.0
      %956 = vmatprep.subr.mxu0 0.0
      %957 = vmatpush1.msra.mxu0 0.0
      %958 = vmatprep.subr.mxu0 0.0
      %959 = vmatpush1.msra.mxu0 0.0
      %960 = vmatprep.subr.mxu0 0.0
      %961 = vmatpush1.msra.mxu0 0.0
      %962 = vmatprep.subr.mxu0 0.0
      %963 = vmatpush1.msra.mxu0 0.0
      %964 = vmatprep.subr.mxu0 0.0
      %965 = vmatpush1.msra.mxu0 0.0
      %966 = vmatprep.subr.mxu0 0.0
      %967 = vmatpush1.msra.mxu0 0.0
      %968 = vmatprep.subr.mxu0 0.0
      %969 = vmatpush1.msra.mxu0 0.0
      %970 = vmatprep.subr.mxu0 0.0
      %971 = vmatpush1.msra.mxu0 0.0
      %972 = vmatprep.subr.mxu0 0.0
      %973 = vmatpush1.msra.mxu0 0.0
      %974 = vmatprep.subr.mxu0 0.0
      %975 = vmatpush1.msra.mxu0 0.0
      %976 = vmatprep.subr.mxu0 0.0
      %977 = vmatpush1.msra.mxu0 0.0
      %978 = vmatprep.subr.mxu0 0.0
      %979 = vmatpush1.msra.mxu0 0.0
      %980 = vmatprep.subr.mxu0 0.0
      %981 = vmatpush1.msra.mxu0 0.0
      %982 = vmatprep.subr.mxu0 0.0
      %983 = vmatpush1.msra.mxu0 0.0
      %984 = vmatprep.subr.mxu0 0.0
      %985 = vmatpush1.msra.mxu0 0.0
      %986 = vmatprep.subr.mxu0 0.0
      %987 = vmatpush1.msra.mxu0 0.0
      %988 = vmatprep.subr.mxu0 0.0
      %989 = vmatpush1.msra.mxu0 0.0
      %990 = vmatprep.subr.mxu0 0.0
      %991 = vmatpush1.msra.mxu0 0.0
      %992 = vmatprep.subr.mxu0 0.0
      %993 = vmatpush1.msra.mxu0 0.0
      %994 = vmatprep.subr.mxu0 0.0
      %995 = vmatpush1.msra.mxu0 0.0
      %996 = vmatprep.subr.mxu0 0.0
      %997 = vmatpush1.msra.mxu0 0.0
      %998 = vmatprep.subr.mxu0 0.0
      %999 = vmatpush1.msra.mxu0 0.0
      %1000 = vmatprep.subr.mxu0 0.0
      %1001 = vmatpush1.msra.mxu0 0.0
      %1002 = vmatprep.subr.mxu0 0.0
      %1003 = vmatpush1.msra.mxu0 0.0
      %1004 = vmatprep.subr.mxu0 0.0
      %1005 = vmatpush1.msra.mxu0 0.0
      %1006 = vmatprep.subr.mxu0 0.0
      %1007 = vmatpush1.msra.mxu0 0.0
      %1008 = vmatprep.mubr.f32.mxu0 0.0
      %1009 = vmatmul.mubr.f32.gmra.mrb[0].mxu0 %v662
      %v1010 = vpop.f32.mrb[0].mxu0
      %v1011 = vadd.f32 0.0, %v1010
      %v1012 = vpop.f32.mrb[0].mxu0
      %1013 = vdwg.mxu0
      %vm1014 = vcmask 64512
      %v1016 = vsel %vm1014, %v658, 0
      %v1019 = vsel %vm1014, %v801, 0
      %1021 = vmatprep.subr.mxu0 0.0
      %1022 = vmatpush1.xpose.msra.mxu0 %v1019
      %1023 = vmatprep.subr.mxu0 0.0
      %1024 = vmatpush1.xpose.msra.mxu0 0.0
      %1025 = vmatprep.subr.mxu0 0.0
      %1026 = vmatpush1.xpose.msra.mxu0 0.0
      %1027 = vmatprep.subr.mxu0 0.0
      %1028 = vmatpush1.xpose.msra.mxu0 0.0
      %1029 = vmatprep.subr.mxu0 0.0
      %1030 = vmatpush1.xpose.msra.mxu0 0.0
      %1031 = vmatprep.subr.mxu0 0.0
      %1032 = vmatpush1.xpose.msra.mxu0 0.0
      %1033 = vmatprep.subr.mxu0 0.0
      %1034 = vmatpush1.xpose.msra.mxu0 0.0
      %1035 = vmatprep.subr.mxu0 0.0
      %1036 = vmatpush1.xpose.msra.mxu0 0.0
      %1037 = vmatprep.subr.mxu0 0.0
      %1038 = vmatpush1.xpose.msra.mxu0 0.0
      %1039 = vmatprep.subr.mxu0 0.0
      %1040 = vmatpush1.xpose.msra.mxu0 0.0
      %1041 = vmatprep.subr.mxu0 0.0
      %1042 = vmatpush1.xpose.msra.mxu0 0.0
      %1043 = vmatprep.subr.mxu0 0.0
      %1044 = vmatpush1.xpose.msra.mxu0 0.0
      %1045 = vmatprep.subr.mxu0 0.0
      %1046 = vmatpush1.xpose.msra.mxu0 0.0
      %1047 = vmatprep.subr.mxu0 0.0
      %1048 = vmatpush1.xpose.msra.mxu0 0.0
      %1049 = vmatprep.subr.mxu0 0.0
      %1050 = vmatpush1.xpose.msra.mxu0 0.0
      %1051 = vmatprep.subr.mxu0 0.0
      %1052 = vmatpush1.xpose.msra.mxu0 0.0
      %1053 = vmatprep.subr.mxu0 0.0
      %1054 = vmatpush1.xpose.msra.mxu0 0.0
      %1055 = vmatprep.subr.mxu0 0.0
      %1056 = vmatpush1.xpose.msra.mxu0 0.0
      %1057 = vmatprep.subr.mxu0 0.0
      %1058 = vmatpush1.xpose.msra.mxu0 0.0
      %1059 = vmatprep.subr.mxu0 0.0
      %1060 = vmatpush1.xpose.msra.mxu0 0.0
      %1061 = vmatprep.subr.mxu0 0.0
      %1062 = vmatpush1.xpose.msra.mxu0 0.0
      %1063 = vmatprep.subr.mxu0 0.0
      %1064 = vmatpush1.xpose.msra.mxu0 0.0
      %1065 = vmatprep.subr.mxu0 0.0
      %1066 = vmatpush1.xpose.msra.mxu0 0.0
      %1067 = vmatprep.subr.mxu0 0.0
      %1068 = vmatpush1.xpose.msra.mxu0 0.0
      %1069 = vmatprep.subr.mxu0 0.0
      %1070 = vmatpush1.xpose.msra.mxu0 0.0
      %1071 = vmatprep.subr.mxu0 0.0
      %1072 = vmatpush1.xpose.msra.mxu0 0.0
      %1073 = vmatprep.subr.mxu0 0.0
      %1074 = vmatpush1.xpose.msra.mxu0 0.0
      %1075 = vmatprep.subr.mxu0 0.0
      %1076 = vmatpush1.xpose.msra.mxu0 0.0
      %1077 = vmatprep.subr.mxu0 0.0
      %1078 = vmatpush1.xpose.msra.mxu0 0.0
      %1079 = vmatprep.subr.mxu0 0.0
      %1080 = vmatpush1.xpose.msra.mxu0 0.0
      %1081 = vmatprep.subr.mxu0 0.0
      %1082 = vmatpush1.xpose.msra.mxu0 0.0
      %1083 = vmatprep.subr.mxu0 0.0
      %1084 = vmatpush1.xpose.msra.mxu0 0.0
      %1085 = vmatprep.mubr.f32.mxu0 0.0
      %1086 = vmatmul.mubr.f32.gmra.mrb[0].mxu0 %v1016
      %v1087 = vpop.f32.mrb[0].mxu0
      %v1088 = vadd.f32 0.0, %v1087
      %v1089 = vpop.f32.mrb[0].mxu0
      %1090 = vdwg.mxu0
      %v1092 = vsel %vm1014, %v731, 0
      %v1095 = vsel %vm1014, %v871, 0
      %1097 = vmatprep.subr.mxu0 0.0
      %1098 = vmatpush1.xpose.msra.mxu0 %v1095
      %1099 = vmatprep.subr.mxu0 0.0
      %1100 = vmatpush1.xpose.msra.mxu0 0.0
      %1101 = vmatprep.subr.mxu0 0.0
      %1102 = vmatpush1.xpose.msra.mxu0 0.0
      %1103 = vmatprep.subr.mxu0 0.0
      %1104 = vmatpush1.xpose.msra.mxu0 0.0
      %1105 = vmatprep.subr.mxu0 0.0
      %1106 = vmatpush1.xpose.msra.mxu0 0.0
      %1107 = vmatprep.subr.mxu0 0.0
      %1108 = vmatpush1.xpose.msra.mxu0 0.0
      %1109 = vmatprep.subr.mxu0 0.0
      %1110 = vmatpush1.xpose.msra.mxu0 0.0
      %1111 = vmatprep.subr.mxu0 0.0
      %1112 = vmatpush1.xpose.msra.mxu0 0.0
      %1113 = vmatprep.subr.mxu0 0.0
      %1114 = vmatpush1.xpose.msra.mxu0 0.0
      %1115 = vmatprep.subr.mxu0 0.0
      %1116 = vmatpush1.xpose.msra.mxu0 0.0
      %1117 = vmatprep.subr.mxu0 0.0
      %1118 = vmatpush1.xpose.msra.mxu0 0.0
      %1119 = vmatprep.subr.mxu0 0.0
      %1120 = vmatpush1.xpose.msra.mxu0 0.0
      %1121 = vmatprep.subr.mxu0 0.0
      %1122 = vmatpush1.xpose.msra.mxu0 0.0
      %1123 = vmatprep.subr.mxu0 0.0
      %1124 = vmatpush1.xpose.msra.mxu0 0.0
      %1125 = vmatprep.subr.mxu0 0.0
      %1126 = vmatpush1.xpose.msra.mxu0 0.0
      %1127 = vmatprep.subr.mxu0 0.0
      %1128 = vmatpush1.xpose.msra.mxu0 0.0
      %1129 = vmatprep.subr.mxu0 0.0
      %1130 = vmatpush1.xpose.msra.mxu0 0.0
      %1131 = vmatprep.subr.mxu0 0.0
      %1132 = vmatpush1.xpose.msra.mxu0 0.0
      %1133 = vmatprep.subr.mxu0 0.0
      %1134 = vmatpush1.xpose.msra.mxu0 0.0
      %1135 = vmatprep.subr.mxu0 0.0
      %1136 = vmatpush1.xpose.msra.mxu0 0.0
      %1137 = vmatprep.subr.mxu0 0.0
      %1138 = vmatpush1.xpose.msra.mxu0 0.0
      %1139 = vmatprep.subr.mxu0 0.0
      %1140 = vmatpush1.xpose.msra.mxu0 0.0
      %1141 = vmatprep.subr.mxu0 0.0
      %1142 = vmatpush1.xpose.msra.mxu0 0.0
      %1143 = vmatprep.subr.mxu0 0.0
      %1144 = vmatpush1.xpose.msra.mxu0 0.0
      %1145 = vmatprep.subr.mxu0 0.0
      %1146 = vmatpush1.xpose.msra.mxu0 0.0
      %1147 = vmatprep.subr.mxu0 0.0
      %1148 = vmatpush1.xpose.msra.mxu0 0.0
      %1149 = vmatprep.subr.mxu0 0.0
      %1150 = vmatpush1.xpose.msra.mxu0 0.0
      %1151 = vmatprep.subr.mxu0 0.0
      %1152 = vmatpush1.xpose.msra.mxu0 0.0
      %1153 = vmatprep.subr.mxu0 0.0
      %1154 = vmatpush1.xpose.msra.mxu0 0.0
      %1155 = vmatprep.subr.mxu0 0.0
      %1156 = vmatpush1.xpose.msra.mxu0 0.0
      %1157 = vmatprep.subr.mxu0 0.0
      %1158 = vmatpush1.xpose.msra.mxu0 0.0
      %1159 = vmatprep.subr.mxu0 0.0
      %1160 = vmatpush1.xpose.msra.mxu0 0.0
      %1161 = vmatprep.mubr.f32.mxu0 0.0
      %1162 = vmatmul.mubr.f32.gmra.mrb[0].mxu0 %v1092
      %v1163 = vpop.f32.mrb[0].mxu0
      %v1164 = vadd.f32 0.0, %v1163
      %v1165 = vpop.f32.mrb[0].mxu0
      %1166 = vdwg.mxu0
      %v1167 = vmul.f32 %v1088, 0.35355338
      %v1168 = vmul.f32 %v1164, 0.35355338
      %vm1169 = vcmask 36864
      %v1170 = vsel %vm1169, %v1167, -inf
      %1171 = vmax.xlane.f32.xlu0 %v1170
      %v1172 = vpop.xlane.xlu0 %1171
      %v1173 = vsel %vm1169, %v1168, -inf
      %1174 = vmax.xlane.f32.xlu0 %v1173
      %v1175 = vpop.xlane.xlu0 %1174
      %v1176 = vsub.f32 %v1167, %v1172
      %v1177 = vsub.f32 %v1168, %v1175
      %v1178 = vmul.f32 %v1176, 1.442695
      %v1179 = vpow.pop %v1178
      %v1180 = vmul.f32 %v1177, 1.442695
      %v1181 = vpow.pop %v1180
      %v1182 = vsel %vm1169, %v1179, 0.0
      %1183 = vadd.xlane.f32.xlu0 %v1182
      %v1184 = vpop.xlane.xlu0 %1183
      %v1185 = vsel %vm1169, %v1181, 0.0
      %1186 = vadd.xlane.f32.xlu0 %v1185
      %v1187 = vpop.xlane.xlu0 %1186
      %v1188 = vrcp.pop %v1184
      %v1189 = vmul.f32 %v1179, %v1188
      %v1190 = vrcp.pop %v1187
      %v1191 = vmul.f32 %v1181, %v1190
      %vm1192 = vcmask 39936
      %v1194 = vsel %vm1192, %v1189, 0
      %vm1196 = vcmask 1044480
      %v1198 = vsel %vm1196, %v941, 0
      %1200 = vmatprep.subr.mxu0 0.0
      %1201 = vmatpush1.msra.mxu0 %v1198
      %1202 = vmatprep.subr.mxu0 0.0
      %1203 = vmatpush1.msra.mxu0 0.0
      %1204 = vmatprep.subr.mxu0 0.0
      %1205 = vmatpush1.msra.mxu0 0.0
      %1206 = vmatprep.subr.mxu0 0.0
      %1207 = vmatpush1.msra.mxu0 0.0
      %1208 = vmatprep.subr.mxu0 0.0
      %1209 = vmatpush1.msra.mxu0 0.0
      %1210 = vmatprep.subr.mxu0 0.0
      %1211 = vmatpush1.msra.mxu0 0.0
      %1212 = vmatprep.subr.mxu0 0.0
      %1213 = vmatpush1.msra.mxu0 0.0
      %1214 = vmatprep.subr.mxu0 0.0
      %1215 = vmatpush1.msra.mxu0 0.0
      %1216 = vmatprep.subr.mxu0 0.0
      %1217 = vmatpush1.msra.mxu0 0.0
      %1218 = vmatprep.subr.mxu0 0.0
      %1219 = vmatpush1.msra.mxu0 0.0
      %1220 = vmatprep.subr.mxu0 0.0
      %1221 = vmatpush1.msra.mxu0 0.0
      %1222 = vmatprep.subr.mxu0 0.0
      %1223 = vmatpush1.msra.mxu0 0.0
      %1224 = vmatprep.subr.mxu0 0.0
      %1225 = vmatpush1.msra.mxu0 0.0
      %1226 = vmatprep.subr.mxu0 0.0
      %1227 = vmatpush1.msra.mxu0 0.0
      %1228 = vmatprep.subr.mxu0 0.0
      %1229 = vmatpush1.msra.mxu0 0.0
      %1230 = vmatprep.subr.mxu0 0.0
      %1231 = vmatpush1.msra.mxu0 0.0
      %1232 = vmatprep.subr.mxu0 0.0
      %1233 = vmatpush1.msra.mxu0 0.0
      %1234 = vmatprep.subr.mxu0 0.0
      %1235 = vmatpush1.msra.mxu0 0.0
      %1236 = vmatprep.subr.mxu0 0.0
      %1237 = vmatpush1.msra.mxu0 0.0
      %1238 = vmatprep.subr.mxu0 0.0
      %1239 = vmatpush1.msra.mxu0 0.0
      %1240 = vmatprep.subr.mxu0 0.0
      %1241 = vmatpush1.msra.mxu0 0.0
      %1242 = vmatprep.subr.mxu0 0.0
      %1243 = vmatpush1.msra.mxu0 0.0
      %1244 = vmatprep.subr.mxu0 0.0
      %1245 = vmatpush1.msra.mxu0 0.0
      %1246 = vmatprep.subr.mxu0 0.0
      %1247 = vmatpush1.msra.mxu0 0.0
      %1248 = vmatprep.subr.mxu0 0.0
      %1249 = vmatpush1.msra.mxu0 0.0
      %1250 = vmatprep.subr.mxu0 0.0
      %1251 = vmatpush1.msra.mxu0 0.0
      %1252 = vmatprep.subr.mxu0 0.0
      %1253 = vmatpush1.msra.mxu0 0.0
      %1254 = vmatprep.subr.mxu0 0.0
      %1255 = vmatpush1.msra.mxu0 0.0
      %1256 = vmatprep.subr.mxu0 0.0
      %1257 = vmatpush1.msra.mxu0 0.0
      %1258 = vmatprep.subr.mxu0 0.0
      %1259 = vmatpush1.msra.mxu0 0.0
      %1260 = vmatprep.subr.mxu0 0.0
      %1261 = vmatpush1.msra.mxu0 0.0
      %1262 = vmatprep.subr.mxu0 0.0
      %1263 = vmatpush1.msra.mxu0 0.0
      %1264 = vmatprep.mubr.f32.mxu0 0.0
      %1265 = vmatmul.mubr.f32.gmra.mrb[0].mxu0 %v1194
      %v1266 = vpop.f32.mrb[0].mxu0
      %v1267 = vadd.f32 0.0, %v1266
      %v1268 = vpop.f32.mrb[0].mxu0
      %1269 = vdwg.mxu0
      %v1271 = vsel %vm1192, %v1191, 0
      %v1274 = vsel %vm1196, %v1011, 0
      %1276 = vmatprep.subr.mxu0 0.0
      %1277 = vmatpush1.msra.mxu0 %v1274
      %1278 = vmatprep.subr.mxu0 0.0
      %1279 = vmatpush1.msra.mxu0 0.0
      %1280 = vmatprep.subr.mxu0 0.0
      %1281 = vmatpush1.msra.mxu0 0.0
      %1282 = vmatprep.subr.mxu0 0.0
      %1283 = vmatpush1.msra.mxu0 0.0
      %1284 = vmatprep.subr.mxu0 0.0
      %1285 = vmatpush1.msra.mxu0 0.0
      %1286 = vmatprep.subr.mxu0 0.0
      %1287 = vmatpush1.msra.mxu0 0.0
      %1288 = vmatprep.subr.mxu0 0.0
      %1289 = vmatpush1.msra.mxu0 0.0
      %1290 = vmatprep.subr.mxu0 0.0
      %1291 = vmatpush1.msra.mxu0 0.0
      %1292 = vmatprep.subr.mxu0 0.0
      %1293 = vmatpush1.msra.mxu0 0.0
      %1294 = vmatprep.subr.mxu0 0.0
      %1295 = vmatpush1.msra.mxu0 0.0
      %1296 = vmatprep.subr.mxu0 0.0
      %1297 = vmatpush1.msra.mxu0 0.0
      %1298 = vmatprep.subr.mxu0 0.0
      %1299 = vmatpush1.msra.mxu0 0.0
      %1300 = vmatprep.subr.mxu0 0.0
      %1301 = vmatpush1.msra.mxu0 0.0
      %1302 = vmatprep.subr.mxu0 0.0
      %1303 = vmatpush1.msra.mxu0 0.0
      %1304 = vmatprep.subr.mxu0 0.0
      %1305 = vmatpush1.msra.mxu0 0.0
      %1306 = vmatprep.subr.mxu0 0.0
      %1307 = vmatpush1.msra.mxu0 0.0
      %1308 = vmatprep.subr.mxu0 0.0
      %1309 = vmatpush1.msra.mxu0 0.0
      %1310 = vmatprep.subr.mxu0 0.0
      %1311 = vmatpush1.msra.mxu0 0.0
      %1312 = vmatprep.subr.mxu0 0.0
      %1313 = vmatpush1.msra.mxu0 0.0
      %1314 = vmatprep.subr.mxu0 0.0
      %1315 = vmatpush1.msra.mxu0 0.0
      %1316 = vmatprep.subr.mxu0 0.0
      %1317 = vmatpush1.msra.mxu0 0.0
      %1318 = vmatprep.subr.mxu0 0.0
      %1319 = vmatpush1.msra.mxu0 0.0
      %1320 = vmatprep.subr.mxu0 0.0
      %1321 = vmatpush1.msra.mxu0 0.0
      %1322 = vmatprep.subr.mxu0 0.0
      %1323 = vmatpush1.msra.mxu0 0.0
      %1324 = vmatprep.subr.mxu0 0.0
      %1325 = vmatpush1.msra.mxu0 0.0
      %1326 = vmatprep.subr.mxu0 0.0
      %1327 = vmatpush1.msra.mxu0 0.0
      %1328 = vmatprep.subr.mxu0 0.0
      %1329 = vmatpush1.msra.mxu0 0.0
      %1330 = vmatprep.subr.mxu0 0.0
      %1331 = vmatpush1.msra.mxu0 0.0
      %1332 = vmatprep.subr.mxu0 0.0
      %1333 = vmatpush1.msra.mxu0 0.0
      %1334 = vmatprep.subr.mxu0 0.0
      %1335 = vmatpush1.msra.mxu0 0.0
      %1336 = vmatprep.subr.mxu0 0.0
      %1337 = vmatpush1.msra.mxu0 0.0
      %1338 = vmatprep.subr.mxu0 0.0
      %1339 = vmatpush1.msra.mxu0 0.0
      %1340 = vmatprep.mubr.f32.mxu0 0.0
      %1341 = vmatmul.mubr.f32.gmra.mrb[0].mxu0 %v1271
      %v1342 = vpop.f32.mrb[0].mxu0
      %v1343 = vadd.f32 0.0, %v1342
      %v1344 = vpop.f32.mrb[0].mxu0
      %1345 = vdwg.mxu0
      %1346 = vmatprep.subr.mxu0 0.0
      %1347 = vmatpush1.msra.mxu0 %v575
      %1348 = vmatprep.subr.mxu0 0.0
      %1349 = vmatpush1.msra.mxu0 %v576
      %1350 = vmatprep.subr.mxu0 0.0
      %1351 = vmatpush1.msra.mxu0 0.0
      %1352 = vmatprep.subr.mxu0 0.0
      %1353 = vmatpush1.msra.mxu0 0.0
      %1354 = vmatprep.subr.mxu0 0.0
      %1355 = vmatpush1.msra.mxu0 0.0
      %1356 = vmatprep.subr.mxu0 0.0
      %1357 = vmatpush1.msra.mxu0 0.0
      %1358 = vmatprep.subr.mxu0 0.0
      %1359 = vmatpush1.msra.mxu0 0.0
      %1360 = vmatprep.subr.mxu0 0.0
      %1361 = vmatpush1.msra.mxu0 0.0
      %1362 = vmatprep.subr.mxu0 0.0
      %1363 = vmatpush1.msra.mxu0 0.0
      %1364 = vmatprep.subr.mxu0 0.0
      %1365 = vmatpush1.msra.mxu0 0.0
      %1366 = vmatprep.subr.mxu0 0.0
      %1367 = vmatpush1.msra.mxu0 0.0
      %1368 = vmatprep.subr.mxu0 0.0
      %1369 = vmatpush1.msra.mxu0 0.0
      %1370 = vmatprep.subr.mxu0 0.0
      %1371 = vmatpush1.msra.mxu0 0.0
      %1372 = vmatprep.subr.mxu0 0.0
      %1373 = vmatpush1.msra.mxu0 0.0
      %1374 = vmatprep.subr.mxu0 0.0
      %1375 = vmatpush1.msra.mxu0 0.0
      %1376 = vmatprep.subr.mxu0 0.0
      %1377 = vmatpush1.msra.mxu0 0.0
      %1378 = vmatprep.subr.mxu0 0.0
      %1379 = vmatpush1.msra.mxu0 0.0
      %1380 = vmatprep.subr.mxu0 0.0
      %1381 = vmatpush1.msra.mxu0 0.0
      %1382 = vmatprep.subr.mxu0 0.0
      %1383 = vmatpush1.msra.mxu0 0.0
      %1384 = vmatprep.subr.mxu0 0.0
      %1385 = vmatpush1.msra.mxu0 0.0
      %1386 = vmatprep.subr.mxu0 0.0
      %1387 = vmatpush1.msra.mxu0 0.0
      %1388 = vmatprep.subr.mxu0 0.0
      %1389 = vmatpush1.msra.mxu0 0.0
      %1390 = vmatprep.subr.mxu0 0.0
      %1391 = vmatpush1.msra.mxu0 0.0
      %1392 = vmatprep.subr.mxu0 0.0
      %1393 = vmatpush1.msra.mxu0 0.0
      %1394 = vmatprep.subr.mxu0 0.0
      %1395 = vmatpush1.msra.mxu0 0.0
      %1396 = vmatprep.subr.mxu0 0.0
      %1397 = vmatpush1.msra.mxu0 0.0
      %1398 = vmatprep.subr.mxu0 0.0
      %1399 = vmatpush1.msra.mxu0 0.0
      %1400 = vmatprep.subr.mxu0 0.0
      %1401 = vmatpush1.msra.mxu0 0.0
      %1402 = vmatprep.subr.mxu0 0.0
      %1403 = vmatpush1.msra.mxu0 0.0
      %1404 = vmatprep.subr.mxu0 0.0
      %1405 = vmatpush1.msra.mxu0 0.0
      %1406 = vmatprep.subr.mxu0 0.0
      %1407 = vmatpush1.msra.mxu0 0.0
      %1408 = vmatprep.subr.mxu0 0.0
      %1409 = vmatpush1.msra.mxu0 0.0
      %1410 = vmatprep.mubr.f32.mxu0 0.0
      %1411 = vmatmul.mubr.f32.gmra.mrb[0].mxu0 %v589
      %v1412 = vpop.f32.mrb[0].mxu0
      %v1413 = vadd.f32 0.0, %v1412
      %v1414 = vpop.f32.mrb[0].mxu0
      %1415 = vdwg.mxu0
      %1416 = vmatprep.subr.mxu0 0.0
      %1417 = vmatpush1.msra.mxu0 %v575
      %1418 = vmatprep.subr.mxu0 0.0
      %1419 = vmatpush1.msra.mxu0 %v576
      %1420 = vmatprep.subr.mxu0 0.0
      %1421 = vmatpush1.msra.mxu0 0.0
      %1422 = vmatprep.subr.mxu0 0.0
      %1423 = vmatpush1.msra.mxu0 0.0
      %1424 = vmatprep.subr.mxu0 0.0
      %1425 = vmatpush1.msra.mxu0 0.0
      %1426 = vmatprep.subr.mxu0 0.0
      %1427 = vmatpush1.msra.mxu0 0.0
      %1428 = vmatprep.subr.mxu0 0.0
      %1429 = vmatpush1.msra.mxu0 0.0
      %1430 = vmatprep.subr.mxu0 0.0
      %1431 = vmatpush1.msra.mxu0 0.0
      %1432 = vmatprep.subr.mxu0 0.0
      %1433 = vmatpush1.msra.mxu0 0.0
      %1434 = vmatprep.subr.mxu0 0.0
      %1435 = vmatpush1.msra.mxu0 0.0
      %1436 = vmatprep.subr.mxu0 0.0
      %1437 = vmatpush1.msra.mxu0 0.0
      %1438 = vmatprep.subr.mxu0 0.0
      %1439 = vmatpush1.msra.mxu0 0.0
      %1440 = vmatprep.subr.mxu0 0.0
      %1441 = vmatpush1.msra.mxu0 0.0
      %1442 = vmatprep.subr.mxu0 0.0
      %1443 = vmatpush1.msra.mxu0 0.0
      %1444 = vmatprep.subr.mxu0 0.0
      %1445 = vmatpush1.msra.mxu0 0.0
      %1446 = vmatprep.subr.mxu0 0.0
      %1447 = vmatpush1.msra.mxu0 0.0
      %1448 = vmatprep.subr.mxu0 0.0
      %1449 = vmatpush1.msra.mxu0 0.0
      %1450 = vmatprep.subr.mxu0 0.0
      %1451 = vmatpush1.msra.mxu0 0.0
      %1452 = vmatprep.subr.mxu0 0.0
      %1453 = vmatpush1.msra.mxu0 0.0
      %1454 = vmatprep.subr.mxu0 0.0
      %1455 = vmatpush1.msra.mxu0 0.0
      %1456 = vmatprep.subr.mxu0 0.0
      %1457 = vmatpush1.msra.mxu0 0.0
      %1458 = vmatprep.subr.mxu0 0.0
      %1459 = vmatpush1.msra.mxu0 0.0
      %1460 = vmatprep.subr.mxu0 0.0
      %1461 = vmatpush1.msra.mxu0 0.0
      %1462 = vmatprep.subr.mxu0 0.0
      %1463 = vmatpush1.msra.mxu0 0.0
      %1464 = vmatprep.subr.mxu0 0.0
      %1465 = vmatpush1.msra.mxu0 0.0
      %1466 = vmatprep.subr.mxu0 0.0
      %1467 = vmatpush1.msra.mxu0 0.0
      %1468 = vmatprep.subr.mxu0 0.0
      %1469 = vmatpush1.msra.mxu0 0.0
      %1470 = vmatprep.subr.mxu0 0.0
      %1471 = vmatpush1.msra.mxu0 0.0
      %1472 = vmatprep.subr.mxu0 0.0
      %1473 = vmatpush1.msra.mxu0 0.0
      %1474 = vmatprep.subr.mxu0 0.0
      %1475 = vmatpush1.msra.mxu0 0.0
      %1476 = vmatprep.subr.mxu0 0.0
      %1477 = vmatpush1.msra.mxu0 0.0
      %1478 = vmatprep.subr.mxu0 0.0
      %1479 = vmatpush1.msra.mxu0 0.0
      %1480 = vmatprep.mubr.f32.mxu0 0.0
      %1481 = vmatmul.mubr.f32.gmra.mrb[0].mxu0 %v662
      %v1482 = vpop.f32.mrb[0].mxu0
      %v1483 = vadd.f32 0.0, %v1482
      %v1484 = vpop.f32.mrb[0].mxu0
      %1485 = vdwg.mxu0
      %1486 = vmatprep.subr.mxu0 0.0
      %1487 = vmatpush1.msra.mxu0 %v579
      %1488 = vmatprep.subr.mxu0 0.0
      %1489 = vmatpush1.msra.mxu0 %v580
      %1490 = vmatprep.subr.mxu0 0.0
      %1491 = vmatpush1.msra.mxu0 0.0
      %1492 = vmatprep.subr.mxu0 0.0
      %1493 = vmatpush1.msra.mxu0 0.0
      %1494 = vmatprep.subr.mxu0 0.0
      %1495 = vmatpush1.msra.mxu0 0.0
      %1496 = vmatprep.subr.mxu0 0.0
      %1497 = vmatpush1.msra.mxu0 0.0
      %1498 = vmatprep.subr.mxu0 0.0
      %1499 = vmatpush1.msra.mxu0 0.0
      %1500 = vmatprep.subr.mxu0 0.0
      %1501 = vmatpush1.msra.mxu0 0.0
      %1502 = vmatprep.subr.mxu0 0.0
      %1503 = vmatpush1.msra.mxu0 0.0
      %1504 = vmatprep.subr.mxu0 0.0
      %1505 = vmatpush1.msra.mxu0 0.0
      %1506 = vmatprep.subr.mxu0 0.0
      %1507 = vmatpush1.msra.mxu0 0.0
      %1508 = vmatprep.subr.mxu0 0.0
      %1509 = vmatpush1.msra.mxu0 0.0
      %1510 = vmatprep.subr.mxu0 0.0
      %1511 = vmatpush1.msra.mxu0 0.0
      %1512 = vmatprep.subr.mxu0 0.0
      %1513 = vmatpush1.msra.mxu0 0.0
      %1514 = vmatprep.subr.mxu0 0.0
      %1515 = vmatpush1.msra.mxu0 0.0
      %1516 = vmatprep.subr.mxu0 0.0
      %1517 = vmatpush1.msra.mxu0 0.0
      %1518 = vmatprep.subr.mxu0 0.0
      %1519 = vmatpush1.msra.mxu0 0.0
      %1520 = vmatprep.subr.mxu0 0.0
      %1521 = vmatpush1.msra.mxu0 0.0
      %1522 = vmatprep.subr.mxu0 0.0
      %1523 = vmatpush1.msra.mxu0 0.0
      %1524 = vmatprep.subr.mxu0 0.0
      %1525 = vmatpush1.msra.mxu0 0.0
      %1526 = vmatprep.subr.mxu0 0.0
      %1527 = vmatpush1.msra.mxu0 0.0
      %1528 = vmatprep.subr.mxu0 0.0
      %1529 = vmatpush1.msra.mxu0 0.0
      %1530 = vmatprep.subr.mxu0 0.0
      %1531 = vmatpush1.msra.mxu0 0.0
      %1532 = vmatprep.subr.mxu0 0.0
      %1533 = vmatpush1.msra.mxu0 0.0
      %1534 = vmatprep.subr.mxu0 0.0
      %1535 = vmatpush1.msra.mxu0 0.0
      %1536 = vmatprep.subr.mxu0 0.0
      %1537 = vmatpush1.msra.mxu0 0.0
      %1538 = vmatprep.subr.mxu0 0.0
      %1539 = vmatpush1.msra.mxu0 0.0
      %1540 = vmatprep.subr.mxu0 0.0
      %1541 = vmatpush1.msra.mxu0 0.0
      %1542 = vmatprep.subr.mxu0 0.0
      %1543 = vmatpush1.msra.mxu0 0.0
      %1544 = vmatprep.subr.mxu0 0.0
      %1545 = vmatpush1.msra.mxu0 0.0
      %1546 = vmatprep.subr.mxu0 0.0
      %1547 = vmatpush1.msra.mxu0 0.0
      %1548 = vmatprep.subr.mxu0 0.0
      %1549 = vmatpush1.msra.mxu0 0.0
      %1550 = vmatprep.mubr.f32.mxu0 0.0
      %1551 = vmatmul.mubr.f32.gmra.mrb[0].mxu0 %v589
      %v1552 = vpop.f32.mrb[0].mxu0
      %v1553 = vadd.f32 0.0, %v1552
      %v1554 = vpop.f32.mrb[0].mxu0
      %1555 = vdwg.mxu0
      %1556 = vmatprep.subr.mxu0 0.0
      %1557 = vmatpush1.msra.mxu0 %v579
      %1558 = vmatprep.subr.mxu0 0.0
      %1559 = vmatpush1.msra.mxu0 %v580
      %1560 = vmatprep.subr.mxu0 0.0
      %1561 = vmatpush1.msra.mxu0 0.0
      %1562 = vmatprep.subr.mxu0 0.0
      %1563 = vmatpush1.msra.mxu0 0.0
      %1564 = vmatprep.subr.mxu0 0.0
      %1565 = vmatpush1.msra.mxu0 0.0
      %1566 = vmatprep.subr.mxu0 0.0
      %1567 = vmatpush1.msra.mxu0 0.0
      %1568 = vmatprep.subr.mxu0 0.0
      %1569 = vmatpush1.msra.mxu0 0.0
      %1570 = vmatprep.subr.mxu0 0.0
      %1571 = vmatpush1.msra.mxu0 0.0
      %1572 = vmatprep.subr.mxu0 0.0
      %1573 = vmatpush1.msra.mxu0 0.0
      %1574 = vmatprep.subr.mxu0 0.0
      %1575 = vmatpush1.msra.mxu0 0.0
      %1576 = vmatprep.subr.mxu0 0.0
      %1577 = vmatpush1.msra.mxu0 0.0
      %1578 = vmatprep.subr.mxu0 0.0
      %1579 = vmatpush1.msra.mxu0 0.0
      %1580 = vmatprep.subr.mxu0 0.0
      %1581 = vmatpush1.msra.mxu0 0.0
      %1582 = vmatprep.subr.mxu0 0.0
      %1583 = vmatpush1.msra.mxu0 0.0
      %1584 = vmatprep.subr.mxu0 0.0
      %1585 = vmatpush1.msra.mxu0 0.0
      %1586 = vmatprep.subr.mxu0 0.0
      %1587 = vmatpush1.msra.mxu0 0.0
      %1588 = vmatprep.subr.mxu0 0.0
      %1589 = vmatpush1.msra.mxu0 0.0
      %1590 = vmatprep.subr.mxu0 0.0
      %1591 = vmatpush1.msra.mxu0 0.0
      %1592 = vmatprep.subr.mxu0 0.0
      %1593 = vmatpush1.msra.mxu0 0.0
      %1594 = vmatprep.subr.mxu0 0.0
      %1595 = vmatpush1.msra.mxu0 0.0
      %1596 = vmatprep.subr.mxu0 0.0
      %1597 = vmatpush1.msra.mxu0 0.0
      %1598 = vmatprep.subr.mxu0 0.0
      %1599 = vmatpush1.msra.mxu0 0.0
      %1600 = vmatprep.subr.mxu0 0.0
      %1601 = vmatpush1.msra.mxu0 0.0
      %1602 = vmatprep.subr.mxu0 0.0
      %1603 = vmatpush1.msra.mxu0 0.0
      %1604 = vmatprep.subr.mxu0 0.0
      %1605 = vmatpush1.msra.mxu0 0.0
      %1606 = vmatprep.subr.mxu0 0.0
      %1607 = vmatpush1.msra.mxu0 0.0
      %1608 = vmatprep.subr.mxu0 0.0
      %1609 = vmatpush1.msra.mxu0 0.0
      %1610 = vmatprep.subr.mxu0 0.0
      %1611 = vmatpush1.msra.mxu0 0.0
      %1612 = vmatprep.subr.mxu0 0.0
      %1613 = vmatpush1.msra.mxu0 0.0
      %1614 = vmatprep.subr.mxu0 0.0
      %1615 = vmatpush1.msra.mxu0 0.0
      %1616 = vmatprep.subr.mxu0 0.0
      %1617 = vmatpush1.msra.mxu0 0.0
      %1618 = vmatprep.subr.mxu0 0.0
      %1619 = vmatpush1.msra.mxu0 0.0
      %1620 = vmatprep.mubr.f32.mxu0 0.0
      %1621 = vmatmul.mubr.f32.gmra.mrb[0].mxu0 %v662
      %v1622 = vpop.f32.mrb[0].mxu0
      %v1623 = vadd.f32 0.0, %v1622
      %v1624 = vpop.f32.mrb[0].mxu0
      %1625 = vdwg.mxu0
      %1626 = vmatprep.subr.mxu0 0.0
      %1627 = vmatpush1.msra.mxu0 %v583
      %1628 = vmatprep.subr.mxu0 0.0
      %1629 = vmatpush1.msra.mxu0 %v584
      %1630 = vmatprep.subr.mxu0 0.0
      %1631 = vmatpush1.msra.mxu0 0.0
      %1632 = vmatprep.subr.mxu0 0.0
      %1633 = vmatpush1.msra.mxu0 0.0
      %1634 = vmatprep.subr.mxu0 0.0
      %1635 = vmatpush1.msra.mxu0 0.0
      %1636 = vmatprep.subr.mxu0 0.0
      %1637 = vmatpush1.msra.mxu0 0.0
      %1638 = vmatprep.subr.mxu0 0.0
      %1639 = vmatpush1.msra.mxu0 0.0
      %1640 = vmatprep.subr.mxu0 0.0
      %1641 = vmatpush1.msra.mxu0 0.0
      %1642 = vmatprep.subr.mxu0 0.0
      %1643 = vmatpush1.msra.mxu0 0.0
      %1644 = vmatprep.subr.mxu0 0.0
      %1645 = vmatpush1.msra.mxu0 0.0
      %1646 = vmatprep.subr.mxu0 0.0
      %1647 = vmatpush1.msra.mxu0 0.0
      %1648 = vmatprep.subr.mxu0 0.0
      %1649 = vmatpush1.msra.mxu0 0.0
      %1650 = vmatprep.subr.mxu0 0.0
      %1651 = vmatpush1.msra.mxu0 0.0
      %1652 = vmatprep.subr.mxu0 0.0
      %1653 = vmatpush1.msra.mxu0 0.0
      %1654 = vmatprep.subr.mxu0 0.0
      %1655 = vmatpush1.msra.mxu0 0.0
      %1656 = vmatprep.subr.mxu0 0.0
      %1657 = vmatpush1.msra.mxu0 0.0
      %1658 = vmatprep.subr.mxu0 0.0
      %1659 = vmatpush1.msra.mxu0 0.0
      %1660 = vmatprep.subr.mxu0 0.0
      %1661 = vmatpush1.msra.mxu0 0.0
      %1662 = vmatprep.subr.mxu0 0.0
      %1663 = vmatpush1.msra.mxu0 0.0
      %1664 = vmatprep.subr.mxu0 0.0
      %1665 = vmatpush1.msra.mxu0 0.0
      %1666 = vmatprep.subr.mxu0 0.0
      %1667 = vmatpush1.msra.mxu0 0.0
      %1668 = vmatprep.subr.mxu0 0.0
      %1669 = vmatpush1.msra.mxu0 0.0
      %1670 = vmatprep.subr.mxu0 0.0
      %1671 = vmatpush1.msra.mxu0 0.0
      %1672 = vmatprep.subr.mxu0 0.0
      %1673 = vmatpush1.msra.mxu0 0.0
      %1674 = vmatprep.subr.mxu0 0.0
      %1675 = vmatpush1.msra.mxu0 0.0
      %1676 = vmatprep.subr.mxu0 0.0
      %1677 = vmatpush1.msra.mxu0 0.0
      %1678 = vmatprep.subr.mxu0 0.0
      %1679 = vmatpush1.msra.mxu0 0.0
      %1680 = vmatprep.subr.mxu0 0.0
      %1681 = vmatpush1.msra.mxu0 0.0
      %1682 = vmatprep.subr.mxu0 0.0
      %1683 = vmatpush1.msra.mxu0 0.0
      %1684 = vmatprep.subr.mxu0 0.0
      %1685 = vmatpush1.msra.mxu0 0.0
      %1686 = vmatprep.subr.mxu0 0.0
      %1687 = vmatpush1.msra.mxu0 0.0
      %1688 = vmatprep.subr.mxu0 0.0
      %1689 = vmatpush1.msra.mxu0 0.0
      %1690 = vmatprep.mubr.f32.mxu0 0.0
      %1691 = vmatmul.mubr.f32.gmra.mrb[0].mxu0 %v589
      %v1692 = vpop.f32.mrb[0].mxu0
      %v1693 = vadd.f32 0.0, %v1692
      %v1694 = vpop.f32.mrb[0].mxu0
      %1695 = vdwg.mxu0
      %1696 = vmatprep.subr.mxu0 0.0
      %1697 = vmatpush1.msra.mxu0 %v583
      %1698 = vmatprep.subr.mxu0 0.0
      %1699 = vmatpush1.msra.mxu0 %v584
      %1700 = vmatprep.subr.mxu0 0.0
      %1701 = vmatpush1.msra.mxu0 0.0
      %1702 = vmatprep.subr.mxu0 0.0
      %1703 = vmatpush1.msra.mxu0 0.0
      %1704 = vmatprep.subr.mxu0 0.0
      %1705 = vmatpush1.msra.mxu0 0.0
      %1706 = vmatprep.subr.mxu0 0.0
      %1707 = vmatpush1.msra.mxu0 0.0
      %1708 = vmatprep.subr.mxu0 0.0
      %1709 = vmatpush1.msra.mxu0 0.0
      %1710 = vmatprep.subr.mxu0 0.0
      %1711 = vmatpush1.msra.mxu0 0.0
      %1712 = vmatprep.subr.mxu0 0.0
      %1713 = vmatpush1.msra.mxu0 0.0
      %1714 = vmatprep.subr.mxu0 0.0
      %1715 = vmatpush1.msra.mxu0 0.0
      %1716 = vmatprep.subr.mxu0 0.0
      %1717 = vmatpush1.msra.mxu0 0.0
      %1718 = vmatprep.subr.mxu0 0.0
      %1719 = vmatpush1.msra.mxu0 0.0
      %1720 = vmatprep.subr.mxu0 0.0
      %1721 = vmatpush1.msra.mxu0 0.0
      %1722 = vmatprep.subr.mxu0 0.0
      %1723 = vmatpush1.msra.mxu0 0.0
      %1724 = vmatprep.subr.mxu0 0.0
      %1725 = vmatpush1.msra.mxu0 0.0
      %1726 = vmatprep.subr.mxu0 0.0
      %1727 = vmatpush1.msra.mxu0 0.0
      %1728 = vmatprep.subr.mxu0 0.0
      %1729 = vmatpush1.msra.mxu0 0.0
      %1730 = vmatprep.subr.mxu0 0.0
      %1731 = vmatpush1.msra.mxu0 0.0
      %1732 = vmatprep.subr.mxu0 0.0
      %1733 = vmatpush1.msra.mxu0 0.0
      %1734 = vmatprep.subr.mxu0 0.0
      %1735 = vmatpush1.msra.mxu0 0.0
      %1736 = vmatprep.subr.mxu0 0.0
      %1737 = vmatpush1.msra.mxu0 0.0
      %1738 = vmatprep.subr.mxu0 0.0
      %1739 = vmatpush1.msra.mxu0 0.0
      %1740 = vmatprep.subr.mxu0 0.0
      %1741 = vmatpush1.msra.mxu0 0.0
      %1742 = vmatprep.subr.mxu0 0.0
      %1743 = vmatpush1.msra.mxu0 0.0
      %1744 = vmatprep.subr.mxu0 0.0
      %1745 = vmatpush1.msra.mxu0 0.0
      %1746 = vmatprep.subr.mxu0 0.0
      %1747 = vmatpush1.msra.mxu0 0.0
      %1748 = vmatprep.subr.mxu0 0.0
      %1749 = vmatpush1.msra.mxu0 0.0
      %1750 = vmatprep.subr.mxu0 0.0
      %1751 = vmatpush1.msra.mxu0 0.0
      %1752 = vmatprep.subr.mxu0 0.0
      %1753 = vmatpush1.msra.mxu0 0.0
      %1754 = vmatprep.subr.mxu0 0.0
      %1755 = vmatpush1.msra.mxu0 0.0
      %1756 = vmatprep.subr.mxu0 0.0
      %1757 = vmatpush1.msra.mxu0 0.0
      %1758 = vmatprep.subr.mxu0 0.0
      %1759 = vmatpush1.msra.mxu0 0.0
      %1760 = vmatprep.mubr.f32.mxu0 0.0
      %1761 = vmatmul.mubr.f32.gmra.mrb[0].mxu0 %v662
      %v1762 = vpop.f32.mrb[0].mxu0
      %v1763 = vadd.f32 0.0, %v1762
      %v1764 = vpop.f32.mrb[0].mxu0
      %1765 = vdwg.mxu0
      %v1767 = vsel %vm1014, %v1413, 0
      %v1770 = vsel %vm1014, %v1553, 0
      %1772 = vmatprep.subr.mxu0 0.0
      %1773 = vmatpush1.xpose.msra.mxu0 %v1770
      %1774 = vmatprep.subr.mxu0 0.0
      %1775 = vmatpush1.xpose.msra.mxu0 0.0
      %1776 = vmatprep.subr.mxu0 0.0
      %1777 = vmatpush1.xpose.msra.mxu0 0.0
      %1778 = vmatprep.subr.mxu0 0.0
      %1779 = vmatpush1.xpose.msra.mxu0 0.0
      %1780 = vmatprep.subr.mxu0 0.0
      %1781 = vmatpush1.xpose.msra.mxu0 0.0
      %1782 = vmatprep.subr.mxu0 0.0
      %1783 = vmatpush1.xpose.msra.mxu0 0.0
      %1784 = vmatprep.subr.mxu0 0.0
      %1785 = vmatpush1.xpose.msra.mxu0 0.0
      %1786 = vmatprep.subr.mxu0 0.0
      %1787 = vmatpush1.xpose.msra.mxu0 0.0
      %1788 = vmatprep.subr.mxu0 0.0
      %1789 = vmatpush1.xpose.msra.mxu0 0.0
      %1790 = vmatprep.subr.mxu0 0.0
      %1791 = vmatpush1.xpose.msra.mxu0 0.0
      %1792 = vmatprep.subr.mxu0 0.0
      %1793 = vmatpush1.xpose.msra.mxu0 0.0
      %1794 = vmatprep.subr.mxu0 0.0
      %1795 = vmatpush1.xpose.msra.mxu0 0.0
      %1796 = vmatprep.subr.mxu0 0.0
      %1797 = vmatpush1.xpose.msra.mxu0 0.0
      %1798 = vmatprep.subr.mxu0 0.0
      %1799 = vmatpush1.xpose.msra.mxu0 0.0
      %1800 = vmatprep.subr.mxu0 0.0
      %1801 = vmatpush1.xpose.msra.mxu0 0.0
      %1802 = vmatprep.subr.mxu0 0.0
      %1803 = vmatpush1.xpose.msra.mxu0 0.0
      %1804 = vmatprep.subr.mxu0 0.0
      %1805 = vmatpush1.xpose.msra.mxu0 0.0
      %1806 = vmatprep.subr.mxu0 0.0
      %1807 = vmatpush1.xpose.msra.mxu0 0.0
      %1808 = vmatprep.subr.mxu0 0.0
      %1809 = vmatpush1.xpose.msra.mxu0 0.0
      %1810 = vmatprep.subr.mxu0 0.0
      %1811 = vmatpush1.xpose.msra.mxu0 0.0
      %1812 = vmatprep.subr.mxu0 0.0
      %1813 = vmatpush1.xpose.msra.mxu0 0.0
      %1814 = vmatprep.subr.mxu0 0.0
      %1815 = vmatpush1.xpose.msra.mxu0 0.0
      %1816 = vmatprep.subr.mxu0 0.0
      %1817 = vmatpush1.xpose.msra.mxu0 0.0
      %1818 = vmatprep.subr.mxu0 0.0
      %1819 = vmatpush1.xpose.msra.mxu0 0.0
      %1820 = vmatprep.subr.mxu0 0.0
      %1821 = vmatpush1.xpose.msra.mxu0 0.0
      %1822 = vmatprep.subr.mxu0 0.0
      %1823 = vmatpush1.xpose.msra.mxu0 0.0
      %1824 = vmatprep.subr.mxu0 0.0
      %1825 = vmatpush1.xpose.msra.mxu0 0.0
      %1826 = vmatprep.subr.mxu0 0.0
      %1827 = vmatpush1.xpose.msra.mxu0 0.0
      %1828 = vmatprep.subr.mxu0 0.0
      %1829 = vmatpush1.xpose.msra.mxu0 0.0
      %1830 = vmatprep.subr.mxu0 0.0
      %1831 = vmatpush1.xpose.msra.mxu0 0.0
      %1832 = vmatprep.subr.mxu0 0.0
      %1833 = vmatpush1.xpose.msra.mxu0 0.0
      %1834 = vmatprep.subr.mxu0 0.0
      %1835 = vmatpush1.xpose.msra.mxu0 0.0
      %1836 = vmatprep.mubr.f32.mxu0 0.0
      %1837 = vmatmul.mubr.f32.gmra.mrb[0].mxu0 %v1767
      %v1838 = vpop.f32.mrb[0].mxu0
      %v1839 = vadd.f32 0.0, %v1838
      %v1840 = vpop.f32.mrb[0].mxu0
      %1841 = vdwg.mxu0
      %v1843 = vsel %vm1014, %v1483, 0
      %v1846 = vsel %vm1014, %v1623, 0
      %1848 = vmatprep.subr.mxu0 0.0
      %1849 = vmatpush1.xpose.msra.mxu0 %v1846
      %1850 = vmatprep.subr.mxu0 0.0
      %1851 = vmatpush1.xpose.msra.mxu0 0.0
      %1852 = vmatprep.subr.mxu0 0.0
      %1853 = vmatpush1.xpose.msra.mxu0 0.0
      %1854 = vmatprep.subr.mxu0 0.0
      %1855 = vmatpush1.xpose.msra.mxu0 0.0
      %1856 = vmatprep.subr.mxu0 0.0
      %1857 = vmatpush1.xpose.msra.mxu0 0.0
      %1858 = vmatprep.subr.mxu0 0.0
      %1859 = vmatpush1.xpose.msra.mxu0 0.0
      %1860 = vmatprep.subr.mxu0 0.0
      %1861 = vmatpush1.xpose.msra.mxu0 0.0
      %1862 = vmatprep.subr.mxu0 0.0
      %1863 = vmatpush1.xpose.msra.mxu0 0.0
      %1864 = vmatprep.subr.mxu0 0.0
      %1865 = vmatpush1.xpose.msra.mxu0 0.0
      %1866 = vmatprep.subr.mxu0 0.0
      %1867 = vmatpush1.xpose.msra.mxu0 0.0
      %1868 = vmatprep.subr.mxu0 0.0
      %1869 = vmatpush1.xpose.msra.mxu0 0.0
      %1870 = vmatprep.subr.mxu0 0.0
      %1871 = vmatpush1.xpose.msra.mxu0 0.0
      %1872 = vmatprep.subr.mxu0 0.0
      %1873 = vmatpush1.xpose.msra.mxu0 0.0
      %1874 = vmatprep.subr.mxu0 0.0
      %1875 = vmatpush1.xpose.msra.mxu0 0.0
      %1876 = vmatprep.subr.mxu0 0.0
      %1877 = vmatpush1.xpose.msra.mxu0 0.0
      %1878 = vmatprep.subr.mxu0 0.0
      %1879 = vmatpush1.xpose.msra.mxu0 0.0
      %1880 = vmatprep.subr.mxu0 0.0
      %1881 = vmatpush1.xpose.msra.mxu0 0.0
      %1882 = vmatprep.subr.mxu0 0.0
      %1883 = vmatpush1.xpose.msra.mxu0 0.0
      %1884 = vmatprep.subr.mxu0 0.0
      %1885 = vmatpush1.xpose.msra.mxu0 0.0
      %1886 = vmatprep.subr.mxu0 0.0
      %1887 = vmatpush1.xpose.msra.mxu0 0.0
      %1888 = vmatprep.subr.mxu0 0.0
      %1889 = vmatpush1.xpose.msra.mxu0 0.0
      %1890 = vmatprep.subr.mxu0 0.0
      %1891 = vmatpush1.xpose.msra.mxu0 0.0
      %1892 = vmatprep.subr.mxu0 0.0
      %1893 = vmatpush1.xpose.msra.mxu0 0.0
      %1894 = vmatprep.subr.mxu0 0.0
      %1895 = vmatpush1.xpose.msra.mxu0 0.0
      %1896 = vmatprep.subr.mxu0 0.0
      %1897 = vmatpush1.xpose.msra.mxu0 0.0
      %1898 = vmatprep.subr.mxu0 0.0
      %1899 = vmatpush1.xpose.msra.mxu0 0.0
      %1900 = vmatprep.subr.mxu0 0.0
      %1901 = vmatpush1.xpose.msra.mxu0 0.0
      %1902 = vmatprep.subr.mxu0 0.0
      %1903 = vmatpush1.xpose.msra.mxu0 0.0
      %1904 = vmatprep.subr.mxu0 0.0
      %1905 = vmatpush1.xpose.msra.mxu0 0.0
      %1906 = vmatprep.subr.mxu0 0.0
      %1907 = vmatpush1.xpose.msra.mxu0 0.0
      %1908 = vmatprep.subr.mxu0 0.0
      %1909 = vmatpush1.xpose.msra.mxu0 0.0
      %1910 = vmatprep.subr.mxu0 0.0
      %1911 = vmatpush1.xpose.msra.mxu0 0.0
      %1912 = vmatprep.mubr.f32.mxu0 0.0
      %1913 = vmatmul.mubr.f32.gmra.mrb[0].mxu0 %v1843
      %v1914 = vpop.f32.mrb[0].mxu0
      %v1915 = vadd.f32 0.0, %v1914
      %v1916 = vpop.f32.mrb[0].mxu0
      %1917 = vdwg.mxu0
      %v1918 = vmul.f32 %v1839, 0.35355338
      %v1919 = vmul.f32 %v1915, 0.35355338
      %v1920 = vsel %vm1169, %v1918, -inf
      %1921 = vmax.xlane.f32.xlu0 %v1920
      %v1922 = vpop.xlane.xlu0 %1921
      %v1923 = vsel %vm1169, %v1919, -inf
      %1924 = vmax.xlane.f32.xlu0 %v1923
      %v1925 = vpop.xlane.xlu0 %1924
      %v1926 = vsub.f32 %v1918, %v1922
      %v1927 = vsub.f32 %v1919, %v1925
      %v1928 = vmul.f32 %v1926, 1.442695
      %v1929 = vpow.pop %v1928
      %v1930 = vmul.f32 %v1927, 1.442695
      %v1931 = vpow.pop %v1930
      %v1932 = vsel %vm1169, %v1929, 0.0
      %1933 = vadd.xlane.f32.xlu0 %v1932
      %v1934 = vpop.xlane.xlu0 %1933
      %v1935 = vsel %vm1169, %v1931, 0.0
      %1936 = vadd.xlane.f32.xlu0 %v1935
      %v1937 = vpop.xlane.xlu0 %1936
      %v1938 = vrcp.pop %v1934
      %v1939 = vmul.f32 %v1929, %v1938
      %v1940 = vrcp.pop %v1937
      %v1941 = vmul.f32 %v1931, %v1940
      %v1943 = vsel %vm1192, %v1939, 0
      %v1946 = vsel %vm1196, %v1693, 0
      %1948 = vmatprep.subr.mxu0 0.0
      %1949 = vmatpush1.msra.mxu0 %v1946
      %1950 = vmatprep.subr.mxu0 0.0
      %1951 = vmatpush1.msra.mxu0 0.0
      %1952 = vmatprep.subr.mxu0 0.0
      %1953 = vmatpush1.msra.mxu0 0.0
      %1954 = vmatprep.subr.mxu0 0.0
      %1955 = vmatpush1.msra.mxu0 0.0
      %1956 = vmatprep.subr.mxu0 0.0
      %1957 = vmatpush1.msra.mxu0 0.0
      %1958 = vmatprep.subr.mxu0 0.0
      %1959 = vmatpush1.msra.mxu0 0.0
      %1960 = vmatprep.subr.mxu0 0.0
      %1961 = vmatpush1.msra.mxu0 0.0
      %1962 = vmatprep.subr.mxu0 0.0
      %1963 = vmatpush1.msra.mxu0 0.0
      %1964 = vmatprep.subr.mxu0 0.0
      %1965 = vmatpush1.msra.mxu0 0.0
      %1966 = vmatprep.subr.mxu0 0.0
      %1967 = vmatpush1.msra.mxu0 0.0
      %1968 = vmatprep.subr.mxu0 0.0
      %1969 = vmatpush1.msra.mxu0 0.0
      %1970 = vmatprep.subr.mxu0 0.0
      %1971 = vmatpush1.msra.mxu0 0.0
      %1972 = vmatprep.subr.mxu0 0.0
      %1973 = vmatpush1.msra.mxu0 0.0
      %1974 = vmatprep.subr.mxu0 0.0
      %1975 = vmatpush1.msra.mxu0 0.0
      %1976 = vmatprep.subr.mxu0 0.0
      %1977 = vmatpush1.msra.mxu0 0.0
      %1978 = vmatprep.subr.mxu0 0.0
      %1979 = vmatpush1.msra.mxu0 0.0
      %1980 = vmatprep.subr.mxu0 0.0
      %1981 = vmatpush1.msra.mxu0 0.0
      %1982 = vmatprep.subr.mxu0 0.0
      %1983 = vmatpush1.msra.mxu0 0.0
      %1984 = vmatprep.subr.mxu0 0.0
      %1985 = vmatpush1.msra.mxu0 0.0
      %1986 = vmatprep.subr.mxu0 0.0
      %1987 = vmatpush1.msra.mxu0 0.0
      %1988 = vmatprep.subr.mxu0 0.0
      %1989 = vmatpush1.msra.mxu0 0.0
      %1990 = vmatprep.subr.mxu0 0.0
      %1991 = vmatpush1.msra.mxu0 0.0
      %1992 = vmatprep.subr.mxu0 0.0
      %1993 = vmatpush1.msra.mxu0 0.0
      %1994 = vmatprep.subr.mxu0 0.0
      %1995 = vmatpush1.msra.mxu0 0.0
      %1996 = vmatprep.subr.mxu0 0.0
      %1997 = vmatpush1.msra.mxu0 0.0
      %1998 = vmatprep.subr.mxu0 0.0
      %1999 = vmatpush1.msra.mxu0 0.0
      %2000 = vmatprep.subr.mxu0 0.0
      %2001 = vmatpush1.msra.mxu0 0.0
      %2002 = vmatprep.subr.mxu0 0.0
      %2003 = vmatpush1.msra.mxu0 0.0
      %2004 = vmatprep.subr.mxu0 0.0
      %2005 = vmatpush1.msra.mxu0 0.0
      %2006 = vmatprep.subr.mxu0 0.0
      %2007 = vmatpush1.msra.mxu0 0.0
      %2008 = vmatprep.subr.mxu0 0.0
      %2009 = vmatpush1.msra.mxu0 0.0
      %2010 = vmatprep.subr.mxu0 0.0
      %2011 = vmatpush1.msra.mxu0 0.0
      %2012 = vmatprep.mubr.f32.mxu0 0.0
      %2013 = vmatmul.mubr.f32.gmra.mrb[0].mxu0 %v1943
      %v2014 = vpop.f32.mrb[0].mxu0
      %v2015 = vadd.f32 0.0, %v2014
      %v2016 = vpop.f32.mrb[0].mxu0
      %2017 = vdwg.mxu0
      %v2019 = vsel %vm1192, %v1941, 0
      %v2022 = vsel %vm1196, %v1763, 0
      %2024 = vmatprep.subr.mxu0 0.0
      %2025 = vmatpush1.msra.mxu0 %v2022
      %2026 = vmatprep.subr.mxu0 0.0
      %2027 = vmatpush1.msra.mxu0 0.0
      %2028 = vmatprep.subr.mxu0 0.0
      %2029 = vmatpush1.msra.mxu0 0.0
      %2030 = vmatprep.subr.mxu0 0.0
      %2031 = vmatpush1.msra.mxu0 0.0
      %2032 = vmatprep.subr.mxu0 0.0
      %2033 = vmatpush1.msra.mxu0 0.0
      %2034 = vmatprep.subr.mxu0 0.0
      %2035 = vmatpush1.msra.mxu0 0.0
      %2036 = vmatprep.subr.mxu0 0.0
      %2037 = vmatpush1.msra.mxu0 0.0
      %2038 = vmatprep.subr.mxu0 0.0
      %2039 = vmatpush1.msra.mxu0 0.0
      %2040 = vmatprep.subr.mxu0 0.0
      %2041 = vmatpush1.msra.mxu0 0.0
      %2042 = vmatprep.subr.mxu0 0.0
      %2043 = vmatpush1.msra.mxu0 0.0
      %2044 = vmatprep.subr.mxu0 0.0
      %2045 = vmatpush1.msra.mxu0 0.0
      %2046 = vmatprep.subr.mxu0 0.0
      %2047 = vmatpush1.msra.mxu0 0.0
      %2048 = vmatprep.subr.mxu0 0.0
      %2049 = vmatpush1.msra.mxu0 0.0
      %2050 = vmatprep.subr.mxu0 0.0
      %2051 = vmatpush1.msra.mxu0 0.0
      %2052 = vmatprep.subr.mxu0 0.0
      %2053 = vmatpush1.msra.mxu0 0.0
      %2054 = vmatprep.subr.mxu0 0.0
      %2055 = vmatpush1.msra.mxu0 0.0
      %2056 = vmatprep.subr.mxu0 0.0
      %2057 = vmatpush1.msra.mxu0 0.0
      %2058 = vmatprep.subr.mxu0 0.0
      %2059 = vmatpush1.msra.mxu0 0.0
      %2060 = vmatprep.subr.mxu0 0.0
      %2061 = vmatpush1.msra.mxu0 0.0
      %2062 = vmatprep.subr.mxu0 0.0
      %2063 = vmatpush1.msra.mxu0 0.0
      %2064 = vmatprep.subr.mxu0 0.0
      %2065 = vmatpush1.msra.mxu0 0.0
      %2066 = vmatprep.subr.mxu0 0.0
      %2067 = vmatpush1.msra.mxu0 0.0
      %2068 = vmatprep.subr.mxu0 0.0
      %2069 = vmatpush1.msra.mxu0 0.0
      %2070 = vmatprep.subr.mxu0 0.0
      %2071 = vmatpush1.msra.mxu0 0.0
      %2072 = vmatprep.subr.mxu0 0.0
      %2073 = vmatpush1.msra.mxu0 0.0
      %2074 = vmatprep.subr.mxu0 0.0
      %2075 = vmatpush1.msra.mxu0 0.0
      %2076 = vmatprep.subr.mxu0 0.0
      %2077 = vmatpush1.msra.mxu0 0.0
      %2078 = vmatprep.subr.mxu0 0.0
      %2079 = vmatpush1.msra.mxu0 0.0
      %2080 = vmatprep.subr.mxu0 0.0
      %2081 = vmatpush1.msra.mxu0 0.0
      %2082 = vmatprep.subr.mxu0 0.0
      %2083 = vmatpush1.msra.mxu0 0.0
      %2084 = vmatprep.subr.mxu0 0.0
      %2085 = vmatpush1.msra.mxu0 0.0
      %2086 = vmatprep.subr.mxu0 0.0
      %2087 = vmatpush1.msra.mxu0 0.0
      %2088 = vmatprep.mubr.f32.mxu0 0.0
      %2089 = vmatmul.mubr.f32.gmra.mrb[0].mxu0 %v2019
      %v2090 = vpop.f32.mrb[0].mxu0
      %v2091 = vadd.f32 0.0, %v2090
      %v2092 = vpop.f32.mrb[0].mxu0
      %2093 = vdwg.mxu0
      %v2095 = vsel %vm1014, %v2015, 0
      %2097 = vmatprep.subr.mxu0 0.0
      %2098 = vmatpush1.msra.mxu0 %v586
      %2099 = vmatprep.subr.mxu0 0.0
      %2100 = vmatpush1.msra.mxu0 0.0
      %2101 = vmatprep.subr.mxu0 0.0
      %2102 = vmatpush1.msra.mxu0 0.0
      %2103 = vmatprep.subr.mxu0 0.0
      %2104 = vmatpush1.msra.mxu0 0.0
      %2105 = vmatprep.subr.mxu0 0.0
      %2106 = vmatpush1.msra.mxu0 0.0
      %2107 = vmatprep.subr.mxu0 0.0
      %2108 = vmatpush1.msra.mxu0 0.0
      %2109 = vmatprep.subr.mxu0 0.0
      %2110 = vmatpush1.msra.mxu0 0.0
      %2111 = vmatprep.subr.mxu0 0.0
      %2112 = vmatpush1.msra.mxu0 0.0
      %2113 = vmatprep.subr.mxu0 0.0
      %2114 = vmatpush1.msra.mxu0 0.0
      %2115 = vmatprep.subr.mxu0 0.0
      %2116 = vmatpush1.msra.mxu0 0.0
      %2117 = vmatprep.subr.mxu0 0.0
      %2118 = vmatpush1.msra.mxu0 0.0
      %2119 = vmatprep.subr.mxu0 0.0
      %2120 = vmatpush1.msra.mxu0 0.0
      %2121 = vmatprep.subr.mxu0 0.0
      %2122 = vmatpush1.msra.mxu0 0.0
      %2123 = vmatprep.subr.mxu0 0.0
      %2124 = vmatpush1.msra.mxu0 0.0
      %2125 = vmatprep.subr.mxu0 0.0
      %2126 = vmatpush1.msra.mxu0 0.0
      %2127 = vmatprep.subr.mxu0 0.0
      %2128 = vmatpush1.msra.mxu0 0.0
      %2129 = vmatprep.subr.mxu0 0.0
      %2130 = vmatpush1.msra.mxu0 0.0
      %2131 = vmatprep.subr.mxu0 0.0
      %2132 = vmatpush1.msra.mxu0 0.0
      %2133 = vmatprep.subr.mxu0 0.0
      %2134 = vmatpush1.msra.mxu0 0.0
      %2135 = vmatprep.subr.mxu0 0.0
      %2136 = vmatpush1.msra.mxu0 0.0
      %2137 = vmatprep.subr.mxu0 0.0
      %2138 = vmatpush1.msra.mxu0 0.0
      %2139 = vmatprep.subr.mxu0 0.0
      %2140 = vmatpush1.msra.mxu0 0.0
      %2141 = vmatprep.subr.mxu0 0.0
      %2142 = vmatpush1.msra.mxu0 0.0
      %2143 = vmatprep.subr.mxu0 0.0
      %2144 = vmatpush1.msra.mxu0 0.0
      %2145 = vmatprep.subr.mxu0 0.0
      %2146 = vmatpush1.msra.mxu0 0.0
      %2147 = vmatprep.subr.mxu0 0.0
      %2148 = vmatpush1.msra.mxu0 0.0
      %2149 = vmatprep.subr.mxu0 0.0
      %2150 = vmatpush1.msra.mxu0 0.0
      %2151 = vmatprep.subr.mxu0 0.0
      %2152 = vmatpush1.msra.mxu0 0.0
      %2153 = vmatprep.subr.mxu0 0.0
      %2154 = vmatpush1.msra.mxu0 0.0
      %2155 = vmatprep.subr.mxu0 0.0
      %2156 = vmatpush1.msra.mxu0 0.0
      %2157 = vmatprep.subr.mxu0 0.0
      %2158 = vmatpush1.msra.mxu0 0.0
      %2159 = vmatprep.subr.mxu0 0.0
      %2160 = vmatpush1.msra.mxu0 0.0
      %2161 = vmatprep.mubr.f32.mxu0 0.0
      %2162 = vmatmul.mubr.f32.gmra.mrb[0].mxu0 %v2095
      %v2163 = vpop.f32.mrb[0].mxu0
      %v2164 = vadd.f32 0.0, %v2163
      %v2165 = vpop.f32.mrb[0].mxu0
      %2166 = vdwg.mxu0
      %v2168 = vsel %vm1014, %v2091, 0
      %2170 = vmatprep.subr.mxu0 0.0
      %2171 = vmatpush1.msra.mxu0 %v586
      %2172 = vmatprep.subr.mxu0 0.0
      %2173 = vmatpush1.msra.mxu0 0.0
      %2174 = vmatprep.subr.mxu0 0.0
      %2175 = vmatpush1.msra.mxu0 0.0
      %2176 = vmatprep.subr.mxu0 0.0
      %2177 = vmatpush1.msra.mxu0 0.0
      %2178 = vmatprep.subr.mxu0 0.0
      %2179 = vmatpush1.msra.mxu0 0.0
      %2180 = vmatprep.subr.mxu0 0.0
      %2181 = vmatpush1.msra.mxu0 0.0
      %2182 = vmatprep.subr.mxu0 0.0
      %2183 = vmatpush1.msra.mxu0 0.0
      %2184 = vmatprep.subr.mxu0 0.0
      %2185 = vmatpush1.msra.mxu0 0.0
      %2186 = vmatprep.subr.mxu0 0.0
      %2187 = vmatpush1.msra.mxu0 0.0
      %2188 = vmatprep.subr.mxu0 0.0
      %2189 = vmatpush1.msra.mxu0 0.0
      %2190 = vmatprep.subr.mxu0 0.0
      %2191 = vmatpush1.msra.mxu0 0.0
      %2192 = vmatprep.subr.mxu0 0.0
      %2193 = vmatpush1.msra.mxu0 0.0
      %2194 = vmatprep.subr.mxu0 0.0
      %2195 = vmatpush1.msra.mxu0 0.0
      %2196 = vmatprep.subr.mxu0 0.0
      %2197 = vmatpush1.msra.mxu0 0.0
      %2198 = vmatprep.subr.mxu0 0.0
      %2199 = vmatpush1.msra.mxu0 0.0
      %2200 = vmatprep.subr.mxu0 0.0
      %2201 = vmatpush1.msra.mxu0 0.0
      %2202 = vmatprep.subr.mxu0 0.0
      %2203 = vmatpush1.msra.mxu0 0.0
      %2204 = vmatprep.subr.mxu0 0.0
      %2205 = vmatpush1.msra.mxu0 0.0
      %2206 = vmatprep.subr.mxu0 0.0
      %2207 = vmatpush1.msra.mxu0 0.0
      %2208 = vmatprep.subr.mxu0 0.0
      %2209 = vmatpush1.msra.mxu0 0.0
      %2210 = vmatprep.subr.mxu0 0.0
      %2211 = vmatpush1.msra.mxu0 0.0
      %2212 = vmatprep.subr.mxu0 0.0
      %2213 = vmatpush1.msra.mxu0 0.0
      %2214 = vmatprep.subr.mxu0 0.0
      %2215 = vmatpush1.msra.mxu0 0.0
      %2216 = vmatprep.subr.mxu0 0.0
      %2217 = vmatpush1.msra.mxu0 0.0
      %2218 = vmatprep.subr.mxu0 0.0
      %2219 = vmatpush1.msra.mxu0 0.0
      %2220 = vmatprep.subr.mxu0 0.0
      %2221 = vmatpush1.msra.mxu0 0.0
      %2222 = vmatprep.subr.mxu0 0.0
      %2223 = vmatpush1.msra.mxu0 0.0
      %2224 = vmatprep.subr.mxu0 0.0
      %2225 = vmatpush1.msra.mxu0 0.0
      %2226 = vmatprep.subr.mxu0 0.0
      %2227 = vmatpush1.msra.mxu0 0.0
      %2228 = vmatprep.subr.mxu0 0.0
      %2229 = vmatpush1.msra.mxu0 0.0
      %2230 = vmatprep.subr.mxu0 0.0
      %2231 = vmatpush1.msra.mxu0 0.0
      %2232 = vmatprep.subr.mxu0 0.0
      %2233 = vmatpush1.msra.mxu0 0.0
      %2234 = vmatprep.mubr.f32.mxu0 0.0
      %2235 = vmatmul.mubr.f32.gmra.mrb[0].mxu0 %v2168
      %v2236 = vpop.f32.mrb[0].mxu0
      %v2237 = vadd.f32 0.0, %v2236
      %v2238 = vpop.f32.mrb[0].mxu0
      %2239 = vdwg.mxu0
      %v2241 = vsel %vm1014, %v1267, 0
      %2243 = vmatprep.subr.mxu0 0.0
      %2244 = vmatpush1.msra.mxu0 %v585
      %2245 = vmatprep.subr.mxu0 0.0
      %2246 = vmatpush1.msra.mxu0 0.0
      %2247 = vmatprep.subr.mxu0 0.0
      %2248 = vmatpush1.msra.mxu0 0.0
      %2249 = vmatprep.subr.mxu0 0.0
      %2250 = vmatpush1.msra.mxu0 0.0
      %2251 = vmatprep.subr.mxu0 0.0
      %2252 = vmatpush1.msra.mxu0 0.0
      %2253 = vmatprep.subr.mxu0 0.0
      %2254 = vmatpush1.msra.mxu0 0.0
      %2255 = vmatprep.subr.mxu0 0.0
      %2256 = vmatpush1.msra.mxu0 0.0
      %2257 = vmatprep.subr.mxu0 0.0
      %2258 = vmatpush1.msra.mxu0 0.0
      %2259 = vmatprep.subr.mxu0 0.0
      %2260 = vmatpush1.msra.mxu0 0.0
      %2261 = vmatprep.subr.mxu0 0.0
      %2262 = vmatpush1.msra.mxu0 0.0
      %2263 = vmatprep.subr.mxu0 0.0
      %2264 = vmatpush1.msra.mxu0 0.0
      %2265 = vmatprep.subr.mxu0 0.0
      %2266 = vmatpush1.msra.mxu0 0.0
      %2267 = vmatprep.subr.mxu0 0.0
      %2268 = vmatpush1.msra.mxu0 0.0
      %2269 = vmatprep.subr.mxu0 0.0
      %2270 = vmatpush1.msra.mxu0 0.0
      %2271 = vmatprep.subr.mxu0 0.0
      %2272 = vmatpush1.msra.mxu0 0.0
      %2273 = vmatprep.subr.mxu0 0.0
      %2274 = vmatpush1.msra.mxu0 0.0
      %2275 = vmatprep.subr.mxu0 0.0
      %2276 = vmatpush1.msra.mxu0 0.0
      %2277 = vmatprep.subr.mxu0 0.0
      %2278 = vmatpush1.msra.mxu0 0.0
      %2279 = vmatprep.subr.mxu0 0.0
      %2280 = vmatpush1.msra.mxu0 0.0
      %2281 = vmatprep.subr.mxu0 0.0
      %2282 = vmatpush1.msra.mxu0 0.0
      %2283 = vmatprep.subr.mxu0 0.0
      %2284 = vmatpush1.msra.mxu0 0.0
      %2285 = vmatprep.subr.mxu0 0.0
      %2286 = vmatpush1.msra.mxu0 0.0
      %2287 = vmatprep.subr.mxu0 0.0
      %2288 = vmatpush1.msra.mxu0 0.0
      %2289 = vmatprep.subr.mxu0 0.0
      %2290 = vmatpush1.msra.mxu0 0.0
      %2291 = vmatprep.subr.mxu0 0.0
      %2292 = vmatpush1.msra.mxu0 0.0
      %2293 = vmatprep.subr.mxu0 0.0
      %2294 = vmatpush1.msra.mxu0 0.0
      %2295 = vmatprep.subr.mxu0 0.0
      %2296 = vmatpush1.msra.mxu0 0.0
      %2297 = vmatprep.subr.mxu0 0.0
      %2298 = vmatpush1.msra.mxu0 0.0
      %2299 = vmatprep.subr.mxu0 0.0
      %2300 = vmatpush1.msra.mxu0 0.0
      %2301 = vmatprep.subr.mxu0 0.0
      %2302 = vmatpush1.msra.mxu0 0.0
      %2303 = vmatprep.subr.mxu0 0.0
      %2304 = vmatpush1.msra.mxu0 0.0
      %2305 = vmatprep.subr.mxu0 0.0
      %2306 = vmatpush1.msra.mxu0 0.0
      %2307 = vmatprep.mubr.f32.mxu0 0.0
      %2308 = vmatmul.mubr.f32.gmra.mrb[0].mxu0 %v2241
      %v2309 = vpop.f32.mrb[0].mxu0
      %v2310 = vadd.f32 %v2164, %v2309
      %v2311 = vpop.f32.mrb[0].mxu0
      %2312 = vdwg.mxu0
      %v2314 = vsel %vm1014, %v1343, 0
      %2316 = vmatprep.subr.mxu0 0.0
      %2317 = vmatpush1.msra.mxu0 %v585
      %2318 = vmatprep.subr.mxu0 0.0
      %2319 = vmatpush1.msra.mxu0 0.0
      %2320 = vmatprep.subr.mxu0 0.0
      %2321 = vmatpush1.msra.mxu0 0.0
      %2322 = vmatprep.subr.mxu0 0.0
      %2323 = vmatpush1.msra.mxu0 0.0
      %2324 = vmatprep.subr.mxu0 0.0
      %2325 = vmatpush1.msra.mxu0 0.0
      %2326 = vmatprep.subr.mxu0 0.0
      %2327 = vmatpush1.msra.mxu0 0.0
      %2328 = vmatprep.subr.mxu0 0.0
      %2329 = vmatpush1.msra.mxu0 0.0
      %2330 = vmatprep.subr.mxu0 0.0
      %2331 = vmatpush1.msra.mxu0 0.0
      %2332 = vmatprep.subr.mxu0 0.0
      %2333 = vmatpush1.msra.mxu0 0.0
      %2334 = vmatprep.subr.mxu0 0.0
      %2335 = vmatpush1.msra.mxu0 0.0
      %2336 = vmatprep.subr.mxu0 0.0
      %2337 = vmatpush1.msra.mxu0 0.0
      %2338 = vmatprep.subr.mxu0 0.0
      %2339 = vmatpush1.msra.mxu0 0.0
      %2340 = vmatprep.subr.mxu0 0.0
      %2341 = vmatpush1.msra.mxu0 0.0
      %2342 = vmatprep.subr.mxu0 0.0
      %2343 = vmatpush1.msra.mxu0 0.0
      %2344 = vmatprep.subr.mxu0 0.0
      %2345 = vmatpush1.msra.mxu0 0.0
      %2346 = vmatprep.subr.mxu0 0.0
      %2347 = vmatpush1.msra.mxu0 0.0
      %2348 = vmatprep.subr.mxu0 0.0
      %2349 = vmatpush1.msra.mxu0 0.0
      %2350 = vmatprep.subr.mxu0 0.0
      %2351 = vmatpush1.msra.mxu0 0.0
      %2352 = vmatprep.subr.mxu0 0.0
      %2353 = vmatpush1.msra.mxu0 0.0
      %2354 = vmatprep.subr.mxu0 0.0
      %2355 = vmatpush1.msra.mxu0 0.0
      %2356 = vmatprep.subr.mxu0 0.0
      %2357 = vmatpush1.msra.mxu0 0.0
      %2358 = vmatprep.subr.mxu0 0.0
      %2359 = vmatpush1.msra.mxu0 0.0
      %2360 = vmatprep.subr.mxu0 0.0
      %2361 = vmatpush1.msra.mxu0 0.0
      %2362 = vmatprep.subr.mxu0 0.0
      %2363 = vmatpush1.msra.mxu0 0.0
      %2364 = vmatprep.subr.mxu0 0.0
      %2365 = vmatpush1.msra.mxu0 0.0
      %2366 = vmatprep.subr.mxu0 0.0
      %2367 = vmatpush1.msra.mxu0 0.0
      %2368 = vmatprep.subr.mxu0 0.0
      %2369 = vmatpush1.msra.mxu0 0.0
      %2370 = vmatprep.subr.mxu0 0.0
      %2371 = vmatpush1.msra.mxu0 0.0
      %2372 = vmatprep.subr.mxu0 0.0
      %2373 = vmatpush1.msra.mxu0 0.0
      %2374 = vmatprep.subr.mxu0 0.0
      %2375 = vmatpush1.msra.mxu0 0.0
      %2376 = vmatprep.subr.mxu0 0.0
      %2377 = vmatpush1.msra.mxu0 0.0
      %2378 = vmatprep.subr.mxu0 0.0
      %2379 = vmatpush1.msra.mxu0 0.0
      %2380 = vmatprep.mubr.f32.mxu0 0.0
      %2381 = vmatmul.mubr.f32.gmra.mrb[0].mxu0 %v2314
      %v2382 = vpop.f32.mrb[0].mxu0
      %v2383 = vadd.f32 %v2237, %v2382
      %v2384 = vpop.f32.mrb[0].mxu0
      %2385 = vdwg.mxu0
      %v2386 = vadd.f32 %v525, %v2310
      %v2387 = vadd.f32 %v526, %v2383
      %v2388 = vld [vmem:[%s7] sm:$0x1]
      %v2390 = vlaneseq
      %v2391 = vshrl.u32 %v2390, 7
      %v2392 = vsub.s32 0, %v2391
      %v2393 = vrot.slane %v2388, %v2392
      %v2395 = vadd.f32 %v2386, %v2393
      %v2396 = vadd.f32 %v2387, %v2393
      %v2397 = vld [vmem:[%s8] sm:$0x1]
      %v2398 = vld [vmem:[%s9] sm:$0x1]
      %v2399 = vsel %vm529, %v2395, 0.0
      %2400 = vadd.xlane.f32.xlu0 %v2399
      %v2401 = vpop.xlane.xlu0 %2400
      %v2402 = vsel %vm529, %v2396, 0.0
      %2403 = vadd.xlane.f32.xlu0 %v2402
      %v2404 = vpop.xlane.xlu0 %2403
      %v2405 = vmul.f32 %v2401, %v536
      %v2406 = vmul.f32 %v2404, %v536
      %v2407 = vsub.f32 %v2395, %v2405
      %v2408 = vsub.f32 %v2396, %v2406
      %v2409 = vmul.f32 %v2407, %v2407
      %v2410 = vmul.f32 %v2408, %v2408
      %v2411 = vsel %vm529, %v2409, 0.0
      %2412 = vadd.xlane.f32.xlu0 %v2411
      %v2413 = vpop.xlane.xlu0 %2412
      %v2414 = vsel %vm529, %v2410, 0.0
      %2415 = vadd.xlane.f32.xlu0 %v2414
      %v2416 = vpop.xlane.xlu0 %2415
      %v2417 = vmul.f32 %v2413, %v536
      %v2418 = vmul.f32 %v2416, %v536
      %v2419 = vadd.f32 %v2417, 1e-05
      %v2420 = vadd.f32 %v2418, 1e-05
      %v2421 = vrsqrt.pop %v2419
      %v2422 = vrsqrt.pop %v2420
      %v2423 = vmul.f32 %v2407, %v2421
      %v2424 = vmul.f32 %v2408, %v2422
      %v2426 = vlaneseq
      %v2427 = vshrl.u32 %v2426, 7
      %v2428 = vsub.s32 0, %v2427
      %v2429 = vrot.slane %v2397, %v2428
      %v2431 = vmul.f32 %v2423, %v2429
      %v2432 = vmul.f32 %v2424, %v2429
      %v2434 = vlaneseq
      %v2435 = vshrl.u32 %v2434, 7
      %v2436 = vsub.s32 0, %v2435
      %v2437 = vrot.slane %v2398, %v2436
      %v2439 = vadd.f32 %v2431, %v2437
      %v2440 = vadd.f32 %v2432, %v2437
      %v2441 = vld [vmem:[%s10] sm:$0xff]
      %v2442 = vld [vmem:[%s10 + $0x8] sm:$0xff]
      %v2443 = vld [vmem:[%s11] sm:$0x1]
      %v2445 = vlaneseq
      %v2446 = vshrl.u32 %v2445, 7
      %v2447 = vsub.s32 0, %v2446
      %v2448 = vrot.slane %v2443, %v2447
      %v2451 = vsel %vm587, %v2439, 0
      %2453 = vmatprep.subr.mxu0 0.0
      %2454 = vmatpush1.msra.mxu0 %v2441
      %2455 = vmatprep.subr.mxu0 0.0
      %2456 = vmatpush1.msra.mxu0 %v2442
      %2457 = vmatprep.subr.mxu0 0.0
      %2458 = vmatpush1.msra.mxu0 0.0
      %2459 = vmatprep.subr.mxu0 0.0
      %2460 = vmatpush1.msra.mxu0 0.0
      %2461 = vmatprep.subr.mxu0 0.0
      %2462 = vmatpush1.msra.mxu0 0.0
      %2463 = vmatprep.subr.mxu0 0.0
      %2464 = vmatpush1.msra.mxu0 0.0
      %2465 = vmatprep.subr.mxu0 0.0
      %2466 = vmatpush1.msra.mxu0 0.0
      %2467 = vmatprep.subr.mxu0 0.0
      %2468 = vmatpush1.msra.mxu0 0.0
      %2469 = vmatprep.subr.mxu0 0.0
      %2470 = vmatpush1.msra.mxu0 0.0
      %2471 = vmatprep.subr.mxu0 0.0
      %2472 = vmatpush1.msra.mxu0 0.0
      %2473 = vmatprep.subr.mxu0 0.0
      %2474 = vmatpush1.msra.mxu0 0.0
      %2475 = vmatprep.subr.mxu0 0.0
      %2476 = vmatpush1.msra.mxu0 0.0
      %2477 = vmatprep.subr.mxu0 0.0
      %2478 = vmatpush1.msra.mxu0 0.0
      %2479 = vmatprep.subr.mxu0 0.0
      %2480 = vmatpush1.msra.mxu0 0.0
      %2481 = vmatprep.subr.mxu0 0.0
      %2482 = vmatpush1.msra.mxu0 0.0
      %2483 = vmatprep.subr.mxu0 0.0
      %2484 = vmatpush1.msra.mxu0 0.0
      %2485 = vmatprep.subr.mxu0 0.0
      %2486 = vmatpush1.msra.mxu0 0.0
      %2487 = vmatprep.subr.mxu0 0.0
      %2488 = vmatpush1.msra.mxu0 0.0
      %2489 = vmatprep.subr.mxu0 0.0
      %2490 = vmatpush1.msra.mxu0 0.0
      %2491 = vmatprep.subr.mxu0 0.0
      %2492 = vmatpush1.msra.mxu0 0.0
      %2493 = vmatprep.subr.mxu0 0.0
      %2494 = vmatpush1.msra.mxu0 0.0
      %2495 = vmatprep.subr.mxu0 0.0
      %2496 = vmatpush1.msra.mxu0 0.0
      %2497 = vmatprep.subr.mxu0 0.0
      %2498 = vmatpush1.msra.mxu0 0.0
      %2499 = vmatprep.subr.mxu0 0.0
      %2500 = vmatpush1.msra.mxu0 0.0
      %2501 = vmatprep.subr.mxu0 0.0
      %2502 = vmatpush1.msra.mxu0 0.0
      %2503 = vmatprep.subr.mxu0 0.0
      %2504 = vmatpush1.msra.mxu0 0.0
      %2505 = vmatprep.subr.mxu0 0.0
      %2506 = vmatpush1.msra.mxu0 0.0
      %2507 = vmatprep.subr.mxu0 0.0
      %2508 = vmatpush1.msra.mxu0 0.0
      %2509 = vmatprep.subr.mxu0 0.0
      %2510 = vmatpush1.msra.mxu0 0.0
      %2511 = vmatprep.subr.mxu0 0.0
      %2512 = vmatpush1.msra.mxu0 0.0
      %2513 = vmatprep.subr.mxu0 0.0
      %2514 = vmatpush1.msra.mxu0 0.0
      %2515 = vmatprep.subr.mxu0 0.0
      %2516 = vmatpush1.msra.mxu0 0.0
      %2517 = vmatprep.mubr.f32.mxu0 0.0
      %2518 = vmatmul.mubr.f32.gmra.mrb[0].mxu0 %v2451
      %v2519 = vpop.f32.mrb[0].mxu0
      %v2520 = vadd.f32 %v2448, %v2519
      %v2521 = vpop.f32.mrb[0].mxu0
      %2522 = vdwg.mxu0
      %v2524 = vsel %vm587, %v2440, 0
      %2526 = vmatprep.subr.mxu0 0.0
      %2527 = vmatpush1.msra.mxu0 %v2441
      %2528 = vmatprep.subr.mxu0 0.0
      %2529 = vmatpush1.msra.mxu0 %v2442
      %2530 = vmatprep.subr.mxu0 0.0
      %2531 = vmatpush1.msra.mxu0 0.0
      %2532 = vmatprep.subr.mxu0 0.0
      %2533 = vmatpush1.msra.mxu0 0.0
      %2534 = vmatprep.subr.mxu0 0.0
      %2535 = vmatpush1.msra.mxu0 0.0
      %2536 = vmatprep.subr.mxu0 0.0
      %2537 = vmatpush1.msra.mxu0 0.0
      %2538 = vmatprep.subr.mxu0 0.0
      %2539 = vmatpush1.msra.mxu0 0.0
      %2540 = vmatprep.subr.mxu0 0.0
      %2541 = vmatpush1.msra.mxu0 0.0
      %2542 = vmatprep.subr.mxu0 0.0
      %2543 = vmatpush1.msra.mxu0 0.0
      %2544 = vmatprep.subr.mxu0 0.0
      %2545 = vmatpush1.msra.mxu0 0.0
      %2546 = vmatprep.subr.mxu0 0.0
      %2547 = vmatpush1.msra.mxu0 0.0
      %2548 = vmatprep.subr.mxu0 0.0
      %2549 = vmatpush1.msra.mxu0 0.0
      %2550 = vmatprep.subr.mxu0 0.0
      %2551 = vmatpush1.msra.mxu0 0.0
      %2552 = vmatprep.subr.mxu0 0.0
      %2553 = vmatpush1.msra.mxu0 0.0
      %2554 = vmatprep.subr.mxu0 0.0
      %2555 = vmatpush1.msra.mxu0 0.0
      %2556 = vmatprep.subr.mxu0 0.0
      %2557 = vmatpush1.msra.mxu0 0.0
      %2558 = vmatprep.subr.mxu0 0.0
      %2559 = vmatpush1.msra.mxu0 0.0
      %2560 = vmatprep.subr.mxu0 0.0
      %2561 = vmatpush1.msra.mxu0 0.0
      %2562 = vmatprep.subr.mxu0 0.0
      %2563 = vmatpush1.msra.mxu0 0.0
      %2564 = vmatprep.subr.mxu0 0.0
      %2565 = vmatpush1.msra.mxu0 0.0
      %2566 = vmatprep.subr.mxu0 0.0
      %2567 = vmatpush1.msra.mxu0 0.0
      %2568 = vmatprep.subr.mxu0 0.0
      %2569 = vmatpush1.msra.mxu0 0.0
      %2570 = vmatprep.subr.mxu0 0.0
      %2571 = vmatpush1.msra.mxu0 0.0
      %2572 = vmatprep.subr.mxu0 0.0
      %2573 = vmatpush1.msra.mxu0 0.0
      %2574 = vmatprep.subr.mxu0 0.0
      %2575 = vmatpush1.msra.mxu0 0.0
      %2576 = vmatprep.subr.mxu0 0.0
      %2577 = vmatpush1.msra.mxu0 0.0
      %2578 = vmatprep.subr.mxu0 0.0
      %2579 = vmatpush1.msra.mxu0 0.0
      %2580 = vmatprep.subr.mxu0 0.0
      %2581 = vmatpush1.msra.mxu0 0.0
      %2582 = vmatprep.subr.mxu0 0.0
      %2583 = vmatpush1.msra.mxu0 0.0
      %2584 = vmatprep.subr.mxu0 0.0
      %2585 = vmatpush1.msra.mxu0 0.0
      %2586 = vmatprep.subr.mxu0 0.0
      %2587 = vmatpush1.msra.mxu0 0.0
      %2588 = vmatprep.subr.mxu0 0.0
      %2589 = vmatpush1.msra.mxu0 0.0
      %2590 = vmatprep.mubr.f32.mxu0 0.0
      %2591 = vmatmul.mubr.f32.gmra.mrb[0].mxu0 %v2524
      %v2592 = vpop.f32.mrb[0].mxu0
      %v2593 = vadd.f32 %v2448, %v2592
      %v2594 = vpop.f32.mrb[0].mxu0
      %2595 = vdwg.mxu0
      %v2596 = vmul.f32 %v2520, 0.5
      %v2597 = vmul.f32 %v2593, 0.5
      %v2598 = vmul.f32 %v2520, 0.70710677
      %v2599 = vmul.f32 %v2593, 0.70710677
      %v2600 = verf.f32.pop %v2598
      %v2601 = verf.f32.pop %v2599
      %v2602 = vadd.f32 %v2600, 1.0
      %v2603 = vadd.f32 %v2601, 1.0
      %v2604 = vmul.f32 %v2596, %v2602
      %v2605 = vmul.f32 %v2597, %v2603
      %v2606 = vld [vmem:[%s12] sm:$0xff]
      %v2607 = vld [vmem:[%s12 + $0x8] sm:$0xff]
      %v2608 = vld [vmem:[%s12 + $0x10] sm:$0xff]
      %v2609 = vld [vmem:[%s12 + $0x18] sm:$0xff]
      %v2610 = vld [vmem:[%s12 + $0x20] sm:$0xff]
      %v2611 = vld [vmem:[%s12 + $0x28] sm:$0xff]
      %v2612 = vld [vmem:[%s12 + $0x30] sm:$0xff]
      %v2613 = vld [vmem:[%s12 + $0x38] sm:$0xff]
      %vm2614 = vcmask 523264
      %v2616 = vsel %vm2614, %v2604, 0
      %2618 = vmatprep.subr.mxu0 0.0
      %2619 = vmatpush1.msra.mxu0 %v2606
      %2620 = vmatprep.subr.mxu0 0.0
      %2621 = vmatpush1.msra.mxu0 %v2607
      %2622 = vmatprep.subr.mxu0 0.0
      %2623 = vmatpush1.msra.mxu0 %v2608
      %2624 = vmatprep.subr.mxu0 0.0
      %2625 = vmatpush1.msra.mxu0 %v2609
      %2626 = vmatprep.subr.mxu0 0.0
      %2627 = vmatpush1.msra.mxu0 %v2610
      %2628 = vmatprep.subr.mxu0 0.0
      %2629 = vmatpush1.msra.mxu0 %v2611
      %2630 = vmatprep.subr.mxu0 0.0
      %2631 = vmatpush1.msra.mxu0 %v2612
      %2632 = vmatprep.subr.mxu0 0.0
      %2633 = vmatpush1.msra.mxu0 %v2613
      %2634 = vmatprep.subr.mxu0 0.0
      %2635 = vmatpush1.msra.mxu0 0.0
      %2636 = vmatprep.subr.mxu0 0.0
      %2637 = vmatpush1.msra.mxu0 0.0
      %2638 = vmatprep.subr.mxu0 0.0
      %2639 = vmatpush1.msra.mxu0 0.0
      %2640 = vmatprep.subr.mxu0 0.0
      %2641 = vmatpush1.msra.mxu0 0.0
      %2642 = vmatprep.subr.mxu0 0.0
      %2643 = vmatpush1.msra.mxu0 0.0
      %2644 = vmatprep.subr.mxu0 0.0
      %2645 = vmatpush1.msra.mxu0 0.0
      %2646 = vmatprep.subr.mxu0 0.0
      %2647 = vmatpush1.msra.mxu0 0.0
      %2648 = vmatprep.subr.mxu0 0.0
      %2649 = vmatpush1.msra.mxu0 0.0
      %2650 = vmatprep.subr.mxu0 0.0
      %2651 = vmatpush1.msra.mxu0 0.0
      %2652 = vmatprep.subr.mxu0 0.0
      %2653 = vmatpush1.msra.mxu0 0.0
      %2654 = vmatprep.subr.mxu0 0.0
      %2655 = vmatpush1.msra.mxu0 0.0
      %2656 = vmatprep.subr.mxu0 0.0
      %2657 = vmatpush1.msra.mxu0 0.0
      %2658 = vmatprep.subr.mxu0 0.0
      %2659 = vmatpush1.msra.mxu0 0.0
      %2660 = vmatprep.subr.mxu0 0.0
      %2661 = vmatpush1.msra.mxu0 0.0
      %2662 = vmatprep.subr.mxu0 0.0
      %2663 = vmatpush1.msra.mxu0 0.0
      %2664 = vmatprep.subr.mxu0 0.0
      %2665 = vmatpush1.msra.mxu0 0.0
      %2666 = vmatprep.subr.mxu0 0.0
      %2667 = vmatpush1.msra.mxu0 0.0
      %2668 = vmatprep.subr.mxu0 0.0
      %2669 = vmatpush1.msra.mxu0 0.0
      %2670 = vmatprep.subr.mxu0 0.0
      %2671 = vmatpush1.msra.mxu0 0.0
      %2672 = vmatprep.subr.mxu0 0.0
      %2673 = vmatpush1.msra.mxu0 0.0
      %2674 = vmatprep.subr.mxu0 0.0
      %2675 = vmatpush1.msra.mxu0 0.0
      %2676 = vmatprep.subr.mxu0 0.0
      %2677 = vmatpush1.msra.mxu0 0.0
      %2678 = vmatprep.subr.mxu0 0.0
      %2679 = vmatpush1.msra.mxu0 0.0
      %2680 = vmatprep.subr.mxu0 0.0
      %2681 = vmatpush1.msra.mxu0 0.0
      %2682 = vmatprep.mubr.f32.mxu0 0.0
      %2683 = vmatmul.mubr.f32.gmra.mrb[0].mxu0 %v2616
      %v2684 = vpop.f32.mrb[0].mxu0
      %v2685 = vadd.f32 0.0, %v2684
      %v2686 = vpop.f32.mrb[0].mxu0
      %2687 = vdwg.mxu0
      %v2689 = vsel %vm2614, %v2605, 0
      %2691 = vmatprep.subr.mxu0 0.0
      %2692 = vmatpush1.msra.mxu0 %v2606
      %2693 = vmatprep.subr.mxu0 0.0
      %2694 = vmatpush1.msra.mxu0 %v2607
      %2695 = vmatprep.subr.mxu0 0.0
      %2696 = vmatpush1.msra.mxu0 %v2608
      %2697 = vmatprep.subr.mxu0 0.0
      %2698 = vmatpush1.msra.mxu0 %v2609
      %2699 = vmatprep.subr.mxu0 0.0
      %2700 = vmatpush1.msra.mxu0 %v2610
      %2701 = vmatprep.subr.mxu0 0.0
      %2702 = vmatpush1.msra.mxu0 %v2611
      %2703 = vmatprep.subr.mxu0 0.0
      %2704 = vmatpush1.msra.mxu0 %v2612
      %2705 = vmatprep.subr.mxu0 0.0
      %2706 = vmatpush1.msra.mxu0 %v2613
      %2707 = vmatprep.subr.mxu0 0.0
      %2708 = vmatpush1.msra.mxu0 0.0
      %2709 = vmatprep.subr.mxu0 0.0
      %2710 = vmatpush1.msra.mxu0 0.0
      %2711 = vmatprep.subr.mxu0 0.0
      %2712 = vmatpush1.msra.mxu0 0.0
      %2713 = vmatprep.subr.mxu0 0.0
      %2714 = vmatpush1.msra.mxu0 0.0
      %2715 = vmatprep.subr.mxu0 0.0
      %2716 = vmatpush1.msra.mxu0 0.0
      %2717 = vmatprep.subr.mxu0 0.0
      %2718 = vmatpush1.msra.mxu0 0.0
      %2719 = vmatprep.subr.mxu0 0.0
      %2720 = vmatpush1.msra.mxu0 0.0
      %2721 = vmatprep.subr.mxu0 0.0
      %2722 = vmatpush1.msra.mxu0 0.0
      %2723 = vmatprep.subr.mxu0 0.0
      %2724 = vmatpush1.msra.mxu0 0.0
      %2725 = vmatprep.subr.mxu0 0.0
      %2726 = vmatpush1.msra.mxu0 0.0
      %2727 = vmatprep.subr.mxu0 0.0
      %2728 = vmatpush1.msra.mxu0 0.0
      %2729 = vmatprep.subr.mxu0 0.0
      %2730 = vmatpush1.msra.mxu0 0.0
      %2731 = vmatprep.subr.mxu0 0.0
      %2732 = vmatpush1.msra.mxu0 0.0
      %2733 = vmatprep.subr.mxu0 0.0
      %2734 = vmatpush1.msra.mxu0 0.0
      %2735 = vmatprep.subr.mxu0 0.0
      %2736 = vmatpush1.msra.mxu0 0.0
      %2737 = vmatprep.subr.mxu0 0.0
      %2738 = vmatpush1.msra.mxu0 0.0
      %2739 = vmatprep.subr.mxu0 0.0
      %2740 = vmatpush1.msra.mxu0 0.0
      %2741 = vmatprep.subr.mxu0 0.0
      %2742 = vmatpush1.msra.mxu0 0.0
      %2743 = vmatprep.subr.mxu0 0.0
      %2744 = vmatpush1.msra.mxu0 0.0
      %2745 = vmatprep.subr.mxu0 0.0
      %2746 = vmatpush1.msra.mxu0 0.0
      %2747 = vmatprep.subr.mxu0 0.0
      %2748 = vmatpush1.msra.mxu0 0.0
      %2749 = vmatprep.subr.mxu0 0.0
      %2750 = vmatpush1.msra.mxu0 0.0
      %2751 = vmatprep.subr.mxu0 0.0
      %2752 = vmatpush1.msra.mxu0 0.0
      %2753 = vmatprep.subr.mxu0 0.0
      %2754 = vmatpush1.msra.mxu0 0.0
      %2755 = vmatprep.mubr.f32.mxu0 0.0
      %2756 = vmatmul.mubr.f32.gmra.mrb[0].mxu0 %v2689
      %v2757 = vpop.f32.mrb[0].mxu0
      %v2758 = vadd.f32 0.0, %v2757
      %v2759 = vpop.f32.mrb[0].mxu0
      %2760 = vdwg.mxu0
      %v2761 = vadd.f32 %v2395, %v2685
      %v2762 = vadd.f32 %v2396, %v2758
      %v2763 = vld [vmem:[%s13] sm:$0x1]
      %v2765 = vlaneseq
      %v2766 = vshrl.u32 %v2765, 7
      %v2767 = vsub.s32 0, %v2766
      %v2768 = vrot.slane %v2763, %v2767
      %v2770 = vadd.f32 %v2761, %v2768
      %v2771 = vadd.f32 %v2762, %v2768
      %s2772 = scalar_lea.vmem %s1, 1
      %v2773 = vld [vmem:[%s2772] sm:$0x1]
      %s2774 = scalar_lea.vmem %s2, 1
      %v2775 = vld [vmem:[%s2774] sm:$0x1]
      %v2776 = vsel %vm529, %v2770, 0.0
      %2777 = vadd.xlane.f32.xlu0 %v2776
      %v2778 = vpop.xlane.xlu0 %2777
      %v2779 = vsel %vm529, %v2771, 0.0
      %2780 = vadd.xlane.f32.xlu0 %v2779
      %v2781 = vpop.xlane.xlu0 %2780
      %v2782 = vmul.f32 %v2778, %v536
      %v2783 = vmul.f32 %v2781, %v536
      %v2784 = vsub.f32 %v2770, %v2782
      %v2785 = vsub.f32 %v2771, %v2783
      %v2786 = vmul.f32 %v2784, %v2784
      %v2787 = vmul.f32 %v2785, %v2785
      %v2788 = vsel %vm529, %v2786, 0.0
      %2789 = vadd.xlane.f32.xlu0 %v2788
      %v2790 = vpop.xlane.xlu0 %2789
      %v2791 = vsel %vm529, %v2787, 0.0
      %2792 = vadd.xlane.f32.xlu0 %v2791
      %v2793 = vpop.xlane.xlu0 %2792
      %v2794 = vmul.f32 %v2790, %v536
      %v2795 = vmul.f32 %v2793, %v536
      %v2796 = vadd.f32 %v2794, 1e-05
      %v2797 = vadd.f32 %v2795, 1e-05
      %v2798 = vrsqrt.pop %v2796
      %v2799 = vrsqrt.pop %v2797
      %v2800 = vmul.f32 %v2784, %v2798
      %v2801 = vmul.f32 %v2785, %v2799
      %v2803 = vlaneseq
      %v2804 = vshrl.u32 %v2803, 7
      %v2805 = vsub.s32 0, %v2804
      %v2806 = vrot.slane %v2773, %v2805
      %v2808 = vmul.f32 %v2800, %v2806
      %v2809 = vmul.f32 %v2801, %v2806
      %v2811 = vlaneseq
      %v2812 = vshrl.u32 %v2811, 7
      %v2813 = vsub.s32 0, %v2812
      %v2814 = vrot.slane %v2775, %v2813
      %v2816 = vadd.f32 %v2808, %v2814
      %v2817 = vadd.f32 %v2809, %v2814
      %s2818 = scalar_lea.vmem %s3, 32
      %v2819 = vld [vmem:[%s2818] sm:$0xff]
      %v2820 = vld [vmem:[%s2818 + $0x8] sm:$0xff]
      %v2821 = vld [vmem:[%s2818 + $0x10] sm:$0xff]
      %v2822 = vld [vmem:[%s2818 + $0x18] sm:$0xff]
      %s2823 = scalar_lea.vmem %s4, 32
      %v2824 = vld [vmem:[%s2823] sm:$0xff]
      %v2825 = vld [vmem:[%s2823 + $0x8] sm:$0xff]
      %v2826 = vld [vmem:[%s2823 + $0x10] sm:$0xff]
      %v2827 = vld [vmem:[%s2823 + $0x18] sm:$0xff]
      %s2828 = scalar_lea.vmem %s5, 32
      %v2829 = vld [vmem:[%s2828] sm:$0xff]
      %v2830 = vld [vmem:[%s2828 + $0x8] sm:$0xff]
      %v2831 = vld [vmem:[%s2828 + $0x10] sm:$0xff]
      %v2832 = vld [vmem:[%s2828 + $0x18] sm:$0xff]
      %s2833 = scalar_lea.vmem %s6, 16
      %v2834 = vld [vmem:[%s2833] sm:$0xff]
      %v2835 = vld [vmem:[%s2833 + $0x8] sm:$0xff]
      %v2837 = vsel %vm587, %v2816, 0
      %2839 = vmatprep.subr.mxu0 0.0
      %2840 = vmatpush1.msra.mxu0 %v2819
      %2841 = vmatprep.subr.mxu0 0.0
      %2842 = vmatpush1.msra.mxu0 %v2820
      %2843 = vmatprep.subr.mxu0 0.0
      %2844 = vmatpush1.msra.mxu0 0.0
      %2845 = vmatprep.subr.mxu0 0.0
      %2846 = vmatpush1.msra.mxu0 0.0
      %2847 = vmatprep.subr.mxu0 0.0
      %2848 = vmatpush1.msra.mxu0 0.0
      %2849 = vmatprep.subr.mxu0 0.0
      %2850 = vmatpush1.msra.mxu0 0.0
      %2851 = vmatprep.subr.mxu0 0.0
      %2852 = vmatpush1.msra.mxu0 0.0
      %2853 = vmatprep.subr.mxu0 0.0
      %2854 = vmatpush1.msra.mxu0 0.0
      %2855 = vmatprep.subr.mxu0 0.0
      %2856 = vmatpush1.msra.mxu0 0.0
      %2857 = vmatprep.subr.mxu0 0.0
      %2858 = vmatpush1.msra.mxu0 0.0
      %2859 = vmatprep.subr.mxu0 0.0
      %2860 = vmatpush1.msra.mxu0 0.0
      %2861 = vmatprep.subr.mxu0 0.0
      %2862 = vmatpush1.msra.mxu0 0.0
      %2863 = vmatprep.subr.mxu0 0.0
      %2864 = vmatpush1.msra.mxu0 0.0
      %2865 = vmatprep.subr.mxu0 0.0
      %2866 = vmatpush1.msra.mxu0 0.0
      %2867 = vmatprep.subr.mxu0 0.0
      %2868 = vmatpush1.msra.mxu0 0.0
      %2869 = vmatprep.subr.mxu0 0.0
      %2870 = vmatpush1.msra.mxu0 0.0
      %2871 = vmatprep.subr.mxu0 0.0
      %2872 = vmatpush1.msra.mxu0 0.0
      %2873 = vmatprep.subr.mxu0 0.0
      %2874 = vmatpush1.msra.mxu0 0.0
      %2875 = vmatprep.subr.mxu0 0.0
      %2876 = vmatpush1.msra.mxu0 0.0
      %2877 = vmatprep.subr.mxu0 0.0
      %2878 = vmatpush1.msra.mxu0 0.0
      %2879 = vmatprep.subr.mxu0 0.0
      %2880 = vmatpush1.msra.mxu0 0.0
      %2881 = vmatprep.subr.mxu0 0.0
      %2882 = vmatpush1.msra.mxu0 0.0
      %2883 = vmatprep.subr.mxu0 0.0
      %2884 = vmatpush1.msra.mxu0 0.0
      %2885 = vmatprep.subr.mxu0 0.0
      %2886 = vmatpush1.msra.mxu0 0.0
      %2887 = vmatprep.subr.mxu0 0.0
      %2888 = vmatpush1.msra.mxu0 0.0
      %2889 = vmatprep.subr.mxu0 0.0
      %2890 = vmatpush1.msra.mxu0 0.0
      %2891 = vmatprep.subr.mxu0 0.0
      %2892 = vmatpush1.msra.mxu0 0.0
      %2893 = vmatprep.subr.mxu0 0.0
      %2894 = vmatpush1.msra.mxu0 0.0
      %2895 = vmatprep.subr.mxu0 0.0
      %2896 = vmatpush1.msra.mxu0 0.0
      %2897 = vmatprep.subr.mxu0 0.0
      %2898 = vmatpush1.msra.mxu0 0.0
      %2899 = vmatprep.subr.mxu0 0.0
      %2900 = vmatpush1.msra.mxu0 0.0
      %2901 = vmatprep.subr.mxu0 0.0
      %2902 = vmatpush1.msra.mxu0 0.0
      %2903 = vmatprep.mubr.f32.mxu0 0.0
      %2904 = vmatmul.mubr.f32.gmra.mrb[0].mxu0 %v2837
      %v2905 = vpop.f32.mrb[0].mxu0
      %v2906 = vadd.f32 0.0, %v2905
      %v2907 = vpop.f32.mrb[0].mxu0
      %2908 = vdwg.mxu0
      %v2910 = vsel %vm587, %v2817, 0
      %2912 = vmatprep.subr.mxu0 0.0
      %2913 = vmatpush1.msra.mxu0 %v2819
      %2914 = vmatprep.subr.mxu0 0.0
      %2915 = vmatpush1.msra.mxu0 %v2820
      %2916 = vmatprep.subr.mxu0 0.0
      %2917 = vmatpush1.msra.mxu0 0.0
      %2918 = vmatprep.subr.mxu0 0.0
      %2919 = vmatpush1.msra.mxu0 0.0
      %2920 = vmatprep.subr.mxu0 0.0
      %2921 = vmatpush1.msra.mxu0 0.0
      %2922 = vmatprep.subr.mxu0 0.0
      %2923 = vmatpush1.msra.mxu0 0.0
      %2924 = vmatprep.subr.mxu0 0.0
      %2925 = vmatpush1.msra.mxu0 0.0
      %2926 = vmatprep.subr.mxu0 0.0
      %2927 = vmatpush1.msra.mxu0 0.0
      %2928 = vmatprep.subr.mxu0 0.0
      %2929 = vmatpush1.msra.mxu0 0.0
      %2930 = vmatprep.subr.mxu0 0.0
      %2931 = vmatpush1.msra.mxu0 0.0
      %2932 = vmatprep.subr.mxu0 0.0
      %2933 = vmatpush1.msra.mxu0 0.0
      %2934 = vmatprep.subr.mxu0 0.0
      %2935 = vmatpush1.msra.mxu0 0.0
      %2936 = vmatprep.subr.mxu0 0.0
      %2937 = vmatpush1.msra.mxu0 0.0
      %2938 = vmatprep.subr.mxu0 0.0
      %2939 = vmatpush1.msra.mxu0 0.0
      %2940 = vmatprep.subr.mxu0 0.0
      %2941 = vmatpush1.msra.mxu0 0.0
      %2942 = vmatprep.subr.mxu0 0.0
      %2943 = vmatpush1.msra.mxu0 0.0
      %2944 = vmatprep.subr.mxu0 0.0
      %2945 = vmatpush1.msra.mxu0 0.0
      %2946 = vmatprep.subr.mxu0 0.0
      %2947 = vmatpush1.msra.mxu0 0.0
      %2948 = vmatprep.subr.mxu0 0.0
      %2949 = vmatpush1.msra.mxu0 0.0
      %2950 = vmatprep.subr.mxu0 0.0
      %2951 = vmatpush1.msra.mxu0 0.0
      %2952 = vmatprep.subr.mxu0 0.0
      %2953 = vmatpush1.msra.mxu0 0.0
      %2954 = vmatprep.subr.mxu0 0.0
      %2955 = vmatpush1.msra.mxu0 0.0
      %2956 = vmatprep.subr.mxu0 0.0
      %2957 = vmatpush1.msra.mxu0 0.0
      %2958 = vmatprep.subr.mxu0 0.0
      %2959 = vmatpush1.msra.mxu0 0.0
      %2960 = vmatprep.subr.mxu0 0.0
      %2961 = vmatpush1.msra.mxu0 0.0
      %2962 = vmatprep.subr.mxu0 0.0
      %2963 = vmatpush1.msra.mxu0 0.0
      %2964 = vmatprep.subr.mxu0 0.0
      %2965 = vmatpush1.msra.mxu0 0.0
      %2966 = vmatprep.subr.mxu0 0.0
      %2967 = vmatpush1.msra.mxu0 0.0
      %2968 = vmatprep.subr.mxu0 0.0
      %2969 = vmatpush1.msra.mxu0 0.0
      %2970 = vmatprep.subr.mxu0 0.0
      %2971 = vmatpush1.msra.mxu0 0.0
      %2972 = vmatprep.subr.mxu0 0.0
      %2973 = vmatpush1.msra.mxu0 0.0
      %2974 = vmatprep.subr.mxu0 0.0
      %2975 = vmatpush1.msra.mxu0 0.0
      %2976 = vmatprep.mubr.f32.mxu0 0.0
      %2977 = vmatmul.mubr.f32.gmra.mrb[0].mxu0 %v2910
      %v2978 = vpop.f32.mrb[0].mxu0
      %v2979 = vadd.f32 0.0, %v2978
      %v2980 = vpop.f32.mrb[0].mxu0
      %2981 = vdwg.mxu0
      %2982 = vmatprep.subr.mxu0 0.0
      %2983 = vmatpush1.msra.mxu0 %v2824
      %2984 = vmatprep.subr.mxu0 0.0
      %2985 = vmatpush1.msra.mxu0 %v2825
      %2986 = vmatprep.subr.mxu0 0.0
      %2987 = vmatpush1.msra.mxu0 0.0
      %2988 = vmatprep.subr.mxu0 0.0
      %2989 = vmatpush1.msra.mxu0 0.0
      %2990 = vmatprep.subr.mxu0 0.0
      %2991 = vmatpush1.msra.mxu0 0.0
      %2992 = vmatprep.subr.mxu0 0.0
      %2993 = vmatpush1.msra.mxu0 0.0
      %2994 = vmatprep.subr.mxu0 0.0
      %2995 = vmatpush1.msra.mxu0 0.0
      %2996 = vmatprep.subr.mxu0 0.0
      %2997 = vmatpush1.msra.mxu0 0.0
      %2998 = vmatprep.subr.mxu0 0.0
      %2999 = vmatpush1.msra.mxu0 0.0
      %3000 = vmatprep.subr.mxu0 0.0
      %3001 = vmatpush1.msra.mxu0 0.0
      %3002 = vmatprep.subr.mxu0 0.0
      %3003 = vmatpush1.msra.mxu0 0.0
      %3004 = vmatprep.subr.mxu0 0.0
      %3005 = vmatpush1.msra.mxu0 0.0
      %3006 = vmatprep.subr.mxu0 0.0
      %3007 = vmatpush1.msra.mxu0 0.0
      %3008 = vmatprep.subr.mxu0 0.0
      %3009 = vmatpush1.msra.mxu0 0.0
      %3010 = vmatprep.subr.mxu0 0.0
      %3011 = vmatpush1.msra.mxu0 0.0
      %3012 = vmatprep.subr.mxu0 0.0
      %3013 = vmatpush1.msra.mxu0 0.0
      %3014 = vmatprep.subr.mxu0 0.0
      %3015 = vmatpush1.msra.mxu0 0.0
      %3016 = vmatprep.subr.mxu0 0.0
      %3017 = vmatpush1.msra.mxu0 0.0
      %3018 = vmatprep.subr.mxu0 0.0
      %3019 = vmatpush1.msra.mxu0 0.0
      %3020 = vmatprep.subr.mxu0 0.0
      %3021 = vmatpush1.msra.mxu0 0.0
      %3022 = vmatprep.subr.mxu0 0.0
      %3023 = vmatpush1.msra.mxu0 0.0
      %3024 = vmatprep.subr.mxu0 0.0
      %3025 = vmatpush1.msra.mxu0 0.0
      %3026 = vmatprep.subr.mxu0 0.0
      %3027 = vmatpush1.msra.mxu0 0.0
      %3028 = vmatprep.subr.mxu0 0.0
      %3029 = vmatpush1.msra.mxu0 0.0
      %3030 = vmatprep.subr.mxu0 0.0
      %3031 = vmatpush1.msra.mxu0 0.0
      %3032 = vmatprep.subr.mxu0 0.0
      %3033 = vmatpush1.msra.mxu0 0.0
      %3034 = vmatprep.subr.mxu0 0.0
      %3035 = vmatpush1.msra.mxu0 0.0
      %3036 = vmatprep.subr.mxu0 0.0
      %3037 = vmatpush1.msra.mxu0 0.0
      %3038 = vmatprep.subr.mxu0 0.0
      %3039 = vmatpush1.msra.mxu0 0.0
      %3040 = vmatprep.subr.mxu0 0.0
      %3041 = vmatpush1.msra.mxu0 0.0
      %3042 = vmatprep.subr.mxu0 0.0
      %3043 = vmatpush1.msra.mxu0 0.0
      %3044 = vmatprep.subr.mxu0 0.0
      %3045 = vmatpush1.msra.mxu0 0.0
      %3046 = vmatprep.mubr.f32.mxu0 0.0
      %3047 = vmatmul.mubr.f32.gmra.mrb[0].mxu0 %v2837
      %v3048 = vpop.f32.mrb[0].mxu0
      %v3049 = vadd.f32 0.0, %v3048
      %v3050 = vpop.f32.mrb[0].mxu0
      %3051 = vdwg.mxu0
      %3052 = vmatprep.subr.mxu0 0.0
      %3053 = vmatpush1.msra.mxu0 %v2824
      %3054 = vmatprep.subr.mxu0 0.0
      %3055 = vmatpush1.msra.mxu0 %v2825
      %3056 = vmatprep.subr.mxu0 0.0
      %3057 = vmatpush1.msra.mxu0 0.0
      %3058 = vmatprep.subr.mxu0 0.0
      %3059 = vmatpush1.msra.mxu0 0.0
      %3060 = vmatprep.subr.mxu0 0.0
      %3061 = vmatpush1.msra.mxu0 0.0
      %3062 = vmatprep.subr.mxu0 0.0
      %3063 = vmatpush1.msra.mxu0 0.0
      %3064 = vmatprep.subr.mxu0 0.0
      %3065 = vmatpush1.msra.mxu0 0.0
      %3066 = vmatprep.subr.mxu0 0.0
      %3067 = vmatpush1.msra.mxu0 0.0
      %3068 = vmatprep.subr.mxu0 0.0
      %3069 = vmatpush1.msra.mxu0 0.0
      %3070 = vmatprep.subr.mxu0 0.0
      %3071 = vmatpush1.msra.mxu0 0.0
      %3072 = vmatprep.subr.mxu0 0.0
      %3073 = vmatpush1.msra.mxu0 0.0
      %3074 = vmatprep.subr.mxu0 0.0
      %3075 = vmatpush1.msra.mxu0 0.0
      %3076 = vmatprep.subr.mxu0 0.0
      %3077 = vmatpush1.msra.mxu0 0.0
      %3078 = vmatprep.subr.mxu0 0.0
      %3079 = vmatpush1.msra.mxu0 0.0
      %3080 = vmatprep.subr.mxu0 0.0
      %3081 = vmatpush1.msra.mxu0 0.0
      %3082 = vmatprep.subr.mxu0 0.0
      %3083 = vmatpush1.msra.mxu0 0.0
      %3084 = vmatprep.subr.mxu0 0.0
      %3085 = vmatpush1.msra.mxu0 0.0
      %3086 = vmatprep.subr.mxu0 0.0
      %3087 = vmatpush1.msra.mxu0 0.0
      %3088 = vmatprep.subr.mxu0 0.0
      %3089 = vmatpush1.msra.mxu0 0.0
      %3090 = vmatprep.subr.mxu0 0.0
      %3091 = vmatpush1.msra.mxu0 0.0
      %3092 = vmatprep.subr.mxu0 0.0
      %3093 = vmatpush1.msra.mxu0 0.0
      %3094 = vmatprep.subr.mxu0 0.0
      %3095 = vmatpush1.msra.mxu0 0.0
      %3096 = vmatprep.subr.mxu0 0.0
      %3097 = vmatpush1.msra.mxu0 0.0
      %3098 = vmatprep.subr.mxu0 0.0
      %3099 = vmatpush1.msra.mxu0 0.0
      %3100 = vmatprep.subr.mxu0 0.0
      %3101 = vmatpush1.msra.mxu0 0.0
      %3102 = vmatprep.subr.mxu0 0.0
      %3103 = vmatpush1.msra.mxu0 0.0
      %3104 = vmatprep.subr.mxu0 0.0
      %3105 = vmatpush1.msra.mxu0 0.0
      %3106 = vmatprep.subr.mxu0 0.0
      %3107 = vmatpush1.msra.mxu0 0.0
      %3108 = vmatprep.subr.mxu0 0.0
      %3109 = vmatpush1.msra.mxu0 0.0
      %3110 = vmatprep.subr.mxu0 0.0
      %3111 = vmatpush1.msra.mxu0 0.0
      %3112 = vmatprep.subr.mxu0 0.0
      %3113 = vmatpush1.msra.mxu0 0.0
      %3114 = vmatprep.subr.mxu0 0.0
      %3115 = vmatpush1.msra.mxu0 0.0
      %3116 = vmatprep.mubr.f32.mxu0 0.0
      %3117 = vmatmul.mubr.f32.gmra.mrb[0].mxu0 %v2910
      %v3118 = vpop.f32.mrb[0].mxu0
      %v3119 = vadd.f32 0.0, %v3118
      %v3120 = vpop.f32.mrb[0].mxu0
      %3121 = vdwg.mxu0
      %3122 = vmatprep.subr.mxu0 0.0
      %3123 = vmatpush1.msra.mxu0 %v2829
      %3124 = vmatprep.subr.mxu0 0.0
      %3125 = vmatpush1.msra.mxu0 %v2830
      %3126 = vmatprep.subr.mxu0 0.0
      %3127 = vmatpush1.msra.mxu0 0.0
      %3128 = vmatprep.subr.mxu0 0.0
      %3129 = vmatpush1.msra.mxu0 0.0
      %3130 = vmatprep.subr.mxu0 0.0
      %3131 = vmatpush1.msra.mxu0 0.0
      %3132 = vmatprep.subr.mxu0 0.0
      %3133 = vmatpush1.msra.mxu0 0.0
      %3134 = vmatprep.subr.mxu0 0.0
      %3135 = vmatpush1.msra.mxu0 0.0
      %3136 = vmatprep.subr.mxu0 0.0
      %3137 = vmatpush1.msra.mxu0 0.0
      %3138 = vmatprep.subr.mxu0 0.0
      %3139 = vmatpush1.msra.mxu0 0.0
      %3140 = vmatprep.subr.mxu0 0.0
      %3141 = vmatpush1.msra.mxu0 0.0
      %3142 = vmatprep.subr.mxu0 0.0
      %3143 = vmatpush1.msra.mxu0 0.0
      %3144 = vmatprep.subr.mxu0 0.0
      %3145 = vmatpush1.msra.mxu0 0.0
      %3146 = vmatprep.subr.mxu0 0.0
      %3147 = vmatpush1.msra.mxu0 0.0
      %3148 = vmatprep.subr.mxu0 0.0
      %3149 = vmatpush1.msra.mxu0 0.0
      %3150 = vmatprep.subr.mxu0 0.0
      %3151 = vmatpush1.msra.mxu0 0.0
      %3152 = vmatprep.subr.mxu0 0.0
      %3153 = vmatpush1.msra.mxu0 0.0
      %3154 = vmatprep.subr.mxu0 0.0
      %3155 = vmatpush1.msra.mxu0 0.0
      %3156 = vmatprep.subr.mxu0 0.0
      %3157 = vmatpush1.msra.mxu0 0.0
      %3158 = vmatprep.subr.mxu0 0.0
      %3159 = vmatpush1.msra.mxu0 0.0
      %3160 = vmatprep.subr.mxu0 0.0
      %3161 = vmatpush1.msra.mxu0 0.0
      %3162 = vmatprep.subr.mxu0 0.0
      %3163 = vmatpush1.msra.mxu0 0.0
      %3164 = vmatprep.subr.mxu0 0.0
      %3165 = vmatpush1.msra.mxu0 0.0
      %3166 = vmatprep.subr.mxu0 0.0
      %3167 = vmatpush1.msra.mxu0 0.0
      %3168 = vmatprep.subr.mxu0 0.0
      %3169 = vmatpush1.msra.mxu0 0.0
      %3170 = vmatprep.subr.mxu0 0.0
      %3171 = vmatpush1.msra.mxu0 0.0
      %3172 = vmatprep.subr.mxu0 0.0
      %3173 = vmatpush1.msra.mxu0 0.0
      %3174 = vmatprep.subr.mxu0 0.0
      %3175 = vmatpush1.msra.mxu0 0.0
      %3176 = vmatprep.subr.mxu0 0.0
      %3177 = vmatpush1.msra.mxu0 0.0
      %3178 = vmatprep.subr.mxu0 0.0
      %3179 = vmatpush1.msra.mxu0 0.0
      %3180 = vmatprep.subr.mxu0 0.0
      %3181 = vmatpush1.msra.mxu0 0.0
      %3182 = vmatprep.subr.mxu0 0.0
      %3183 = vmatpush1.msra.mxu0 0.0
      %3184 = vmatprep.subr.mxu0 0.0
      %3185 = vmatpush1.msra.mxu0 0.0
      %3186 = vmatprep.mubr.f32.mxu0 0.0
      %3187 = vmatmul.mubr.f32.gmra.mrb[0].mxu0 %v2837
      %v3188 = vpop.f32.mrb[0].mxu0
      %v3189 = vadd.f32 0.0, %v3188
      %v3190 = vpop.f32.mrb[0].mxu0
      %3191 = vdwg.mxu0
      %3192 = vmatprep.subr.mxu0 0.0
      %3193 = vmatpush1.msra.mxu0 %v2829
      %3194 = vmatprep.subr.mxu0 0.0
      %3195 = vmatpush1.msra.mxu0 %v2830
      %3196 = vmatprep.subr.mxu0 0.0
      %3197 = vmatpush1.msra.mxu0 0.0
      %3198 = vmatprep.subr.mxu0 0.0
      %3199 = vmatpush1.msra.mxu0 0.0
      %3200 = vmatprep.subr.mxu0 0.0
      %3201 = vmatpush1.msra.mxu0 0.0
      %3202 = vmatprep.subr.mxu0 0.0
      %3203 = vmatpush1.msra.mxu0 0.0
      %3204 = vmatprep.subr.mxu0 0.0
      %3205 = vmatpush1.msra.mxu0 0.0
      %3206 = vmatprep.subr.mxu0 0.0
      %3207 = vmatpush1.msra.mxu0 0.0
      %3208 = vmatprep.subr.mxu0 0.0
      %3209 = vmatpush1.msra.mxu0 0.0
      %3210 = vmatprep.subr.mxu0 0.0
      %3211 = vmatpush1.msra.mxu0 0.0
      %3212 = vmatprep.subr.mxu0 0.0
      %3213 = vmatpush1.msra.mxu0 0.0
      %3214 = vmatprep.subr.mxu0 0.0
      %3215 = vmatpush1.msra.mxu0 0.0
      %3216 = vmatprep.subr.mxu0 0.0
      %3217 = vmatpush1.msra.mxu0 0.0
      %3218 = vmatprep.subr.mxu0 0.0
      %3219 = vmatpush1.msra.mxu0 0.0
      %3220 = vmatprep.subr.mxu0 0.0
      %3221 = vmatpush1.msra.mxu0 0.0
      %3222 = vmatprep.subr.mxu0 0.0
      %3223 = vmatpush1.msra.mxu0 0.0
      %3224 = vmatprep.subr.mxu0 0.0
      %3225 = vmatpush1.msra.mxu0 0.0
      %3226 = vmatprep.subr.mxu0 0.0
      %3227 = vmatpush1.msra.mxu0 0.0
      %3228 = vmatprep.subr.mxu0 0.0
      %3229 = vmatpush1.msra.mxu0 0.0
      %3230 = vmatprep.subr.mxu0 0.0
      %3231 = vmatpush1.msra.mxu0 0.0
      %3232 = vmatprep.subr.mxu0 0.0
      %3233 = vmatpush1.msra.mxu0 0.0
      %3234 = vmatprep.subr.mxu0 0.0
      %3235 = vmatpush1.msra.mxu0 0.0
      %3236 = vmatprep.subr.mxu0 0.0
      %3237 = vmatpush1.msra.mxu0 0.0
      %3238 = vmatprep.subr.mxu0 0.0
      %3239 = vmatpush1.msra.mxu0 0.0
      %3240 = vmatprep.subr.mxu0 0.0
      %3241 = vmatpush1.msra.mxu0 0.0
      %3242 = vmatprep.subr.mxu0 0.0
      %3243 = vmatpush1.msra.mxu0 0.0
      %3244 = vmatprep.subr.mxu0 0.0
      %3245 = vmatpush1.msra.mxu0 0.0
      %3246 = vmatprep.subr.mxu0 0.0
      %3247 = vmatpush1.msra.mxu0 0.0
      %3248 = vmatprep.subr.mxu0 0.0
      %3249 = vmatpush1.msra.mxu0 0.0
      %3250 = vmatprep.subr.mxu0 0.0
      %3251 = vmatpush1.msra.mxu0 0.0
      %3252 = vmatprep.subr.mxu0 0.0
      %3253 = vmatpush1.msra.mxu0 0.0
      %3254 = vmatprep.subr.mxu0 0.0
      %3255 = vmatpush1.msra.mxu0 0.0
      %3256 = vmatprep.mubr.f32.mxu0 0.0
      %3257 = vmatmul.mubr.f32.gmra.mrb[0].mxu0 %v2910
      %v3258 = vpop.f32.mrb[0].mxu0
      %v3259 = vadd.f32 0.0, %v3258
      %v3260 = vpop.f32.mrb[0].mxu0
      %3261 = vdwg.mxu0
      %v3263 = vsel %vm1014, %v2906, 0
      %v3266 = vsel %vm1014, %v3049, 0
      %3268 = vmatprep.subr.mxu0 0.0
      %3269 = vmatpush1.xpose.msra.mxu0 %v3266
      %3270 = vmatprep.subr.mxu0 0.0
      %3271 = vmatpush1.xpose.msra.mxu0 0.0
      %3272 = vmatprep.subr.mxu0 0.0
      %3273 = vmatpush1.xpose.msra.mxu0 0.0
      %3274 = vmatprep.subr.mxu0 0.0
      %3275 = vmatpush1.xpose.msra.mxu0 0.0
      %3276 = vmatprep.subr.mxu0 0.0
      %3277 = vmatpush1.xpose.msra.mxu0 0.0
      %3278 = vmatprep.subr.mxu0 0.0
      %3279 = vmatpush1.xpose.msra.mxu0 0.0
      %3280 = vmatprep.subr.mxu0 0.0
      %3281 = vmatpush1.xpose.msra.mxu0 0.0
      %3282 = vmatprep.subr.mxu0 0.0
      %3283 = vmatpush1.xpose.msra.mxu0 0.0
      %3284 = vmatprep.subr.mxu0 0.0
      %3285 = vmatpush1.xpose.msra.mxu0 0.0
      %3286 = vmatprep.subr.mxu0 0.0
      %3287 = vmatpush1.xpose.msra.mxu0 0.0
      %3288 = vmatprep.subr.mxu0 0.0
      %3289 = vmatpush1.xpose.msra.mxu0 0.0
      %3290 = vmatprep.subr.mxu0 0.0
      %3291 = vmatpush1.xpose.msra.mxu0 0.0
      %3292 = vmatprep.subr.mxu0 0.0
      %3293 = vmatpush1.xpose.msra.mxu0 0.0
      %3294 = vmatprep.subr.mxu0 0.0
      %3295 = vmatpush1.xpose.msra.mxu0 0.0
      %3296 = vmatprep.subr.mxu0 0.0
      %3297 = vmatpush1.xpose.msra.mxu0 0.0
      %3298 = vmatprep.subr.mxu0 0.0
      %3299 = vmatpush1.xpose.msra.mxu0 0.0
      %3300 = vmatprep.subr.mxu0 0.0
      %3301 = vmatpush1.xpose.msra.mxu0 0.0
      %3302 = vmatprep.subr.mxu0 0.0
      %3303 = vmatpush1.xpose.msra.mxu0 0.0
      %3304 = vmatprep.subr.mxu0 0.0
      %3305 = vmatpush1.xpose.msra.mxu0 0.0
      %3306 = vmatprep.subr.mxu0 0.0
      %3307 = vmatpush1.xpose.msra.mxu0 0.0
      %3308 = vmatprep.subr.mxu0 0.0
      %3309 = vmatpush1.xpose.msra.mxu0 0.0
      %3310 = vmatprep.subr.mxu0 0.0
      %3311 = vmatpush1.xpose.msra.mxu0 0.0
      %3312 = vmatprep.subr.mxu0 0.0
      %3313 = vmatpush1.xpose.msra.mxu0 0.0
      %3314 = vmatprep.subr.mxu0 0.0
      %3315 = vmatpush1.xpose.msra.mxu0 0.0
      %3316 = vmatprep.subr.mxu0 0.0
      %3317 = vmatpush1.xpose.msra.mxu0 0.0
      %3318 = vmatprep.subr.mxu0 0.0
      %3319 = vmatpush1.xpose.msra.mxu0 0.0
      %3320 = vmatprep.subr.mxu0 0.0
      %3321 = vmatpush1.xpose.msra.mxu0 0.0
      %3322 = vmatprep.subr.mxu0 0.0
      %3323 = vmatpush1.xpose.msra.mxu0 0.0
      %3324 = vmatprep.subr.mxu0 0.0
      %3325 = vmatpush1.xpose.msra.mxu0 0.0
      %3326 = vmatprep.subr.mxu0 0.0
      %3327 = vmatpush1.xpose.msra.mxu0 0.0
      %3328 = vmatprep.subr.mxu0 0.0
      %3329 = vmatpush1.xpose.msra.mxu0 0.0
      %3330 = vmatprep.subr.mxu0 0.0
      %3331 = vmatpush1.xpose.msra.mxu0 0.0
      %3332 = vmatprep.mubr.f32.mxu0 0.0
      %3333 = vmatmul.mubr.f32.gmra.mrb[0].mxu0 %v3263
      %v3334 = vpop.f32.mrb[0].mxu0
      %v3335 = vadd.f32 0.0, %v3334
      %v3336 = vpop.f32.mrb[0].mxu0
      %3337 = vdwg.mxu0
      %v3339 = vsel %vm1014, %v2979, 0
      %v3342 = vsel %vm1014, %v3119, 0
      %3344 = vmatprep.subr.mxu0 0.0
      %3345 = vmatpush1.xpose.msra.mxu0 %v3342
      %3346 = vmatprep.subr.mxu0 0.0
      %3347 = vmatpush1.xpose.msra.mxu0 0.0
      %3348 = vmatprep.subr.mxu0 0.0
      %3349 = vmatpush1.xpose.msra.mxu0 0.0
      %3350 = vmatprep.subr.mxu0 0.0
      %3351 = vmatpush1.xpose.msra.mxu0 0.0
      %3352 = vmatprep.subr.mxu0 0.0
      %3353 = vmatpush1.xpose.msra.mxu0 0.0
      %3354 = vmatprep.subr.mxu0 0.0
      %3355 = vmatpush1.xpose.msra.mxu0 0.0
      %3356 = vmatprep.subr.mxu0 0.0
      %3357 = vmatpush1.xpose.msra.mxu0 0.0
      %3358 = vmatprep.subr.mxu0 0.0
      %3359 = vmatpush1.xpose.msra.mxu0 0.0
      %3360 = vmatprep.subr.mxu0 0.0
      %3361 = vmatpush1.xpose.msra.mxu0 0.0
      %3362 = vmatprep.subr.mxu0 0.0
      %3363 = vmatpush1.xpose.msra.mxu0 0.0
      %3364 = vmatprep.subr.mxu0 0.0
      %3365 = vmatpush1.xpose.msra.mxu0 0.0
      %3366 = vmatprep.subr.mxu0 0.0
      %3367 = vmatpush1.xpose.msra.mxu0 0.0
      %3368 = vmatprep.subr.mxu0 0.0
      %3369 = vmatpush1.xpose.msra.mxu0 0.0
      %3370 = vmatprep.subr.mxu0 0.0
      %3371 = vmatpush1.xpose.msra.mxu0 0.0
      %3372 = vmatprep.subr.mxu0 0.0
      %3373 = vmatpush1.xpose.msra.mxu0 0.0
      %3374 = vmatprep.subr.mxu0 0.0
      %3375 = vmatpush1.xpose.msra.mxu0 0.0
      %3376 = vmatprep.subr.mxu0 0.0
      %3377 = vmatpush1.xpose.msra.mxu0 0.0
      %3378 = vmatprep.subr.mxu0 0.0
      %3379 = vmatpush1.xpose.msra.mxu0 0.0
      %3380 = vmatprep.subr.mxu0 0.0
      %3381 = vmatpush1.xpose.msra.mxu0 0.0
      %3382 = vmatprep.subr.mxu0 0.0
      %3383 = vmatpush1.xpose.msra.mxu0 0.0
      %3384 = vmatprep.subr.mxu0 0.0
      %3385 = vmatpush1.xpose.msra.mxu0 0.0
      %3386 = vmatprep.subr.mxu0 0.0
      %3387 = vmatpush1.xpose.msra.mxu0 0.0
      %3388 = vmatprep.subr.mxu0 0.0
      %3389 = vmatpush1.xpose.msra.mxu0 0.0
      %3390 = vmatprep.subr.mxu0 0.0
      %3391 = vmatpush1.xpose.msra.mxu0 0.0
      %3392 = vmatprep.subr.mxu0 0.0
      %3393 = vmatpush1.xpose.msra.mxu0 0.0
      %3394 = vmatprep.subr.mxu0 0.0
      %3395 = vmatpush1.xpose.msra.mxu0 0.0
      %3396 = vmatprep.subr.mxu0 0.0
      %3397 = vmatpush1.xpose.msra.mxu0 0.0
      %3398 = vmatprep.subr.mxu0 0.0
      %3399 = vmatpush1.xpose.msra.mxu0 0.0
      %3400 = vmatprep.subr.mxu0 0.0
      %3401 = vmatpush1.xpose.msra.mxu0 0.0
      %3402 = vmatprep.subr.mxu0 0.0
      %3403 = vmatpush1.xpose.msra.mxu0 0.0
      %3404 = vmatprep.subr.mxu0 0.0
      %3405 = vmatpush1.xpose.msra.mxu0 0.0
      %3406 = vmatprep.subr.mxu0 0.0
      %3407 = vmatpush1.xpose.msra.mxu0 0.0
      %3408 = vmatprep.mubr.f32.mxu0 0.0
      %3409 = vmatmul.mubr.f32.gmra.mrb[0].mxu0 %v3339
      %v3410 = vpop.f32.mrb[0].mxu0
      %v3411 = vadd.f32 0.0, %v3410
      %v3412 = vpop.f32.mrb[0].mxu0
      %3413 = vdwg.mxu0
      %v3414 = vmul.f32 %v3335, 0.35355338
      %v3415 = vmul.f32 %v3411, 0.35355338
      %v3416 = vsel %vm1169, %v3414, -inf
      %3417 = vmax.xlane.f32.xlu0 %v3416
      %v3418 = vpop.xlane.xlu0 %3417
      %v3419 = vsel %vm1169, %v3415, -inf
      %3420 = vmax.xlane.f32.xlu0 %v3419
      %v3421 = vpop.xlane.xlu0 %3420
      %v3422 = vsub.f32 %v3414, %v3418
      %v3423 = vsub.f32 %v3415, %v3421
      %v3424 = vmul.f32 %v3422, 1.442695
      %v3425 = vpow.pop %v3424
      %v3426 = vmul.f32 %v3423, 1.442695
      %v3427 = vpow.pop %v3426
      %v3428 = vsel %vm1169, %v3425, 0.0
      %3429 = vadd.xlane.f32.xlu0 %v3428
      %v3430 = vpop.xlane.xlu0 %3429
      %v3431 = vsel %vm1169, %v3427, 0.0
      %3432 = vadd.xlane.f32.xlu0 %v3431
      %v3433 = vpop.xlane.xlu0 %3432
      %v3434 = vrcp.pop %v3430
      %v3435 = vmul.f32 %v3425, %v3434
      %v3436 = vrcp.pop %v3433
      %v3437 = vmul.f32 %v3427, %v3436
      %v3439 = vsel %vm1192, %v3435, 0
      %v3442 = vsel %vm1196, %v3189, 0
      %3444 = vmatprep.subr.mxu0 0.0
      %3445 = vmatpush1.msra.mxu0 %v3442
      %3446 = vmatprep.subr.mxu0 0.0
      %3447 = vmatpush1.msra.mxu0 0.0
      %3448 = vmatprep.subr.mxu0 0.0
      %3449 = vmatpush1.msra.mxu0 0.0
      %3450 = vmatprep.subr.mxu0 0.0
      %3451 = vmatpush1.msra.mxu0 0.0
      %3452 = vmatprep.subr.mxu0 0.0
      %3453 = vmatpush1.msra.mxu0 0.0
      %3454 = vmatprep.subr.mxu0 0.0
      %3455 = vmatpush1.msra.mxu0 0.0
      %3456 = vmatprep.subr.mxu0 0.0
      %3457 = vmatpush1.msra.mxu0 0.0
      %3458 = vmatprep.subr.mxu0 0.0
      %3459 = vmatpush1.msra.mxu0 0.0
      %3460 = vmatprep.subr.mxu0 0.0
      %3461 = vmatpush1.msra.mxu0 0.0
      %3462 = vmatprep.subr.mxu0 0.0
      %3463 = vmatpush1.msra.mxu0 0.0
      %3464 = vmatprep.subr.mxu0 0.0
      %3465 = vmatpush1.msra.mxu0 0.0
      %3466 = vmatprep.subr.mxu0 0.0
      %3467 = vmatpush1.msra.mxu0 0.0
      %3468 = vmatprep.subr.mxu0 0.0
      %3469 = vmatpush1.msra.mxu0 0.0
      %3470 = vmatprep.subr.mxu0 0.0
      %3471 = vmatpush1.msra.mxu0 0.0
      %3472 = vmatprep.subr.mxu0 0.0
      %3473 = vmatpush1.msra.mxu0 0.0
      %3474 = vmatprep.subr.mxu0 0.0
      %3475 = vmatpush1.msra.mxu0 0.0
      %3476 = vmatprep.subr.mxu0 0.0
      %3477 = vmatpush1.msra.mxu0 0.0
      %3478 = vmatprep.subr.mxu0 0.0
      %3479 = vmatpush1.msra.mxu0 0.0
      %3480 = vmatprep.subr.mxu0 0.0
      %3481 = vmatpush1.msra.mxu0 0.0
      %3482 = vmatprep.subr.mxu0 0.0
      %3483 = vmatpush1.msra.mxu0 0.0
      %3484 = vmatprep.subr.mxu0 0.0
      %3485 = vmatpush1.msra.mxu0 0.0
      %3486 = vmatprep.subr.mxu0 0.0
      %3487 = vmatpush1.msra.mxu0 0.0
      %3488 = vmatprep.subr.mxu0 0.0
      %3489 = vmatpush1.msra.mxu0 0.0
      %3490 = vmatprep.subr.mxu0 0.0
      %3491 = vmatpush1.msra.mxu0 0.0
      %3492 = vmatprep.subr.mxu0 0.0
      %3493 = vmatpush1.msra.mxu0 0.0
      %3494 = vmatprep.subr.mxu0 0.0
      %3495 = vmatpush1.msra.mxu0 0.0
      %3496 = vmatprep.subr.mxu0 0.0
      %3497 = vmatpush1.msra.mxu0 0.0
      %3498 = vmatprep.subr.mxu0 0.0
      %3499 = vmatpush1.msra.mxu0 0.0
      %3500 = vmatprep.subr.mxu0 0.0
      %3501 = vmatpush1.msra.mxu0 0.0
      %3502 = vmatprep.subr.mxu0 0.0
      %3503 = vmatpush1.msra.mxu0 0.0
      %3504 = vmatprep.subr.mxu0 0.0
      %3505 = vmatpush1.msra.mxu0 0.0
      %3506 = vmatprep.subr.mxu0 0.0
      %3507 = vmatpush1.msra.mxu0 0.0
      %3508 = vmatprep.mubr.f32.mxu0 0.0
      %3509 = vmatmul.mubr.f32.gmra.mrb[0].mxu0 %v3439
      %v3510 = vpop.f32.mrb[0].mxu0
      %v3511 = vadd.f32 0.0, %v3510
      %v3512 = vpop.f32.mrb[0].mxu0
      %3513 = vdwg.mxu0
      %v3515 = vsel %vm1192, %v3437, 0
      %v3518 = vsel %vm1196, %v3259, 0
      %3520 = vmatprep.subr.mxu0 0.0
      %3521 = vmatpush1.msra.mxu0 %v3518
      %3522 = vmatprep.subr.mxu0 0.0
      %3523 = vmatpush1.msra.mxu0 0.0
      %3524 = vmatprep.subr.mxu0 0.0
      %3525 = vmatpush1.msra.mxu0 0.0
      %3526 = vmatprep.subr.mxu0 0.0
      %3527 = vmatpush1.msra.mxu0 0.0
      %3528 = vmatprep.subr.mxu0 0.0
      %3529 = vmatpush1.msra.mxu0 0.0
      %3530 = vmatprep.subr.mxu0 0.0
      %3531 = vmatpush1.msra.mxu0 0.0
      %3532 = vmatprep.subr.mxu0 0.0
      %3533 = vmatpush1.msra.mxu0 0.0
      %3534 = vmatprep.subr.mxu0 0.0
      %3535 = vmatpush1.msra.mxu0 0.0
      %3536 = vmatprep.subr.mxu0 0.0
      %3537 = vmatpush1.msra.mxu0 0.0
      %3538 = vmatprep.subr.mxu0 0.0
      %3539 = vmatpush1.msra.mxu0 0.0
      %3540 = vmatprep.subr.mxu0 0.0
      %3541 = vmatpush1.msra.mxu0 0.0
      %3542 = vmatprep.subr.mxu0 0.0
      %3543 = vmatpush1.msra.mxu0 0.0
      %3544 = vmatprep.subr.mxu0 0.0
      %3545 = vmatpush1.msra.mxu0 0.0
      %3546 = vmatprep.subr.mxu0 0.0
      %3547 = vmatpush1.msra.mxu0 0.0
      %3548 = vmatprep.subr.mxu0 0.0
      %3549 = vmatpush1.msra.mxu0 0.0
      %3550 = vmatprep.subr.mxu0 0.0
      %3551 = vmatpush1.msra.mxu0 0.0
      %3552 = vmatprep.subr.mxu0 0.0
      %3553 = vmatpush1.msra.mxu0 0.0
      %3554 = vmatprep.subr.mxu0 0.0
      %3555 = vmatpush1.msra.mxu0 0.0
      %3556 = vmatprep.subr.mxu0 0.0
      %3557 = vmatpush1.msra.mxu0 0.0
      %3558 = vmatprep.subr.mxu0 0.0
      %3559 = vmatpush1.msra.mxu0 0.0
      %3560 = vmatprep.subr.mxu0 0.0
      %3561 = vmatpush1.msra.mxu0 0.0
      %3562 = vmatprep.subr.mxu0 0.0
      %3563 = vmatpush1.msra.mxu0 0.0
      %3564 = vmatprep.subr.mxu0 0.0
      %3565 = vmatpush1.msra.mxu0 0.0
      %3566 = vmatprep.subr.mxu0 0.0
      %3567 = vmatpush1.msra.mxu0 0.0
      %3568 = vmatprep.subr.mxu0 0.0
      %3569 = vmatpush1.msra.mxu0 0.0
      %3570 = vmatprep.subr.mxu0 0.0
      %3571 = vmatpush1.msra.mxu0 0.0
      %3572 = vmatprep.subr.mxu0 0.0
      %3573 = vmatpush1.msra.mxu0 0.0
      %3574 = vmatprep.subr.mxu0 0.0
      %3575 = vmatpush1.msra.mxu0 0.0
      %3576 = vmatprep.subr.mxu0 0.0
      %3577 = vmatpush1.msra.mxu0 0.0
      %3578 = vmatprep.subr.mxu0 0.0
      %3579 = vmatpush1.msra.mxu0 0.0
      %3580 = vmatprep.subr.mxu0 0.0
      %3581 = vmatpush1.msra.mxu0 0.0
      %3582 = vmatprep.subr.mxu0 0.0
      %3583 = vmatpush1.msra.mxu0 0.0
      %3584 = vmatprep.mubr.f32.mxu0 0.0
      %3585 = vmatmul.mubr.f32.gmra.mrb[0].mxu0 %v3515
      %v3586 = vpop.f32.mrb[0].mxu0
      %v3587 = vadd.f32 0.0, %v3586
      %v3588 = vpop.f32.mrb[0].mxu0
      %3589 = vdwg.mxu0
      %3590 = vmatprep.subr.mxu0 0.0
      %3591 = vmatpush1.msra.mxu0 %v2821
      %3592 = vmatprep.subr.mxu0 0.0
      %3593 = vmatpush1.msra.mxu0 %v2822
      %3594 = vmatprep.subr.mxu0 0.0
      %3595 = vmatpush1.msra.mxu0 0.0
      %3596 = vmatprep.subr.mxu0 0.0
      %3597 = vmatpush1.msra.mxu0 0.0
      %3598 = vmatprep.subr.mxu0 0.0
      %3599 = vmatpush1.msra.mxu0 0.0
      %3600 = vmatprep.subr.mxu0 0.0
      %3601 = vmatpush1.msra.mxu0 0.0
      %3602 = vmatprep.subr.mxu0 0.0
      %3603 = vmatpush1.msra.mxu0 0.0
      %3604 = vmatprep.subr.mxu0 0.0
      %3605 = vmatpush1.msra.mxu0 0.0
      %3606 = vmatprep.subr.mxu0 0.0
      %3607 = vmatpush1.msra.mxu0 0.0
      %3608 = vmatprep.subr.mxu0 0.0
      %3609 = vmatpush1.msra.mxu0 0.0
      %3610 = vmatprep.subr.mxu0 0.0
      %3611 = vmatpush1.msra.mxu0 0.0
      %3612 = vmatprep.subr.mxu0 0.0
      %3613 = vmatpush1.msra.mxu0 0.0
      %3614 = vmatprep.subr.mxu0 0.0
      %3615 = vmatpush1.msra.mxu0 0.0
      %3616 = vmatprep.subr.mxu0 0.0
      %3617 = vmatpush1.msra.mxu0 0.0
      %3618 = vmatprep.subr.mxu0 0.0
      %3619 = vmatpush1.msra.mxu0 0.0
      %3620 = vmatprep.subr.mxu0 0.0
      %3621 = vmatpush1.msra.mxu0 0.0
      %3622 = vmatprep.subr.mxu0 0.0
      %3623 = vmatpush1.msra.mxu0 0.0
      %3624 = vmatprep.subr.mxu0 0.0
      %3625 = vmatpush1.msra.mxu0 0.0
      %3626 = vmatprep.subr.mxu0 0.0
      %3627 = vmatpush1.msra.mxu0 0.0
      %3628 = vmatprep.subr.mxu0 0.0
      %3629 = vmatpush1.msra.mxu0 0.0
      %3630 = vmatprep.subr.mxu0 0.0
      %3631 = vmatpush1.msra.mxu0 0.0
      %3632 = vmatprep.subr.mxu0 0.0
      %3633 = vmatpush1.msra.mxu0 0.0
      %3634 = vmatprep.subr.mxu0 0.0
      %3635 = vmatpush1.msra.mxu0 0.0
      %3636 = vmatprep.subr.mxu0 0.0
      %3637 = vmatpush1.msra.mxu0 0.0
      %3638 = vmatprep.subr.mxu0 0.0
      %3639 = vmatpush1.msra.mxu0 0.0
      %3640 = vmatprep.subr.mxu0 0.0
      %3641 = vmatpush1.msra.mxu0 0.0
      %3642 = vmatprep.subr.mxu0 0.0
      %3643 = vmatpush1.msra.mxu0 0.0
      %3644 = vmatprep.subr.mxu0 0.0
      %3645 = vmatpush1.msra.mxu0 0.0
      %3646 = vmatprep.subr.mxu0 0.0
      %3647 = vmatpush1.msra.mxu0 0.0
      %3648 = vmatprep.subr.mxu0 0.0
      %3649 = vmatpush1.msra.mxu0 0.0
      %3650 = vmatprep.subr.mxu0 0.0
      %3651 = vmatpush1.msra.mxu0 0.0
      %3652 = vmatprep.subr.mxu0 0.0
      %3653 = vmatpush1.msra.mxu0 0.0
      %3654 = vmatprep.mubr.f32.mxu0 0.0
      %3655 = vmatmul.mubr.f32.gmra.mrb[0].mxu0 %v2837
      %v3656 = vpop.f32.mrb[0].mxu0
      %v3657 = vadd.f32 0.0, %v3656
      %v3658 = vpop.f32.mrb[0].mxu0
      %3659 = vdwg.mxu0
      %3660 = vmatprep.subr.mxu0 0.0
      %3661 = vmatpush1.msra.mxu0 %v2821
      %3662 = vmatprep.subr.mxu0 0.0
      %3663 = vmatpush1.msra.mxu0 %v2822
      %3664 = vmatprep.subr.mxu0 0.0
      %3665 = vmatpush1.msra.mxu0 0.0
      %3666 = vmatprep.subr.mxu0 0.0
      %3667 = vmatpush1.msra.mxu0 0.0
      %3668 = vmatprep.subr.mxu0 0.0
      %3669 = vmatpush1.msra.mxu0 0.0
      %3670 = vmatprep.subr.mxu0 0.0
      %3671 = vmatpush1.msra.mxu0 0.0
      %3672 = vmatprep.subr.mxu0 0.0
      %3673 = vmatpush1.msra.mxu0 0.0
      %3674 = vmatprep.subr.mxu0 0.0
      %3675 = vmatpush1.msra.mxu0 0.0
      %3676 = vmatprep.subr.mxu0 0.0
      %3677 = vmatpush1.msra.mxu0 0.0
      %3678 = vmatprep.subr.mxu0 0.0
      %3679 = vmatpush1.msra.mxu0 0.0
      %3680 = vmatprep.subr.mxu0 0.0
      %3681 = vmatpush1.msra.mxu0 0.0
      %3682 = vmatprep.subr.mxu0 0.0
      %3683 = vmatpush1.msra.mxu0 0.0
      %3684 = vmatprep.subr.mxu0 0.0
      %3685 = vmatpush1.msra.mxu0 0.0
      %3686 = vmatprep.subr.mxu0 0.0
      %3687 = vmatpush1.msra.mxu0 0.0
      %3688 = vmatprep.subr.mxu0 0.0
      %3689 = vmatpush1.msra.mxu0 0.0
      %3690 = vmatprep.subr.mxu0 0.0
      %3691 = vmatpush1.msra.mxu0 0.0
      %3692 = vmatprep.subr.mxu0 0.0
      %3693 = vmatpush1.msra.mxu0 0.0
      %3694 = vmatprep.subr.mxu0 0.0
      %3695 = vmatpush1.msra.mxu0 0.0
      %3696 = vmatprep.subr.mxu0 0.0
      %3697 = vmatpush1.msra.mxu0 0.0
      %3698 = vmatprep.subr.mxu0 0.0
      %3699 = vmatpush1.msra.mxu0 0.0
      %3700 = vmatprep.subr.mxu0 0.0
      %3701 = vmatpush1.msra.mxu0 0.0
      %3702 = vmatprep.subr.mxu0 0.0
      %3703 = vmatpush1.msra.mxu0 0.0
      %3704 = vmatprep.subr.mxu0 0.0
      %3705 = vmatpush1.msra.mxu0 0.0
      %3706 = vmatprep.subr.mxu0 0.0
      %3707 = vmatpush1.msra.mxu0 0.0
      %3708 = vmatprep.subr.mxu0 0.0
      %3709 = vmatpush1.msra.mxu0 0.0
      %3710 = vmatprep.subr.mxu0 0.0
      %3711 = vmatpush1.msra.mxu0 0.0
      %3712 = vmatprep.subr.mxu0 0.0
      %3713 = vmatpush1.msra.mxu0 0.0
      %3714 = vmatprep.subr.mxu0 0.0
      %3715 = vmatpush1.msra.mxu0 0.0
      %3716 = vmatprep.subr.mxu0 0.0
      %3717 = vmatpush1.msra.mxu0 0.0
      %3718 = vmatprep.subr.mxu0 0.0
      %3719 = vmatpush1.msra.mxu0 0.0
      %3720 = vmatprep.subr.mxu0 0.0
      %3721 = vmatpush1.msra.mxu0 0.0
      %3722 = vmatprep.subr.mxu0 0.0
      %3723 = vmatpush1.msra.mxu0 0.0
      %3724 = vmatprep.mubr.f32.mxu0 0.0
      %3725 = vmatmul.mubr.f32.gmra.mrb[0].mxu0 %v2910
      %v3726 = vpop.f32.mrb[0].mxu0
      %v3727 = vadd.f32 0.0, %v3726
      %v3728 = vpop.f32.mrb[0].mxu0
      %3729 = vdwg.mxu0
      %3730 = vmatprep.subr.mxu0 0.0
      %3731 = vmatpush1.msra.mxu0 %v2826
      %3732 = vmatprep.subr.mxu0 0.0
      %3733 = vmatpush1.msra.mxu0 %v2827
      %3734 = vmatprep.subr.mxu0 0.0
      %3735 = vmatpush1.msra.mxu0 0.0
      %3736 = vmatprep.subr.mxu0 0.0
      %3737 = vmatpush1.msra.mxu0 0.0
      %3738 = vmatprep.subr.mxu0 0.0
      %3739 = vmatpush1.msra.mxu0 0.0
      %3740 = vmatprep.subr.mxu0 0.0
      %3741 = vmatpush1.msra.mxu0 0.0
      %3742 = vmatprep.subr.mxu0 0.0
      %3743 = vmatpush1.msra.mxu0 0.0
      %3744 = vmatprep.subr.mxu0 0.0
      %3745 = vmatpush1.msra.mxu0 0.0
      %3746 = vmatprep.subr.mxu0 0.0
      %3747 = vmatpush1.msra.mxu0 0.0
      %3748 = vmatprep.subr.mxu0 0.0
      %3749 = vmatpush1.msra.mxu0 0.0
      %3750 = vmatprep.subr.mxu0 0.0
      %3751 = vmatpush1.msra.mxu0 0.0
      %3752 = vmatprep.subr.mxu0 0.0
      %3753 = vmatpush1.msra.mxu0 0.0
      %3754 = vmatprep.subr.mxu0 0.0
      %3755 = vmatpush1.msra.mxu0 0.0
      %3756 = vmatprep.subr.mxu0 0.0
      %3757 = vmatpush1.msra.mxu0 0.0
      %3758 = vmatprep.subr.mxu0 0.0
      %3759 = vmatpush1.msra.mxu0 0.0
      %3760 = vmatprep.subr.mxu0 0.0
      %3761 = vmatpush1.msra.mxu0 0.0
      %3762 = vmatprep.subr.mxu0 0.0
      %3763 = vmatpush1.msra.mxu0 0.0
      %3764 = vmatprep.subr.mxu0 0.0
      %3765 = vmatpush1.msra.mxu0 0.0
      %3766 = vmatprep.subr.mxu0 0.0
      %3767 = vmatpush1.msra.mxu0 0.0
      %3768 = vmatprep.subr.mxu0 0.0
      %3769 = vmatpush1.msra.mxu0 0.0
      %3770 = vmatprep.subr.mxu0 0.0
      %3771 = vmatpush1.msra.mxu0 0.0
      %3772 = vmatprep.subr.mxu0 0.0
      %3773 = vmatpush1.msra.mxu0 0.0
      %3774 = vmatprep.subr.mxu0 0.0
      %3775 = vmatpush1.msra.mxu0 0.0
      %3776 = vmatprep.subr.mxu0 0.0
      %3777 = vmatpush1.msra.mxu0 0.0
      %3778 = vmatprep.subr.mxu0 0.0
      %3779 = vmatpush1.msra.mxu0 0.0
      %3780 = vmatprep.subr.mxu0 0.0
      %3781 = vmatpush1.msra.mxu0 0.0
      %3782 = vmatprep.subr.mxu0 0.0
      %3783 = vmatpush1.msra.mxu0 0.0
      %3784 = vmatprep.subr.mxu0 0.0
      %3785 = vmatpush1.msra.mxu0 0.0
      %3786 = vmatprep.subr.mxu0 0.0
      %3787 = vmatpush1.msra.mxu0 0.0
      %3788 = vmatprep.subr.mxu0 0.0
      %3789 = vmatpush1.msra.mxu0 0.0
      %3790 = vmatprep.subr.mxu0 0.0
      %3791 = vmatpush1.msra.mxu0 0.0
      %3792 = vmatprep.subr.mxu0 0.0
      %3793 = vmatpush1.msra.mxu0 0.0
      %3794 = vmatprep.mubr.f32.mxu0 0.0
      %3795 = vmatmul.mubr.f32.gmra.mrb[0].mxu0 %v2837
      %v3796 = vpop.f32.mrb[0].mxu0
      %v3797 = vadd.f32 0.0, %v3796
      %v3798 = vpop.f32.mrb[0].mxu0
      %3799 = vdwg.mxu0
      %3800 = vmatprep.subr.mxu0 0.0
      %3801 = vmatpush1.msra.mxu0 %v2826
      %3802 = vmatprep.subr.mxu0 0.0
      %3803 = vmatpush1.msra.mxu0 %v2827
      %3804 = vmatprep.subr.mxu0 0.0
      %3805 = vmatpush1.msra.mxu0 0.0
      %3806 = vmatprep.subr.mxu0 0.0
      %3807 = vmatpush1.msra.mxu0 0.0
      %3808 = vmatprep.subr.mxu0 0.0
      %3809 = vmatpush1.msra.mxu0 0.0
      %3810 = vmatprep.subr.mxu0 0.0
      %3811 = vmatpush1.msra.mxu0 0.0
      %3812 = vmatprep.subr.mxu0 0.0
      %3813 = vmatpush1.msra.mxu0 0.0
      %3814 = vmatprep.subr.mxu0 0.0
      %3815 = vmatpush1.msra.mxu0 0.0
      %3816 = vmatprep.subr.mxu0 0.0
      %3817 = vmatpush1.msra.mxu0 0.0
      %3818 = vmatprep.subr.mxu0 0.0
      %3819 = vmatpush1.msra.mxu0 0.0
      %3820 = vmatprep.subr.mxu0 0.0
      %3821 = vmatpush1.msra.mxu0 0.0
      %3822 = vmatprep.subr.mxu0 0.0
      %3823 = vmatpush1.msra.mxu0 0.0
      %3824 = vmatprep.subr.mxu0 0.0
      %3825 = vmatpush1.msra.mxu0 0.0
      %3826 = vmatprep.subr.mxu0 0.0
      %3827 = vmatpush1.msra.mxu0 0.0
      %3828 = vmatprep.subr.mxu0 0.0
      %3829 = vmatpush1.msra.mxu0 0.0
      %3830 = vmatprep.subr.mxu0 0.0
      %3831 = vmatpush1.msra.mxu0 0.0
      %3832 = vmatprep.subr.mxu0 0.0
      %3833 = vmatpush1.msra.mxu0 0.0
      %3834 = vmatprep.subr.mxu0 0.0
      %3835 = vmatpush1.msra.mxu0 0.0
      %3836 = vmatprep.subr.mxu0 0.0
      %3837 = vmatpush1.msra.mxu0 0.0
      %3838 = vmatprep.subr.mxu0 0.0
      %3839 = vmatpush1.msra.mxu0 0.0
      %3840 = vmatprep.subr.mxu0 0.0
      %3841 = vmatpush1.msra.mxu0 0.0
      %3842 = vmatprep.subr.mxu0 0.0
      %3843 = vmatpush1.msra.mxu0 0.0
      %3844 = vmatprep.subr.mxu0 0.0
      %3845 = vmatpush1.msra.mxu0 0.0
      %3846 = vmatprep.subr.mxu0 0.0
      %3847 = vmatpush1.msra.mxu0 0.0
      %3848 = vmatprep.subr.mxu0 0.0
      %3849 = vmatpush1.msra.mxu0 0.0
      %3850 = vmatprep.subr.mxu0 0.0
      %3851 = vmatpush1.msra.mxu0 0.0
      %3852 = vmatprep.subr.mxu0 0.0
      %3853 = vmatpush1.msra.mxu0 0.0
      %3854 = vmatprep.subr.mxu0 0.0
      %3855 = vmatpush1.msra.mxu0 0.0
      %3856 = vmatprep.subr.mxu0 0.0
      %3857 = vmatpush1.msra.mxu0 0.0
      %3858 = vmatprep.subr.mxu0 0.0
      %3859 = vmatpush1.msra.mxu0 0.0
      %3860 = vmatprep.subr.mxu0 0.0
      %3861 = vmatpush1.msra.mxu0 0.0
      %3862 = vmatprep.subr.mxu0 0.0
      %3863 = vmatpush1.msra.mxu0 0.0
      %3864 = vmatprep.mubr.f32.mxu0 0.0
      %3865 = vmatmul.mubr.f32.gmra.mrb[0].mxu0 %v2910
      %v3866 = vpop.f32.mrb[0].mxu0
      %v3867 = vadd.f32 0.0, %v3866
      %v3868 = vpop.f32.mrb[0].mxu0
      %3869 = vdwg.mxu0
      %3870 = vmatprep.subr.mxu0 0.0
      %3871 = vmatpush1.msra.mxu0 %v2831
      %3872 = vmatprep.subr.mxu0 0.0
      %3873 = vmatpush1.msra.mxu0 %v2832
      %3874 = vmatprep.subr.mxu0 0.0
      %3875 = vmatpush1.msra.mxu0 0.0
      %3876 = vmatprep.subr.mxu0 0.0
      %3877 = vmatpush1.msra.mxu0 0.0
      %3878 = vmatprep.subr.mxu0 0.0
      %3879 = vmatpush1.msra.mxu0 0.0
      %3880 = vmatprep.subr.mxu0 0.0
      %3881 = vmatpush1.msra.mxu0 0.0
      %3882 = vmatprep.subr.mxu0 0.0
      %3883 = vmatpush1.msra.mxu0 0.0
      %3884 = vmatprep.subr.mxu0 0.0
      %3885 = vmatpush1.msra.mxu0 0.0
      %3886 = vmatprep.subr.mxu0 0.0
      %3887 = vmatpush1.msra.mxu0 0.0
      %3888 = vmatprep.subr.mxu0 0.0
      %3889 = vmatpush1.msra.mxu0 0.0
      %3890 = vmatprep.subr.mxu0 0.0
      %3891 = vmatpush1.msra.mxu0 0.0
      %3892 = vmatprep.subr.mxu0 0.0
      %3893 = vmatpush1.msra.mxu0 0.0
      %3894 = vmatprep.subr.mxu0 0.0
      %3895 = vmatpush1.msra.mxu0 0.0
      %3896 = vmatprep.subr.mxu0 0.0
      %3897 = vmatpush1.msra.mxu0 0.0
      %3898 = vmatprep.subr.mxu0 0.0
      %3899 = vmatpush1.msra.mxu0 0.0
      %3900 = vmatprep.subr.mxu0 0.0
      %3901 = vmatpush1.msra.mxu0 0.0
      %3902 = vmatprep.subr.mxu0 0.0
      %3903 = vmatpush1.msra.mxu0 0.0
      %3904 = vmatprep.subr.mxu0 0.0
      %3905 = vmatpush1.msra.mxu0 0.0
      %3906 = vmatprep.subr.mxu0 0.0
      %3907 = vmatpush1.msra.mxu0 0.0
      %3908 = vmatprep.subr.mxu0 0.0
      %3909 = vmatpush1.msra.mxu0 0.0
      %3910 = vmatprep.subr.mxu0 0.0
      %3911 = vmatpush1.msra.mxu0 0.0
      %3912 = vmatprep.subr.mxu0 0.0
      %3913 = vmatpush1.msra.mxu0 0.0
      %3914 = vmatprep.subr.mxu0 0.0
      %3915 = vmatpush1.msra.mxu0 0.0
      %3916 = vmatprep.subr.mxu0 0.0
      %3917 = vmatpush1.msra.mxu0 0.0
      %3918 = vmatprep.subr.mxu0 0.0
      %3919 = vmatpush1.msra.mxu0 0.0
      %3920 = vmatprep.subr.mxu0 0.0
      %3921 = vmatpush1.msra.mxu0 0.0
      %3922 = vmatprep.subr.mxu0 0.0
      %3923 = vmatpush1.msra.mxu0 0.0
      %3924 = vmatprep.subr.mxu0 0.0
      %3925 = vmatpush1.msra.mxu0 0.0
      %3926 = vmatprep.subr.mxu0 0.0
      %3927 = vmatpush1.msra.mxu0 0.0
      %3928 = vmatprep.subr.mxu0 0.0
      %3929 = vmatpush1.msra.mxu0 0.0
      %3930 = vmatprep.subr.mxu0 0.0
      %3931 = vmatpush1.msra.mxu0 0.0
      %3932 = vmatprep.subr.mxu0 0.0
      %3933 = vmatpush1.msra.mxu0 0.0
      %3934 = vmatprep.mubr.f32.mxu0 0.0
      %3935 = vmatmul.mubr.f32.gmra.mrb[0].mxu0 %v2837
      %v3936 = vpop.f32.mrb[0].mxu0
      %v3937 = vadd.f32 0.0, %v3936
      %v3938 = vpop.f32.mrb[0].mxu0
      %3939 = vdwg.mxu0
      %3940 = vmatprep.subr.mxu0 0.0
      %3941 = vmatpush1.msra.mxu0 %v2831
      %3942 = vmatprep.subr.mxu0 0.0
      %3943 = vmatpush1.msra.mxu0 %v2832
      %3944 = vmatprep.subr.mxu0 0.0
      %3945 = vmatpush1.msra.mxu0 0.0
      %3946 = vmatprep.subr.mxu0 0.0
      %3947 = vmatpush1.msra.mxu0 0.0
      %3948 = vmatprep.subr.mxu0 0.0
      %3949 = vmatpush1.msra.mxu0 0.0
      %3950 = vmatprep.subr.mxu0 0.0
      %3951 = vmatpush1.msra.mxu0 0.0
      %3952 = vmatprep.subr.mxu0 0.0
      %3953 = vmatpush1.msra.mxu0 0.0
      %3954 = vmatprep.subr.mxu0 0.0
      %3955 = vmatpush1.msra.mxu0 0.0
      %3956 = vmatprep.subr.mxu0 0.0
      %3957 = vmatpush1.msra.mxu0 0.0
      %3958 = vmatprep.subr.mxu0 0.0
      %3959 = vmatpush1.msra.mxu0 0.0
      %3960 = vmatprep.subr.mxu0 0.0
      %3961 = vmatpush1.msra.mxu0 0.0
      %3962 = vmatprep.subr.mxu0 0.0
      %3963 = vmatpush1.msra.mxu0 0.0
      %3964 = vmatprep.subr.mxu0 0.0
      %3965 = vmatpush1.msra.mxu0 0.0
      %3966 = vmatprep.subr.mxu0 0.0
      %3967 = vmatpush1.msra.mxu0 0.0
      %3968 = vmatprep.subr.mxu0 0.0
      %3969 = vmatpush1.msra.mxu0 0.0
      %3970 = vmatprep.subr.mxu0 0.0
      %3971 = vmatpush1.msra.mxu0 0.0
      %3972 = vmatprep.subr.mxu0 0.0
      %3973 = vmatpush1.msra.mxu0 0.0
      %3974 = vmatprep.subr.mxu0 0.0
      %3975 = vmatpush1.msra.mxu0 0.0
      %3976 = vmatprep.subr.mxu0 0.0
      %3977 = vmatpush1.msra.mxu0 0.0
      %3978 = vmatprep.subr.mxu0 0.0
      %3979 = vmatpush1.msra.mxu0 0.0
      %3980 = vmatprep.subr.mxu0 0.0
      %3981 = vmatpush1.msra.mxu0 0.0
      %3982 = vmatprep.subr.mxu0 0.0
      %3983 = vmatpush1.msra.mxu0 0.0
      %3984 = vmatprep.subr.mxu0 0.0
      %3985 = vmatpush1.msra.mxu0 0.0
      %3986 = vmatprep.subr.mxu0 0.0
      %3987 = vmatpush1.msra.mxu0 0.0
      %3988 = vmatprep.subr.mxu0 0.0
      %3989 = vmatpush1.msra.mxu0 0.0
      %3990 = vmatprep.subr.mxu0 0.0
      %3991 = vmatpush1.msra.mxu0 0.0
      %3992 = vmatprep.subr.mxu0 0.0
      %3993 = vmatpush1.msra.mxu0 0.0
      %3994 = vmatprep.subr.mxu0 0.0
      %3995 = vmatpush1.msra.mxu0 0.0
      %3996 = vmatprep.subr.mxu0 0.0
      %3997 = vmatpush1.msra.mxu0 0.0
      %3998 = vmatprep.subr.mxu0 0.0
      %3999 = vmatpush1.msra.mxu0 0.0
      %4000 = vmatprep.subr.mxu0 0.0
      %4001 = vmatpush1.msra.mxu0 0.0
      %4002 = vmatprep.subr.mxu0 0.0
      %4003 = vmatpush1.msra.mxu0 0.0
      %4004 = vmatprep.mubr.f32.mxu0 0.0
      %4005 = vmatmul.mubr.f32.gmra.mrb[0].mxu0 %v2910
      %v4006 = vpop.f32.mrb[0].mxu0
      %v4007 = vadd.f32 0.0, %v4006
      %v4008 = vpop.f32.mrb[0].mxu0
      %4009 = vdwg.mxu0
      %v4011 = vsel %vm1014, %v3657, 0
      %v4014 = vsel %vm1014, %v3797, 0
      %4016 = vmatprep.subr.mxu0 0.0
      %4017 = vmatpush1.xpose.msra.mxu0 %v4014
      %4018 = vmatprep.subr.mxu0 0.0
      %4019 = vmatpush1.xpose.msra.mxu0 0.0
      %4020 = vmatprep.subr.mxu0 0.0
      %4021 = vmatpush1.xpose.msra.mxu0 0.0
      %4022 = vmatprep.subr.mxu0 0.0
      %4023 = vmatpush1.xpose.msra.mxu0 0.0
      %4024 = vmatprep.subr.mxu0 0.0
      %4025 = vmatpush1.xpose.msra.mxu0 0.0
      %4026 = vmatprep.subr.mxu0 0.0
      %4027 = vmatpush1.xpose.msra.mxu0 0.0
      %4028 = vmatprep.subr.mxu0 0.0
      %4029 = vmatpush1.xpose.msra.mxu0 0.0
      %4030 = vmatprep.subr.mxu0 0.0
      %4031 = vmatpush1.xpose.msra.mxu0 0.0
      %4032 = vmatprep.subr.mxu0 0.0
      %4033 = vmatpush1.xpose.msra.mxu0 0.0
      %4034 = vmatprep.subr.mxu0 0.0
      %4035 = vmatpush1.xpose.msra.mxu0 0.0
      %4036 = vmatprep.subr.mxu0 0.0
      %4037 = vmatpush1.xpose.msra.mxu0 0.0
      %4038 = vmatprep.subr.mxu0 0.0
      %4039 = vmatpush1.xpose.msra.mxu0 0.0
      %4040 = vmatprep.subr.mxu0 0.0
      %4041 = vmatpush1.xpose.msra.mxu0 0.0
      %4042 = vmatprep.subr.mxu0 0.0
      %4043 = vmatpush1.xpose.msra.mxu0 0.0
      %4044 = vmatprep.subr.mxu0 0.0
      %4045 = vmatpush1.xpose.msra.mxu0 0.0
      %4046 = vmatprep.subr.mxu0 0.0
      %4047 = vmatpush1.xpose.msra.mxu0 0.0
      %4048 = vmatprep.subr.mxu0 0.0
      %4049 = vmatpush1.xpose.msra.mxu0 0.0
      %4050 = vmatprep.subr.mxu0 0.0
      %4051 = vmatpush1.xpose.msra.mxu0 0.0
      %4052 = vmatprep.subr.mxu0 0.0
      %4053 = vmatpush1.xpose.msra.mxu0 0.0
      %4054 = vmatprep.subr.mxu0 0.0
      %4055 = vmatpush1.xpose.msra.mxu0 0.0
      %4056 = vmatprep.subr.mxu0 0.0
      %4057 = vmatpush1.xpose.msra.mxu0 0.0
      %4058 = vmatprep.subr.mxu0 0.0
      %4059 = vmatpush1.xpose.msra.mxu0 0.0
      %4060 = vmatprep.subr.mxu0 0.0
      %4061 = vmatpush1.xpose.msra.mxu0 0.0
      %4062 = vmatprep.subr.mxu0 0.0
      %4063 = vmatpush1.xpose.msra.mxu0 0.0
      %4064 = vmatprep.subr.mxu0 0.0
      %4065 = vmatpush1.xpose.msra.mxu0 0.0
      %4066 = vmatprep.subr.mxu0 0.0
      %4067 = vmatpush1.xpose.msra.mxu0 0.0
      %4068 = vmatprep.subr.mxu0 0.0
      %4069 = vmatpush1.xpose.msra.mxu0 0.0
      %4070 = vmatprep.subr.mxu0 0.0
      %4071 = vmatpush1.xpose.msra.mxu0 0.0
      %4072 = vmatprep.subr.mxu0 0.0
      %4073 = vmatpush1.xpose.msra.mxu0 0.0
      %4074 = vmatprep.subr.mxu0 0.0
      %4075 = vmatpush1.xpose.msra.mxu0 0.0
      %4076 = vmatprep.subr.mxu0 0.0
      %4077 = vmatpush1.xpose.msra.mxu0 0.0
      %4078 = vmatprep.subr.mxu0 0.0
      %4079 = vmatpush1.xpose.msra.mxu0 0.0
      %4080 = vmatprep.mubr.f32.mxu0 0.0
      %4081 = vmatmul.mubr.f32.gmra.mrb[0].mxu0 %v4011
      %v4082 = vpop.f32.mrb[0].mxu0
      %v4083 = vadd.f32 0.0, %v4082
      %v4084 = vpop.f32.mrb[0].mxu0
      %4085 = vdwg.mxu0
      %v4087 = vsel %vm1014, %v3727, 0
      %v4090 = vsel %vm1014, %v3867, 0
      %4092 = vmatprep.subr.mxu0 0.0
      %4093 = vmatpush1.xpose.msra.mxu0 %v4090
      %4094 = vmatprep.subr.mxu0 0.0
      %4095 = vmatpush1.xpose.msra.mxu0 0.0
      %4096 = vmatprep.subr.mxu0 0.0
      %4097 = vmatpush1.xpose.msra.mxu0 0.0
      %4098 = vmatprep.subr.mxu0 0.0
      %4099 = vmatpush1.xpose.msra.mxu0 0.0
      %4100 = vmatprep.subr.mxu0 0.0
      %4101 = vmatpush1.xpose.msra.mxu0 0.0
      %4102 = vmatprep.subr.mxu0 0.0
      %4103 = vmatpush1.xpose.msra.mxu0 0.0
      %4104 = vmatprep.subr.mxu0 0.0
      %4105 = vmatpush1.xpose.msra.mxu0 0.0
      %4106 = vmatprep.subr.mxu0 0.0
      %4107 = vmatpush1.xpose.msra.mxu0 0.0
      %4108 = vmatprep.subr.mxu0 0.0
      %4109 = vmatpush1.xpose.msra.mxu0 0.0
      %4110 = vmatprep.subr.mxu0 0.0
      %4111 = vmatpush1.xpose.msra.mxu0 0.0
      %4112 = vmatprep.subr.mxu0 0.0
      %4113 = vmatpush1.xpose.msra.mxu0 0.0
      %4114 = vmatprep.subr.mxu0 0.0
      %4115 = vmatpush1.xpose.msra.mxu0 0.0
      %4116 = vmatprep.subr.mxu0 0.0
      %4117 = vmatpush1.xpose.msra.mxu0 0.0
      %4118 = vmatprep.subr.mxu0 0.0
      %4119 = vmatpush1.xpose.msra.mxu0 0.0
      %4120 = vmatprep.subr.mxu0 0.0
      %4121 = vmatpush1.xpose.msra.mxu0 0.0
      %4122 = vmatprep.subr.mxu0 0.0
      %4123 = vmatpush1.xpose.msra.mxu0 0.0
      %4124 = vmatprep.subr.mxu0 0.0
      %4125 = vmatpush1.xpose.msra.mxu0 0.0
      %4126 = vmatprep.subr.mxu0 0.0
      %4127 = vmatpush1.xpose.msra.mxu0 0.0
      %4128 = vmatprep.subr.mxu0 0.0
      %4129 = vmatpush1.xpose.msra.mxu0 0.0
      %4130 = vmatprep.subr.mxu0 0.0
      %4131 = vmatpush1.xpose.msra.mxu0 0.0
      %4132 = vmatprep.subr.mxu0 0.0
      %4133 = vmatpush1.xpose.msra.mxu0 0.0
      %4134 = vmatprep.subr.mxu0 0.0
      %4135 = vmatpush1.xpose.msra.mxu0 0.0
      %4136 = vmatprep.subr.mxu0 0.0
      %4137 = vmatpush1.xpose.msra.mxu0 0.0
      %4138 = vmatprep.subr.mxu0 0.0
      %4139 = vmatpush1.xpose.msra.mxu0 0.0
      %4140 = vmatprep.subr.mxu0 0.0
      %4141 = vmatpush1.xpose.msra.mxu0 0.0
      %4142 = vmatprep.subr.mxu0 0.0
      %4143 = vmatpush1.xpose.msra.mxu0 0.0
      %4144 = vmatprep.subr.mxu0 0.0
      %4145 = vmatpush1.xpose.msra.mxu0 0.0
      %4146 = vmatprep.subr.mxu0 0.0
      %4147 = vmatpush1.xpose.msra.mxu0 0.0
      %4148 = vmatprep.subr.mxu0 0.0
      %4149 = vmatpush1.xpose.msra.mxu0 0.0
      %4150 = vmatprep.subr.mxu0 0.0
      %4151 = vmatpush1.xpose.msra.mxu0 0.0
      %4152 = vmatprep.subr.mxu0 0.0
      %4153 = vmatpush1.xpose.msra.mxu0 0.0
      %4154 = vmatprep.subr.mxu0 0.0
      %4155 = vmatpush1.xpose.msra.mxu0 0.0
      %4156 = vmatprep.mubr.f32.mxu0 0.0
      %4157 = vmatmul.mubr.f32.gmra.mrb[0].mxu0 %v4087
      %v4158 = vpop.f32.mrb[0].mxu0
      %v4159 = vadd.f32 0.0, %v4158
      %v4160 = vpop.f32.mrb[0].mxu0
      %4161 = vdwg.mxu0
      %v4162 = vmul.f32 %v4083, 0.35355338
      %v4163 = vmul.f32 %v4159, 0.35355338
      %v4164 = vsel %vm1169, %v4162, -inf
      %4165 = vmax.xlane.f32.xlu0 %v4164
      %v4166 = vpop.xlane.xlu0 %4165
      %v4167 = vsel %vm1169, %v4163, -inf
      %4168 = vmax.xlane.f32.xlu0 %v4167
      %v4169 = vpop.xlane.xlu0 %4168
      %v4170 = vsub.f32 %v4162, %v4166
      %v4171 = vsub.f32 %v4163, %v4169
      %v4172 = vmul.f32 %v4170, 1.442695
      %v4173 = vpow.pop %v4172
      %v4174 = vmul.f32 %v4171, 1.442695
      %v4175 = vpow.pop %v4174
      %v4176 = vsel %vm1169, %v4173, 0.0
      %4177 = vadd.xlane.f32.xlu0 %v4176
      %v4178 = vpop.xlane.xlu0 %4177
      %v4179 = vsel %vm1169, %v4175, 0.0
      %4180 = vadd.xlane.f32.xlu0 %v4179
      %v4181 = vpop.xlane.xlu0 %4180
      %v4182 = vrcp.pop %v4178
      %v4183 = vmul.f32 %v4173, %v4182
      %v4184 = vrcp.pop %v4181
      %v4185 = vmul.f32 %v4175, %v4184
      %v4187 = vsel %vm1192, %v4183, 0
      %v4190 = vsel %vm1196, %v3937, 0
      %4192 = vmatprep.subr.mxu0 0.0
      %4193 = vmatpush1.msra.mxu0 %v4190
      %4194 = vmatprep.subr.mxu0 0.0
      %4195 = vmatpush1.msra.mxu0 0.0
      %4196 = vmatprep.subr.mxu0 0.0
      %4197 = vmatpush1.msra.mxu0 0.0
      %4198 = vmatprep.subr.mxu0 0.0
      %4199 = vmatpush1.msra.mxu0 0.0
      %4200 = vmatprep.subr.mxu0 0.0
      %4201 = vmatpush1.msra.mxu0 0.0
      %4202 = vmatprep.subr.mxu0 0.0
      %4203 = vmatpush1.msra.mxu0 0.0
      %4204 = vmatprep.subr.mxu0 0.0
      %4205 = vmatpush1.msra.mxu0 0.0
      %4206 = vmatprep.subr.mxu0 0.0
      %4207 = vmatpush1.msra.mxu0 0.0
      %4208 = vmatprep.subr.mxu0 0.0
      %4209 = vmatpush1.msra.mxu0 0.0
      %4210 = vmatprep.subr.mxu0 0.0
      %4211 = vmatpush1.msra.mxu0 0.0
      %4212 = vmatprep.subr.mxu0 0.0
      %4213 = vmatpush1.msra.mxu0 0.0
      %4214 = vmatprep.subr.mxu0 0.0
      %4215 = vmatpush1.msra.mxu0 0.0
      %4216 = vmatprep.subr.mxu0 0.0
      %4217 = vmatpush1.msra.mxu0 0.0
      %4218 = vmatprep.subr.mxu0 0.0
      %4219 = vmatpush1.msra.mxu0 0.0
      %4220 = vmatprep.subr.mxu0 0.0
      %4221 = vmatpush1.msra.mxu0 0.0
      %4222 = vmatprep.subr.mxu0 0.0
      %4223 = vmatpush1.msra.mxu0 0.0
      %4224 = vmatprep.subr.mxu0 0.0
      %4225 = vmatpush1.msra.mxu0 0.0
      %4226 = vmatprep.subr.mxu0 0.0
      %4227 = vmatpush1.msra.mxu0 0.0
      %4228 = vmatprep.subr.mxu0 0.0
      %4229 = vmatpush1.msra.mxu0 0.0
      %4230 = vmatprep.subr.mxu0 0.0
      %4231 = vmatpush1.msra.mxu0 0.0
      %4232 = vmatprep.subr.mxu0 0.0
      %4233 = vmatpush1.msra.mxu0 0.0
      %4234 = vmatprep.subr.mxu0 0.0
      %4235 = vmatpush1.msra.mxu0 0.0
      %4236 = vmatprep.subr.mxu0 0.0
      %4237 = vmatpush1.msra.mxu0 0.0
      %4238 = vmatprep.subr.mxu0 0.0
      %4239 = vmatpush1.msra.mxu0 0.0
      %4240 = vmatprep.subr.mxu0 0.0
      %4241 = vmatpush1.msra.mxu0 0.0
      %4242 = vmatprep.subr.mxu0 0.0
      %4243 = vmatpush1.msra.mxu0 0.0
      %4244 = vmatprep.subr.mxu0 0.0
      %4245 = vmatpush1.msra.mxu0 0.0
      %4246 = vmatprep.subr.mxu0 0.0
      %4247 = vmatpush1.msra.mxu0 0.0
      %4248 = vmatprep.subr.mxu0 0.0
      %4249 = vmatpush1.msra.mxu0 0.0
      %4250 = vmatprep.subr.mxu0 0.0
      %4251 = vmatpush1.msra.mxu0 0.0
      %4252 = vmatprep.subr.mxu0 0.0
      %4253 = vmatpush1.msra.mxu0 0.0
      %4254 = vmatprep.subr.mxu0 0.0
      %4255 = vmatpush1.msra.mxu0 0.0
      %4256 = vmatprep.mubr.f32.mxu0 0.0
      %4257 = vmatmul.mubr.f32.gmra.mrb[0].mxu0 %v4187
      %v4258 = vpop.f32.mrb[0].mxu0
      %v4259 = vadd.f32 0.0, %v4258
      %v4260 = vpop.f32.mrb[0].mxu0
      %4261 = vdwg.mxu0
      %v4263 = vsel %vm1192, %v4185, 0
      %v4266 = vsel %vm1196, %v4007, 0
      %4268 = vmatprep.subr.mxu0 0.0
      %4269 = vmatpush1.msra.mxu0 %v4266
      %4270 = vmatprep.subr.mxu0 0.0
      %4271 = vmatpush1.msra.mxu0 0.0
      %4272 = vmatprep.subr.mxu0 0.0
      %4273 = vmatpush1.msra.mxu0 0.0
      %4274 = vmatprep.subr.mxu0 0.0
      %4275 = vmatpush1.msra.mxu0 0.0
      %4276 = vmatprep.subr.mxu0 0.0
      %4277 = vmatpush1.msra.mxu0 0.0
      %4278 = vmatprep.subr.mxu0 0.0
      %4279 = vmatpush1.msra.mxu0 0.0
      %4280 = vmatprep.subr.mxu0 0.0
      %4281 = vmatpush1.msra.mxu0 0.0
      %4282 = vmatprep.subr.mxu0 0.0
      %4283 = vmatpush1.msra.mxu0 0.0
      %4284 = vmatprep.subr.mxu0 0.0
      %4285 = vmatpush1.msra.mxu0 0.0
      %4286 = vmatprep.subr.mxu0 0.0
      %4287 = vmatpush1.msra.mxu0 0.0
      %4288 = vmatprep.subr.mxu0 0.0
      %4289 = vmatpush1.msra.mxu0 0.0
      %4290 = vmatprep.subr.mxu0 0.0
      %4291 = vmatpush1.msra.mxu0 0.0
      %4292 = vmatprep.subr.mxu0 0.0
      %4293 = vmatpush1.msra.mxu0 0.0
      %4294 = vmatprep.subr.mxu0 0.0
      %4295 = vmatpush1.msra.mxu0 0.0
      %4296 = vmatprep.subr.mxu0 0.0
      %4297 = vmatpush1.msra.mxu0 0.0
      %4298 = vmatprep.subr.mxu0 0.0
      %4299 = vmatpush1.msra.mxu0 0.0
      %4300 = vmatprep.subr.mxu0 0.0
      %4301 = vmatpush1.msra.mxu0 0.0
      %4302 = vmatprep.subr.mxu0 0.0
      %4303 = vmatpush1.msra.mxu0 0.0
      %4304 = vmatprep.subr.mxu0 0.0
      %4305 = vmatpush1.msra.mxu0 0.0
      %4306 = vmatprep.subr.mxu0 0.0
      %4307 = vmatpush1.msra.mxu0 0.0
      %4308 = vmatprep.subr.mxu0 0.0
      %4309 = vmatpush1.msra.mxu0 0.0
      %4310 = vmatprep.subr.mxu0 0.0
      %4311 = vmatpush1.msra.mxu0 0.0
      %4312 = vmatprep.subr.mxu0 0.0
      %4313 = vmatpush1.msra.mxu0 0.0
      %4314 = vmatprep.subr.mxu0 0.0
      %4315 = vmatpush1.msra.mxu0 0.0
      %4316 = vmatprep.subr.mxu0 0.0
      %4317 = vmatpush1.msra.mxu0 0.0
      %4318 = vmatprep.subr.mxu0 0.0
      %4319 = vmatpush1.msra.mxu0 0.0
      %4320 = vmatprep.subr.mxu0 0.0
      %4321 = vmatpush1.msra.mxu0 0.0
      %4322 = vmatprep.subr.mxu0 0.0
      %4323 = vmatpush1.msra.mxu0 0.0
      %4324 = vmatprep.subr.mxu0 0.0
      %4325 = vmatpush1.msra.mxu0 0.0
      %4326 = vmatprep.subr.mxu0 0.0
      %4327 = vmatpush1.msra.mxu0 0.0
      %4328 = vmatprep.subr.mxu0 0.0
      %4329 = vmatpush1.msra.mxu0 0.0
      %4330 = vmatprep.subr.mxu0 0.0
      %4331 = vmatpush1.msra.mxu0 0.0
      %4332 = vmatprep.mubr.f32.mxu0 0.0
      %4333 = vmatmul.mubr.f32.gmra.mrb[0].mxu0 %v4263
      %v4334 = vpop.f32.mrb[0].mxu0
      %v4335 = vadd.f32 0.0, %v4334
      %v4336 = vpop.f32.mrb[0].mxu0
      %4337 = vdwg.mxu0
      %v4339 = vsel %vm1014, %v4259, 0
      %4341 = vmatprep.subr.mxu0 0.0
      %4342 = vmatpush1.msra.mxu0 %v2835
      %4343 = vmatprep.subr.mxu0 0.0
      %4344 = vmatpush1.msra.mxu0 0.0
      %4345 = vmatprep.subr.mxu0 0.0
      %4346 = vmatpush1.msra.mxu0 0.0
      %4347 = vmatprep.subr.mxu0 0.0
      %4348 = vmatpush1.msra.mxu0 0.0
      %4349 = vmatprep.subr.mxu0 0.0
      %4350 = vmatpush1.msra.mxu0 0.0
      %4351 = vmatprep.subr.mxu0 0.0
      %4352 = vmatpush1.msra.mxu0 0.0
      %4353 = vmatprep.subr.mxu0 0.0
      %4354 = vmatpush1.msra.mxu0 0.0
      %4355 = vmatprep.subr.mxu0 0.0
      %4356 = vmatpush1.msra.mxu0 0.0
      %4357 = vmatprep.subr.mxu0 0.0
      %4358 = vmatpush1.msra.mxu0 0.0
      %4359 = vmatprep.subr.mxu0 0.0
      %4360 = vmatpush1.msra.mxu0 0.0
      %4361 = vmatprep.subr.mxu0 0.0
      %4362 = vmatpush1.msra.mxu0 0.0
      %4363 = vmatprep.subr.mxu0 0.0
      %4364 = vmatpush1.msra.mxu0 0.0
      %4365 = vmatprep.subr.mxu0 0.0
      %4366 = vmatpush1.msra.mxu0 0.0
      %4367 = vmatprep.subr.mxu0 0.0
      %4368 = vmatpush1.msra.mxu0 0.0
      %4369 = vmatprep.subr.mxu0 0.0
      %4370 = vmatpush1.msra.mxu0 0.0
      %4371 = vmatprep.subr.mxu0 0.0
      %4372 = vmatpush1.msra.mxu0 0.0
      %4373 = vmatprep.subr.mxu0 0.0
      %4374 = vmatpush1.msra.mxu0 0.0
      %4375 = vmatprep.subr.mxu0 0.0
      %4376 = vmatpush1.msra.mxu0 0.0
      %4377 = vmatprep.subr.mxu0 0.0
      %4378 = vmatpush1.msra.mxu0 0.0
      %4379 = vmatprep.subr.mxu0 0.0
      %4380 = vmatpush1.msra.mxu0 0.0
      %4381 = vmatprep.subr.mxu0 0.0
      %4382 = vmatpush1.msra.mxu0 0.0
      %4383 = vmatprep.subr.mxu0 0.0
      %4384 = vmatpush1.msra.mxu0 0.0
      %4385 = vmatprep.subr.mxu0 0.0
      %4386 = vmatpush1.msra.mxu0 0.0
      %4387 = vmatprep.subr.mxu0 0.0
      %4388 = vmatpush1.msra.mxu0 0.0
      %4389 = vmatprep.subr.mxu0 0.0
      %4390 = vmatpush1.msra.mxu0 0.0
      %4391 = vmatprep.subr.mxu0 0.0
      %4392 = vmatpush1.msra.mxu0 0.0
      %4393 = vmatprep.subr.mxu0 0.0
      %4394 = vmatpush1.msra.mxu0 0.0
      %4395 = vmatprep.subr.mxu0 0.0
      %4396 = vmatpush1.msra.mxu0 0.0
      %4397 = vmatprep.subr.mxu0 0.0
      %4398 = vmatpush1.msra.mxu0 0.0
      %4399 = vmatprep.subr.mxu0 0.0
      %4400 = vmatpush1.msra.mxu0 0.0
      %4401 = vmatprep.subr.mxu0 0.0
      %4402 = vmatpush1.msra.mxu0 0.0
      %4403 = vmatprep.subr.mxu0 0.0
      %4404 = vmatpush1.msra.mxu0 0.0
      %4405 = vmatprep.mubr.f32.mxu0 0.0
      %4406 = vmatmul.mubr.f32.gmra.mrb[0].mxu0 %v4339
      %v4407 = vpop.f32.mrb[0].mxu0
      %v4408 = vadd.f32 0.0, %v4407
      %v4409 = vpop.f32.mrb[0].mxu0
      %4410 = vdwg.mxu0
      %v4412 = vsel %vm1014, %v4335, 0
      %4414 = vmatprep.subr.mxu0 0.0
      %4415 = vmatpush1.msra.mxu0 %v2835
      %4416 = vmatprep.subr.mxu0 0.0
      %4417 = vmatpush1.msra.mxu0 0.0
      %4418 = vmatprep.subr.mxu0 0.0
      %4419 = vmatpush1.msra.mxu0 0.0
      %4420 = vmatprep.subr.mxu0 0.0
      %4421 = vmatpush1.msra.mxu0 0.0
      %4422 = vmatprep.subr.mxu0 0.0
      %4423 = vmatpush1.msra.mxu0 0.0
      %4424 = vmatprep.subr.mxu0 0.0
      %4425 = vmatpush1.msra.mxu0 0.0
      %4426 = vmatprep.subr.mxu0 0.0
      %4427 = vmatpush1.msra.mxu0 0.0
      %4428 = vmatprep.subr.mxu0 0.0
      %4429 = vmatpush1.msra.mxu0 0.0
      %4430 = vmatprep.subr.mxu0 0.0
      %4431 = vmatpush1.msra.mxu0 0.0
      %4432 = vmatprep.subr.mxu0 0.0
      %4433 = vmatpush1.msra.mxu0 0.0
      %4434 = vmatprep.subr.mxu0 0.0
      %4435 = vmatpush1.msra.mxu0 0.0
      %4436 = vmatprep.subr.mxu0 0.0
      %4437 = vmatpush1.msra.mxu0 0.0
      %4438 = vmatprep.subr.mxu0 0.0
      %4439 = vmatpush1.msra.mxu0 0.0
      %4440 = vmatprep.subr.mxu0 0.0
      %4441 = vmatpush1.msra.mxu0 0.0
      %4442 = vmatprep.subr.mxu0 0.0
      %4443 = vmatpush1.msra.mxu0 0.0
      %4444 = vmatprep.subr.mxu0 0.0
      %4445 = vmatpush1.msra.mxu0 0.0
      %4446 = vmatprep.subr.mxu0 0.0
      %4447 = vmatpush1.msra.mxu0 0.0
      %4448 = vmatprep.subr.mxu0 0.0
      %4449 = vmatpush1.msra.mxu0 0.0
      %4450 = vmatprep.subr.mxu0 0.0
      %4451 = vmatpush1.msra.mxu0 0.0
      %4452 = vmatprep.subr.mxu0 0.0
      %4453 = vmatpush1.msra.mxu0 0.0
      %4454 = vmatprep.subr.mxu0 0.0
      %4455 = vmatpush1.msra.mxu0 0.0
      %4456 = vmatprep.subr.mxu0 0.0
      %4457 = vmatpush1.msra.mxu0 0.0
      %4458 = vmatprep.subr.mxu0 0.0
      %4459 = vmatpush1.msra.mxu0 0.0
      %4460 = vmatprep.subr.mxu0 0.0
      %4461 = vmatpush1.msra.mxu0 0.0
      %4462 = vmatprep.subr.mxu0 0.0
      %4463 = vmatpush1.msra.mxu0 0.0
      %4464 = vmatprep.subr.mxu0 0.0
      %4465 = vmatpush1.msra.mxu0 0.0
      %4466 = vmatprep.subr.mxu0 0.0
      %4467 = vmatpush1.msra.mxu0 0.0
      %4468 = vmatprep.subr.mxu0 0.0
      %4469 = vmatpush1.msra.mxu0 0.0
      %4470 = vmatprep.subr.mxu0 0.0
      %4471 = vmatpush1.msra.mxu0 0.0
      %4472 = vmatprep.subr.mxu0 0.0
      %4473 = vmatpush1.msra.mxu0 0.0
      %4474 = vmatprep.subr.mxu0 0.0
      %4475 = vmatpush1.msra.mxu0 0.0
      %4476 = vmatprep.subr.mxu0 0.0
      %4477 = vmatpush1.msra.mxu0 0.0
      %4478 = vmatprep.mubr.f32.mxu0 0.0
      %4479 = vmatmul.mubr.f32.gmra.mrb[0].mxu0 %v4412
      %v4480 = vpop.f32.mrb[0].mxu0
      %v4481 = vadd.f32 0.0, %v4480
      %v4482 = vpop.f32.mrb[0].mxu0
      %4483 = vdwg.mxu0
      %v4485 = vsel %vm1014, %v3511, 0
      %4487 = vmatprep.subr.mxu0 0.0
      %4488 = vmatpush1.msra.mxu0 %v2834
      %4489 = vmatprep.subr.mxu0 0.0
      %4490 = vmatpush1.msra.mxu0 0.0
      %4491 = vmatprep.subr.mxu0 0.0
      %4492 = vmatpush1.msra.mxu0 0.0
      %4493 = vmatprep.subr.mxu0 0.0
      %4494 = vmatpush1.msra.mxu0 0.0
      %4495 = vmatprep.subr.mxu0 0.0
      %4496 = vmatpush1.msra.mxu0 0.0
      %4497 = vmatprep.subr.mxu0 0.0
      %4498 = vmatpush1.msra.mxu0 0.0
      %4499 = vmatprep.subr.mxu0 0.0
      %4500 = vmatpush1.msra.mxu0 0.0
      %4501 = vmatprep.subr.mxu0 0.0
      %4502 = vmatpush1.msra.mxu0 0.0
      %4503 = vmatprep.subr.mxu0 0.0
      %4504 = vmatpush1.msra.mxu0 0.0
      %4505 = vmatprep.subr.mxu0 0.0
      %4506 = vmatpush1.msra.mxu0 0.0
      %4507 = vmatprep.subr.mxu0 0.0
      %4508 = vmatpush1.msra.mxu0 0.0
      %4509 = vmatprep.subr.mxu0 0.0
      %4510 = vmatpush1.msra.mxu0 0.0
      %4511 = vmatprep.subr.mxu0 0.0
      %4512 = vmatpush1.msra.mxu0 0.0
      %4513 = vmatprep.subr.mxu0 0.0
      %4514 = vmatpush1.msra.mxu0 0.0
      %4515 = vmatprep.subr.mxu0 0.0
      %4516 = vmatpush1.msra.mxu0 0.0
      %4517 = vmatprep.subr.mxu0 0.0
      %4518 = vmatpush1.msra.mxu0 0.0
      %4519 = vmatprep.subr.mxu0 0.0
      %4520 = vmatpush1.msra.mxu0 0.0
      %4521 = vmatprep.subr.mxu0 0.0
      %4522 = vmatpush1.msra.mxu0 0.0
      %4523 = vmatprep.subr.mxu0 0.0
      %4524 = vmatpush1.msra.mxu0 0.0
      %4525 = vmatprep.subr.mxu0 0.0
      %4526 = vmatpush1.msra.mxu0 0.0
      %4527 = vmatprep.subr.mxu0 0.0
      %4528 = vmatpush1.msra.mxu0 0.0
      %4529 = vmatprep.subr.mxu0 0.0
      %4530 = vmatpush1.msra.mxu0 0.0
      %4531 = vmatprep.subr.mxu0 0.0
      %4532 = vmatpush1.msra.mxu0 0.0
      %4533 = vmatprep.subr.mxu0 0.0
      %4534 = vmatpush1.msra.mxu0 0.0
      %4535 = vmatprep.subr.mxu0 0.0
      %4536 = vmatpush1.msra.mxu0 0.0
      %4537 = vmatprep.subr.mxu0 0.0
      %4538 = vmatpush1.msra.mxu0 0.0
      %4539 = vmatprep.subr.mxu0 0.0
      %4540 = vmatpush1.msra.mxu0 0.0
      %4541 = vmatprep.subr.mxu0 0.0
      %4542 = vmatpush1.msra.mxu0 0.0
      %4543 = vmatprep.subr.mxu0 0.0
      %4544 = vmatpush1.msra.mxu0 0.0
      %4545 = vmatprep.subr.mxu0 0.0
      %4546 = vmatpush1.msra.mxu0 0.0
      %4547 = vmatprep.subr.mxu0 0.0
      %4548 = vmatpush1.msra.mxu0 0.0
      %4549 = vmatprep.subr.mxu0 0.0
      %4550 = vmatpush1.msra.mxu0 0.0
      %4551 = vmatprep.mubr.f32.mxu0 0.0
      %4552 = vmatmul.mubr.f32.gmra.mrb[0].mxu0 %v4485
      %v4553 = vpop.f32.mrb[0].mxu0
      %v4554 = vadd.f32 %v4408, %v4553
      %v4555 = vpop.f32.mrb[0].mxu0
      %4556 = vdwg.mxu0
      %v4558 = vsel %vm1014, %v3587, 0
      %4560 = vmatprep.subr.mxu0 0.0
      %4561 = vmatpush1.msra.mxu0 %v2834
      %4562 = vmatprep.subr.mxu0 0.0
      %4563 = vmatpush1.msra.mxu0 0.0
      %4564 = vmatprep.subr.mxu0 0.0
      %4565 = vmatpush1.msra.mxu0 0.0
      %4566 = vmatprep.subr.mxu0 0.0
      %4567 = vmatpush1.msra.mxu0 0.0
      %4568 = vmatprep.subr.mxu0 0.0
      %4569 = vmatpush1.msra.mxu0 0.0
      %4570 = vmatprep.subr.mxu0 0.0
      %4571 = vmatpush1.msra.mxu0 0.0
      %4572 = vmatprep.subr.mxu0 0.0
      %4573 = vmatpush1.msra.mxu0 0.0
      %4574 = vmatprep.subr.mxu0 0.0
      %4575 = vmatpush1.msra.mxu0 0.0
      %4576 = vmatprep.subr.mxu0 0.0
      %4577 = vmatpush1.msra.mxu0 0.0
      %4578 = vmatprep.subr.mxu0 0.0
      %4579 = vmatpush1.msra.mxu0 0.0
      %4580 = vmatprep.subr.mxu0 0.0
      %4581 = vmatpush1.msra.mxu0 0.0
      %4582 = vmatprep.subr.mxu0 0.0
      %4583 = vmatpush1.msra.mxu0 0.0
      %4584 = vmatprep.subr.mxu0 0.0
      %4585 = vmatpush1.msra.mxu0 0.0
      %4586 = vmatprep.subr.mxu0 0.0
      %4587 = vmatpush1.msra.mxu0 0.0
      %4588 = vmatprep.subr.mxu0 0.0
      %4589 = vmatpush1.msra.mxu0 0.0
      %4590 = vmatprep.subr.mxu0 0.0
      %4591 = vmatpush1.msra.mxu0 0.0
      %4592 = vmatprep.subr.mxu0 0.0
      %4593 = vmatpush1.msra.mxu0 0.0
      %4594 = vmatprep.subr.mxu0 0.0
      %4595 = vmatpush1.msra.mxu0 0.0
      %4596 = vmatprep.subr.mxu0 0.0
      %4597 = vmatpush1.msra.mxu0 0.0
      %4598 = vmatprep.subr.mxu0 0.0
      %4599 = vmatpush1.msra.mxu0 0.0
      %4600 = vmatprep.subr.mxu0 0.0
      %4601 = vmatpush1.msra.mxu0 0.0
      %4602 = vmatprep.subr.mxu0 0.0
      %4603 = vmatpush1.msra.mxu0 0.0
      %4604 = vmatprep.subr.mxu0 0.0
      %4605 = vmatpush1.msra.mxu0 0.0
      %4606 = vmatprep.subr.mxu0 0.0
      %4607 = vmatpush1.msra.mxu0 0.0
      %4608 = vmatprep.subr.mxu0 0.0
      %4609 = vmatpush1.msra.mxu0 0.0
      %4610 = vmatprep.subr.mxu0 0.0
      %4611 = vmatpush1.msra.mxu0 0.0
      %4612 = vmatprep.subr.mxu0 0.0
      %4613 = vmatpush1.msra.mxu0 0.0
      %4614 = vmatprep.subr.mxu0 0.0
      %4615 = vmatpush1.msra.mxu0 0.0
      %4616 = vmatprep.subr.mxu0 0.0
      %4617 = vmatpush1.msra.mxu0 0.0
      %4618 = vmatprep.subr.mxu0 0.0
      %4619 = vmatpush1.msra.mxu0 0.0
      %4620 = vmatprep.subr.mxu0 0.0
      %4621 = vmatpush1.msra.mxu0 0.0
      %4622 = vmatprep.subr.mxu0 0.0
      %4623 = vmatpush1.msra.mxu0 0.0
      %4624 = vmatprep.mubr.f32.mxu0 0.0
      %4625 = vmatmul.mubr.f32.gmra.mrb[0].mxu0 %v4558
      %v4626 = vpop.f32.mrb[0].mxu0
      %v4627 = vadd.f32 %v4481, %v4626
      %v4628 = vpop.f32.mrb[0].mxu0
      %4629 = vdwg.mxu0
      %v4630 = vadd.f32 %v2770, %v4554
      %v4631 = vadd.f32 %v2771, %v4627
      %s4632 = scalar_lea.vmem %s7, 1
      %v4633 = vld [vmem:[%s4632] sm:$0x1]
      %v4635 = vlaneseq
      %v4636 = vshrl.u32 %v4635, 7
      %v4637 = vsub.s32 0, %v4636
      %v4638 = vrot.slane %v4633, %v4637
      %v4640 = vadd.f32 %v4630, %v4638
      %v4641 = vadd.f32 %v4631, %v4638
      %s4642 = scalar_lea.vmem %s8, 1
      %v4643 = vld [vmem:[%s4642] sm:$0x1]
      %s4644 = scalar_lea.vmem %s9, 1
      %v4645 = vld [vmem:[%s4644] sm:$0x1]
      %v4646 = vsel %vm529, %v4640, 0.0
      %4647 = vadd.xlane.f32.xlu0 %v4646
      %v4648 = vpop.xlane.xlu0 %4647
      %v4649 = vsel %vm529, %v4641, 0.0
      %4650 = vadd.xlane.f32.xlu0 %v4649
      %v4651 = vpop.xlane.xlu0 %4650
      %v4652 = vmul.f32 %v4648, %v536
      %v4653 = vmul.f32 %v4651, %v536
      %v4654 = vsub.f32 %v4640, %v4652
      %v4655 = vsub.f32 %v4641, %v4653
      %v4656 = vmul.f32 %v4654, %v4654
      %v4657 = vmul.f32 %v4655, %v4655
      %v4658 = vsel %vm529, %v4656, 0.0
      %4659 = vadd.xlane.f32.xlu0 %v4658
      %v4660 = vpop.xlane.xlu0 %4659
      %v4661 = vsel %vm529, %v4657, 0.0
      %4662 = vadd.xlane.f32.xlu0 %v4661
      %v4663 = vpop.xlane.xlu0 %4662
      %v4664 = vmul.f32 %v4660, %v536
      %v4665 = vmul.f32 %v4663, %v536
      %v4666 = vadd.f32 %v4664, 1e-05
      %v4667 = vadd.f32 %v4665, 1e-05
      %v4668 = vrsqrt.pop %v4666
      %v4669 = vrsqrt.pop %v4667
      %v4670 = vmul.f32 %v4654, %v4668
      %v4671 = vmul.f32 %v4655, %v4669
      %v4673 = vlaneseq
      %v4674 = vshrl.u32 %v4673, 7
      %v4675 = vsub.s32 0, %v4674
      %v4676 = vrot.slane %v4643, %v4675
      %v4678 = vmul.f32 %v4670, %v4676
      %v4679 = vmul.f32 %v4671, %v4676
      %v4681 = vlaneseq
      %v4682 = vshrl.u32 %v4681, 7
      %v4683 = vsub.s32 0, %v4682
      %v4684 = vrot.slane %v4645, %v4683
      %v4686 = vadd.f32 %v4678, %v4684
      %v4687 = vadd.f32 %v4679, %v4684
      %s4688 = scalar_lea.vmem %s10, 16
      %v4689 = vld [vmem:[%s4688] sm:$0xff]
      %v4690 = vld [vmem:[%s4688 + $0x8] sm:$0xff]
      %s4691 = scalar_lea.vmem %s11, 1
      %v4692 = vld [vmem:[%s4691] sm:$0x1]
      %v4694 = vlaneseq
      %v4695 = vshrl.u32 %v4694, 7
      %v4696 = vsub.s32 0, %v4695
      %v4697 = vrot.slane %v4692, %v4696
      %v4700 = vsel %vm587, %v4686, 0
      %4702 = vmatprep.subr.mxu0 0.0
      %4703 = vmatpush1.msra.mxu0 %v4689
      %4704 = vmatprep.subr.mxu0 0.0
      %4705 = vmatpush1.msra.mxu0 %v4690
      %4706 = vmatprep.subr.mxu0 0.0
      %4707 = vmatpush1.msra.mxu0 0.0
      %4708 = vmatprep.subr.mxu0 0.0
      %4709 = vmatpush1.msra.mxu0 0.0
      %4710 = vmatprep.subr.mxu0 0.0
      %4711 = vmatpush1.msra.mxu0 0.0
      %4712 = vmatprep.subr.mxu0 0.0
      %4713 = vmatpush1.msra.mxu0 0.0
      %4714 = vmatprep.subr.mxu0 0.0
      %4715 = vmatpush1.msra.mxu0 0.0
      %4716 = vmatprep.subr.mxu0 0.0
      %4717 = vmatpush1.msra.mxu0 0.0
      %4718 = vmatprep.subr.mxu0 0.0
      %4719 = vmatpush1.msra.mxu0 0.0
      %4720 = vmatprep.subr.mxu0 0.0
      %4721 = vmatpush1.msra.mxu0 0.0
      %4722 = vmatprep.subr.mxu0 0.0
      %4723 = vmatpush1.msra.mxu0 0.0
      %4724 = vmatprep.subr.mxu0 0.0
      %4725 = vmatpush1.msra.mxu0 0.0
      %4726 = vmatprep.subr.mxu0 0.0
      %4727 = vmatpush1.msra.mxu0 0.0
      %4728 = vmatprep.subr.mxu0 0.0
      %4729 = vmatpush1.msra.mxu0 0.0
      %4730 = vmatprep.subr.mxu0 0.0
      %4731 = vmatpush1.msra.mxu0 0.0
      %4732 = vmatprep.subr.mxu0 0.0
      %4733 = vmatpush1.msra.mxu0 0.0
      %4734 = vmatprep.subr.mxu0 0.0
      %4735 = vmatpush1.msra.mxu0 0.0
      %4736 = vmatprep.subr.mxu0 0.0
      %4737 = vmatpush1.msra.mxu0 0.0
      %4738 = vmatprep.subr.mxu0 0.0
      %4739 = vmatpush1.msra.mxu0 0.0
      %4740 = vmatprep.subr.mxu0 0.0
      %4741 = vmatpush1.msra.mxu0 0.0
      %4742 = vmatprep.subr.mxu0 0.0
      %4743 = vmatpush1.msra.mxu0 0.0
      %4744 = vmatprep.subr.mxu0 0.0
      %4745 = vmatpush1.msra.mxu0 0.0
      %4746 = vmatprep.subr.mxu0 0.0
      %4747 = vmatpush1.msra.mxu0 0.0
      %4748 = vmatprep.subr.mxu0 0.0
      %4749 = vmatpush1.msra.mxu0 0.0
      %4750 = vmatprep.subr.mxu0 0.0
      %4751 = vmatpush1.msra.mxu0 0.0
      %4752 = vmatprep.subr.mxu0 0.0
      %4753 = vmatpush1.msra.mxu0 0.0
      %4754 = vmatprep.subr.mxu0 0.0
      %4755 = vmatpush1.msra.mxu0 0.0
      %4756 = vmatprep.subr.mxu0 0.0
      %4757 = vmatpush1.msra.mxu0 0.0
      %4758 = vmatprep.subr.mxu0 0.0
      %4759 = vmatpush1.msra.mxu0 0.0
      %4760 = vmatprep.subr.mxu0 0.0
      %4761 = vmatpush1.msra.mxu0 0.0
      %4762 = vmatprep.subr.mxu0 0.0
      %4763 = vmatpush1.msra.mxu0 0.0
      %4764 = vmatprep.subr.mxu0 0.0
      %4765 = vmatpush1.msra.mxu0 0.0
      %4766 = vmatprep.mubr.f32.mxu0 0.0
      %4767 = vmatmul.mubr.f32.gmra.mrb[0].mxu0 %v4700
      %v4768 = vpop.f32.mrb[0].mxu0
      %v4769 = vadd.f32 %v4697, %v4768
      %v4770 = vpop.f32.mrb[0].mxu0
      %4771 = vdwg.mxu0
      %v4773 = vsel %vm587, %v4687, 0
      %4775 = vmatprep.subr.mxu0 0.0
      %4776 = vmatpush1.msra.mxu0 %v4689
      %4777 = vmatprep.subr.mxu0 0.0
      %4778 = vmatpush1.msra.mxu0 %v4690
      %4779 = vmatprep.subr.mxu0 0.0
      %4780 = vmatpush1.msra.mxu0 0.0
      %4781 = vmatprep.subr.mxu0 0.0
      %4782 = vmatpush1.msra.mxu0 0.0
      %4783 = vmatprep.subr.mxu0 0.0
      %4784 = vmatpush1.msra.mxu0 0.0
      %4785 = vmatprep.subr.mxu0 0.0
      %4786 = vmatpush1.msra.mxu0 0.0
      %4787 = vmatprep.subr.mxu0 0.0
      %4788 = vmatpush1.msra.mxu0 0.0
      %4789 = vmatprep.subr.mxu0 0.0
      %4790 = vmatpush1.msra.mxu0 0.0
      %4791 = vmatprep.subr.mxu0 0.0
      %4792 = vmatpush1.msra.mxu0 0.0
      %4793 = vmatprep.subr.mxu0 0.0
      %4794 = vmatpush1.msra.mxu0 0.0
      %4795 = vmatprep.subr.mxu0 0.0
      %4796 = vmatpush1.msra.mxu0 0.0
      %4797 = vmatprep.subr.mxu0 0.0
      %4798 = vmatpush1.msra.mxu0 0.0
      %4799 = vmatprep.subr.mxu0 0.0
      %4800 = vmatpush1.msra.mxu0 0.0
      %4801 = vmatprep.subr.mxu0 0.0
      %4802 = vmatpush1.msra.mxu0 0.0
      %4803 = vmatprep.subr.mxu0 0.0
      %4804 = vmatpush1.msra.mxu0 0.0
      %4805 = vmatprep.subr.mxu0 0.0
      %4806 = vmatpush1.msra.mxu0 0.0
      %4807 = vmatprep.subr.mxu0 0.0
      %4808 = vmatpush1.msra.mxu0 0.0
      %4809 = vmatprep.subr.mxu0 0.0
      %4810 = vmatpush1.msra.mxu0 0.0
      %4811 = vmatprep.subr.mxu0 0.0
      %4812 = vmatpush1.msra.mxu0 0.0
      %4813 = vmatprep.subr.mxu0 0.0
      %4814 = vmatpush1.msra.mxu0 0.0
      %4815 = vmatprep.subr.mxu0 0.0
      %4816 = vmatpush1.msra.mxu0 0.0
      %4817 = vmatprep.subr.mxu0 0.0
      %4818 = vmatpush1.msra.mxu0 0.0
      %4819 = vmatprep.subr.mxu0 0.0
      %4820 = vmatpush1.msra.mxu0 0.0
      %4821 = vmatprep.subr.mxu0 0.0
      %4822 = vmatpush1.msra.mxu0 0.0
      %4823 = vmatprep.subr.mxu0 0.0
      %4824 = vmatpush1.msra.mxu0 0.0
      %4825 = vmatprep.subr.mxu0 0.0
      %4826 = vmatpush1.msra.mxu0 0.0
      %4827 = vmatprep.subr.mxu0 0.0
      %4828 = vmatpush1.msra.mxu0 0.0
      %4829 = vmatprep.subr.mxu0 0.0
      %4830 = vmatpush1.msra.mxu0 0.0
      %4831 = vmatprep.subr.mxu0 0.0
      %4832 = vmatpush1.msra.mxu0 0.0
      %4833 = vmatprep.subr.mxu0 0.0
      %4834 = vmatpush1.msra.mxu0 0.0
      %4835 = vmatprep.subr.mxu0 0.0
      %4836 = vmatpush1.msra.mxu0 0.0
      %4837 = vmatprep.subr.mxu0 0.0
      %4838 = vmatpush1.msra.mxu0 0.0
      %4839 = vmatprep.mubr.f32.mxu0 0.0
      %4840 = vmatmul.mubr.f32.gmra.mrb[0].mxu0 %v4773
      %v4841 = vpop.f32.mrb[0].mxu0
      %v4842 = vadd.f32 %v4697, %v4841
      %v4843 = vpop.f32.mrb[0].mxu0
      %4844 = vdwg.mxu0
      %v4845 = vmul.f32 %v4769, 0.5
      %v4846 = vmul.f32 %v4842, 0.5
      %v4847 = vmul.f32 %v4769, 0.70710677
      %v4848 = vmul.f32 %v4842, 0.70710677
      %v4849 = verf.f32.pop %v4847
      %v4850 = verf.f32.pop %v4848
      %v4851 = vadd.f32 %v4849, 1.0
      %v4852 = vadd.f32 %v4850, 1.0
      %v4853 = vmul.f32 %v4845, %v4851
      %v4854 = vmul.f32 %v4846, %v4852
      %s4855 = scalar_lea.vmem %s12, 64
      %v4856 = vld [vmem:[%s4855] sm:$0xff]
      %v4857 = vld [vmem:[%s4855 + $0x8] sm:$0xff]
      %v4858 = vld [vmem:[%s4855 + $0x10] sm:$0xff]
      %v4859 = vld [vmem:[%s4855 + $0x18] sm:$0xff]
      %v4860 = vld [vmem:[%s4855 + $0x20] sm:$0xff]
      %v4861 = vld [vmem:[%s4855 + $0x28] sm:$0xff]
      %v4862 = vld [vmem:[%s4855 + $0x30] sm:$0xff]
      %v4863 = vld [vmem:[%s4855 + $0x38] sm:$0xff]
      %v4865 = vsel %vm2614, %v4853, 0
      %4867 = vmatprep.subr.mxu0 0.0
      %4868 = vmatpush1.msra.mxu0 %v4856
      %4869 = vmatprep.subr.mxu0 0.0
      %4870 = vmatpush1.msra.mxu0 %v4857
      %4871 = vmatprep.subr.mxu0 0.0
      %4872 = vmatpush1.msra.mxu0 %v4858
      %4873 = vmatprep.subr.mxu0 0.0
      %4874 = vmatpush1.msra.mxu0 %v4859
      %4875 = vmatprep.subr.mxu0 0.0
      %4876 = vmatpush1.msra.mxu0 %v4860
      %4877 = vmatprep.subr.mxu0 0.0
      %4878 = vmatpush1.msra.mxu0 %v4861
      %4879 = vmatprep.subr.mxu0 0.0
      %4880 = vmatpush1.msra.mxu0 %v4862
      %4881 = vmatprep.subr.mxu0 0.0
      %4882 = vmatpush1.msra.mxu0 %v4863
      %4883 = vmatprep.subr.mxu0 0.0
      %4884 = vmatpush1.msra.mxu0 0.0
      %4885 = vmatprep.subr.mxu0 0.0
      %4886 = vmatpush1.msra.mxu0 0.0
      %4887 = vmatprep.subr.mxu0 0.0
      %4888 = vmatpush1.msra.mxu0 0.0
      %4889 = vmatprep.subr.mxu0 0.0
      %4890 = vmatpush1.msra.mxu0 0.0
      %4891 = vmatprep.subr.mxu0 0.0
      %4892 = vmatpush1.msra.mxu0 0.0
      %4893 = vmatprep.subr.mxu0 0.0
      %4894 = vmatpush1.msra.mxu0 0.0
      %4895 = vmatprep.subr.mxu0 0.0
      %4896 = vmatpush1.msra.mxu0 0.0
      %4897 = vmatprep.subr.mxu0 0.0
      %4898 = vmatpush1.msra.mxu0 0.0
      %4899 = vmatprep.subr.mxu0 0.0
      %4900 = vmatpush1.msra.mxu0 0.0
      %4901 = vmatprep.subr.mxu0 0.0
      %4902 = vmatpush1.msra.mxu0 0.0
      %4903 = vmatprep.subr.mxu0 0.0
      %4904 = vmatpush1.msra.mxu0 0.0
      %4905 = vmatprep.subr.mxu0 0.0
      %4906 = vmatpush1.msra.mxu0 0.0
      %4907 = vmatprep.subr.mxu0 0.0
      %4908 = vmatpush1.msra.mxu0 0.0
      %4909 = vmatprep.subr.mxu0 0.0
      %4910 = vmatpush1.msra.mxu0 0.0
      %4911 = vmatprep.subr.mxu0 0.0
      %4912 = vmatpush1.msra.mxu0 0.0
      %4913 = vmatprep.subr.mxu0 0.0
      %4914 = vmatpush1.msra.mxu0 0.0
      %4915 = vmatprep.subr.mxu0 0.0
      %4916 = vmatpush1.msra.mxu0 0.0
      %4917 = vmatprep.subr.mxu0 0.0
      %4918 = vmatpush1.msra.mxu0 0.0
      %4919 = vmatprep.subr.mxu0 0.0
      %4920 = vmatpush1.msra.mxu0 0.0
      %4921 = vmatprep.subr.mxu0 0.0
      %4922 = vmatpush1.msra.mxu0 0.0
      %4923 = vmatprep.subr.mxu0 0.0
      %4924 = vmatpush1.msra.mxu0 0.0
      %4925 = vmatprep.subr.mxu0 0.0
      %4926 = vmatpush1.msra.mxu0 0.0
      %4927 = vmatprep.subr.mxu0 0.0
      %4928 = vmatpush1.msra.mxu0 0.0
      %4929 = vmatprep.subr.mxu0 0.0
      %4930 = vmatpush1.msra.mxu0 0.0
      %4931 = vmatprep.mubr.f32.mxu0 0.0
      %4932 = vmatmul.mubr.f32.gmra.mrb[0].mxu0 %v4865
      %v4933 = vpop.f32.mrb[0].mxu0
      %v4934 = vadd.f32 0.0, %v4933
      %v4935 = vpop.f32.mrb[0].mxu0
      %4936 = vdwg.mxu0
      %v4938 = vsel %vm2614, %v4854, 0
      %4940 = vmatprep.subr.mxu0 0.0
      %4941 = vmatpush1.msra.mxu0 %v4856
      %4942 = vmatprep.subr.mxu0 0.0
      %4943 = vmatpush1.msra.mxu0 %v4857
      %4944 = vmatprep.subr.mxu0 0.0
      %4945 = vmatpush1.msra.mxu0 %v4858
      %4946 = vmatprep.subr.mxu0 0.0
      %4947 = vmatpush1.msra.mxu0 %v4859
      %4948 = vmatprep.subr.mxu0 0.0
      %4949 = vmatpush1.msra.mxu0 %v4860
      %4950 = vmatprep.subr.mxu0 0.0
      %4951 = vmatpush1.msra.mxu0 %v4861
      %4952 = vmatprep.subr.mxu0 0.0
      %4953 = vmatpush1.msra.mxu0 %v4862
      %4954 = vmatprep.subr.mxu0 0.0
      %4955 = vmatpush1.msra.mxu0 %v4863
      %4956 = vmatprep.subr.mxu0 0.0
      %4957 = vmatpush1.msra.mxu0 0.0
      %4958 = vmatprep.subr.mxu0 0.0
      %4959 = vmatpush1.msra.mxu0 0.0
      %4960 = vmatprep.subr.mxu0 0.0
      %4961 = vmatpush1.msra.mxu0 0.0
      %4962 = vmatprep.subr.mxu0 0.0
      %4963 = vmatpush1.msra.mxu0 0.0
      %4964 = vmatprep.subr.mxu0 0.0
      %4965 = vmatpush1.msra.mxu0 0.0
      %4966 = vmatprep.subr.mxu0 0.0
      %4967 = vmatpush1.msra.mxu0 0.0
      %4968 = vmatprep.subr.mxu0 0.0
      %4969 = vmatpush1.msra.mxu0 0.0
      %4970 = vmatprep.subr.mxu0 0.0
      %4971 = vmatpush1.msra.mxu0 0.0
      %4972 = vmatprep.subr.mxu0 0.0
      %4973 = vmatpush1.msra.mxu0 0.0
      %4974 = vmatprep.subr.mxu0 0.0
      %4975 = vmatpush1.msra.mxu0 0.0
      %4976 = vmatprep.subr.mxu0 0.0
      %4977 = vmatpush1.msra.mxu0 0.0
      %4978 = vmatprep.subr.mxu0 0.0
      %4979 = vmatpush1.msra.mxu0 0.0
      %4980 = vmatprep.subr.mxu0 0.0
      %4981 = vmatpush1.msra.mxu0 0.0
      %4982 = vmatprep.subr.mxu0 0.0
      %4983 = vmatpush1.msra.mxu0 0.0
      %4984 = vmatprep.subr.mxu0 0.0
      %4985 = vmatpush1.msra.mxu0 0.0
      %4986 = vmatprep.subr.mxu0 0.0
      %4987 = vmatpush1.msra.mxu0 0.0
      %4988 = vmatprep.subr.mxu0 0.0
      %4989 = vmatpush1.msra.mxu0 0.0
      %4990 = vmatprep.subr.mxu0 0.0
      %4991 = vmatpush1.msra.mxu0 0.0
      %4992 = vmatprep.subr.mxu0 0.0
      %4993 = vmatpush1.msra.mxu0 0.0
      %4994 = vmatprep.subr.mxu0 0.0
      %4995 = vmatpush1.msra.mxu0 0.0
      %4996 = vmatprep.subr.mxu0 0.0
      %4997 = vmatpush1.msra.mxu0 0.0
      %4998 = vmatprep.subr.mxu0 0.0
      %4999 = vmatpush1.msra.mxu0 0.0
      %5000 = vmatprep.subr.mxu0 0.0
      %5001 = vmatpush1.msra.mxu0 0.0
      %5002 = vmatprep.subr.mxu0 0.0
      %5003 = vmatpush1.msra.mxu0 0.0
      %5004 = vmatprep.mubr.f32.mxu0 0.0
      %5005 = vmatmul.mubr.f32.gmra.mrb[0].mxu0 %v4938
      %v5006 = vpop.f32.mrb[0].mxu0
      %v5007 = vadd.f32 0.0, %v5006
      %v5008 = vpop.f32.mrb[0].mxu0
      %5009 = vdwg.mxu0
      %v5010 = vadd.f32 %v4640, %v4934
      %v5011 = vadd.f32 %v4641, %v5007
      %s5012 = scalar_lea.vmem %s13, 1
      %v5013 = vld [vmem:[%s5012] sm:$0x1]
      %v5015 = vlaneseq
      %v5016 = vshrl.u32 %v5015, 7
      %v5017 = vsub.s32 0, %v5016
      %v5018 = vrot.slane %v5013, %v5017
      %v5020 = vadd.f32 %v5010, %v5018
      %v5021 = vadd.f32 %v5011, %v5018
      %v5022 = vld [vmem:[%s14] sm:$0x1]
      %v5023 = vld [vmem:[%s15] sm:$0x1]
      %v5024 = vsel %vm529, %v5020, 0.0
      %5025 = vadd.xlane.f32.xlu0 %v5024
      %v5026 = vpop.xlane.xlu0 %5025
      %v5027 = vsel %vm529, %v5021, 0.0
      %5028 = vadd.xlane.f32.xlu0 %v5027
      %v5029 = vpop.xlane.xlu0 %5028
      %v5030 = vmul.f32 %v5026, %v536
      %v5031 = vmul.f32 %v5029, %v536
      %v5032 = vsub.f32 %v5020, %v5030
      %v5033 = vsub.f32 %v5021, %v5031
      %v5034 = vmul.f32 %v5032, %v5032
      %v5035 = vmul.f32 %v5033, %v5033
      %v5036 = vsel %vm529, %v5034, 0.0
      %5037 = vadd.xlane.f32.xlu0 %v5036
      %v5038 = vpop.xlane.xlu0 %5037
      %v5039 = vsel %vm529, %v5035, 0.0
      %5040 = vadd.xlane.f32.xlu0 %v5039
      %v5041 = vpop.xlane.xlu0 %5040
      %v5042 = vmul.f32 %v5038, %v536
      %v5043 = vmul.f32 %v5041, %v536
      %v5044 = vadd.f32 %v5042, 1e-05
      %v5045 = vadd.f32 %v5043, 1e-05
      %v5046 = vrsqrt.pop %v5044
      %v5047 = vrsqrt.pop %v5045
      %v5048 = vmul.f32 %v5032, %v5046
      %v5049 = vmul.f32 %v5033, %v5047
      %v5051 = vlaneseq
      %v5052 = vshrl.u32 %v5051, 7
      %v5053 = vsub.s32 0, %v5052
      %v5054 = vrot.slane %v5022, %v5053
      %v5056 = vmul.f32 %v5048, %v5054
      %v5057 = vmul.f32 %v5049, %v5054
      %v5059 = vlaneseq
      %v5060 = vshrl.u32 %v5059, 7
      %v5061 = vsub.s32 0, %v5060
      %v5062 = vrot.slane %v5023, %v5061
      %v5064 = vadd.f32 %v5056, %v5062
      %v5065 = vadd.f32 %v5057, %v5062
      %5066 = vst.msk [vmem:[%s523] sm:$0x1f] %vm529, %v5064
      %5067 = vst.msk [vmem:[%s523 + $0x8] sm:$0x1f] %vm529, %v5065
      %s5068 = smul.u32 2, %s27
      %p5069 = scmp.lt.s32.totalorder %s5068, 3
      %s5070 = scalar_select %p5069, %s5068, 3
      %s5071 = smul.addr %s5070, 8
      %s5072 = scalar_lea.vmem %s16, %s5071
      // Predicated region
      $region85: #{_lambda_.2} parent=83 // pred_check
        %p5073 = pneg %p386
      $region86: #{_lambda_.2} parent=83 // pred_check_branch
        %5075 = sbr.rel (%p5073) target = $region88
      $region87: #{_lambda_.2} parent=83 // pred_region
        %s5076 = smul.u32 2, %s27
      $region88: #{_lambda_.2} parent=83 // pred_fallthru
        _
    $region84: #{_lambda_.2} parent=5 // pred_fallthru
      _
    %p5077 = scmp.le.s32.totalorder 2, %s22
    // Predicated region
    $region89: #{_lambda_.2} parent=5 // pred_check
      %p5078 = pneg %p5077
    $region90: #{_lambda_.2} parent=5 // pred_check_branch
      %5080 = sbr.rel (%p5078) target = $region92
    $region91: #{_lambda_.2} parent=5 // pred_region
      %s5081 = ssub.s32 %s22, 2
      // Predicated region
      $region93: #{_lambda_.2} parent=91 // pred_check
        %p5082 = pneg %p392
      $region94: #{_lambda_.2} parent=91 // pred_check_branch
        %5084 = sbr.rel (%p5082) target = $region96
      $region95: #{_lambda_.2} parent=91 // pred_region
        %s5085 = smul.u32 2, %s28
        %p5086 = scmp.lt.s32.totalorder %s5085, 3
        %s5087 = scalar_select %p5086, %s5085, 3
        %s5088 = smul.addr %s5087, 8
        %s5089 = scalar_lea.vmem %s16, %s5088
      $region96: #{_lambda_.2} parent=91 // pred_fallthru
        _
    $region92: #{_lambda_.2} parent=5 // pred_fallthru
      _
  $region6: #{_lambda_.2} parent=0 // loop_footer
    %s26 = sadd.s32 1, %s22
  $region7: #{_lambda_.2} parent=0 // loop_footer_branch
    %21 = sbr.rel target = $region3
  $region8: #{_lambda_.2} parent=0 // loop_exit
    _

</llo_original>
